<compile_context>
chip_gen: v5e
topology: v5e:2x2
jax: 0.10.0
libtpu: 0.0.40
codegen_flags: <defaults>
</compile_context>

<pallas_src>
import functools

import jax
import jax.numpy as jnp
from jax import lax
from jax.experimental import pallas as pl
from jax.experimental.pallas import tpu as pltpu

K = 3  # 3x3 conv, padding=0, stride=1


def _conv3x3_bn_relu_kernel(x_ref, w_ref, scale_ref, bias_ref, o_ref):
    """3x3 valid conv + folded-BN affine + ReLU for one (batch, row-tile) step.

    x_ref:     (1, H, W, Cin)      full image for this batch element (VMEM,
                                   resident across row tiles)
    w_ref:     (K, K*Cin, Cout)    kw-folded weights (compute dtype)
    scale_ref: (1, Cout) f32       gamma / sqrt(var + eps)
    bias_ref:  (1, Cout) f32       (conv_bias - mean) * scale + beta
    o_ref:     (1, TH, Wo, Cout)   output row tile
    """
    th, wo, cout = o_ref.shape[1], o_ref.shape[2], o_ref.shape[3]
    cin = x_ref.shape[3]

    j = pl.program_id(1)
    row0 = j * th  # first output row of this row tile

    # One large MXU matmul per kh tap, accumulated in f32.
    acc = jnp.zeros((th * wo, cout), jnp.float32)
    for kh in range(K):
        slab = x_ref[0, pl.ds(row0 + kh, th)]                       # (TH, W, Cin)
        patch = jnp.concatenate(                                     # (TH, Wo, K*Cin)
            [slab[:, kw:kw + wo, :] for kw in range(K)], axis=-1)
        acc = acc + jnp.dot(patch.reshape(th * wo, K * cin), w_ref[kh],
                            preferred_element_type=jnp.float32)

    # f32 epilogue (scale/bias read once, broadcast over rows), single store.
    y = jnp.maximum(acc * scale_ref[...] + bias_ref[...], 0.0)
    o_ref[0] = y.reshape(th, wo, cout).astype(o_ref.dtype)


def _row_tile(ho, wo, max_m=1024):
    """Largest divisor t of ho such that the matmul M = t*wo stays <= max_m."""
    best = 1
    for t in range(1, ho + 1):
        if ho % t == 0 and t * wo <= max_m:
            best = t
    return best


def conv3x3_bn_relu(x_nhwc, w_kkio, scale, bias, *, compute_dtype=jnp.bfloat16):
    """x_nhwc: (B,H,W,Cin); w_kkio: (K,K,Cin,Cout); scale/bias: (Cout,)."""
    b, h, w, cin = x_nhwc.shape
    cout = w_kkio.shape[-1]
    ho, wo = h - (K - 1), w - (K - 1)
    th = _row_tile(ho, wo)
    nrt = ho // th

    x_c = x_nhwc.astype(compute_dtype)
    w_c = w_kkio.reshape(K, K * cin, cout).astype(compute_dtype)  # kw folded into contraction
    scale2 = scale.reshape(1, cout).astype(jnp.float32)
    bias2 = bias.reshape(1, cout).astype(jnp.float32)

    itemsize = jnp.dtype(compute_dtype).itemsize
    cost = pl.CostEstimate(
        flops=2 * b * ho * wo * K * K * cin * cout,
        transcendentals=0,
        bytes_accessed=(b * h * w * cin + K * K * cin * cout
                        + b * ho * wo * cout) * itemsize + 2 * cout * 4,
    )

    return pl.pallas_call(
        _conv3x3_bn_relu_kernel,
        out_shape=jax.ShapeDtypeStruct((b, ho, wo, cout), compute_dtype),
        grid_spec=pltpu.PrefetchScalarGridSpec(
            num_scalar_prefetch=0,
            grid=(b, nrt),
            in_specs=[
                pl.BlockSpec((1, h, w, cin), lambda i, j: (i, 0, 0, 0)),
                pl.BlockSpec((K, K * cin, cout), lambda i, j: (0, 0, 0)),
                pl.BlockSpec((1, cout), lambda i, j: (0, 0)),
                pl.BlockSpec((1, cout), lambda i, j: (0, 0)),
            ],
            out_specs=pl.BlockSpec((1, th, wo, cout), lambda i, j: (i, j, 0, 0)),
        ),
        compiler_params=pltpu.CompilerParams(
            dimension_semantics=("parallel", "parallel")),
        cost_estimate=cost,
    )(x_c, w_c, scale2, bias2)


def _fold_bn(conv_bias, gamma, beta, mean, var, eps=1e-5):
    scale = gamma / jnp.sqrt(var + eps)
    bias = (conv_bias - mean) * scale + beta
    return scale, bias


def _init_block_params(key, cin, cout):
    kw, kb, kg, kbe, km, kv = jax.random.split(key, 6)
    return {
        # PyTorch conv weight layout: (Cout, Cin, KH, KW)
        "w": 0.05 * jax.random.normal(kw, (cout, cin, K, K), jnp.float32),
        "b": 0.05 * jax.random.normal(kb, (cout,), jnp.float32),
        "gamma": 1.0 + 0.1 * jax.random.normal(kg, (cout,), jnp.float32),
        "beta": 0.1 * jax.random.normal(kbe, (cout,), jnp.float32),
        "mean": 0.1 * jax.random.normal(km, (cout,), jnp.float32),
        "var": 1.0 + 0.1 * jnp.abs(jax.random.normal(kv, (cout,), jnp.float32)),
    }


@functools.partial(jax.jit, static_argnames=("compute_dtype",))
def branch3_forward(x_nchw, params_list, compute_dtype=jnp.bfloat16):
    """Branch3.forward: three CNNBlocks (conv3x3 + BN + ReLU) then final ReLU.

    x_nchw: (B, 128, H, W) float32. Returns (B, 256, H-6, W-6) float32.
    """
    x = jnp.transpose(x_nchw, (0, 2, 3, 1))  # NCHW -> NHWC (once at the boundary)
    for p in params_list:
        w_kkio = jnp.transpose(p["w"], (2, 3, 1, 0))  # (KH, KW, Cin, Cout)
        scale, bias = _fold_bn(p["b"], p["gamma"], p["beta"], p["mean"], p["var"])
        x = conv3x3_bn_relu(x, w_kkio, scale, bias, compute_dtype=compute_dtype)
    x = jnp.maximum(x, 0.0).astype(jnp.float32)  # outer F.relu (numerical no-op)
    return jnp.transpose(x, (0, 3, 1, 2))        # NHWC -> NCHW


def _reference_forward(x_nchw, params_list, eps=1e-5):
    """Plain-JAX reference (eval-mode BN), for correctness checking."""
    x = x_nchw
    for p in params_list:
        y = lax.conv_general_dilated(
            x, p["w"], window_strides=(1, 1), padding="VALID",
            dimension_numbers=("NCHW", "OIHW", "NCHW"))
        y = y + p["b"][None, :, None, None]
        scale = p["gamma"] / jnp.sqrt(p["var"] + eps)
        y = (y - p["mean"][None, :, None, None]) * scale[None, :, None, None] \
            + p["beta"][None, :, None, None]
        x = jnp.maximum(y, 0.0)
    return jnp.maximum(x, 0.0)


if __name__ == "__main__":
    key = jax.random.PRNGKey(0)
    kx, k1, k2, k3 = jax.random.split(key, 4)

    # Small but channel-faithful shapes: Branch3 requires 128 input channels.
    B, C_IN, H, W = 2, 128, 12, 12
    x = jax.random.normal(kx, (B, C_IN, H, W), jnp.float32)

    params = [
        _init_block_params(k1, 128, 256),
        _init_block_params(k2, 256, 256),
        _init_block_params(k3, 256, 256),
    ]

    ref = _reference_forward(x, params)

    # 1) Exact-semantics check: f32 MXU inputs vs plain-JAX reference.
    out_f32 = jax.block_until_ready(
        branch3_forward(x, params, compute_dtype=jnp.float32))
    assert out_f32.shape == (B, 256, H - 6, W - 6), out_f32.shape
    assert jnp.allclose(out_f32, ref, rtol=2e-3, atol=2e-3), \
        float(jnp.max(jnp.abs(out_f32 - ref)))

    # 2) Fast path: bf16 MXU inputs/weights, f32 accumulation + f32 epilogue.
    #    Tolerance reflects three stacked bf16 conv layers vs the f32 reference
    #    (output dynamic range here is ~20, so atol is <1% of range).
    out = jax.block_until_ready(branch3_forward(x, params))
    assert out.shape == (B, 256, H - 6, W - 6), out.shape
    assert jnp.allclose(out, ref, rtol=5e-2, atol=1.5e-1), \
        float(jnp.max(jnp.abs(out - ref)))

    print("KERNEL_OK")
</pallas_src>

<mosaic_0001>
module attributes {stable_mosaic.version = 11 : i64} {
  func.func @_conv3x3_bn_relu_kernel(%arg0: i32, %arg1: i32, %arg2: memref<1x12x12x128xf32, #tpu.memory_space<vmem>>, %arg3: memref<3x384x256xf32, #tpu.memory_space<vmem>>, %arg4: memref<1x256xf32, #tpu.memory_space<vmem>>, %arg5: memref<1x256xf32, #tpu.memory_space<vmem>>, %arg6: memref<1x10x10x256xf32, #tpu.memory_space<vmem>>) attributes {dimension_semantics = [#tpu.dimension_semantics<parallel>, #tpu.dimension_semantics<parallel>], iteration_bounds = array<i64: 2, 1>, scalar_prefetch = 0 : i64, scratch_operands = 0 : i64, tpu.core_type = #tpu.core_type<tc>, window_params = [{transform_indices = @transform_0, window_bounds = array<i64: 1, 12, 12, 128>}, {pipeline_mode = #tpu.pipeline_mode<synchronous>, transform_indices = @transform_1, window_bounds = array<i64: 3, 384, 256>}, {pipeline_mode = #tpu.pipeline_mode<synchronous>, transform_indices = @transform_2, window_bounds = array<i64: 1, 256>}, {pipeline_mode = #tpu.pipeline_mode<synchronous>, transform_indices = @transform_3, window_bounds = array<i64: 1, 256>}, {transform_indices = @transform_4, window_bounds = array<i64: 1, 10, 10, 256>}]} {
    %c10_i32 = arith.constant 10 : i32
    %0 = arith.muli %arg1, %c10_i32 : i32
    %cst = arith.constant 0.000000e+00 : f32
    %1 = vector.broadcast %cst : f32 to vector<100x256xf32>
    %c0_i32 = arith.constant 0 : i32
    %2 = arith.addi %0, %c0_i32 : i32
    %c0 = arith.constant 0 : index
    %3 = arith.index_cast %2 : i32 to index
    %c0_0 = arith.constant 0 : index
    %c0_1 = arith.constant 0 : index
    %4 = vector.load %arg2[%c0, %3, %c0_0, %c0_1] : memref<1x12x12x128xf32, #tpu.memory_space<vmem>>, vector<1x10x12x128xf32>
    %5 = vector.shape_cast %4 : vector<1x10x12x128xf32> to vector<10x12x128xf32>
    %6 = vector.extract_strided_slice %5 {offsets = [0, 0, 0], sizes = [10, 10, 128], strides = [1, 1, 1]} : vector<10x12x128xf32> to vector<10x10x128xf32>
    %7 = vector.extract_strided_slice %5 {offsets = [0, 1, 0], sizes = [10, 10, 128], strides = [1, 1, 1]} : vector<10x12x128xf32> to vector<10x10x128xf32>
    %8 = vector.extract_strided_slice %5 {offsets = [0, 2, 0], sizes = [10, 10, 128], strides = [1, 1, 1]} : vector<10x12x128xf32> to vector<10x10x128xf32>
    %9 = tpu.concatenate %6, %7, %8 in 2 : vector<10x10x128xf32>, vector<10x10x128xf32>, vector<10x10x128xf32> -> vector<10x10x384xf32>
    %10 = vector.shape_cast %9 : vector<10x10x384xf32> to vector<100x384xf32>
    %c0_2 = arith.constant 0 : index
    %c0_3 = arith.constant 0 : index
    %c0_4 = arith.constant 0 : index
    %11 = vector.load %arg3[%c0_2, %c0_3, %c0_4] : memref<3x384x256xf32, #tpu.memory_space<vmem>>, vector<1x384x256xf32>
    %12 = vector.shape_cast %11 : vector<1x384x256xf32> to vector<384x256xf32>
    %cst_5 = arith.constant dense<0.000000e+00> : vector<100x256xf32>
    %13 = tpu.matmul %10, %12, %cst_5 {dimension_numbers = #tpu.dot_dimension_numbers<[1], [0], [0], [1], [0, 0, 1, 1], [], []>} : vector<100x384xf32>, vector<384x256xf32>, vector<100x256xf32> -> vector<100x256xf32>
    %14 = arith.addf %1, %13 : vector<100x256xf32>
    %c1_i32 = arith.constant 1 : i32
    %15 = arith.addi %0, %c1_i32 : i32
    %c0_6 = arith.constant 0 : index
    %16 = arith.index_cast %15 : i32 to index
    %c0_7 = arith.constant 0 : index
    %c0_8 = arith.constant 0 : index
    %17 = vector.load %arg2[%c0_6, %16, %c0_7, %c0_8] : memref<1x12x12x128xf32, #tpu.memory_space<vmem>>, vector<1x10x12x128xf32>
    %18 = vector.shape_cast %17 : vector<1x10x12x128xf32> to vector<10x12x128xf32>
    %19 = vector.extract_strided_slice %18 {offsets = [0, 0, 0], sizes = [10, 10, 128], strides = [1, 1, 1]} : vector<10x12x128xf32> to vector<10x10x128xf32>
    %20 = vector.extract_strided_slice %18 {offsets = [0, 1, 0], sizes = [10, 10, 128], strides = [1, 1, 1]} : vector<10x12x128xf32> to vector<10x10x128xf32>
    %21 = vector.extract_strided_slice %18 {offsets = [0, 2, 0], sizes = [10, 10, 128], strides = [1, 1, 1]} : vector<10x12x128xf32> to vector<10x10x128xf32>
    %22 = tpu.concatenate %19, %20, %21 in 2 : vector<10x10x128xf32>, vector<10x10x128xf32>, vector<10x10x128xf32> -> vector<10x10x384xf32>
    %23 = vector.shape_cast %22 : vector<10x10x384xf32> to vector<100x384xf32>
    %c1 = arith.constant 1 : index
    %c0_9 = arith.constant 0 : index
    %c0_10 = arith.constant 0 : index
    %24 = vector.load %arg3[%c1, %c0_9, %c0_10] : memref<3x384x256xf32, #tpu.memory_space<vmem>>, vector<1x384x256xf32>
    %25 = vector.shape_cast %24 : vector<1x384x256xf32> to vector<384x256xf32>
    %cst_11 = arith.constant dense<0.000000e+00> : vector<100x256xf32>
    %26 = tpu.matmul %23, %25, %cst_11 {dimension_numbers = #tpu.dot_dimension_numbers<[1], [0], [0], [1], [0, 0, 1, 1], [], []>} : vector<100x384xf32>, vector<384x256xf32>, vector<100x256xf32> -> vector<100x256xf32>
    %27 = arith.addf %14, %26 : vector<100x256xf32>
    %c2_i32 = arith.constant 2 : i32
    %28 = arith.addi %0, %c2_i32 : i32
    %c0_12 = arith.constant 0 : index
    %29 = arith.index_cast %28 : i32 to index
    %c0_13 = arith.constant 0 : index
    %c0_14 = arith.constant 0 : index
    %30 = vector.load %arg2[%c0_12, %29, %c0_13, %c0_14] : memref<1x12x12x128xf32, #tpu.memory_space<vmem>>, vector<1x10x12x128xf32>
    %31 = vector.shape_cast %30 : vector<1x10x12x128xf32> to vector<10x12x128xf32>
    %32 = vector.extract_strided_slice %31 {offsets = [0, 0, 0], sizes = [10, 10, 128], strides = [1, 1, 1]} : vector<10x12x128xf32> to vector<10x10x128xf32>
    %33 = vector.extract_strided_slice %31 {offsets = [0, 1, 0], sizes = [10, 10, 128], strides = [1, 1, 1]} : vector<10x12x128xf32> to vector<10x10x128xf32>
    %34 = vector.extract_strided_slice %31 {offsets = [0, 2, 0], sizes = [10, 10, 128], strides = [1, 1, 1]} : vector<10x12x128xf32> to vector<10x10x128xf32>
    %35 = tpu.concatenate %32, %33, %34 in 2 : vector<10x10x128xf32>, vector<10x10x128xf32>, vector<10x10x128xf32> -> vector<10x10x384xf32>
    %36 = vector.shape_cast %35 : vector<10x10x384xf32> to vector<100x384xf32>
    %c2 = arith.constant 2 : index
    %c0_15 = arith.constant 0 : index
    %c0_16 = arith.constant 0 : index
    %37 = vector.load %arg3[%c2, %c0_15, %c0_16] : memref<3x384x256xf32, #tpu.memory_space<vmem>>, vector<1x384x256xf32>
    %38 = vector.shape_cast %37 : vector<1x384x256xf32> to vector<384x256xf32>
    %cst_17 = arith.constant dense<0.000000e+00> : vector<100x256xf32>
    %39 = tpu.matmul %36, %38, %cst_17 {dimension_numbers = #tpu.dot_dimension_numbers<[1], [0], [0], [1], [0, 0, 1, 1], [], []>} : vector<100x384xf32>, vector<384x256xf32>, vector<100x256xf32> -> vector<100x256xf32>
    %40 = arith.addf %27, %39 : vector<100x256xf32>
    %c0_18 = arith.constant 0 : index
    %c0_19 = arith.constant 0 : index
    %41 = vector.load %arg4[%c0_18, %c0_19] : memref<1x256xf32, #tpu.memory_space<vmem>>, vector<1x256xf32>
    %42 = vector.broadcast %41 : vector<1x256xf32> to vector<100x256xf32>
    %43 = arith.mulf %40, %42 : vector<100x256xf32>
    %c0_20 = arith.constant 0 : index
    %c0_21 = arith.constant 0 : index
    %44 = vector.load %arg5[%c0_20, %c0_21] : memref<1x256xf32, #tpu.memory_space<vmem>>, vector<1x256xf32>
    %45 = vector.broadcast %44 : vector<1x256xf32> to vector<100x256xf32>
    %46 = arith.addf %43, %45 : vector<100x256xf32>
    %cst_22 = arith.constant 0.000000e+00 : f32
    %47 = vector.broadcast %cst_22 : f32 to vector<100x256xf32>
    %48 = arith.maximumf %46, %47 : vector<100x256xf32>
    %49 = vector.shape_cast %48 : vector<100x256xf32> to vector<10x10x256xf32>
    %c0_23 = arith.constant 0 : index
    %c0_24 = arith.constant 0 : index
    %c0_25 = arith.constant 0 : index
    %c0_26 = arith.constant 0 : index
    %50 = vector.load %arg6[%c0_23, %c0_24, %c0_25, %c0_26] : memref<1x10x10x256xf32, #tpu.memory_space<vmem>>, vector<1x10x10x256xf32>
    %51 = vector.shape_cast %50 : vector<1x10x10x256xf32> to vector<10x10x256xf32>
    %52 = vector.shape_cast %49 : vector<10x10x256xf32> to vector<1x10x10x256xf32>
    tpu.vector_store %arg6[%c0_23, %c0_24, %c0_25, %c0_26], %52 {strides = array<i32>} : memref<1x10x10x256xf32, #tpu.memory_space<vmem>>, vector<1x10x10x256xf32>,
    return
  }
  func.func @transform_0(%arg0: i32, %arg1: i32) -> (i32, i32, i32, i32) {
    %c0_i32 = arith.constant 0 : i32
    %c0_i32_0 = arith.constant 0 : i32
    %c0_i32_1 = arith.constant 0 : i32
    %c0_i32_2 = arith.constant 0 : i32
    return %arg0, %c0_i32, %c0_i32_0, %c0_i32_1 : i32, i32, i32, i32
  }
  func.func @transform_1(%arg0: i32, %arg1: i32) -> (i32, i32, i32) {
    %c0_i32 = arith.constant 0 : i32
    %c0_i32_0 = arith.constant 0 : i32
    %c0_i32_1 = arith.constant 0 : i32
    %c0_i32_2 = arith.constant 0 : i32
    return %c0_i32, %c0_i32_0, %c0_i32_1 : i32, i32, i32
  }
  func.func @transform_2(%arg0: i32, %arg1: i32) -> (i32, i32) {
    %c0_i32 = arith.constant 0 : i32
    %c0_i32_0 = arith.constant 0 : i32
    %c0_i32_1 = arith.constant 0 : i32
    return %c0_i32, %c0_i32_0 : i32, i32
  }
  func.func @transform_3(%arg0: i32, %arg1: i32) -> (i32, i32) {
    %c0_i32 = arith.constant 0 : i32
    %c0_i32_0 = arith.constant 0 : i32
    %c0_i32_1 = arith.constant 0 : i32
    return %c0_i32, %c0_i32_0 : i32, i32
  }
  func.func @transform_4(%arg0: i32, %arg1: i32) -> (i32, i32, i32, i32) {
    %c0_i32 = arith.constant 0 : i32
    %c0_i32_0 = arith.constant 0 : i32
    %c0_i32_1 = arith.constant 0 : i32
    return %arg0, %arg1, %c0_i32, %c0_i32_0 : i32, i32, i32, i32
  }
}

module attributes {stable_mosaic.version = 11 : i64} {
  func.func @_conv3x3_bn_relu_kernel(%arg0: i32, %arg1: i32, %arg2: memref<1x10x10x256xf32, #tpu.memory_space<vmem>>, %arg3: memref<3x768x256xf32, #tpu.memory_space<vmem>>, %arg4: memref<1x256xf32, #tpu.memory_space<vmem>>, %arg5: memref<1x256xf32, #tpu.memory_space<vmem>>, %arg6: memref<1x8x8x256xf32, #tpu.memory_space<vmem>>) attributes {dimension_semantics = [#tpu.dimension_semantics<parallel>, #tpu.dimension_semantics<parallel>], iteration_bounds = array<i64: 2, 1>, scalar_prefetch = 0 : i64, scratch_operands = 0 : i64, tpu.core_type = #tpu.core_type<tc>, window_params = [{transform_indices = @transform_0, window_bounds = array<i64: 1, 10, 10, 256>}, {pipeline_mode = #tpu.pipeline_mode<synchronous>, transform_indices = @transform_1, window_bounds = array<i64: 3, 768, 256>}, {pipeline_mode = #tpu.pipeline_mode<synchronous>, transform_indices = @transform_2, window_bounds = array<i64: 1, 256>}, {pipeline_mode = #tpu.pipeline_mode<synchronous>, transform_indices = @transform_3, window_bounds = array<i64: 1, 256>}, {transform_indices = @transform_4, window_bounds = array<i64: 1, 8, 8, 256>}]} {
    %c8_i32 = arith.constant 8 : i32
    %0 = arith.muli %arg1, %c8_i32 : i32
    %cst = arith.constant 0.000000e+00 : f32
    %1 = vector.broadcast %cst : f32 to vector<64x256xf32>
    %c0_i32 = arith.constant 0 : i32
    %2 = arith.addi %0, %c0_i32 : i32
    %c0 = arith.constant 0 : index
    %3 = arith.index_cast %2 : i32 to index
    %c0_0 = arith.constant 0 : index
    %c0_1 = arith.constant 0 : index
    %4 = vector.load %arg2[%c0, %3, %c0_0, %c0_1] : memref<1x10x10x256xf32, #tpu.memory_space<vmem>>, vector<1x8x10x256xf32>
    %5 = vector.shape_cast %4 : vector<1x8x10x256xf32> to vector<8x10x256xf32>
    %6 = vector.extract_strided_slice %5 {offsets = [0, 0, 0], sizes = [8, 8, 256], strides = [1, 1, 1]} : vector<8x10x256xf32> to vector<8x8x256xf32>
    %7 = vector.extract_strided_slice %5 {offsets = [0, 1, 0], sizes = [8, 8, 256], strides = [1, 1, 1]} : vector<8x10x256xf32> to vector<8x8x256xf32>
    %8 = vector.extract_strided_slice %5 {offsets = [0, 2, 0], sizes = [8, 8, 256], strides = [1, 1, 1]} : vector<8x10x256xf32> to vector<8x8x256xf32>
    %9 = tpu.concatenate %6, %7, %8 in 2 : vector<8x8x256xf32>, vector<8x8x256xf32>, vector<8x8x256xf32> -> vector<8x8x768xf32>
    %10 = vector.shape_cast %9 : vector<8x8x768xf32> to vector<64x768xf32>
    %c0_2 = arith.constant 0 : index
    %c0_3 = arith.constant 0 : index
    %c0_4 = arith.constant 0 : index
    %11 = vector.load %arg3[%c0_2, %c0_3, %c0_4] : memref<3x768x256xf32, #tpu.memory_space<vmem>>, vector<1x768x256xf32>
    %12 = vector.shape_cast %11 : vector<1x768x256xf32> to vector<768x256xf32>
    %cst_5 = arith.constant dense<0.000000e+00> : vector<64x256xf32>
    %13 = tpu.matmul %10, %12, %cst_5 {dimension_numbers = #tpu.dot_dimension_numbers<[1], [0], [0], [1], [0, 0, 1, 1], [], []>} : vector<64x768xf32>, vector<768x256xf32>, vector<64x256xf32> -> vector<64x256xf32>
    %14 = arith.addf %1, %13 : vector<64x256xf32>
    %c1_i32 = arith.constant 1 : i32
    %15 = arith.addi %0, %c1_i32 : i32
    %c0_6 = arith.constant 0 : index
    %16 = arith.index_cast %15 : i32 to index
    %c0_7 = arith.constant 0 : index
    %c0_8 = arith.constant 0 : index
    %17 = vector.load %arg2[%c0_6, %16, %c0_7, %c0_8] : memref<1x10x10x256xf32, #tpu.memory_space<vmem>>, vector<1x8x10x256xf32>
    %18 = vector.shape_cast %17 : vector<1x8x10x256xf32> to vector<8x10x256xf32>
    %19 = vector.extract_strided_slice %18 {offsets = [0, 0, 0], sizes = [8, 8, 256], strides = [1, 1, 1]} : vector<8x10x256xf32> to vector<8x8x256xf32>
    %20 = vector.extract_strided_slice %18 {offsets = [0, 1, 0], sizes = [8, 8, 256], strides = [1, 1, 1]} : vector<8x10x256xf32> to vector<8x8x256xf32>
    %21 = vector.extract_strided_slice %18 {offsets = [0, 2, 0], sizes = [8, 8, 256], strides = [1, 1, 1]} : vector<8x10x256xf32> to vector<8x8x256xf32>
    %22 = tpu.concatenate %19, %20, %21 in 2 : vector<8x8x256xf32>, vector<8x8x256xf32>, vector<8x8x256xf32> -> vector<8x8x768xf32>
    %23 = vector.shape_cast %22 : vector<8x8x768xf32> to vector<64x768xf32>
    %c1 = arith.constant 1 : index
    %c0_9 = arith.constant 0 : index
    %c0_10 = arith.constant 0 : index
    %24 = vector.load %arg3[%c1, %c0_9, %c0_10] : memref<3x768x256xf32, #tpu.memory_space<vmem>>, vector<1x768x256xf32>
    %25 = vector.shape_cast %24 : vector<1x768x256xf32> to vector<768x256xf32>
    %cst_11 = arith.constant dense<0.000000e+00> : vector<64x256xf32>
    %26 = tpu.matmul %23, %25, %cst_11 {dimension_numbers = #tpu.dot_dimension_numbers<[1], [0], [0], [1], [0, 0, 1, 1], [], []>} : vector<64x768xf32>, vector<768x256xf32>, vector<64x256xf32> -> vector<64x256xf32>
    %27 = arith.addf %14, %26 : vector<64x256xf32>
    %c2_i32 = arith.constant 2 : i32
    %28 = arith.addi %0, %c2_i32 : i32
    %c0_12 = arith.constant 0 : index
    %29 = arith.index_cast %28 : i32 to index
    %c0_13 = arith.constant 0 : index
    %c0_14 = arith.constant 0 : index
    %30 = vector.load %arg2[%c0_12, %29, %c0_13, %c0_14] : memref<1x10x10x256xf32, #tpu.memory_space<vmem>>, vector<1x8x10x256xf32>
    %31 = vector.shape_cast %30 : vector<1x8x10x256xf32> to vector<8x10x256xf32>
    %32 = vector.extract_strided_slice %31 {offsets = [0, 0, 0], sizes = [8, 8, 256], strides = [1, 1, 1]} : vector<8x10x256xf32> to vector<8x8x256xf32>
    %33 = vector.extract_strided_slice %31 {offsets = [0, 1, 0], sizes = [8, 8, 256], strides = [1, 1, 1]} : vector<8x10x256xf32> to vector<8x8x256xf32>
    %34 = vector.extract_strided_slice %31 {offsets = [0, 2, 0], sizes = [8, 8, 256], strides = [1, 1, 1]} : vector<8x10x256xf32> to vector<8x8x256xf32>
    %35 = tpu.concatenate %32, %33, %34 in 2 : vector<8x8x256xf32>, vector<8x8x256xf32>, vector<8x8x256xf32> -> vector<8x8x768xf32>
    %36 = vector.shape_cast %35 : vector<8x8x768xf32> to vector<64x768xf32>
    %c2 = arith.constant 2 : index
    %c0_15 = arith.constant 0 : index
    %c0_16 = arith.constant 0 : index
    %37 = vector.load %arg3[%c2, %c0_15, %c0_16] : memref<3x768x256xf32, #tpu.memory_space<vmem>>, vector<1x768x256xf32>
    %38 = vector.shape_cast %37 : vector<1x768x256xf32> to vector<768x256xf32>
    %cst_17 = arith.constant dense<0.000000e+00> : vector<64x256xf32>
    %39 = tpu.matmul %36, %38, %cst_17 {dimension_numbers = #tpu.dot_dimension_numbers<[1], [0], [0], [1], [0, 0, 1, 1], [], []>} : vector<64x768xf32>, vector<768x256xf32>, vector<64x256xf32> -> vector<64x256xf32>
    %40 = arith.addf %27, %39 : vector<64x256xf32>
    %c0_18 = arith.constant 0 : index
    %c0_19 = arith.constant 0 : index
    %41 = vector.load %arg4[%c0_18, %c0_19] : memref<1x256xf32, #tpu.memory_space<vmem>>, vector<1x256xf32>
    %42 = vector.broadcast %41 : vector<1x256xf32> to vector<64x256xf32>
    %43 = arith.mulf %40, %42 : vector<64x256xf32>
    %c0_20 = arith.constant 0 : index
    %c0_21 = arith.constant 0 : index
    %44 = vector.load %arg5[%c0_20, %c0_21] : memref<1x256xf32, #tpu.memory_space<vmem>>, vector<1x256xf32>
    %45 = vector.broadcast %44 : vector<1x256xf32> to vector<64x256xf32>
    %46 = arith.addf %43, %45 : vector<64x256xf32>
    %cst_22 = arith.constant 0.000000e+00 : f32
    %47 = vector.broadcast %cst_22 : f32 to vector<64x256xf32>
    %48 = arith.maximumf %46, %47 : vector<64x256xf32>
    %49 = vector.shape_cast %48 : vector<64x256xf32> to vector<8x8x256xf32>
    %c0_23 = arith.constant 0 : index
    %c0_24 = arith.constant 0 : index
    %c0_25 = arith.constant 0 : index
    %c0_26 = arith.constant 0 : index
    %50 = vector.load %arg6[%c0_23, %c0_24, %c0_25, %c0_26] : memref<1x8x8x256xf32, #tpu.memory_space<vmem>>, vector<1x8x8x256xf32>
    %51 = vector.shape_cast %50 : vector<1x8x8x256xf32> to vector<8x8x256xf32>
    %52 = vector.shape_cast %49 : vector<8x8x256xf32> to vector<1x8x8x256xf32>
    tpu.vector_store %arg6[%c0_23, %c0_24, %c0_25, %c0_26], %52 {strides = array<i32>} : memref<1x8x8x256xf32, #tpu.memory_space<vmem>>, vector<1x8x8x256xf32>,
    return
  }
  func.func @transform_0(%arg0: i32, %arg1: i32) -> (i32, i32, i32, i32) {
    %c0_i32 = arith.constant 0 : i32
    %c0_i32_0 = arith.constant 0 : i32
    %c0_i32_1 = arith.constant 0 : i32
    %c0_i32_2 = arith.constant 0 : i32
    return %arg0, %c0_i32, %c0_i32_0, %c0_i32_1 : i32, i32, i32, i32
  }
  func.func @transform_1(%arg0: i32, %arg1: i32) -> (i32, i32, i32) {
    %c0_i32 = arith.constant 0 : i32
    %c0_i32_0 = arith.constant 0 : i32
    %c0_i32_1 = arith.constant 0 : i32
    %c0_i32_2 = arith.constant 0 : i32
    return %c0_i32, %c0_i32_0, %c0_i32_1 : i32, i32, i32
  }
  func.func @transform_2(%arg0: i32, %arg1: i32) -> (i32, i32) {
    %c0_i32 = arith.constant 0 : i32
    %c0_i32_0 = arith.constant 0 : i32
    %c0_i32_1 = arith.constant 0 : i32
    return %c0_i32, %c0_i32_0 : i32, i32
  }
  func.func @transform_3(%arg0: i32, %arg1: i32) -> (i32, i32) {
    %c0_i32 = arith.constant 0 : i32
    %c0_i32_0 = arith.constant 0 : i32
    %c0_i32_1 = arith.constant 0 : i32
    return %c0_i32, %c0_i32_0 : i32, i32
  }
  func.func @transform_4(%arg0: i32, %arg1: i32) -> (i32, i32, i32, i32) {
    %c0_i32 = arith.constant 0 : i32
    %c0_i32_0 = arith.constant 0 : i32
    %c0_i32_1 = arith.constant 0 : i32
    return %arg0, %arg1, %c0_i32, %c0_i32_0 : i32, i32, i32, i32
  }
}

module attributes {stable_mosaic.version = 11 : i64} {
  func.func @_conv3x3_bn_relu_kernel(%arg0: i32, %arg1: i32, %arg2: memref<1x8x8x256xf32, #tpu.memory_space<vmem>>, %arg3: memref<3x768x256xf32, #tpu.memory_space<vmem>>, %arg4: memref<1x256xf32, #tpu.memory_space<vmem>>, %arg5: memref<1x256xf32, #tpu.memory_space<vmem>>, %arg6: memref<1x6x6x256xf32, #tpu.memory_space<vmem>>) attributes {dimension_semantics = [#tpu.dimension_semantics<parallel>, #tpu.dimension_semantics<parallel>], iteration_bounds = array<i64: 2, 1>, scalar_prefetch = 0 : i64, scratch_operands = 0 : i64, tpu.core_type = #tpu.core_type<tc>, window_params = [{transform_indices = @transform_0, window_bounds = array<i64: 1, 8, 8, 256>}, {pipeline_mode = #tpu.pipeline_mode<synchronous>, transform_indices = @transform_1, window_bounds = array<i64: 3, 768, 256>}, {pipeline_mode = #tpu.pipeline_mode<synchronous>, transform_indices = @transform_2, window_bounds = array<i64: 1, 256>}, {pipeline_mode = #tpu.pipeline_mode<synchronous>, transform_indices = @transform_3, window_bounds = array<i64: 1, 256>}, {transform_indices = @transform_4, window_bounds = array<i64: 1, 6, 6, 256>}]} {
    %c6_i32 = arith.constant 6 : i32
    %0 = arith.muli %arg1, %c6_i32 : i32
    %cst = arith.constant 0.000000e+00 : f32
    %1 = vector.broadcast %cst : f32 to vector<36x256xf32>
    %c0_i32 = arith.constant 0 : i32
    %2 = arith.addi %0, %c0_i32 : i32
    %c0 = arith.constant 0 : index
    %3 = arith.index_cast %2 : i32 to index
    %c0_0 = arith.constant 0 : index
    %c0_1 = arith.constant 0 : index
    %4 = vector.load %arg2[%c0, %3, %c0_0, %c0_1] : memref<1x8x8x256xf32, #tpu.memory_space<vmem>>, vector<1x6x8x256xf32>
    %5 = vector.shape_cast %4 : vector<1x6x8x256xf32> to vector<6x8x256xf32>
    %6 = vector.extract_strided_slice %5 {offsets = [0, 0, 0], sizes = [6, 6, 256], strides = [1, 1, 1]} : vector<6x8x256xf32> to vector<6x6x256xf32>
    %7 = vector.extract_strided_slice %5 {offsets = [0, 1, 0], sizes = [6, 6, 256], strides = [1, 1, 1]} : vector<6x8x256xf32> to vector<6x6x256xf32>
    %8 = vector.extract_strided_slice %5 {offsets = [0, 2, 0], sizes = [6, 6, 256], strides = [1, 1, 1]} : vector<6x8x256xf32> to vector<6x6x256xf32>
    %9 = tpu.concatenate %6, %7, %8 in 2 : vector<6x6x256xf32>, vector<6x6x256xf32>, vector<6x6x256xf32> -> vector<6x6x768xf32>
    %10 = vector.shape_cast %9 : vector<6x6x768xf32> to vector<36x768xf32>
    %c0_2 = arith.constant 0 : index
    %c0_3 = arith.constant 0 : index
    %c0_4 = arith.constant 0 : index
    %11 = vector.load %arg3[%c0_2, %c0_3, %c0_4] : memref<3x768x256xf32, #tpu.memory_space<vmem>>, vector<1x768x256xf32>
    %12 = vector.shape_cast %11 : vector<1x768x256xf32> to vector<768x256xf32>
    %cst_5 = arith.constant dense<0.000000e+00> : vector<36x256xf32>
    %13 = tpu.matmul %10, %12, %cst_5 {dimension_numbers = #tpu.dot_dimension_numbers<[1], [0], [0], [1], [0, 0, 1, 1], [], []>} : vector<36x768xf32>, vector<768x256xf32>, vector<36x256xf32> -> vector<36x256xf32>
    %14 = arith.addf %1, %13 : vector<36x256xf32>
    %c1_i32 = arith.constant 1 : i32
    %15 = arith.addi %0, %c1_i32 : i32
    %c0_6 = arith.constant 0 : index
    %16 = arith.index_cast %15 : i32 to index
    %c0_7 = arith.constant 0 : index
    %c0_8 = arith.constant 0 : index
    %17 = vector.load %arg2[%c0_6, %16, %c0_7, %c0_8] : memref<1x8x8x256xf32, #tpu.memory_space<vmem>>, vector<1x6x8x256xf32>
    %18 = vector.shape_cast %17 : vector<1x6x8x256xf32> to vector<6x8x256xf32>
    %19 = vector.extract_strided_slice %18 {offsets = [0, 0, 0], sizes = [6, 6, 256], strides = [1, 1, 1]} : vector<6x8x256xf32> to vector<6x6x256xf32>
    %20 = vector.extract_strided_slice %18 {offsets = [0, 1, 0], sizes = [6, 6, 256], strides = [1, 1, 1]} : vector<6x8x256xf32> to vector<6x6x256xf32>
    %21 = vector.extract_strided_slice %18 {offsets = [0, 2, 0], sizes = [6, 6, 256], strides = [1, 1, 1]} : vector<6x8x256xf32> to vector<6x6x256xf32>
    %22 = tpu.concatenate %19, %20, %21 in 2 : vector<6x6x256xf32>, vector<6x6x256xf32>, vector<6x6x256xf32> -> vector<6x6x768xf32>
    %23 = vector.shape_cast %22 : vector<6x6x768xf32> to vector<36x768xf32>
    %c1 = arith.constant 1 : index
    %c0_9 = arith.constant 0 : index
    %c0_10 = arith.constant 0 : index
    %24 = vector.load %arg3[%c1, %c0_9, %c0_10] : memref<3x768x256xf32, #tpu.memory_space<vmem>>, vector<1x768x256xf32>
    %25 = vector.shape_cast %24 : vector<1x768x256xf32> to vector<768x256xf32>
    %cst_11 = arith.constant dense<0.000000e+00> : vector<36x256xf32>
    %26 = tpu.matmul %23, %25, %cst_11 {dimension_numbers = #tpu.dot_dimension_numbers<[1], [0], [0], [1], [0, 0, 1, 1], [], []>} : vector<36x768xf32>, vector<768x256xf32>, vector<36x256xf32> -> vector<36x256xf32>
    %27 = arith.addf %14, %26 : vector<36x256xf32>
    %c2_i32 = arith.constant 2 : i32
    %28 = arith.addi %0, %c2_i32 : i32
    %c0_12 = arith.constant 0 : index
    %29 = arith.index_cast %28 : i32 to index
    %c0_13 = arith.constant 0 : index
    %c0_14 = arith.constant 0 : index
    %30 = vector.load %arg2[%c0_12, %29, %c0_13, %c0_14] : memref<1x8x8x256xf32, #tpu.memory_space<vmem>>, vector<1x6x8x256xf32>
    %31 = vector.shape_cast %30 : vector<1x6x8x256xf32> to vector<6x8x256xf32>
    %32 = vector.extract_strided_slice %31 {offsets = [0, 0, 0], sizes = [6, 6, 256], strides = [1, 1, 1]} : vector<6x8x256xf32> to vector<6x6x256xf32>
    %33 = vector.extract_strided_slice %31 {offsets = [0, 1, 0], sizes = [6, 6, 256], strides = [1, 1, 1]} : vector<6x8x256xf32> to vector<6x6x256xf32>
    %34 = vector.extract_strided_slice %31 {offsets = [0, 2, 0], sizes = [6, 6, 256], strides = [1, 1, 1]} : vector<6x8x256xf32> to vector<6x6x256xf32>
    %35 = tpu.concatenate %32, %33, %34 in 2 : vector<6x6x256xf32>, vector<6x6x256xf32>, vector<6x6x256xf32> -> vector<6x6x768xf32>
    %36 = vector.shape_cast %35 : vector<6x6x768xf32> to vector<36x768xf32>
    %c2 = arith.constant 2 : index
    %c0_15 = arith.constant 0 : index
    %c0_16 = arith.constant 0 : index
    %37 = vector.load %arg3[%c2, %c0_15, %c0_16] : memref<3x768x256xf32, #tpu.memory_space<vmem>>, vector<1x768x256xf32>
    %38 = vector.shape_cast %37 : vector<1x768x256xf32> to vector<768x256xf32>
    %cst_17 = arith.constant dense<0.000000e+00> : vector<36x256xf32>
    %39 = tpu.matmul %36, %38, %cst_17 {dimension_numbers = #tpu.dot_dimension_numbers<[1], [0], [0], [1], [0, 0, 1, 1], [], []>} : vector<36x768xf32>, vector<768x256xf32>, vector<36x256xf32> -> vector<36x256xf32>
    %40 = arith.addf %27, %39 : vector<36x256xf32>
    %c0_18 = arith.constant 0 : index
    %c0_19 = arith.constant 0 : index
    %41 = vector.load %arg4[%c0_18, %c0_19] : memref<1x256xf32, #tpu.memory_space<vmem>>, vector<1x256xf32>
    %42 = vector.broadcast %41 : vector<1x256xf32> to vector<36x256xf32>
    %43 = arith.mulf %40, %42 : vector<36x256xf32>
    %c0_20 = arith.constant 0 : index
    %c0_21 = arith.constant 0 : index
    %44 = vector.load %arg5[%c0_20, %c0_21] : memref<1x256xf32, #tpu.memory_space<vmem>>, vector<1x256xf32>
    %45 = vector.broadcast %44 : vector<1x256xf32> to vector<36x256xf32>
    %46 = arith.addf %43, %45 : vector<36x256xf32>
    %cst_22 = arith.constant 0.000000e+00 : f32
    %47 = vector.broadcast %cst_22 : f32 to vector<36x256xf32>
    %48 = arith.maximumf %46, %47 : vector<36x256xf32>
    %49 = vector.shape_cast %48 : vector<36x256xf32> to vector<6x6x256xf32>
    %c0_23 = arith.constant 0 : index
    %c0_24 = arith.constant 0 : index
    %c0_25 = arith.constant 0 : index
    %c0_26 = arith.constant 0 : index
    %50 = vector.load %arg6[%c0_23, %c0_24, %c0_25, %c0_26] : memref<1x6x6x256xf32, #tpu.memory_space<vmem>>, vector<1x6x6x256xf32>
    %51 = vector.shape_cast %50 : vector<1x6x6x256xf32> to vector<6x6x256xf32>
    %52 = vector.shape_cast %49 : vector<6x6x256xf32> to vector<1x6x6x256xf32>
    tpu.vector_store %arg6[%c0_23, %c0_24, %c0_25, %c0_26], %52 {strides = array<i32>} : memref<1x6x6x256xf32, #tpu.memory_space<vmem>>, vector<1x6x6x256xf32>,
    return
  }
  func.func @transform_0(%arg0: i32, %arg1: i32) -> (i32, i32, i32, i32) {
    %c0_i32 = arith.constant 0 : i32
    %c0_i32_0 = arith.constant 0 : i32
    %c0_i32_1 = arith.constant 0 : i32
    %c0_i32_2 = arith.constant 0 : i32
    return %arg0, %c0_i32, %c0_i32_0, %c0_i32_1 : i32, i32, i32, i32
  }
  func.func @transform_1(%arg0: i32, %arg1: i32) -> (i32, i32, i32) {
    %c0_i32 = arith.constant 0 : i32
    %c0_i32_0 = arith.constant 0 : i32
    %c0_i32_1 = arith.constant 0 : i32
    %c0_i32_2 = arith.constant 0 : i32
    return %c0_i32, %c0_i32_0, %c0_i32_1 : i32, i32, i32
  }
  func.func @transform_2(%arg0: i32, %arg1: i32) -> (i32, i32) {
    %c0_i32 = arith.constant 0 : i32
    %c0_i32_0 = arith.constant 0 : i32
    %c0_i32_1 = arith.constant 0 : i32
    return %c0_i32, %c0_i32_0 : i32, i32
  }
  func.func @transform_3(%arg0: i32, %arg1: i32) -> (i32, i32) {
    %c0_i32 = arith.constant 0 : i32
    %c0_i32_0 = arith.constant 0 : i32
    %c0_i32_1 = arith.constant 0 : i32
    return %c0_i32, %c0_i32_0 : i32, i32
  }
  func.func @transform_4(%arg0: i32, %arg1: i32) -> (i32, i32, i32, i32) {
    %c0_i32 = arith.constant 0 : i32
    %c0_i32_0 = arith.constant 0 : i32
    %c0_i32_1 = arith.constant 0 : i32
    return %arg0, %arg1, %c0_i32, %c0_i32_0 : i32, i32, i32, i32
  }
}

</mosaic_0001>

<llo_original>
// kernel: branch3_forward.4
$region0: #{branch3_forward.4}
  #allocation0 [shape = 'u32[]', space=smem, size = 0x4, offset = 0x4, fixed_abs, tag = 'smem constant byte address 0x4 - core index']
  #allocation1 [shape = 'u32[72,128]{1,0:T(1,128)}', space=vmem, size = 0x9000, scoped, tag = 'internal scratch']
  %s0 = inlined_call_operand.vmem [shape: f32[2,10,10,256], index: 0, kind: input, shape index: {}]
  %s1 = inlined_call_operand.vmem [shape: f32[3,768,256], index: 1, kind: input, shape index: {}]
  %s2 = inlined_call_operand.vmem [shape: f32[1,256], index: 2, kind: input, shape index: {}]
  %s3 = inlined_call_operand.vmem [shape: f32[1,256], index: 3, kind: input, shape index: {}]
  %s4 = inlined_call_operand.vmem [shape: f32[2,8,8,256], index: 4, kind: output, shape index: {}]
  %s5 = sld [smem:[#allocation0]]
  $region49: #{branch3_forward.4} parent=0
    _
  %s7 = ssub.s32 1, %s5
  %s8 = scalar_select 0, %s7, %s5
  loop: start=0, step=1, limit=4
  $region2: #{branch3_forward.4} parent=0 // loop_pre_header
    _
  $region3: #{branch3_forward.4} parent=0 // loop_header
    %s10 = sphi 0, %s14
    %p11 = scmp.ge.s32.totalorder %s10, 4
    %s17 = sphi 0, %s29
    %s18 = sphi 0, %s25
    %s19 = sphi 0, %s17
    %s20 = sphi 0, %s18
    %s21 = sphi 0, %s19
    %s22 = sphi 0, %s20
    %s32 = sphi 0, %s34
    %s35 = sphi 0, %s32
    %s36 = sphi 0, %s35
    %s52 = sphi 0, %s36
    %s56 = sphi 0, %s56
    %s58 = sphi 0, %s56
    %s59 = sphi 0, %s58
    %s73 = sphi 0, %s59
    %s77 = sphi 0, %s77
    %s79 = sphi 0, %s77
    %s80 = sphi 0, %s79
    %s94 = sphi 0, %s80
    %s98 = sphi 0, %s98
    %s100 = sphi 0, %s98
    %s101 = sphi 0, %s100
    %s115 = sphi 0, %s101
    %s123 = sphi 0, %s125
    %s126 = sphi 0, %s123
    %s127 = sphi 0, %s126
    %s143 = sphi 0, %s127
  $region4: #{branch3_forward.4} parent=0 // loop_header_branch
    %13 = sbr.rel (%p11) target = $region8
  $region5: #{branch3_forward.4} parent=0 // loop_body
    %s15 = ssub.s32 %s10, 1
    %s16 = ssub.s32 %s10, 2
    %s23 = sadd.s32 1, %s18
    %p24 = scmp.ge.s32.totalorder %s23, 1
    %s25 = scalar_select %p24, 0, %s23
    %s26 = sadd.s32 1, %s17
    %s27 = scalar_select %p24, %s26, %s17
    %p28 = scmp.ge.s32.totalorder %s27, 2
    %s29 = scalar_select %p28, 0, %s27
    %s30 = ssub.s32 %s17, %s29
    %p31 = scmp.eq.s32.totalorder %s30, 0
    %s33 = sadd.s32 %s32, 1
    %s34 = scalar_select %p31, %s32, %s33
    %p37 = pneg %p31
    %p38 = scmp.eq.s32.totalorder %s10, 1
    %p39 = por %p37, %p38
    %p40 = scmp.ne.s32.totalorder %s32, %s35
    %p41 = scmp.eq.s32.totalorder %s10, 0
    %p42 = por %p40, %p41
    %p43 = scmp.ne.s32.totalorder %s32, %s35
    %p44 = scmp.eq.s32.totalorder %s15, 1
    %p45 = por %p43, %p44
    %p46 = scmp.ne.s32.totalorder %s35, %s36
    %p47 = scmp.eq.s32.totalorder %s15, 0
    %p48 = por %p46, %p47
    %p49 = scmp.ne.s32.totalorder %s35, %s36
    %p50 = scmp.eq.s32.totalorder %s16, 1
    %p51 = por %p49, %p50
    %p53 = scmp.ne.s32.totalorder %s36, %s52
    %p54 = scmp.eq.s32.totalorder %s16, 0
    %p55 = por %p53, %p54
    %s57 = sadd.s32 %s56, 1
    %p60 = scmp.eq.s32.totalorder %s10, 1
    %p61 = scmp.ne.s32.totalorder %s56, %s58
    %p62 = scmp.eq.s32.totalorder %s10, 0
    %p63 = por %p61, %p62
    %p64 = scmp.ne.s32.totalorder %s56, %s58
    %p65 = scmp.eq.s32.totalorder %s15, 1
    %p66 = por %p64, %p65
    %p67 = scmp.ne.s32.totalorder %s58, %s59
    %p68 = scmp.eq.s32.totalorder %s15, 0
    %p69 = por %p67, %p68
    %p70 = scmp.ne.s32.totalorder %s58, %s59
    %p71 = scmp.eq.s32.totalorder %s16, 1
    %p72 = por %p70, %p71
    %p74 = scmp.ne.s32.totalorder %s59, %s73
    %p75 = scmp.eq.s32.totalorder %s16, 0
    %p76 = por %p74, %p75
    %s78 = sadd.s32 %s77, 1
    %p81 = scmp.eq.s32.totalorder %s10, 1
    %p82 = scmp.ne.s32.totalorder %s77, %s79
    %p83 = scmp.eq.s32.totalorder %s10, 0
    %p84 = por %p82, %p83
    %p85 = scmp.ne.s32.totalorder %s77, %s79
    %p86 = scmp.eq.s32.totalorder %s15, 1
    %p87 = por %p85, %p86
    %p88 = scmp.ne.s32.totalorder %s79, %s80
    %p89 = scmp.eq.s32.totalorder %s15, 0
    %p90 = por %p88, %p89
    %p91 = scmp.ne.s32.totalorder %s79, %s80
    %p92 = scmp.eq.s32.totalorder %s16, 1
    %p93 = por %p91, %p92
    %p95 = scmp.ne.s32.totalorder %s80, %s94
    %p96 = scmp.eq.s32.totalorder %s16, 0
    %p97 = por %p95, %p96
    %s99 = sadd.s32 %s98, 1
    %p102 = scmp.eq.s32.totalorder %s10, 1
    %p103 = scmp.ne.s32.totalorder %s98, %s100
    %p104 = scmp.eq.s32.totalorder %s10, 0
    %p105 = por %p103, %p104
    %p106 = scmp.ne.s32.totalorder %s98, %s100
    %p107 = scmp.eq.s32.totalorder %s15, 1
    %p108 = por %p106, %p107
    %p109 = scmp.ne.s32.totalorder %s100, %s101
    %p110 = scmp.eq.s32.totalorder %s15, 0
    %p111 = por %p109, %p110
    %p112 = scmp.ne.s32.totalorder %s100, %s101
    %p113 = scmp.eq.s32.totalorder %s16, 1
    %p114 = por %p112, %p113
    %p116 = scmp.ne.s32.totalorder %s101, %s115
    %p117 = scmp.eq.s32.totalorder %s16, 0
    %p118 = por %p116, %p117
    %s119 = ssub.s32 %s17, %s29
    %s120 = ssub.s32 %s18, %s25
    %s121 = sor.u32 %s119, %s120
    %p122 = scmp.eq.s32.totalorder %s121, 0
    %s124 = sadd.s32 %s123, 1
    %s125 = scalar_select %p122, %s123, %s124
    %p128 = pneg %p122
    %p129 = scmp.eq.s32.totalorder %s10, 1
    %p130 = por %p128, %p129
    %p131 = scmp.ne.s32.totalorder %s123, %s126
    %p132 = scmp.eq.s32.totalorder %s10, 0
    %p133 = por %p131, %p132
    %p134 = scmp.ne.s32.totalorder %s123, %s126
    %p135 = scmp.eq.s32.totalorder %s15, 1
    %p136 = por %p134, %p135
    %p137 = scmp.ne.s32.totalorder %s126, %s127
    %p138 = scmp.eq.s32.totalorder %s15, 0
    %p139 = por %p137, %p138
    %p140 = scmp.ne.s32.totalorder %s126, %s127
    %p141 = scmp.eq.s32.totalorder %s16, 1
    %p142 = por %p140, %p141
    %p144 = scmp.ne.s32.totalorder %s127, %s143
    %p145 = scmp.eq.s32.totalorder %s16, 0
    %p146 = por %p144, %p145
    %p147 = scmp.le.s32.totalorder 1, %s10
    %p148 = scmp.lt.s32.totalorder %s10, 3
    %p149 = pnand %p147, %p148
    %p150 = pneg %p149
    // Predicated region
    $region9: #{branch3_forward.4} parent=5 // pred_check
      _
    $region10: #{branch3_forward.4} parent=5 // pred_check_branch
      %152 = sbr.rel (%p149) target = $region12
    $region11: #{branch3_forward.4} parent=5 // pred_region
      %s153 = ssub.s32 %s10, 1
      // Predicated region
      $region13: #{branch3_forward.4} parent=11 // pred_check
        %p154 = pneg %p69
      $region14: #{branch3_forward.4} parent=11 // pred_check_branch
        %156 = sbr.rel (%p154) target = $region16
      $region15: #{branch3_forward.4} parent=11 // pred_region
        _
      $region16: #{branch3_forward.4} parent=11 // pred_fallthru
        _
      // Predicated region
      $region17: #{branch3_forward.4} parent=11 // pred_check
        %p157 = pneg %p90
      $region18: #{branch3_forward.4} parent=11 // pred_check_branch
        %159 = sbr.rel (%p157) target = $region20
      $region19: #{branch3_forward.4} parent=11 // pred_region
        _
      $region20: #{branch3_forward.4} parent=11 // pred_fallthru
        _
      // Predicated region
      $region21: #{branch3_forward.4} parent=11 // pred_check
        %p160 = pneg %p111
      $region22: #{branch3_forward.4} parent=11 // pred_check_branch
        %162 = sbr.rel (%p160) target = $region24
      $region23: #{branch3_forward.4} parent=11 // pred_region
        _
      $region24: #{branch3_forward.4} parent=11 // pred_fallthru
        _
    $region12: #{branch3_forward.4} parent=5 // pred_fallthru
      _
    %p163 = scmp.lt.s32.totalorder %s10, 2
    // Predicated region
    $region25: #{branch3_forward.4} parent=5 // pred_check
      %p164 = pneg %p163
    $region26: #{branch3_forward.4} parent=5 // pred_check_branch
      %166 = sbr.rel (%p164) target = $region28
    $region27: #{branch3_forward.4} parent=5 // pred_region
      // Predicated region
      $region29: #{branch3_forward.4} parent=27 // pred_check
        %p167 = pneg %p42
      $region30: #{branch3_forward.4} parent=27 // pred_check_branch
        %169 = sbr.rel (%p167) target = $region32
      $region31: #{branch3_forward.4} parent=27 // pred_region
        %p170 = scmp.lt.s32.totalorder %s17, 1
        %s171 = scalar_select %p170, %s17, 1
        %s172 = smul.addr %s171, 40
        %s173 = smul.addr %s172, 8
        %s174 = scalar_lea.vmem %s0, %s173
      $region32: #{branch3_forward.4} parent=27 // pred_fallthru
        _
    $region28: #{branch3_forward.4} parent=5 // pred_fallthru
      _
    %p175 = scmp.le.s32.totalorder 1, %s10
    %p176 = scmp.lt.s32.totalorder %s10, 3
    %p177 = pnand %p175, %p176
    %p178 = pneg %p177
    // Predicated region
    $region33: #{branch3_forward.4} parent=5 // pred_check
      _
    $region34: #{branch3_forward.4} parent=5 // pred_check_branch
      %180 = sbr.rel (%p177) target = $region36
    $region35: #{branch3_forward.4} parent=5 // pred_region
      %s181 = ssub.s32 %s10, 1
      %p182 = scmp.lt.s32.totalorder %s19, 1
      %s183 = scalar_select %p182, %s19, 1
      %s184 = smul.addr %s183, 40
      %s185 = smul.addr %s184, 8
      %s186 = scalar_lea.vmem %s0, %s185
      %p187 = pneg %p48
      %p188 = pneg %p45
      %p189 = pneg %p69
      %p190 = pneg %p66
      %p191 = pneg %p90
      %p192 = pneg %p87
      %p193 = pneg %p111
      %p194 = pneg %p108
      %p195 = pneg %p139
      %p196 = pneg %p136
      %s197 = smul.u32 8, %s20
      %p198 = scmp.lt.s32.totalorder %s19, 1
      %s199 = scalar_select %p198, %s19, 1
      %p200 = scmp.lt.s32.totalorder %s197, 7
      %s201 = scalar_select %p200, %s197, 7
      %s202 = smul.addr %s201, 2
      %s203 = smul.addr %s199, 16
      %s204 = sadd.s32 %s202, %s203
      %s205 = smul.addr %s204, 8
      %s206 = scalar_lea.vmem %s4, %s205
      %p207 = scmp.lt.s32.totalorder %s19, 1
      %s208 = scalar_select %p207, %s19, 1
      %s209 = smul.addr %s208, 40
      %s210 = smul.addr %s209, 8
      %s211 = scalar_lea.vmem %s0, %s210
      %s212 = smul.u32 8, %s20
      %p213 = scmp.lt.s32.totalorder %s19, 1
      %s214 = scalar_select %p213, %s19, 1
      %p215 = scmp.lt.s32.totalorder %s212, 7
      %s216 = scalar_select %p215, %s212, 7
      %s217 = smul.addr %s216, 2
      %s218 = smul.addr %s214, 16
      %s219 = sadd.s32 %s217, %s218
      %s220 = smul.addr %s219, 8
      %s221 = scalar_lea.vmem %s4, %s220
      %s222 = smul.u32 8, %s20
      %s223 = smul.u32 %s20, 8
      %s224 = smul.u32 %s223, 4
      %s225 = smul.addr %s224, 8
      %s226 = scalar_lea.vmem %s211, %s225
      %v227 = vld [vmem:[%s226] sm:$0xff]
      %v228 = vld [vmem:[%s226 + $0x8] sm:$0xff]
      %v229 = vld [vmem:[%s226 + $0x10] sm:$0x3]
      %v230 = vld [vmem:[%s226 + $0x18] sm:$0x3]
      %v231 = vld [vmem:[%s226 + $0x20] sm:$0xff]
      %v232 = vld [vmem:[%s226 + $0x28] sm:$0xff]
      %v233 = vld [vmem:[%s226 + $0x30] sm:$0x3]
      %v234 = vld [vmem:[%s226 + $0x38] sm:$0x3]
      %v235 = vld [vmem:[%s226 + $0x40] sm:$0xff]
      %v236 = vld [vmem:[%s226 + $0x48] sm:$0xff]
      %v237 = vld [vmem:[%s226 + $0x50] sm:$0x3]
      %v238 = vld [vmem:[%s226 + $0x58] sm:$0x3]
      %v239 = vld [vmem:[%s226 + $0x60] sm:$0xff]
      %v240 = vld [vmem:[%s226 + $0x68] sm:$0xff]
      %v241 = vld [vmem:[%s226 + $0x70] sm:$0x3]
      %v242 = vld [vmem:[%s226 + $0x78] sm:$0x3]
      %v243 = vld [vmem:[%s226 + $0x80] sm:$0xff]
      %v244 = vld [vmem:[%s226 + $0x88] sm:$0xff]
      %v245 = vld [vmem:[%s226 + $0x90] sm:$0x3]
      %v246 = vld [vmem:[%s226 + $0x98] sm:$0x3]
      %v247 = vld [vmem:[%s226 + $0xa0] sm:$0xff]
      %v248 = vld [vmem:[%s226 + $0xa8] sm:$0xff]
      %v249 = vld [vmem:[%s226 + $0xb0] sm:$0x3]
      %v250 = vld [vmem:[%s226 + $0xb8] sm:$0x3]
      %v251 = vld [vmem:[%s226 + $0xc0] sm:$0xff]
      %v252 = vld [vmem:[%s226 + $0xc8] sm:$0xff]
      %v253 = vld [vmem:[%s226 + $0xd0] sm:$0x3]
      %v254 = vld [vmem:[%s226 + $0xd8] sm:$0x3]
      %v255 = vld [vmem:[%s226 + $0xe0] sm:$0xff]
      %v256 = vld [vmem:[%s226 + $0xe8] sm:$0xff]
      %v257 = vld [vmem:[%s226 + $0xf0] sm:$0x3]
      %v258 = vld [vmem:[%s226 + $0xf8] sm:$0x3]
      %vm291 = vcmask 1046528
      %v292 = vrot.slane %v227, 1
      %v293 = vrot.slane %v229, 1
      %v294 = vsel %vm291, %v292, %v293
      %v295 = vrot.slane %v228, 1
      %v296 = vrot.slane %v230, 1
      %v297 = vsel %vm291, %v295, %v296
      %v298 = vrot.slane %v231, 1
      %v299 = vrot.slane %v233, 1
      %v300 = vsel %vm291, %v298, %v299
      %v301 = vrot.slane %v232, 1
      %v302 = vrot.slane %v234, 1
      %v303 = vsel %vm291, %v301, %v302
      %v304 = vrot.slane %v235, 1
      %v305 = vrot.slane %v237, 1
      %v306 = vsel %vm291, %v304, %v305
      %v307 = vrot.slane %v236, 1
      %v308 = vrot.slane %v238, 1
      %v309 = vsel %vm291, %v307, %v308
      %v310 = vrot.slane %v239, 1
      %v311 = vrot.slane %v241, 1
      %v312 = vsel %vm291, %v310, %v311
      %v313 = vrot.slane %v240, 1
      %v314 = vrot.slane %v242, 1
      %v315 = vsel %vm291, %v313, %v314
      %v316 = vrot.slane %v243, 1
      %v317 = vrot.slane %v245, 1
      %v318 = vsel %vm291, %v316, %v317
      %v319 = vrot.slane %v244, 1
      %v320 = vrot.slane %v246, 1
      %v321 = vsel %vm291, %v319, %v320
      %v322 = vrot.slane %v247, 1
      %v323 = vrot.slane %v249, 1
      %v324 = vsel %vm291, %v322, %v323
      %v325 = vrot.slane %v248, 1
      %v326 = vrot.slane %v250, 1
      %v327 = vsel %vm291, %v325, %v326
      %v328 = vrot.slane %v251, 1
      %v329 = vrot.slane %v253, 1
      %v330 = vsel %vm291, %v328, %v329
      %v331 = vrot.slane %v252, 1
      %v332 = vrot.slane %v254, 1
      %v333 = vsel %vm291, %v331, %v332
      %v334 = vrot.slane %v255, 1
      %v335 = vrot.slane %v257, 1
      %v336 = vsel %vm291, %v334, %v335
      %v337 = vrot.slane %v256, 1
      %v338 = vrot.slane %v258, 1
      %v339 = vsel %vm291, %v337, %v338
      %vm356 = vcmask 1045504
      %v357 = vrot.slane %v227, 2
      %v358 = vrot.slane %v229, 2
      %v359 = vsel %vm356, %v357, %v358
      %v360 = vrot.slane %v228, 2
      %v361 = vrot.slane %v230, 2
      %v362 = vsel %vm356, %v360, %v361
      %v363 = vrot.slane %v231, 2
      %v364 = vrot.slane %v233, 2
      %v365 = vsel %vm356, %v363, %v364
      %v366 = vrot.slane %v232, 2
      %v367 = vrot.slane %v234, 2
      %v368 = vsel %vm356, %v366, %v367
      %v369 = vrot.slane %v235, 2
      %v370 = vrot.slane %v237, 2
      %v371 = vsel %vm356, %v369, %v370
      %v372 = vrot.slane %v236, 2
      %v373 = vrot.slane %v238, 2
      %v374 = vsel %vm356, %v372, %v373
      %v375 = vrot.slane %v239, 2
      %v376 = vrot.slane %v241, 2
      %v377 = vsel %vm356, %v375, %v376
      %v378 = vrot.slane %v240, 2
      %v379 = vrot.slane %v242, 2
      %v380 = vsel %vm356, %v378, %v379
      %v381 = vrot.slane %v243, 2
      %v382 = vrot.slane %v245, 2
      %v383 = vsel %vm356, %v381, %v382
      %v384 = vrot.slane %v244, 2
      %v385 = vrot.slane %v246, 2
      %v386 = vsel %vm356, %v384, %v385
      %v387 = vrot.slane %v247, 2
      %v388 = vrot.slane %v249, 2
      %v389 = vsel %vm356, %v387, %v388
      %v390 = vrot.slane %v248, 2
      %v391 = vrot.slane %v250, 2
      %v392 = vsel %vm356, %v390, %v391
      %v393 = vrot.slane %v251, 2
      %v394 = vrot.slane %v253, 2
      %v395 = vsel %vm356, %v393, %v394
      %v396 = vrot.slane %v252, 2
      %v397 = vrot.slane %v254, 2
      %v398 = vsel %vm356, %v396, %v397
      %v399 = vrot.slane %v255, 2
      %v400 = vrot.slane %v257, 2
      %v401 = vsel %vm356, %v399, %v400
      %v402 = vrot.slane %v256, 2
      %v403 = vrot.slane %v258, 2
      %v404 = vsel %vm356, %v402, %v403
      %v421 = vld [vmem:[%s1] sm:$0xff]
      %v422 = vld [vmem:[%s1 + $0x8] sm:$0xff]
      %v423 = vld [vmem:[%s1 + $0x10] sm:$0xff]
      %v424 = vld [vmem:[%s1 + $0x18] sm:$0xff]
      %v425 = vld [vmem:[%s1 + $0x20] sm:$0xff]
      %v426 = vld [vmem:[%s1 + $0x28] sm:$0xff]
      %v427 = vld [vmem:[%s1 + $0x30] sm:$0xff]
      %v428 = vld [vmem:[%s1 + $0x38] sm:$0xff]
      %v429 = vld [vmem:[%s1 + $0x40] sm:$0xff]
      %v430 = vld [vmem:[%s1 + $0x48] sm:$0xff]
      %v431 = vld [vmem:[%s1 + $0x50] sm:$0xff]
      %v432 = vld [vmem:[%s1 + $0x58] sm:$0xff]
      %v433 = vld [vmem:[%s1 + $0x60] sm:$0xff]
      %v434 = vld [vmem:[%s1 + $0x68] sm:$0xff]
      %v435 = vld [vmem:[%s1 + $0x70] sm:$0xff]
      %v436 = vld [vmem:[%s1 + $0x78] sm:$0xff]
      %v437 = vld [vmem:[%s1 + $0x80] sm:$0xff]
      %v438 = vld [vmem:[%s1 + $0x88] sm:$0xff]
      %v439 = vld [vmem:[%s1 + $0x90] sm:$0xff]
      %v440 = vld [vmem:[%s1 + $0x98] sm:$0xff]
      %v441 = vld [vmem:[%s1 + $0xa0] sm:$0xff]
      %v442 = vld [vmem:[%s1 + $0xa8] sm:$0xff]
      %v443 = vld [vmem:[%s1 + $0xb0] sm:$0xff]
      %v444 = vld [vmem:[%s1 + $0xb8] sm:$0xff]
      %v445 = vld [vmem:[%s1 + $0xc0] sm:$0xff]
      %v446 = vld [vmem:[%s1 + $0xc8] sm:$0xff]
      %v447 = vld [vmem:[%s1 + $0xd0] sm:$0xff]
      %v448 = vld [vmem:[%s1 + $0xd8] sm:$0xff]
      %v449 = vld [vmem:[%s1 + $0xe0] sm:$0xff]
      %v450 = vld [vmem:[%s1 + $0xe8] sm:$0xff]
      %v451 = vld [vmem:[%s1 + $0xf0] sm:$0xff]
      %v452 = vld [vmem:[%s1 + $0xf8] sm:$0xff]
      %v453 = vld [vmem:[%s1 + $0x100] sm:$0xff]
      %v454 = vld [vmem:[%s1 + $0x108] sm:$0xff]
      %v455 = vld [vmem:[%s1 + $0x110] sm:$0xff]
      %v456 = vld [vmem:[%s1 + $0x118] sm:$0xff]
      %v457 = vld [vmem:[%s1 + $0x120] sm:$0xff]
      %v458 = vld [vmem:[%s1 + $0x128] sm:$0xff]
      %v459 = vld [vmem:[%s1 + $0x130] sm:$0xff]
      %v460 = vld [vmem:[%s1 + $0x138] sm:$0xff]
      %v461 = vld [vmem:[%s1 + $0x140] sm:$0xff]
      %v462 = vld [vmem:[%s1 + $0x148] sm:$0xff]
      %v463 = vld [vmem:[%s1 + $0x150] sm:$0xff]
      %v464 = vld [vmem:[%s1 + $0x158] sm:$0xff]
      %v465 = vld [vmem:[%s1 + $0x160] sm:$0xff]
      %v466 = vld [vmem:[%s1 + $0x168] sm:$0xff]
      %v467 = vld [vmem:[%s1 + $0x170] sm:$0xff]
      %v468 = vld [vmem:[%s1 + $0x178] sm:$0xff]
      %v469 = vld [vmem:[%s1 + $0x180] sm:$0xff]
      %v470 = vld [vmem:[%s1 + $0x188] sm:$0xff]
      %v471 = vld [vmem:[%s1 + $0x190] sm:$0xff]
      %v472 = vld [vmem:[%s1 + $0x198] sm:$0xff]
      %v473 = vld [vmem:[%s1 + $0x1a0] sm:$0xff]
      %v474 = vld [vmem:[%s1 + $0x1a8] sm:$0xff]
      %v475 = vld [vmem:[%s1 + $0x1b0] sm:$0xff]
      %v476 = vld [vmem:[%s1 + $0x1b8] sm:$0xff]
      %v477 = vld [vmem:[%s1 + $0x1c0] sm:$0xff]
      %v478 = vld [vmem:[%s1 + $0x1c8] sm:$0xff]
      %v479 = vld [vmem:[%s1 + $0x1d0] sm:$0xff]
      %v480 = vld [vmem:[%s1 + $0x1d8] sm:$0xff]
      %v481 = vld [vmem:[%s1 + $0x1e0] sm:$0xff]
      %v482 = vld [vmem:[%s1 + $0x1e8] sm:$0xff]
      %v483 = vld [vmem:[%s1 + $0x1f0] sm:$0xff]
      %v484 = vld [vmem:[%s1 + $0x1f8] sm:$0xff]
      %v485 = vld [vmem:[%s1 + $0x200] sm:$0xff]
      %v486 = vld [vmem:[%s1 + $0x208] sm:$0xff]
      %v487 = vld [vmem:[%s1 + $0x210] sm:$0xff]
      %v488 = vld [vmem:[%s1 + $0x218] sm:$0xff]
      %v489 = vld [vmem:[%s1 + $0x220] sm:$0xff]
      %v490 = vld [vmem:[%s1 + $0x228] sm:$0xff]
      %v491 = vld [vmem:[%s1 + $0x230] sm:$0xff]
      %v492 = vld [vmem:[%s1 + $0x238] sm:$0xff]
      %v493 = vld [vmem:[%s1 + $0x240] sm:$0xff]
      %v494 = vld [vmem:[%s1 + $0x248] sm:$0xff]
      %v495 = vld [vmem:[%s1 + $0x250] sm:$0xff]
      %v496 = vld [vmem:[%s1 + $0x258] sm:$0xff]
      %v497 = vld [vmem:[%s1 + $0x260] sm:$0xff]
      %v498 = vld [vmem:[%s1 + $0x268] sm:$0xff]
      %v499 = vld [vmem:[%s1 + $0x270] sm:$0xff]
      %v500 = vld [vmem:[%s1 + $0x278] sm:$0xff]
      %v501 = vld [vmem:[%s1 + $0x280] sm:$0xff]
      %v502 = vld [vmem:[%s1 + $0x288] sm:$0xff]
      %v503 = vld [vmem:[%s1 + $0x290] sm:$0xff]
      %v504 = vld [vmem:[%s1 + $0x298] sm:$0xff]
      %v505 = vld [vmem:[%s1 + $0x2a0] sm:$0xff]
      %v506 = vld [vmem:[%s1 + $0x2a8] sm:$0xff]
      %v507 = vld [vmem:[%s1 + $0x2b0] sm:$0xff]
      %v508 = vld [vmem:[%s1 + $0x2b8] sm:$0xff]
      %v509 = vld [vmem:[%s1 + $0x2c0] sm:$0xff]
      %v510 = vld [vmem:[%s1 + $0x2c8] sm:$0xff]
      %v511 = vld [vmem:[%s1 + $0x2d0] sm:$0xff]
      %v512 = vld [vmem:[%s1 + $0x2d8] sm:$0xff]
      %v513 = vld [vmem:[%s1 + $0x2e0] sm:$0xff]
      %v514 = vld [vmem:[%s1 + $0x2e8] sm:$0xff]
      %v515 = vld [vmem:[%s1 + $0x2f0] sm:$0xff]
      %v516 = vld [vmem:[%s1 + $0x2f8] sm:$0xff]
      %v517 = vld [vmem:[%s1 + $0x300] sm:$0xff]
      %v518 = vld [vmem:[%s1 + $0x308] sm:$0xff]
      %v519 = vld [vmem:[%s1 + $0x310] sm:$0xff]
      %v520 = vld [vmem:[%s1 + $0x318] sm:$0xff]
      %v521 = vld [vmem:[%s1 + $0x320] sm:$0xff]
      %v522 = vld [vmem:[%s1 + $0x328] sm:$0xff]
      %v523 = vld [vmem:[%s1 + $0x330] sm:$0xff]
      %v524 = vld [vmem:[%s1 + $0x338] sm:$0xff]
      %v525 = vld [vmem:[%s1 + $0x340] sm:$0xff]
      %v526 = vld [vmem:[%s1 + $0x348] sm:$0xff]
      %v527 = vld [vmem:[%s1 + $0x350] sm:$0xff]
      %v528 = vld [vmem:[%s1 + $0x358] sm:$0xff]
      %v529 = vld [vmem:[%s1 + $0x360] sm:$0xff]
      %v530 = vld [vmem:[%s1 + $0x368] sm:$0xff]
      %v531 = vld [vmem:[%s1 + $0x370] sm:$0xff]
      %v532 = vld [vmem:[%s1 + $0x378] sm:$0xff]
      %v533 = vld [vmem:[%s1 + $0x380] sm:$0xff]
      %v534 = vld [vmem:[%s1 + $0x388] sm:$0xff]
      %v535 = vld [vmem:[%s1 + $0x390] sm:$0xff]
      %v536 = vld [vmem:[%s1 + $0x398] sm:$0xff]
      %v537 = vld [vmem:[%s1 + $0x3a0] sm:$0xff]
      %v538 = vld [vmem:[%s1 + $0x3a8] sm:$0xff]
      %v539 = vld [vmem:[%s1 + $0x3b0] sm:$0xff]
      %v540 = vld [vmem:[%s1 + $0x3b8] sm:$0xff]
      %v541 = vld [vmem:[%s1 + $0x3c0] sm:$0xff]
      %v542 = vld [vmem:[%s1 + $0x3c8] sm:$0xff]
      %v543 = vld [vmem:[%s1 + $0x3d0] sm:$0xff]
      %v544 = vld [vmem:[%s1 + $0x3d8] sm:$0xff]
      %v545 = vld [vmem:[%s1 + $0x3e0] sm:$0xff]
      %v546 = vld [vmem:[%s1 + $0x3e8] sm:$0xff]
      %v547 = vld [vmem:[%s1 + $0x3f0] sm:$0xff]
      %v548 = vld [vmem:[%s1 + $0x3f8] sm:$0xff]
      %v549 = vld [vmem:[%s1 + $0x400] sm:$0xff]
      %v550 = vld [vmem:[%s1 + $0x408] sm:$0xff]
      %v551 = vld [vmem:[%s1 + $0x410] sm:$0xff]
      %v552 = vld [vmem:[%s1 + $0x418] sm:$0xff]
      %v553 = vld [vmem:[%s1 + $0x420] sm:$0xff]
      %v554 = vld [vmem:[%s1 + $0x428] sm:$0xff]
      %v555 = vld [vmem:[%s1 + $0x430] sm:$0xff]
      %v556 = vld [vmem:[%s1 + $0x438] sm:$0xff]
      %v557 = vld [vmem:[%s1 + $0x440] sm:$0xff]
      %v558 = vld [vmem:[%s1 + $0x448] sm:$0xff]
      %v559 = vld [vmem:[%s1 + $0x450] sm:$0xff]
      %v560 = vld [vmem:[%s1 + $0x458] sm:$0xff]
      %v561 = vld [vmem:[%s1 + $0x460] sm:$0xff]
      %v562 = vld [vmem:[%s1 + $0x468] sm:$0xff]
      %v563 = vld [vmem:[%s1 + $0x470] sm:$0xff]
      %v564 = vld [vmem:[%s1 + $0x478] sm:$0xff]
      %v565 = vld [vmem:[%s1 + $0x480] sm:$0xff]
      %v566 = vld [vmem:[%s1 + $0x488] sm:$0xff]
      %v567 = vld [vmem:[%s1 + $0x490] sm:$0xff]
      %v568 = vld [vmem:[%s1 + $0x498] sm:$0xff]
      %v569 = vld [vmem:[%s1 + $0x4a0] sm:$0xff]
      %v570 = vld [vmem:[%s1 + $0x4a8] sm:$0xff]
      %v571 = vld [vmem:[%s1 + $0x4b0] sm:$0xff]
      %v572 = vld [vmem:[%s1 + $0x4b8] sm:$0xff]
      %v573 = vld [vmem:[%s1 + $0x4c0] sm:$0xff]
      %v574 = vld [vmem:[%s1 + $0x4c8] sm:$0xff]
      %v575 = vld [vmem:[%s1 + $0x4d0] sm:$0xff]
      %v576 = vld [vmem:[%s1 + $0x4d8] sm:$0xff]
      %v577 = vld [vmem:[%s1 + $0x4e0] sm:$0xff]
      %v578 = vld [vmem:[%s1 + $0x4e8] sm:$0xff]
      %v579 = vld [vmem:[%s1 + $0x4f0] sm:$0xff]
      %v580 = vld [vmem:[%s1 + $0x4f8] sm:$0xff]
      %v581 = vld [vmem:[%s1 + $0x500] sm:$0xff]
      %v582 = vld [vmem:[%s1 + $0x508] sm:$0xff]
      %v583 = vld [vmem:[%s1 + $0x510] sm:$0xff]
      %v584 = vld [vmem:[%s1 + $0x518] sm:$0xff]
      %v585 = vld [vmem:[%s1 + $0x520] sm:$0xff]
      %v586 = vld [vmem:[%s1 + $0x528] sm:$0xff]
      %v587 = vld [vmem:[%s1 + $0x530] sm:$0xff]
      %v588 = vld [vmem:[%s1 + $0x538] sm:$0xff]
      %v589 = vld [vmem:[%s1 + $0x540] sm:$0xff]
      %v590 = vld [vmem:[%s1 + $0x548] sm:$0xff]
      %v591 = vld [vmem:[%s1 + $0x550] sm:$0xff]
      %v592 = vld [vmem:[%s1 + $0x558] sm:$0xff]
      %v593 = vld [vmem:[%s1 + $0x560] sm:$0xff]
      %v594 = vld [vmem:[%s1 + $0x568] sm:$0xff]
      %v595 = vld [vmem:[%s1 + $0x570] sm:$0xff]
      %v596 = vld [vmem:[%s1 + $0x578] sm:$0xff]
      %v597 = vld [vmem:[%s1 + $0x580] sm:$0xff]
      %v598 = vld [vmem:[%s1 + $0x588] sm:$0xff]
      %v599 = vld [vmem:[%s1 + $0x590] sm:$0xff]
      %v600 = vld [vmem:[%s1 + $0x598] sm:$0xff]
      %v601 = vld [vmem:[%s1 + $0x5a0] sm:$0xff]
      %v602 = vld [vmem:[%s1 + $0x5a8] sm:$0xff]
      %v603 = vld [vmem:[%s1 + $0x5b0] sm:$0xff]
      %v604 = vld [vmem:[%s1 + $0x5b8] sm:$0xff]
      %v605 = vld [vmem:[%s1 + $0x5c0] sm:$0xff]
      %v606 = vld [vmem:[%s1 + $0x5c8] sm:$0xff]
      %v607 = vld [vmem:[%s1 + $0x5d0] sm:$0xff]
      %v608 = vld [vmem:[%s1 + $0x5d8] sm:$0xff]
      %v609 = vld [vmem:[%s1 + $0x5e0] sm:$0xff]
      %v610 = vld [vmem:[%s1 + $0x5e8] sm:$0xff]
      %v611 = vld [vmem:[%s1 + $0x5f0] sm:$0xff]
      %v612 = vld [vmem:[%s1 + $0x5f8] sm:$0xff]
      %s613 = sadd.s32 %s223, 1
      %s614 = smul.u32 %s613, 4
      %s615 = smul.addr %s614, 8
      %s616 = scalar_lea.vmem %s211, %s615
      %v617 = vld [vmem:[%s616] sm:$0xff]
      %v618 = vld [vmem:[%s616 + $0x8] sm:$0xff]
      %v619 = vld [vmem:[%s616 + $0x10] sm:$0x3]
      %v620 = vld [vmem:[%s616 + $0x18] sm:$0x3]
      %v621 = vld [vmem:[%s616 + $0x20] sm:$0xff]
      %v622 = vld [vmem:[%s616 + $0x28] sm:$0xff]
      %v623 = vld [vmem:[%s616 + $0x30] sm:$0x3]
      %v624 = vld [vmem:[%s616 + $0x38] sm:$0x3]
      %v625 = vld [vmem:[%s616 + $0x40] sm:$0xff]
      %v626 = vld [vmem:[%s616 + $0x48] sm:$0xff]
      %v627 = vld [vmem:[%s616 + $0x50] sm:$0x3]
      %v628 = vld [vmem:[%s616 + $0x58] sm:$0x3]
      %v629 = vld [vmem:[%s616 + $0x60] sm:$0xff]
      %v630 = vld [vmem:[%s616 + $0x68] sm:$0xff]
      %v631 = vld [vmem:[%s616 + $0x70] sm:$0x3]
      %v632 = vld [vmem:[%s616 + $0x78] sm:$0x3]
      %v633 = vld [vmem:[%s616 + $0x80] sm:$0xff]
      %v634 = vld [vmem:[%s616 + $0x88] sm:$0xff]
      %v635 = vld [vmem:[%s616 + $0x90] sm:$0x3]
      %v636 = vld [vmem:[%s616 + $0x98] sm:$0x3]
      %v637 = vld [vmem:[%s616 + $0xa0] sm:$0xff]
      %v638 = vld [vmem:[%s616 + $0xa8] sm:$0xff]
      %v639 = vld [vmem:[%s616 + $0xb0] sm:$0x3]
      %v640 = vld [vmem:[%s616 + $0xb8] sm:$0x3]
      %v641 = vld [vmem:[%s616 + $0xc0] sm:$0xff]
      %v642 = vld [vmem:[%s616 + $0xc8] sm:$0xff]
      %v643 = vld [vmem:[%s616 + $0xd0] sm:$0x3]
      %v644 = vld [vmem:[%s616 + $0xd8] sm:$0x3]
      %v645 = vld [vmem:[%s616 + $0xe0] sm:$0xff]
      %v646 = vld [vmem:[%s616 + $0xe8] sm:$0xff]
      %v647 = vld [vmem:[%s616 + $0xf0] sm:$0x3]
      %v648 = vld [vmem:[%s616 + $0xf8] sm:$0x3]
      %v681 = vrot.slane %v617, 1
      %v682 = vrot.slane %v619, 1
      %v683 = vsel %vm291, %v681, %v682
      %v684 = vrot.slane %v618, 1
      %v685 = vrot.slane %v620, 1
      %v686 = vsel %vm291, %v684, %v685
      %v687 = vrot.slane %v621, 1
      %v688 = vrot.slane %v623, 1
      %v689 = vsel %vm291, %v687, %v688
      %v690 = vrot.slane %v622, 1
      %v691 = vrot.slane %v624, 1
      %v692 = vsel %vm291, %v690, %v691
      %v693 = vrot.slane %v625, 1
      %v694 = vrot.slane %v627, 1
      %v695 = vsel %vm291, %v693, %v694
      %v696 = vrot.slane %v626, 1
      %v697 = vrot.slane %v628, 1
      %v698 = vsel %vm291, %v696, %v697
      %v699 = vrot.slane %v629, 1
      %v700 = vrot.slane %v631, 1
      %v701 = vsel %vm291, %v699, %v700
      %v702 = vrot.slane %v630, 1
      %v703 = vrot.slane %v632, 1
      %v704 = vsel %vm291, %v702, %v703
      %v705 = vrot.slane %v633, 1
      %v706 = vrot.slane %v635, 1
      %v707 = vsel %vm291, %v705, %v706
      %v708 = vrot.slane %v634, 1
      %v709 = vrot.slane %v636, 1
      %v710 = vsel %vm291, %v708, %v709
      %v711 = vrot.slane %v637, 1
      %v712 = vrot.slane %v639, 1
      %v713 = vsel %vm291, %v711, %v712
      %v714 = vrot.slane %v638, 1
      %v715 = vrot.slane %v640, 1
      %v716 = vsel %vm291, %v714, %v715
      %v717 = vrot.slane %v641, 1
      %v718 = vrot.slane %v643, 1
      %v719 = vsel %vm291, %v717, %v718
      %v720 = vrot.slane %v642, 1
      %v721 = vrot.slane %v644, 1
      %v722 = vsel %vm291, %v720, %v721
      %v723 = vrot.slane %v645, 1
      %v724 = vrot.slane %v647, 1
      %v725 = vsel %vm291, %v723, %v724
      %v726 = vrot.slane %v646, 1
      %v727 = vrot.slane %v648, 1
      %v728 = vsel %vm291, %v726, %v727
      %v745 = vrot.slane %v617, 2
      %v746 = vrot.slane %v619, 2
      %v747 = vsel %vm356, %v745, %v746
      %v748 = vrot.slane %v618, 2
      %v749 = vrot.slane %v620, 2
      %v750 = vsel %vm356, %v748, %v749
      %v751 = vrot.slane %v621, 2
      %v752 = vrot.slane %v623, 2
      %v753 = vsel %vm356, %v751, %v752
      %v754 = vrot.slane %v622, 2
      %v755 = vrot.slane %v624, 2
      %v756 = vsel %vm356, %v754, %v755
      %v757 = vrot.slane %v625, 2
      %v758 = vrot.slane %v627, 2
      %v759 = vsel %vm356, %v757, %v758
      %v760 = vrot.slane %v626, 2
      %v761 = vrot.slane %v628, 2
      %v762 = vsel %vm356, %v760, %v761
      %v763 = vrot.slane %v629, 2
      %v764 = vrot.slane %v631, 2
      %v765 = vsel %vm356, %v763, %v764
      %v766 = vrot.slane %v630, 2
      %v767 = vrot.slane %v632, 2
      %v768 = vsel %vm356, %v766, %v767
      %v769 = vrot.slane %v633, 2
      %v770 = vrot.slane %v635, 2
      %v771 = vsel %vm356, %v769, %v770
      %v772 = vrot.slane %v634, 2
      %v773 = vrot.slane %v636, 2
      %v774 = vsel %vm356, %v772, %v773
      %v775 = vrot.slane %v637, 2
      %v776 = vrot.slane %v639, 2
      %v777 = vsel %vm356, %v775, %v776
      %v778 = vrot.slane %v638, 2
      %v779 = vrot.slane %v640, 2
      %v780 = vsel %vm356, %v778, %v779
      %v781 = vrot.slane %v641, 2
      %v782 = vrot.slane %v643, 2
      %v783 = vsel %vm356, %v781, %v782
      %v784 = vrot.slane %v642, 2
      %v785 = vrot.slane %v644, 2
      %v786 = vsel %vm356, %v784, %v785
      %v787 = vrot.slane %v645, 2
      %v788 = vrot.slane %v647, 2
      %v789 = vsel %vm356, %v787, %v788
      %v790 = vrot.slane %v646, 2
      %v791 = vrot.slane %v648, 2
      %v792 = vsel %vm356, %v790, %v791
      %s809 = scalar_lea.vmem %s1, 1536
      %v810 = vld [vmem:[%s809] sm:$0xff]
      %v811 = vld [vmem:[%s809 + $0x8] sm:$0xff]
      %v812 = vld [vmem:[%s809 + $0x10] sm:$0xff]
      %v813 = vld [vmem:[%s809 + $0x18] sm:$0xff]
      %v814 = vld [vmem:[%s809 + $0x20] sm:$0xff]
      %v815 = vld [vmem:[%s809 + $0x28] sm:$0xff]
      %v816 = vld [vmem:[%s809 + $0x30] sm:$0xff]
      %v817 = vld [vmem:[%s809 + $0x38] sm:$0xff]
      %v818 = vld [vmem:[%s809 + $0x40] sm:$0xff]
      %v819 = vld [vmem:[%s809 + $0x48] sm:$0xff]
      %v820 = vld [vmem:[%s809 + $0x50] sm:$0xff]
      %v821 = vld [vmem:[%s809 + $0x58] sm:$0xff]
      %v822 = vld [vmem:[%s809 + $0x60] sm:$0xff]
      %v823 = vld [vmem:[%s809 + $0x68] sm:$0xff]
      %v824 = vld [vmem:[%s809 + $0x70] sm:$0xff]
      %v825 = vld [vmem:[%s809 + $0x78] sm:$0xff]
      %v826 = vld [vmem:[%s809 + $0x80] sm:$0xff]
      %v827 = vld [vmem:[%s809 + $0x88] sm:$0xff]
      %v828 = vld [vmem:[%s809 + $0x90] sm:$0xff]
      %v829 = vld [vmem:[%s809 + $0x98] sm:$0xff]
      %v830 = vld [vmem:[%s809 + $0xa0] sm:$0xff]
      %v831 = vld [vmem:[%s809 + $0xa8] sm:$0xff]
      %v832 = vld [vmem:[%s809 + $0xb0] sm:$0xff]
      %v833 = vld [vmem:[%s809 + $0xb8] sm:$0xff]
      %v834 = vld [vmem:[%s809 + $0xc0] sm:$0xff]
      %v835 = vld [vmem:[%s809 + $0xc8] sm:$0xff]
      %v836 = vld [vmem:[%s809 + $0xd0] sm:$0xff]
      %v837 = vld [vmem:[%s809 + $0xd8] sm:$0xff]
      %v838 = vld [vmem:[%s809 + $0xe0] sm:$0xff]
      %v839 = vld [vmem:[%s809 + $0xe8] sm:$0xff]
      %v840 = vld [vmem:[%s809 + $0xf0] sm:$0xff]
      %v841 = vld [vmem:[%s809 + $0xf8] sm:$0xff]
      %v842 = vld [vmem:[%s809 + $0x100] sm:$0xff]
      %v843 = vld [vmem:[%s809 + $0x108] sm:$0xff]
      %v844 = vld [vmem:[%s809 + $0x110] sm:$0xff]
      %v845 = vld [vmem:[%s809 + $0x118] sm:$0xff]
      %v846 = vld [vmem:[%s809 + $0x120] sm:$0xff]
      %v847 = vld [vmem:[%s809 + $0x128] sm:$0xff]
      %v848 = vld [vmem:[%s809 + $0x130] sm:$0xff]
      %v849 = vld [vmem:[%s809 + $0x138] sm:$0xff]
      %v850 = vld [vmem:[%s809 + $0x140] sm:$0xff]
      %v851 = vld [vmem:[%s809 + $0x148] sm:$0xff]
      %v852 = vld [vmem:[%s809 + $0x150] sm:$0xff]
      %v853 = vld [vmem:[%s809 + $0x158] sm:$0xff]
      %v854 = vld [vmem:[%s809 + $0x160] sm:$0xff]
      %v855 = vld [vmem:[%s809 + $0x168] sm:$0xff]
      %v856 = vld [vmem:[%s809 + $0x170] sm:$0xff]
      %v857 = vld [vmem:[%s809 + $0x178] sm:$0xff]
      %v858 = vld [vmem:[%s809 + $0x180] sm:$0xff]
      %v859 = vld [vmem:[%s809 + $0x188] sm:$0xff]
      %v860 = vld [vmem:[%s809 + $0x190] sm:$0xff]
      %v861 = vld [vmem:[%s809 + $0x198] sm:$0xff]
      %v862 = vld [vmem:[%s809 + $0x1a0] sm:$0xff]
      %v863 = vld [vmem:[%s809 + $0x1a8] sm:$0xff]
      %v864 = vld [vmem:[%s809 + $0x1b0] sm:$0xff]
      %v865 = vld [vmem:[%s809 + $0x1b8] sm:$0xff]
      %v866 = vld [vmem:[%s809 + $0x1c0] sm:$0xff]
      %v867 = vld [vmem:[%s809 + $0x1c8] sm:$0xff]
      %v868 = vld [vmem:[%s809 + $0x1d0] sm:$0xff]
      %v869 = vld [vmem:[%s809 + $0x1d8] sm:$0xff]
      %v870 = vld [vmem:[%s809 + $0x1e0] sm:$0xff]
      %v871 = vld [vmem:[%s809 + $0x1e8] sm:$0xff]
      %v872 = vld [vmem:[%s809 + $0x1f0] sm:$0xff]
      %v873 = vld [vmem:[%s809 + $0x1f8] sm:$0xff]
      %v874 = vld [vmem:[%s809 + $0x200] sm:$0xff]
      %v875 = vld [vmem:[%s809 + $0x208] sm:$0xff]
      %v876 = vld [vmem:[%s809 + $0x210] sm:$0xff]
      %v877 = vld [vmem:[%s809 + $0x218] sm:$0xff]
      %v878 = vld [vmem:[%s809 + $0x220] sm:$0xff]
      %v879 = vld [vmem:[%s809 + $0x228] sm:$0xff]
      %v880 = vld [vmem:[%s809 + $0x230] sm:$0xff]
      %v881 = vld [vmem:[%s809 + $0x238] sm:$0xff]
      %v882 = vld [vmem:[%s809 + $0x240] sm:$0xff]
      %v883 = vld [vmem:[%s809 + $0x248] sm:$0xff]
      %v884 = vld [vmem:[%s809 + $0x250] sm:$0xff]
      %v885 = vld [vmem:[%s809 + $0x258] sm:$0xff]
      %v886 = vld [vmem:[%s809 + $0x260] sm:$0xff]
      %v887 = vld [vmem:[%s809 + $0x268] sm:$0xff]
      %v888 = vld [vmem:[%s809 + $0x270] sm:$0xff]
      %v889 = vld [vmem:[%s809 + $0x278] sm:$0xff]
      %v890 = vld [vmem:[%s809 + $0x280] sm:$0xff]
      %v891 = vld [vmem:[%s809 + $0x288] sm:$0xff]
      %v892 = vld [vmem:[%s809 + $0x290] sm:$0xff]
      %v893 = vld [vmem:[%s809 + $0x298] sm:$0xff]
      %v894 = vld [vmem:[%s809 + $0x2a0] sm:$0xff]
      %v895 = vld [vmem:[%s809 + $0x2a8] sm:$0xff]
      %v896 = vld [vmem:[%s809 + $0x2b0] sm:$0xff]
      %v897 = vld [vmem:[%s809 + $0x2b8] sm:$0xff]
      %v898 = vld [vmem:[%s809 + $0x2c0] sm:$0xff]
      %v899 = vld [vmem:[%s809 + $0x2c8] sm:$0xff]
      %v900 = vld [vmem:[%s809 + $0x2d0] sm:$0xff]
      %v901 = vld [vmem:[%s809 + $0x2d8] sm:$0xff]
      %v902 = vld [vmem:[%s809 + $0x2e0] sm:$0xff]
      %v903 = vld [vmem:[%s809 + $0x2e8] sm:$0xff]
      %v904 = vld [vmem:[%s809 + $0x2f0] sm:$0xff]
      %v905 = vld [vmem:[%s809 + $0x2f8] sm:$0xff]
      %v906 = vld [vmem:[%s809 + $0x300] sm:$0xff]
      %v907 = vld [vmem:[%s809 + $0x308] sm:$0xff]
      %v908 = vld [vmem:[%s809 + $0x310] sm:$0xff]
      %v909 = vld [vmem:[%s809 + $0x318] sm:$0xff]
      %v910 = vld [vmem:[%s809 + $0x320] sm:$0xff]
      %v911 = vld [vmem:[%s809 + $0x328] sm:$0xff]
      %v912 = vld [vmem:[%s809 + $0x330] sm:$0xff]
      %v913 = vld [vmem:[%s809 + $0x338] sm:$0xff]
      %v914 = vld [vmem:[%s809 + $0x340] sm:$0xff]
      %v915 = vld [vmem:[%s809 + $0x348] sm:$0xff]
      %v916 = vld [vmem:[%s809 + $0x350] sm:$0xff]
      %v917 = vld [vmem:[%s809 + $0x358] sm:$0xff]
      %v918 = vld [vmem:[%s809 + $0x360] sm:$0xff]
      %v919 = vld [vmem:[%s809 + $0x368] sm:$0xff]
      %v920 = vld [vmem:[%s809 + $0x370] sm:$0xff]
      %v921 = vld [vmem:[%s809 + $0x378] sm:$0xff]
      %v922 = vld [vmem:[%s809 + $0x380] sm:$0xff]
      %v923 = vld [vmem:[%s809 + $0x388] sm:$0xff]
      %v924 = vld [vmem:[%s809 + $0x390] sm:$0xff]
      %v925 = vld [vmem:[%s809 + $0x398] sm:$0xff]
      %v926 = vld [vmem:[%s809 + $0x3a0] sm:$0xff]
      %v927 = vld [vmem:[%s809 + $0x3a8] sm:$0xff]
      %v928 = vld [vmem:[%s809 + $0x3b0] sm:$0xff]
      %v929 = vld [vmem:[%s809 + $0x3b8] sm:$0xff]
      %v930 = vld [vmem:[%s809 + $0x3c0] sm:$0xff]
      %v931 = vld [vmem:[%s809 + $0x3c8] sm:$0xff]
      %v932 = vld [vmem:[%s809 + $0x3d0] sm:$0xff]
      %v933 = vld [vmem:[%s809 + $0x3d8] sm:$0xff]
      %v934 = vld [vmem:[%s809 + $0x3e0] sm:$0xff]
      %v935 = vld [vmem:[%s809 + $0x3e8] sm:$0xff]
      %v936 = vld [vmem:[%s809 + $0x3f0] sm:$0xff]
      %v937 = vld [vmem:[%s809 + $0x3f8] sm:$0xff]
      %v938 = vld [vmem:[%s809 + $0x400] sm:$0xff]
      %v939 = vld [vmem:[%s809 + $0x408] sm:$0xff]
      %v940 = vld [vmem:[%s809 + $0x410] sm:$0xff]
      %v941 = vld [vmem:[%s809 + $0x418] sm:$0xff]
      %v942 = vld [vmem:[%s809 + $0x420] sm:$0xff]
      %v943 = vld [vmem:[%s809 + $0x428] sm:$0xff]
      %v944 = vld [vmem:[%s809 + $0x430] sm:$0xff]
      %v945 = vld [vmem:[%s809 + $0x438] sm:$0xff]
      %v946 = vld [vmem:[%s809 + $0x440] sm:$0xff]
      %v947 = vld [vmem:[%s809 + $0x448] sm:$0xff]
      %v948 = vld [vmem:[%s809 + $0x450] sm:$0xff]
      %v949 = vld [vmem:[%s809 + $0x458] sm:$0xff]
      %v950 = vld [vmem:[%s809 + $0x460] sm:$0xff]
      %v951 = vld [vmem:[%s809 + $0x468] sm:$0xff]
      %v952 = vld [vmem:[%s809 + $0x470] sm:$0xff]
      %v953 = vld [vmem:[%s809 + $0x478] sm:$0xff]
      %v954 = vld [vmem:[%s809 + $0x480] sm:$0xff]
      %v955 = vld [vmem:[%s809 + $0x488] sm:$0xff]
      %v956 = vld [vmem:[%s809 + $0x490] sm:$0xff]
      %v957 = vld [vmem:[%s809 + $0x498] sm:$0xff]
      %v958 = vld [vmem:[%s809 + $0x4a0] sm:$0xff]
      %v959 = vld [vmem:[%s809 + $0x4a8] sm:$0xff]
      %v960 = vld [vmem:[%s809 + $0x4b0] sm:$0xff]
      %v961 = vld [vmem:[%s809 + $0x4b8] sm:$0xff]
      %v962 = vld [vmem:[%s809 + $0x4c0] sm:$0xff]
      %v963 = vld [vmem:[%s809 + $0x4c8] sm:$0xff]
      %v964 = vld [vmem:[%s809 + $0x4d0] sm:$0xff]
      %v965 = vld [vmem:[%s809 + $0x4d8] sm:$0xff]
      %v966 = vld [vmem:[%s809 + $0x4e0] sm:$0xff]
      %v967 = vld [vmem:[%s809 + $0x4e8] sm:$0xff]
      %v968 = vld [vmem:[%s809 + $0x4f0] sm:$0xff]
      %v969 = vld [vmem:[%s809 + $0x4f8] sm:$0xff]
      %v970 = vld [vmem:[%s809 + $0x500] sm:$0xff]
      %v971 = vld [vmem:[%s809 + $0x508] sm:$0xff]
      %v972 = vld [vmem:[%s809 + $0x510] sm:$0xff]
      %v973 = vld [vmem:[%s809 + $0x518] sm:$0xff]
      %v974 = vld [vmem:[%s809 + $0x520] sm:$0xff]
      %v975 = vld [vmem:[%s809 + $0x528] sm:$0xff]
      %v976 = vld [vmem:[%s809 + $0x530] sm:$0xff]
      %v977 = vld [vmem:[%s809 + $0x538] sm:$0xff]
      %v978 = vld [vmem:[%s809 + $0x540] sm:$0xff]
      %v979 = vld [vmem:[%s809 + $0x548] sm:$0xff]
      %v980 = vld [vmem:[%s809 + $0x550] sm:$0xff]
      %v981 = vld [vmem:[%s809 + $0x558] sm:$0xff]
      %v982 = vld [vmem:[%s809 + $0x560] sm:$0xff]
      %v983 = vld [vmem:[%s809 + $0x568] sm:$0xff]
      %v984 = vld [vmem:[%s809 + $0x570] sm:$0xff]
      %v985 = vld [vmem:[%s809 + $0x578] sm:$0xff]
      %v986 = vld [vmem:[%s809 + $0x580] sm:$0xff]
      %v987 = vld [vmem:[%s809 + $0x588] sm:$0xff]
      %v988 = vld [vmem:[%s809 + $0x590] sm:$0xff]
      %v989 = vld [vmem:[%s809 + $0x598] sm:$0xff]
      %v990 = vld [vmem:[%s809 + $0x5a0] sm:$0xff]
      %v991 = vld [vmem:[%s809 + $0x5a8] sm:$0xff]
      %v992 = vld [vmem:[%s809 + $0x5b0] sm:$0xff]
      %v993 = vld [vmem:[%s809 + $0x5b8] sm:$0xff]
      %v994 = vld [vmem:[%s809 + $0x5c0] sm:$0xff]
      %v995 = vld [vmem:[%s809 + $0x5c8] sm:$0xff]
      %v996 = vld [vmem:[%s809 + $0x5d0] sm:$0xff]
      %v997 = vld [vmem:[%s809 + $0x5d8] sm:$0xff]
      %v998 = vld [vmem:[%s809 + $0x5e0] sm:$0xff]
      %v999 = vld [vmem:[%s809 + $0x5e8] sm:$0xff]
      %v1000 = vld [vmem:[%s809 + $0x5f0] sm:$0xff]
      %v1001 = vld [vmem:[%s809 + $0x5f8] sm:$0xff]
      %1002 = vmatpush.msra.mxu0 %v840
      %1003 = vmatpush.msra.mxu0 %v838
      %1004 = vmatpush.msra.mxu0 %v836
      %1005 = vmatpush.msra.mxu0 %v834
      %1006 = vmatpush.msra.mxu0 %v832
      %1007 = vmatpush.msra.mxu0 %v830
      %1008 = vmatpush.msra.mxu0 %v828
      %1009 = vmatpush.msra.mxu0 %v826
      %1010 = vmatpush.msra.mxu0 %v824
      %1011 = vmatpush.msra.mxu0 %v822
      %1012 = vmatpush.msra.mxu0 %v820
      %1013 = vmatpush.msra.mxu0 %v818
      %1014 = vmatpush.msra.mxu0 %v816
      %1015 = vmatpush.msra.mxu0 %v814
      %1016 = vmatpush.msra.mxu0 %v812
      %1017 = vmatpush.msra.mxu0 %v810
      %1018 = vmatmul.f32.gmra.mxu0 %v617
      %v1019 = vpop.f32.mrf.mxu0
      %v1020 = vadd.f32 0.0, %v1019
      %1021 = vmatmul.f32.gmra.mxu0 %v621
      %v1022 = vpop.f32.mrf.mxu0
      %v1023 = vadd.f32 0.0, %v1022
      %1024 = vmatmul.f32.gmra.mxu0 %v625
      %v1025 = vpop.f32.mrf.mxu0
      %v1026 = vadd.f32 0.0, %v1025
      %1027 = vmatmul.f32.gmra.mxu0 %v629
      %v1028 = vpop.f32.mrf.mxu0
      %v1029 = vadd.f32 0.0, %v1028
      %1030 = vmatmul.f32.gmra.mxu0 %v633
      %v1031 = vpop.f32.mrf.mxu0
      %v1032 = vadd.f32 0.0, %v1031
      %1033 = vmatmul.f32.gmra.mxu0 %v637
      %v1034 = vpop.f32.mrf.mxu0
      %v1035 = vadd.f32 0.0, %v1034
      %1036 = vmatmul.f32.gmra.mxu0 %v641
      %v1037 = vpop.f32.mrf.mxu0
      %v1038 = vadd.f32 0.0, %v1037
      %1039 = vmatmul.f32.gmra.mxu0 %v645
      %v1040 = vpop.f32.mrf.mxu0
      %v1041 = vadd.f32 0.0, %v1040
      %1042 = vdwg.mxu0
      %1043 = vmatpush.msra.mxu0 %v872
      %1044 = vmatpush.msra.mxu0 %v870
      %1045 = vmatpush.msra.mxu0 %v868
      %1046 = vmatpush.msra.mxu0 %v866
      %1047 = vmatpush.msra.mxu0 %v864
      %1048 = vmatpush.msra.mxu0 %v862
      %1049 = vmatpush.msra.mxu0 %v860
      %1050 = vmatpush.msra.mxu0 %v858
      %1051 = vmatpush.msra.mxu0 %v856
      %1052 = vmatpush.msra.mxu0 %v854
      %1053 = vmatpush.msra.mxu0 %v852
      %1054 = vmatpush.msra.mxu0 %v850
      %1055 = vmatpush.msra.mxu0 %v848
      %1056 = vmatpush.msra.mxu0 %v846
      %1057 = vmatpush.msra.mxu0 %v844
      %1058 = vmatpush.msra.mxu0 %v842
      %1059 = vmatmul.f32.gmra.mxu0 %v618
      %v1060 = vpop.f32.mrf.mxu0
      %v1061 = vadd.f32 %v1020, %v1060
      %1062 = vmatmul.f32.gmra.mxu0 %v622
      %v1063 = vpop.f32.mrf.mxu0
      %v1064 = vadd.f32 %v1023, %v1063
      %1065 = vmatmul.f32.gmra.mxu0 %v626
      %v1066 = vpop.f32.mrf.mxu0
      %v1067 = vadd.f32 %v1026, %v1066
      %1068 = vmatmul.f32.gmra.mxu0 %v630
      %v1069 = vpop.f32.mrf.mxu0
      %v1070 = vadd.f32 %v1029, %v1069
      %1071 = vmatmul.f32.gmra.mxu0 %v634
      %v1072 = vpop.f32.mrf.mxu0
      %v1073 = vadd.f32 %v1032, %v1072
      %1074 = vmatmul.f32.gmra.mxu0 %v638
      %v1075 = vpop.f32.mrf.mxu0
      %v1076 = vadd.f32 %v1035, %v1075
      %1077 = vmatmul.f32.gmra.mxu0 %v642
      %v1078 = vpop.f32.mrf.mxu0
      %v1079 = vadd.f32 %v1038, %v1078
      %1080 = vmatmul.f32.gmra.mxu0 %v646
      %v1081 = vpop.f32.mrf.mxu0
      %v1082 = vadd.f32 %v1041, %v1081
      %1083 = vdwg.mxu0
      %1084 = vmatpush.msra.mxu0 %v904
      %1085 = vmatpush.msra.mxu0 %v902
      %1086 = vmatpush.msra.mxu0 %v900
      %1087 = vmatpush.msra.mxu0 %v898
      %1088 = vmatpush.msra.mxu0 %v896
      %1089 = vmatpush.msra.mxu0 %v894
      %1090 = vmatpush.msra.mxu0 %v892
      %1091 = vmatpush.msra.mxu0 %v890
      %1092 = vmatpush.msra.mxu0 %v888
      %1093 = vmatpush.msra.mxu0 %v886
      %1094 = vmatpush.msra.mxu0 %v884
      %1095 = vmatpush.msra.mxu0 %v882
      %1096 = vmatpush.msra.mxu0 %v880
      %1097 = vmatpush.msra.mxu0 %v878
      %1098 = vmatpush.msra.mxu0 %v876
      %1099 = vmatpush.msra.mxu0 %v874
      %1100 = vmatmul.f32.gmra.mxu0 %v683
      %v1101 = vpop.f32.mrf.mxu0
      %v1102 = vadd.f32 %v1061, %v1101
      %1103 = vmatmul.f32.gmra.mxu0 %v689
      %v1104 = vpop.f32.mrf.mxu0
      %v1105 = vadd.f32 %v1064, %v1104
      %1106 = vmatmul.f32.gmra.mxu0 %v695
      %v1107 = vpop.f32.mrf.mxu0
      %v1108 = vadd.f32 %v1067, %v1107
      %1109 = vmatmul.f32.gmra.mxu0 %v701
      %v1110 = vpop.f32.mrf.mxu0
      %v1111 = vadd.f32 %v1070, %v1110
      %1112 = vmatmul.f32.gmra.mxu0 %v707
      %v1113 = vpop.f32.mrf.mxu0
      %v1114 = vadd.f32 %v1073, %v1113
      %1115 = vmatmul.f32.gmra.mxu0 %v713
      %v1116 = vpop.f32.mrf.mxu0
      %v1117 = vadd.f32 %v1076, %v1116
      %1118 = vmatmul.f32.gmra.mxu0 %v719
      %v1119 = vpop.f32.mrf.mxu0
      %v1120 = vadd.f32 %v1079, %v1119
      %1121 = vmatmul.f32.gmra.mxu0 %v725
      %v1122 = vpop.f32.mrf.mxu0
      %v1123 = vadd.f32 %v1082, %v1122
      %1124 = vdwg.mxu0
      %1125 = vmatpush.msra.mxu0 %v936
      %1126 = vmatpush.msra.mxu0 %v934
      %1127 = vmatpush.msra.mxu0 %v932
      %1128 = vmatpush.msra.mxu0 %v930
      %1129 = vmatpush.msra.mxu0 %v928
      %1130 = vmatpush.msra.mxu0 %v926
      %1131 = vmatpush.msra.mxu0 %v924
      %1132 = vmatpush.msra.mxu0 %v922
      %1133 = vmatpush.msra.mxu0 %v920
      %1134 = vmatpush.msra.mxu0 %v918
      %1135 = vmatpush.msra.mxu0 %v916
      %1136 = vmatpush.msra.mxu0 %v914
      %1137 = vmatpush.msra.mxu0 %v912
      %1138 = vmatpush.msra.mxu0 %v910
      %1139 = vmatpush.msra.mxu0 %v908
      %1140 = vmatpush.msra.mxu0 %v906
      %1141 = vmatmul.f32.gmra.mxu0 %v686
      %v1142 = vpop.f32.mrf.mxu0
      %v1143 = vadd.f32 %v1102, %v1142
      %1144 = vmatmul.f32.gmra.mxu0 %v692
      %v1145 = vpop.f32.mrf.mxu0
      %v1146 = vadd.f32 %v1105, %v1145
      %1147 = vmatmul.f32.gmra.mxu0 %v698
      %v1148 = vpop.f32.mrf.mxu0
      %v1149 = vadd.f32 %v1108, %v1148
      %1150 = vmatmul.f32.gmra.mxu0 %v704
      %v1151 = vpop.f32.mrf.mxu0
      %v1152 = vadd.f32 %v1111, %v1151
      %1153 = vmatmul.f32.gmra.mxu0 %v710
      %v1154 = vpop.f32.mrf.mxu0
      %v1155 = vadd.f32 %v1114, %v1154
      %1156 = vmatmul.f32.gmra.mxu0 %v716
      %v1157 = vpop.f32.mrf.mxu0
      %v1158 = vadd.f32 %v1117, %v1157
      %1159 = vmatmul.f32.gmra.mxu0 %v722
      %v1160 = vpop.f32.mrf.mxu0
      %v1161 = vadd.f32 %v1120, %v1160
      %1162 = vmatmul.f32.gmra.mxu0 %v728
      %v1163 = vpop.f32.mrf.mxu0
      %v1164 = vadd.f32 %v1123, %v1163
      %1165 = vdwg.mxu0
      %1166 = vmatpush.msra.mxu0 %v968
      %1167 = vmatpush.msra.mxu0 %v966
      %1168 = vmatpush.msra.mxu0 %v964
      %1169 = vmatpush.msra.mxu0 %v962
      %1170 = vmatpush.msra.mxu0 %v960
      %1171 = vmatpush.msra.mxu0 %v958
      %1172 = vmatpush.msra.mxu0 %v956
      %1173 = vmatpush.msra.mxu0 %v954
      %1174 = vmatpush.msra.mxu0 %v952
      %1175 = vmatpush.msra.mxu0 %v950
      %1176 = vmatpush.msra.mxu0 %v948
      %1177 = vmatpush.msra.mxu0 %v946
      %1178 = vmatpush.msra.mxu0 %v944
      %1179 = vmatpush.msra.mxu0 %v942
      %1180 = vmatpush.msra.mxu0 %v940
      %1181 = vmatpush.msra.mxu0 %v938
      %1182 = vmatmul.f32.gmra.mxu0 %v747
      %v1183 = vpop.f32.mrf.mxu0
      %v1184 = vadd.f32 %v1143, %v1183
      %1185 = vmatmul.f32.gmra.mxu0 %v753
      %v1186 = vpop.f32.mrf.mxu0
      %v1187 = vadd.f32 %v1146, %v1186
      %1188 = vmatmul.f32.gmra.mxu0 %v759
      %v1189 = vpop.f32.mrf.mxu0
      %v1190 = vadd.f32 %v1149, %v1189
      %1191 = vmatmul.f32.gmra.mxu0 %v765
      %v1192 = vpop.f32.mrf.mxu0
      %v1193 = vadd.f32 %v1152, %v1192
      %1194 = vmatmul.f32.gmra.mxu0 %v771
      %v1195 = vpop.f32.mrf.mxu0
      %v1196 = vadd.f32 %v1155, %v1195
      %1197 = vmatmul.f32.gmra.mxu0 %v777
      %v1198 = vpop.f32.mrf.mxu0
      %v1199 = vadd.f32 %v1158, %v1198
      %1200 = vmatmul.f32.gmra.mxu0 %v783
      %v1201 = vpop.f32.mrf.mxu0
      %v1202 = vadd.f32 %v1161, %v1201
      %1203 = vmatmul.f32.gmra.mxu0 %v789
      %v1204 = vpop.f32.mrf.mxu0
      %v1205 = vadd.f32 %v1164, %v1204
      %1206 = vdwg.mxu0
      %1207 = vmatpush.msra.mxu0 %v1000
      %1208 = vmatpush.msra.mxu0 %v998
      %1209 = vmatpush.msra.mxu0 %v996
      %1210 = vmatpush.msra.mxu0 %v994
      %1211 = vmatpush.msra.mxu0 %v992
      %1212 = vmatpush.msra.mxu0 %v990
      %1213 = vmatpush.msra.mxu0 %v988
      %1214 = vmatpush.msra.mxu0 %v986
      %1215 = vmatpush.msra.mxu0 %v984
      %1216 = vmatpush.msra.mxu0 %v982
      %1217 = vmatpush.msra.mxu0 %v980
      %1218 = vmatpush.msra.mxu0 %v978
      %1219 = vmatpush.msra.mxu0 %v976
      %1220 = vmatpush.msra.mxu0 %v974
      %1221 = vmatpush.msra.mxu0 %v972
      %1222 = vmatpush.msra.mxu0 %v970
      %1223 = vmatmul.f32.gmra.mxu0 %v750
      %v1224 = vpop.f32.mrf.mxu0
      %v1225 = vadd.f32 %v1184, %v1224
      %1226 = vmatmul.f32.gmra.mxu0 %v756
      %v1227 = vpop.f32.mrf.mxu0
      %v1228 = vadd.f32 %v1187, %v1227
      %1229 = vmatmul.f32.gmra.mxu0 %v762
      %v1230 = vpop.f32.mrf.mxu0
      %v1231 = vadd.f32 %v1190, %v1230
      %1232 = vmatmul.f32.gmra.mxu0 %v768
      %v1233 = vpop.f32.mrf.mxu0
      %v1234 = vadd.f32 %v1193, %v1233
      %1235 = vmatmul.f32.gmra.mxu0 %v774
      %v1236 = vpop.f32.mrf.mxu0
      %v1237 = vadd.f32 %v1196, %v1236
      %1238 = vmatmul.f32.gmra.mxu0 %v780
      %v1239 = vpop.f32.mrf.mxu0
      %v1240 = vadd.f32 %v1199, %v1239
      %1241 = vmatmul.f32.gmra.mxu0 %v786
      %v1242 = vpop.f32.mrf.mxu0
      %v1243 = vadd.f32 %v1202, %v1242
      %1244 = vmatmul.f32.gmra.mxu0 %v792
      %v1245 = vpop.f32.mrf.mxu0
      %v1246 = vadd.f32 %v1205, %v1245
      %1247 = vdwg.mxu0
      %1248 = vmatpush.msra.mxu0 %v841
      %1249 = vmatpush.msra.mxu0 %v839
      %1250 = vmatpush.msra.mxu0 %v837
      %1251 = vmatpush.msra.mxu0 %v835
      %1252 = vmatpush.msra.mxu0 %v833
      %1253 = vmatpush.msra.mxu0 %v831
      %1254 = vmatpush.msra.mxu0 %v829
      %1255 = vmatpush.msra.mxu0 %v827
      %1256 = vmatpush.msra.mxu0 %v825
      %1257 = vmatpush.msra.mxu0 %v823
      %1258 = vmatpush.msra.mxu0 %v821
      %1259 = vmatpush.msra.mxu0 %v819
      %1260 = vmatpush.msra.mxu0 %v817
      %1261 = vmatpush.msra.mxu0 %v815
      %1262 = vmatpush.msra.mxu0 %v813
      %1263 = vmatpush.msra.mxu0 %v811
      %1264 = vmatmul.f32.gmra.mxu0 %v617
      %v1265 = vpop.f32.mrf.mxu0
      %v1266 = vadd.f32 0.0, %v1265
      %1267 = vmatmul.f32.gmra.mxu0 %v621
      %v1268 = vpop.f32.mrf.mxu0
      %v1269 = vadd.f32 0.0, %v1268
      %1270 = vmatmul.f32.gmra.mxu0 %v625
      %v1271 = vpop.f32.mrf.mxu0
      %v1272 = vadd.f32 0.0, %v1271
      %1273 = vmatmul.f32.gmra.mxu0 %v629
      %v1274 = vpop.f32.mrf.mxu0
      %v1275 = vadd.f32 0.0, %v1274
      %1276 = vmatmul.f32.gmra.mxu0 %v633
      %v1277 = vpop.f32.mrf.mxu0
      %v1278 = vadd.f32 0.0, %v1277
      %1279 = vmatmul.f32.gmra.mxu0 %v637
      %v1280 = vpop.f32.mrf.mxu0
      %v1281 = vadd.f32 0.0, %v1280
      %1282 = vmatmul.f32.gmra.mxu0 %v641
      %v1283 = vpop.f32.mrf.mxu0
      %v1284 = vadd.f32 0.0, %v1283
      %1285 = vmatmul.f32.gmra.mxu0 %v645
      %v1286 = vpop.f32.mrf.mxu0
      %v1287 = vadd.f32 0.0, %v1286
      %1288 = vdwg.mxu0
      %1289 = vmatpush.msra.mxu0 %v873
      %1290 = vmatpush.msra.mxu0 %v871
      %1291 = vmatpush.msra.mxu0 %v869
      %1292 = vmatpush.msra.mxu0 %v867
      %1293 = vmatpush.msra.mxu0 %v865
      %1294 = vmatpush.msra.mxu0 %v863
      %1295 = vmatpush.msra.mxu0 %v861
      %1296 = vmatpush.msra.mxu0 %v859
      %1297 = vmatpush.msra.mxu0 %v857
      %1298 = vmatpush.msra.mxu0 %v855
      %1299 = vmatpush.msra.mxu0 %v853
      %1300 = vmatpush.msra.mxu0 %v851
      %1301 = vmatpush.msra.mxu0 %v849
      %1302 = vmatpush.msra.mxu0 %v847
      %1303 = vmatpush.msra.mxu0 %v845
      %1304 = vmatpush.msra.mxu0 %v843
      %1305 = vmatmul.f32.gmra.mxu0 %v618
      %v1306 = vpop.f32.mrf.mxu0
      %v1307 = vadd.f32 %v1266, %v1306
      %1308 = vmatmul.f32.gmra.mxu0 %v622
      %v1309 = vpop.f32.mrf.mxu0
      %v1310 = vadd.f32 %v1269, %v1309
      %1311 = vmatmul.f32.gmra.mxu0 %v626
      %v1312 = vpop.f32.mrf.mxu0
      %v1313 = vadd.f32 %v1272, %v1312
      %1314 = vmatmul.f32.gmra.mxu0 %v630
      %v1315 = vpop.f32.mrf.mxu0
      %v1316 = vadd.f32 %v1275, %v1315
      %1317 = vmatmul.f32.gmra.mxu0 %v634
      %v1318 = vpop.f32.mrf.mxu0
      %v1319 = vadd.f32 %v1278, %v1318
      %1320 = vmatmul.f32.gmra.mxu0 %v638
      %v1321 = vpop.f32.mrf.mxu0
      %v1322 = vadd.f32 %v1281, %v1321
      %1323 = vmatmul.f32.gmra.mxu0 %v642
      %v1324 = vpop.f32.mrf.mxu0
      %v1325 = vadd.f32 %v1284, %v1324
      %1326 = vmatmul.f32.gmra.mxu0 %v646
      %v1327 = vpop.f32.mrf.mxu0
      %v1328 = vadd.f32 %v1287, %v1327
      %1329 = vdwg.mxu0
      %1330 = vmatpush.msra.mxu0 %v905
      %1331 = vmatpush.msra.mxu0 %v903
      %1332 = vmatpush.msra.mxu0 %v901
      %1333 = vmatpush.msra.mxu0 %v899
      %1334 = vmatpush.msra.mxu0 %v897
      %1335 = vmatpush.msra.mxu0 %v895
      %1336 = vmatpush.msra.mxu0 %v893
      %1337 = vmatpush.msra.mxu0 %v891
      %1338 = vmatpush.msra.mxu0 %v889
      %1339 = vmatpush.msra.mxu0 %v887
      %1340 = vmatpush.msra.mxu0 %v885
      %1341 = vmatpush.msra.mxu0 %v883
      %1342 = vmatpush.msra.mxu0 %v881
      %1343 = vmatpush.msra.mxu0 %v879
      %1344 = vmatpush.msra.mxu0 %v877
      %1345 = vmatpush.msra.mxu0 %v875
      %1346 = vmatmul.f32.gmra.mxu0 %v683
      %v1347 = vpop.f32.mrf.mxu0
      %v1348 = vadd.f32 %v1307, %v1347
      %1349 = vmatmul.f32.gmra.mxu0 %v689
      %v1350 = vpop.f32.mrf.mxu0
      %v1351 = vadd.f32 %v1310, %v1350
      %1352 = vmatmul.f32.gmra.mxu0 %v695
      %v1353 = vpop.f32.mrf.mxu0
      %v1354 = vadd.f32 %v1313, %v1353
      %1355 = vmatmul.f32.gmra.mxu0 %v701
      %v1356 = vpop.f32.mrf.mxu0
      %v1357 = vadd.f32 %v1316, %v1356
      %1358 = vmatmul.f32.gmra.mxu0 %v707
      %v1359 = vpop.f32.mrf.mxu0
      %v1360 = vadd.f32 %v1319, %v1359
      %1361 = vmatmul.f32.gmra.mxu0 %v713
      %v1362 = vpop.f32.mrf.mxu0
      %v1363 = vadd.f32 %v1322, %v1362
      %1364 = vmatmul.f32.gmra.mxu0 %v719
      %v1365 = vpop.f32.mrf.mxu0
      %v1366 = vadd.f32 %v1325, %v1365
      %1367 = vmatmul.f32.gmra.mxu0 %v725
      %v1368 = vpop.f32.mrf.mxu0
      %v1369 = vadd.f32 %v1328, %v1368
      %1370 = vdwg.mxu0
      %1371 = vmatpush.msra.mxu0 %v937
      %1372 = vmatpush.msra.mxu0 %v935
      %1373 = vmatpush.msra.mxu0 %v933
      %1374 = vmatpush.msra.mxu0 %v931
      %1375 = vmatpush.msra.mxu0 %v929
      %1376 = vmatpush.msra.mxu0 %v927
      %1377 = vmatpush.msra.mxu0 %v925
      %1378 = vmatpush.msra.mxu0 %v923
      %1379 = vmatpush.msra.mxu0 %v921
      %1380 = vmatpush.msra.mxu0 %v919
      %1381 = vmatpush.msra.mxu0 %v917
      %1382 = vmatpush.msra.mxu0 %v915
      %1383 = vmatpush.msra.mxu0 %v913
      %1384 = vmatpush.msra.mxu0 %v911
      %1385 = vmatpush.msra.mxu0 %v909
      %1386 = vmatpush.msra.mxu0 %v907
      %1387 = vmatmul.f32.gmra.mxu0 %v686
      %v1388 = vpop.f32.mrf.mxu0
      %v1389 = vadd.f32 %v1348, %v1388
      %1390 = vmatmul.f32.gmra.mxu0 %v692
      %v1391 = vpop.f32.mrf.mxu0
      %v1392 = vadd.f32 %v1351, %v1391
      %1393 = vmatmul.f32.gmra.mxu0 %v698
      %v1394 = vpop.f32.mrf.mxu0
      %v1395 = vadd.f32 %v1354, %v1394
      %1396 = vmatmul.f32.gmra.mxu0 %v704
      %v1397 = vpop.f32.mrf.mxu0
      %v1398 = vadd.f32 %v1357, %v1397
      %1399 = vmatmul.f32.gmra.mxu0 %v710
      %v1400 = vpop.f32.mrf.mxu0
      %v1401 = vadd.f32 %v1360, %v1400
      %1402 = vmatmul.f32.gmra.mxu0 %v716
      %v1403 = vpop.f32.mrf.mxu0
      %v1404 = vadd.f32 %v1363, %v1403
      %1405 = vmatmul.f32.gmra.mxu0 %v722
      %v1406 = vpop.f32.mrf.mxu0
      %v1407 = vadd.f32 %v1366, %v1406
      %1408 = vmatmul.f32.gmra.mxu0 %v728
      %v1409 = vpop.f32.mrf.mxu0
      %v1410 = vadd.f32 %v1369, %v1409
      %1411 = vdwg.mxu0
      %1412 = vmatpush.msra.mxu0 %v969
      %1413 = vmatpush.msra.mxu0 %v967
      %1414 = vmatpush.msra.mxu0 %v965
      %1415 = vmatpush.msra.mxu0 %v963
      %1416 = vmatpush.msra.mxu0 %v961
      %1417 = vmatpush.msra.mxu0 %v959
      %1418 = vmatpush.msra.mxu0 %v957
      %1419 = vmatpush.msra.mxu0 %v955
      %1420 = vmatpush.msra.mxu0 %v953
      %1421 = vmatpush.msra.mxu0 %v951
      %1422 = vmatpush.msra.mxu0 %v949
      %1423 = vmatpush.msra.mxu0 %v947
      %1424 = vmatpush.msra.mxu0 %v945
      %1425 = vmatpush.msra.mxu0 %v943
      %1426 = vmatpush.msra.mxu0 %v941
      %1427 = vmatpush.msra.mxu0 %v939
      %1428 = vmatmul.f32.gmra.mxu0 %v747
      %v1429 = vpop.f32.mrf.mxu0
      %v1430 = vadd.f32 %v1389, %v1429
      %1431 = vmatmul.f32.gmra.mxu0 %v753
      %v1432 = vpop.f32.mrf.mxu0
      %v1433 = vadd.f32 %v1392, %v1432
      %1434 = vmatmul.f32.gmra.mxu0 %v759
      %v1435 = vpop.f32.mrf.mxu0
      %v1436 = vadd.f32 %v1395, %v1435
      %1437 = vmatmul.f32.gmra.mxu0 %v765
      %v1438 = vpop.f32.mrf.mxu0
      %v1439 = vadd.f32 %v1398, %v1438
      %1440 = vmatmul.f32.gmra.mxu0 %v771
      %v1441 = vpop.f32.mrf.mxu0
      %v1442 = vadd.f32 %v1401, %v1441
      %1443 = vmatmul.f32.gmra.mxu0 %v777
      %v1444 = vpop.f32.mrf.mxu0
      %v1445 = vadd.f32 %v1404, %v1444
      %1446 = vmatmul.f32.gmra.mxu0 %v783
      %v1447 = vpop.f32.mrf.mxu0
      %v1448 = vadd.f32 %v1407, %v1447
      %1449 = vmatmul.f32.gmra.mxu0 %v789
      %v1450 = vpop.f32.mrf.mxu0
      %v1451 = vadd.f32 %v1410, %v1450
      %1452 = vdwg.mxu0
      %1453 = vmatpush.msra.mxu0 %v1001
      %1454 = vmatpush.msra.mxu0 %v999
      %1455 = vmatpush.msra.mxu0 %v997
      %1456 = vmatpush.msra.mxu0 %v995
      %1457 = vmatpush.msra.mxu0 %v993
      %1458 = vmatpush.msra.mxu0 %v991
      %1459 = vmatpush.msra.mxu0 %v989
      %1460 = vmatpush.msra.mxu0 %v987
      %1461 = vmatpush.msra.mxu0 %v985
      %1462 = vmatpush.msra.mxu0 %v983
      %1463 = vmatpush.msra.mxu0 %v981
      %1464 = vmatpush.msra.mxu0 %v979
      %1465 = vmatpush.msra.mxu0 %v977
      %1466 = vmatpush.msra.mxu0 %v975
      %1467 = vmatpush.msra.mxu0 %v973
      %1468 = vmatpush.msra.mxu0 %v971
      %1469 = vmatmul.f32.gmra.mxu0 %v750
      %v1470 = vpop.f32.mrf.mxu0
      %v1471 = vadd.f32 %v1430, %v1470
      %1472 = vmatmul.f32.gmra.mxu0 %v756
      %v1473 = vpop.f32.mrf.mxu0
      %v1474 = vadd.f32 %v1433, %v1473
      %1475 = vmatmul.f32.gmra.mxu0 %v762
      %v1476 = vpop.f32.mrf.mxu0
      %v1477 = vadd.f32 %v1436, %v1476
      %1478 = vmatmul.f32.gmra.mxu0 %v768
      %v1479 = vpop.f32.mrf.mxu0
      %v1480 = vadd.f32 %v1439, %v1479
      %1481 = vmatmul.f32.gmra.mxu0 %v774
      %v1482 = vpop.f32.mrf.mxu0
      %v1483 = vadd.f32 %v1442, %v1482
      %1484 = vmatmul.f32.gmra.mxu0 %v780
      %v1485 = vpop.f32.mrf.mxu0
      %v1486 = vadd.f32 %v1445, %v1485
      %1487 = vmatmul.f32.gmra.mxu0 %v786
      %v1488 = vpop.f32.mrf.mxu0
      %v1489 = vadd.f32 %v1448, %v1488
      %1490 = vmatmul.f32.gmra.mxu0 %v792
      %v1491 = vpop.f32.mrf.mxu0
      %v1492 = vadd.f32 %v1451, %v1491
      %1493 = vdwg.mxu0
      %1494 = vmatpush.msra.mxu0 %v451
      %1495 = vmatpush.msra.mxu0 %v449
      %1496 = vmatpush.msra.mxu0 %v447
      %1497 = vmatpush.msra.mxu0 %v445
      %1498 = vmatpush.msra.mxu0 %v443
      %1499 = vmatpush.msra.mxu0 %v441
      %1500 = vmatpush.msra.mxu0 %v439
      %1501 = vmatpush.msra.mxu0 %v437
      %1502 = vmatpush.msra.mxu0 %v435
      %1503 = vmatpush.msra.mxu0 %v433
      %1504 = vmatpush.msra.mxu0 %v431
      %1505 = vmatpush.msra.mxu0 %v429
      %1506 = vmatpush.msra.mxu0 %v427
      %1507 = vmatpush.msra.mxu0 %v425
      %1508 = vmatpush.msra.mxu0 %v423
      %1509 = vmatpush.msra.mxu0 %v421
      %1510 = vmatmul.f32.gmra.mxu0 %v227
      %v1511 = vpop.f32.mrf.mxu0
      %v1512 = vadd.f32 %v1225, %v1511
      %1513 = vmatmul.f32.gmra.mxu0 %v231
      %v1514 = vpop.f32.mrf.mxu0
      %v1515 = vadd.f32 %v1228, %v1514
      %1516 = vmatmul.f32.gmra.mxu0 %v235
      %v1517 = vpop.f32.mrf.mxu0
      %v1518 = vadd.f32 %v1231, %v1517
      %1519 = vmatmul.f32.gmra.mxu0 %v239
      %v1520 = vpop.f32.mrf.mxu0
      %v1521 = vadd.f32 %v1234, %v1520
      %1522 = vmatmul.f32.gmra.mxu0 %v243
      %v1523 = vpop.f32.mrf.mxu0
      %v1524 = vadd.f32 %v1237, %v1523
      %1525 = vmatmul.f32.gmra.mxu0 %v247
      %v1526 = vpop.f32.mrf.mxu0
      %v1527 = vadd.f32 %v1240, %v1526
      %1528 = vmatmul.f32.gmra.mxu0 %v251
      %v1529 = vpop.f32.mrf.mxu0
      %v1530 = vadd.f32 %v1243, %v1529
      %1531 = vmatmul.f32.gmra.mxu0 %v255
      %v1532 = vpop.f32.mrf.mxu0
      %v1533 = vadd.f32 %v1246, %v1532
      %1534 = vdwg.mxu0
      %1535 = vmatpush.msra.mxu0 %v483
      %1536 = vmatpush.msra.mxu0 %v481
      %1537 = vmatpush.msra.mxu0 %v479
      %1538 = vmatpush.msra.mxu0 %v477
      %1539 = vmatpush.msra.mxu0 %v475
      %1540 = vmatpush.msra.mxu0 %v473
      %1541 = vmatpush.msra.mxu0 %v471
      %1542 = vmatpush.msra.mxu0 %v469
      %1543 = vmatpush.msra.mxu0 %v467
      %1544 = vmatpush.msra.mxu0 %v465
      %1545 = vmatpush.msra.mxu0 %v463
      %1546 = vmatpush.msra.mxu0 %v461
      %1547 = vmatpush.msra.mxu0 %v459
      %1548 = vmatpush.msra.mxu0 %v457
      %1549 = vmatpush.msra.mxu0 %v455
      %1550 = vmatpush.msra.mxu0 %v453
      %1551 = vmatmul.f32.gmra.mxu0 %v228
      %v1552 = vpop.f32.mrf.mxu0
      %v1553 = vadd.f32 %v1512, %v1552
      %1554 = vmatmul.f32.gmra.mxu0 %v232
      %v1555 = vpop.f32.mrf.mxu0
      %v1556 = vadd.f32 %v1515, %v1555
      %1557 = vmatmul.f32.gmra.mxu0 %v236
      %v1558 = vpop.f32.mrf.mxu0
      %v1559 = vadd.f32 %v1518, %v1558
      %1560 = vmatmul.f32.gmra.mxu0 %v240
      %v1561 = vpop.f32.mrf.mxu0
      %v1562 = vadd.f32 %v1521, %v1561
      %1563 = vmatmul.f32.gmra.mxu0 %v244
      %v1564 = vpop.f32.mrf.mxu0
      %v1565 = vadd.f32 %v1524, %v1564
      %1566 = vmatmul.f32.gmra.mxu0 %v248
      %v1567 = vpop.f32.mrf.mxu0
      %v1568 = vadd.f32 %v1527, %v1567
      %1569 = vmatmul.f32.gmra.mxu0 %v252
      %v1570 = vpop.f32.mrf.mxu0
      %v1571 = vadd.f32 %v1530, %v1570
      %1572 = vmatmul.f32.gmra.mxu0 %v256
      %v1573 = vpop.f32.mrf.mxu0
      %v1574 = vadd.f32 %v1533, %v1573
      %1575 = vdwg.mxu0
      %1576 = vmatpush.msra.mxu0 %v515
      %1577 = vmatpush.msra.mxu0 %v513
      %1578 = vmatpush.msra.mxu0 %v511
      %1579 = vmatpush.msra.mxu0 %v509
      %1580 = vmatpush.msra.mxu0 %v507
      %1581 = vmatpush.msra.mxu0 %v505
      %1582 = vmatpush.msra.mxu0 %v503
      %1583 = vmatpush.msra.mxu0 %v501
      %1584 = vmatpush.msra.mxu0 %v499
      %1585 = vmatpush.msra.mxu0 %v497
      %1586 = vmatpush.msra.mxu0 %v495
      %1587 = vmatpush.msra.mxu0 %v493
      %1588 = vmatpush.msra.mxu0 %v491
      %1589 = vmatpush.msra.mxu0 %v489
      %1590 = vmatpush.msra.mxu0 %v487
      %1591 = vmatpush.msra.mxu0 %v485
      %1592 = vmatmul.f32.gmra.mxu0 %v294
      %v1593 = vpop.f32.mrf.mxu0
      %v1594 = vadd.f32 %v1553, %v1593
      %1595 = vmatmul.f32.gmra.mxu0 %v300
      %v1596 = vpop.f32.mrf.mxu0
      %v1597 = vadd.f32 %v1556, %v1596
      %1598 = vmatmul.f32.gmra.mxu0 %v306
      %v1599 = vpop.f32.mrf.mxu0
      %v1600 = vadd.f32 %v1559, %v1599
      %1601 = vmatmul.f32.gmra.mxu0 %v312
      %v1602 = vpop.f32.mrf.mxu0
      %v1603 = vadd.f32 %v1562, %v1602
      %1604 = vmatmul.f32.gmra.mxu0 %v318
      %v1605 = vpop.f32.mrf.mxu0
      %v1606 = vadd.f32 %v1565, %v1605
      %1607 = vmatmul.f32.gmra.mxu0 %v324
      %v1608 = vpop.f32.mrf.mxu0
      %v1609 = vadd.f32 %v1568, %v1608
      %1610 = vmatmul.f32.gmra.mxu0 %v330
      %v1611 = vpop.f32.mrf.mxu0
      %v1612 = vadd.f32 %v1571, %v1611
      %1613 = vmatmul.f32.gmra.mxu0 %v336
      %v1614 = vpop.f32.mrf.mxu0
      %v1615 = vadd.f32 %v1574, %v1614
      %1616 = vdwg.mxu0
      %1617 = vmatpush.msra.mxu0 %v547
      %1618 = vmatpush.msra.mxu0 %v545
      %1619 = vmatpush.msra.mxu0 %v543
      %1620 = vmatpush.msra.mxu0 %v541
      %1621 = vmatpush.msra.mxu0 %v539
      %1622 = vmatpush.msra.mxu0 %v537
      %1623 = vmatpush.msra.mxu0 %v535
      %1624 = vmatpush.msra.mxu0 %v533
      %1625 = vmatpush.msra.mxu0 %v531
      %1626 = vmatpush.msra.mxu0 %v529
      %1627 = vmatpush.msra.mxu0 %v527
      %1628 = vmatpush.msra.mxu0 %v525
      %1629 = vmatpush.msra.mxu0 %v523
      %1630 = vmatpush.msra.mxu0 %v521
      %1631 = vmatpush.msra.mxu0 %v519
      %1632 = vmatpush.msra.mxu0 %v517
      %1633 = vmatmul.f32.gmra.mxu0 %v297
      %v1634 = vpop.f32.mrf.mxu0
      %v1635 = vadd.f32 %v1594, %v1634
      %1636 = vmatmul.f32.gmra.mxu0 %v303
      %v1637 = vpop.f32.mrf.mxu0
      %v1638 = vadd.f32 %v1597, %v1637
      %1639 = vmatmul.f32.gmra.mxu0 %v309
      %v1640 = vpop.f32.mrf.mxu0
      %v1641 = vadd.f32 %v1600, %v1640
      %1642 = vmatmul.f32.gmra.mxu0 %v315
      %v1643 = vpop.f32.mrf.mxu0
      %v1644 = vadd.f32 %v1603, %v1643
      %1645 = vmatmul.f32.gmra.mxu0 %v321
      %v1646 = vpop.f32.mrf.mxu0
      %v1647 = vadd.f32 %v1606, %v1646
      %1648 = vmatmul.f32.gmra.mxu0 %v327
      %v1649 = vpop.f32.mrf.mxu0
      %v1650 = vadd.f32 %v1609, %v1649
      %1651 = vmatmul.f32.gmra.mxu0 %v333
      %v1652 = vpop.f32.mrf.mxu0
      %v1653 = vadd.f32 %v1612, %v1652
      %1654 = vmatmul.f32.gmra.mxu0 %v339
      %v1655 = vpop.f32.mrf.mxu0
      %v1656 = vadd.f32 %v1615, %v1655
      %1657 = vdwg.mxu0
      %1658 = vmatpush.msra.mxu0 %v579
      %1659 = vmatpush.msra.mxu0 %v577
      %1660 = vmatpush.msra.mxu0 %v575
      %1661 = vmatpush.msra.mxu0 %v573
      %1662 = vmatpush.msra.mxu0 %v571
      %1663 = vmatpush.msra.mxu0 %v569
      %1664 = vmatpush.msra.mxu0 %v567
      %1665 = vmatpush.msra.mxu0 %v565
      %1666 = vmatpush.msra.mxu0 %v563
      %1667 = vmatpush.msra.mxu0 %v561
      %1668 = vmatpush.msra.mxu0 %v559
      %1669 = vmatpush.msra.mxu0 %v557
      %1670 = vmatpush.msra.mxu0 %v555
      %1671 = vmatpush.msra.mxu0 %v553
      %1672 = vmatpush.msra.mxu0 %v551
      %1673 = vmatpush.msra.mxu0 %v549
      %1674 = vmatmul.f32.gmra.mxu0 %v359
      %v1675 = vpop.f32.mrf.mxu0
      %v1676 = vadd.f32 %v1635, %v1675
      %1677 = vmatmul.f32.gmra.mxu0 %v365
      %v1678 = vpop.f32.mrf.mxu0
      %v1679 = vadd.f32 %v1638, %v1678
      %1680 = vmatmul.f32.gmra.mxu0 %v371
      %v1681 = vpop.f32.mrf.mxu0
      %v1682 = vadd.f32 %v1641, %v1681
      %1683 = vmatmul.f32.gmra.mxu0 %v377
      %v1684 = vpop.f32.mrf.mxu0
      %v1685 = vadd.f32 %v1644, %v1684
      %1686 = vmatmul.f32.gmra.mxu0 %v383
      %v1687 = vpop.f32.mrf.mxu0
      %v1688 = vadd.f32 %v1647, %v1687
      %1689 = vmatmul.f32.gmra.mxu0 %v389
      %v1690 = vpop.f32.mrf.mxu0
      %v1691 = vadd.f32 %v1650, %v1690
      %1692 = vmatmul.f32.gmra.mxu0 %v395
      %v1693 = vpop.f32.mrf.mxu0
      %v1694 = vadd.f32 %v1653, %v1693
      %1695 = vmatmul.f32.gmra.mxu0 %v401
      %v1696 = vpop.f32.mrf.mxu0
      %v1697 = vadd.f32 %v1656, %v1696
      %1698 = vdwg.mxu0
      %1699 = vmatpush.msra.mxu0 %v611
      %1700 = vmatpush.msra.mxu0 %v609
      %1701 = vmatpush.msra.mxu0 %v607
      %1702 = vmatpush.msra.mxu0 %v605
      %1703 = vmatpush.msra.mxu0 %v603
      %1704 = vmatpush.msra.mxu0 %v601
      %1705 = vmatpush.msra.mxu0 %v599
      %1706 = vmatpush.msra.mxu0 %v597
      %1707 = vmatpush.msra.mxu0 %v595
      %1708 = vmatpush.msra.mxu0 %v593
      %1709 = vmatpush.msra.mxu0 %v591
      %1710 = vmatpush.msra.mxu0 %v589
      %1711 = vmatpush.msra.mxu0 %v587
      %1712 = vmatpush.msra.mxu0 %v585
      %1713 = vmatpush.msra.mxu0 %v583
      %1714 = vmatpush.msra.mxu0 %v581
      %1715 = vmatmul.f32.gmra.mxu0 %v362
      %v1716 = vpop.f32.mrf.mxu0
      %v1717 = vadd.f32 %v1676, %v1716
      %1718 = vmatmul.f32.gmra.mxu0 %v368
      %v1719 = vpop.f32.mrf.mxu0
      %v1720 = vadd.f32 %v1679, %v1719
      %1721 = vmatmul.f32.gmra.mxu0 %v374
      %v1722 = vpop.f32.mrf.mxu0
      %v1723 = vadd.f32 %v1682, %v1722
      %1724 = vmatmul.f32.gmra.mxu0 %v380
      %v1725 = vpop.f32.mrf.mxu0
      %v1726 = vadd.f32 %v1685, %v1725
      %1727 = vmatmul.f32.gmra.mxu0 %v386
      %v1728 = vpop.f32.mrf.mxu0
      %v1729 = vadd.f32 %v1688, %v1728
      %1730 = vmatmul.f32.gmra.mxu0 %v392
      %v1731 = vpop.f32.mrf.mxu0
      %v1732 = vadd.f32 %v1691, %v1731
      %1733 = vmatmul.f32.gmra.mxu0 %v398
      %v1734 = vpop.f32.mrf.mxu0
      %v1735 = vadd.f32 %v1694, %v1734
      %1736 = vmatmul.f32.gmra.mxu0 %v404
      %v1737 = vpop.f32.mrf.mxu0
      %v1738 = vadd.f32 %v1697, %v1737
      %1739 = vdwg.mxu0
      %1740 = vmatpush.msra.mxu0 %v452
      %1741 = vmatpush.msra.mxu0 %v450
      %1742 = vmatpush.msra.mxu0 %v448
      %1743 = vmatpush.msra.mxu0 %v446
      %1744 = vmatpush.msra.mxu0 %v444
      %1745 = vmatpush.msra.mxu0 %v442
      %1746 = vmatpush.msra.mxu0 %v440
      %1747 = vmatpush.msra.mxu0 %v438
      %1748 = vmatpush.msra.mxu0 %v436
      %1749 = vmatpush.msra.mxu0 %v434
      %1750 = vmatpush.msra.mxu0 %v432
      %1751 = vmatpush.msra.mxu0 %v430
      %1752 = vmatpush.msra.mxu0 %v428
      %1753 = vmatpush.msra.mxu0 %v426
      %1754 = vmatpush.msra.mxu0 %v424
      %1755 = vmatpush.msra.mxu0 %v422
      %1756 = vmatmul.f32.gmra.mxu0 %v227
      %v1757 = vpop.f32.mrf.mxu0
      %v1758 = vadd.f32 %v1471, %v1757
      %1759 = vmatmul.f32.gmra.mxu0 %v231
      %v1760 = vpop.f32.mrf.mxu0
      %v1761 = vadd.f32 %v1474, %v1760
      %1762 = vmatmul.f32.gmra.mxu0 %v235
      %v1763 = vpop.f32.mrf.mxu0
      %v1764 = vadd.f32 %v1477, %v1763
      %1765 = vmatmul.f32.gmra.mxu0 %v239
      %v1766 = vpop.f32.mrf.mxu0
      %v1767 = vadd.f32 %v1480, %v1766
      %1768 = vmatmul.f32.gmra.mxu0 %v243
      %v1769 = vpop.f32.mrf.mxu0
      %v1770 = vadd.f32 %v1483, %v1769
      %1771 = vmatmul.f32.gmra.mxu0 %v247
      %v1772 = vpop.f32.mrf.mxu0
      %v1773 = vadd.f32 %v1486, %v1772
      %1774 = vmatmul.f32.gmra.mxu0 %v251
      %v1775 = vpop.f32.mrf.mxu0
      %v1776 = vadd.f32 %v1489, %v1775
      %1777 = vmatmul.f32.gmra.mxu0 %v255
      %v1778 = vpop.f32.mrf.mxu0
      %v1779 = vadd.f32 %v1492, %v1778
      %1780 = vdwg.mxu0
      %1781 = vmatpush.msra.mxu0 %v484
      %1782 = vmatpush.msra.mxu0 %v482
      %1783 = vmatpush.msra.mxu0 %v480
      %1784 = vmatpush.msra.mxu0 %v478
      %1785 = vmatpush.msra.mxu0 %v476
      %1786 = vmatpush.msra.mxu0 %v474
      %1787 = vmatpush.msra.mxu0 %v472
      %1788 = vmatpush.msra.mxu0 %v470
      %1789 = vmatpush.msra.mxu0 %v468
      %1790 = vmatpush.msra.mxu0 %v466
      %1791 = vmatpush.msra.mxu0 %v464
      %1792 = vmatpush.msra.mxu0 %v462
      %1793 = vmatpush.msra.mxu0 %v460
      %1794 = vmatpush.msra.mxu0 %v458
      %1795 = vmatpush.msra.mxu0 %v456
      %1796 = vmatpush.msra.mxu0 %v454
      %1797 = vmatmul.f32.gmra.mxu0 %v228
      %v1798 = vpop.f32.mrf.mxu0
      %v1799 = vadd.f32 %v1758, %v1798
      %1800 = vmatmul.f32.gmra.mxu0 %v232
      %v1801 = vpop.f32.mrf.mxu0
      %v1802 = vadd.f32 %v1761, %v1801
      %1803 = vmatmul.f32.gmra.mxu0 %v236
      %v1804 = vpop.f32.mrf.mxu0
      %v1805 = vadd.f32 %v1764, %v1804
      %1806 = vmatmul.f32.gmra.mxu0 %v240
      %v1807 = vpop.f32.mrf.mxu0
      %v1808 = vadd.f32 %v1767, %v1807
      %1809 = vmatmul.f32.gmra.mxu0 %v244
      %v1810 = vpop.f32.mrf.mxu0
      %v1811 = vadd.f32 %v1770, %v1810
      %1812 = vmatmul.f32.gmra.mxu0 %v248
      %v1813 = vpop.f32.mrf.mxu0
      %v1814 = vadd.f32 %v1773, %v1813
      %1815 = vmatmul.f32.gmra.mxu0 %v252
      %v1816 = vpop.f32.mrf.mxu0
      %v1817 = vadd.f32 %v1776, %v1816
      %1818 = vmatmul.f32.gmra.mxu0 %v256
      %v1819 = vpop.f32.mrf.mxu0
      %v1820 = vadd.f32 %v1779, %v1819
      %1821 = vdwg.mxu0
      %1822 = vmatpush.msra.mxu0 %v516
      %1823 = vmatpush.msra.mxu0 %v514
      %1824 = vmatpush.msra.mxu0 %v512
      %1825 = vmatpush.msra.mxu0 %v510
      %1826 = vmatpush.msra.mxu0 %v508
      %1827 = vmatpush.msra.mxu0 %v506
      %1828 = vmatpush.msra.mxu0 %v504
      %1829 = vmatpush.msra.mxu0 %v502
      %1830 = vmatpush.msra.mxu0 %v500
      %1831 = vmatpush.msra.mxu0 %v498
      %1832 = vmatpush.msra.mxu0 %v496
      %1833 = vmatpush.msra.mxu0 %v494
      %1834 = vmatpush.msra.mxu0 %v492
      %1835 = vmatpush.msra.mxu0 %v490
      %1836 = vmatpush.msra.mxu0 %v488
      %1837 = vmatpush.msra.mxu0 %v486
      %1838 = vmatmul.f32.gmra.mxu0 %v294
      %v1839 = vpop.f32.mrf.mxu0
      %v1840 = vadd.f32 %v1799, %v1839
      %1841 = vmatmul.f32.gmra.mxu0 %v300
      %v1842 = vpop.f32.mrf.mxu0
      %v1843 = vadd.f32 %v1802, %v1842
      %1844 = vmatmul.f32.gmra.mxu0 %v306
      %v1845 = vpop.f32.mrf.mxu0
      %v1846 = vadd.f32 %v1805, %v1845
      %1847 = vmatmul.f32.gmra.mxu0 %v312
      %v1848 = vpop.f32.mrf.mxu0
      %v1849 = vadd.f32 %v1808, %v1848
      %1850 = vmatmul.f32.gmra.mxu0 %v318
      %v1851 = vpop.f32.mrf.mxu0
      %v1852 = vadd.f32 %v1811, %v1851
      %1853 = vmatmul.f32.gmra.mxu0 %v324
      %v1854 = vpop.f32.mrf.mxu0
      %v1855 = vadd.f32 %v1814, %v1854
      %1856 = vmatmul.f32.gmra.mxu0 %v330
      %v1857 = vpop.f32.mrf.mxu0
      %v1858 = vadd.f32 %v1817, %v1857
      %1859 = vmatmul.f32.gmra.mxu0 %v336
      %v1860 = vpop.f32.mrf.mxu0
      %v1861 = vadd.f32 %v1820, %v1860
      %1862 = vdwg.mxu0
      %1863 = vmatpush.msra.mxu0 %v548
      %1864 = vmatpush.msra.mxu0 %v546
      %1865 = vmatpush.msra.mxu0 %v544
      %1866 = vmatpush.msra.mxu0 %v542
      %1867 = vmatpush.msra.mxu0 %v540
      %1868 = vmatpush.msra.mxu0 %v538
      %1869 = vmatpush.msra.mxu0 %v536
      %1870 = vmatpush.msra.mxu0 %v534
      %1871 = vmatpush.msra.mxu0 %v532
      %1872 = vmatpush.msra.mxu0 %v530
      %1873 = vmatpush.msra.mxu0 %v528
      %1874 = vmatpush.msra.mxu0 %v526
      %1875 = vmatpush.msra.mxu0 %v524
      %1876 = vmatpush.msra.mxu0 %v522
      %1877 = vmatpush.msra.mxu0 %v520
      %1878 = vmatpush.msra.mxu0 %v518
      %1879 = vmatmul.f32.gmra.mxu0 %v297
      %v1880 = vpop.f32.mrf.mxu0
      %v1881 = vadd.f32 %v1840, %v1880
      %1882 = vmatmul.f32.gmra.mxu0 %v303
      %v1883 = vpop.f32.mrf.mxu0
      %v1884 = vadd.f32 %v1843, %v1883
      %1885 = vmatmul.f32.gmra.mxu0 %v309
      %v1886 = vpop.f32.mrf.mxu0
      %v1887 = vadd.f32 %v1846, %v1886
      %1888 = vmatmul.f32.gmra.mxu0 %v315
      %v1889 = vpop.f32.mrf.mxu0
      %v1890 = vadd.f32 %v1849, %v1889
      %1891 = vmatmul.f32.gmra.mxu0 %v321
      %v1892 = vpop.f32.mrf.mxu0
      %v1893 = vadd.f32 %v1852, %v1892
      %1894 = vmatmul.f32.gmra.mxu0 %v327
      %v1895 = vpop.f32.mrf.mxu0
      %v1896 = vadd.f32 %v1855, %v1895
      %1897 = vmatmul.f32.gmra.mxu0 %v333
      %v1898 = vpop.f32.mrf.mxu0
      %v1899 = vadd.f32 %v1858, %v1898
      %1900 = vmatmul.f32.gmra.mxu0 %v339
      %v1901 = vpop.f32.mrf.mxu0
      %v1902 = vadd.f32 %v1861, %v1901
      %1903 = vdwg.mxu0
      %1904 = vmatpush.msra.mxu0 %v580
      %1905 = vmatpush.msra.mxu0 %v578
      %1906 = vmatpush.msra.mxu0 %v576
      %1907 = vmatpush.msra.mxu0 %v574
      %1908 = vmatpush.msra.mxu0 %v572
      %1909 = vmatpush.msra.mxu0 %v570
      %1910 = vmatpush.msra.mxu0 %v568
      %1911 = vmatpush.msra.mxu0 %v566
      %1912 = vmatpush.msra.mxu0 %v564
      %1913 = vmatpush.msra.mxu0 %v562
      %1914 = vmatpush.msra.mxu0 %v560
      %1915 = vmatpush.msra.mxu0 %v558
      %1916 = vmatpush.msra.mxu0 %v556
      %1917 = vmatpush.msra.mxu0 %v554
      %1918 = vmatpush.msra.mxu0 %v552
      %1919 = vmatpush.msra.mxu0 %v550
      %1920 = vmatmul.f32.gmra.mxu0 %v359
      %v1921 = vpop.f32.mrf.mxu0
      %v1922 = vadd.f32 %v1881, %v1921
      %1923 = vmatmul.f32.gmra.mxu0 %v365
      %v1924 = vpop.f32.mrf.mxu0
      %v1925 = vadd.f32 %v1884, %v1924
      %1926 = vmatmul.f32.gmra.mxu0 %v371
      %v1927 = vpop.f32.mrf.mxu0
      %v1928 = vadd.f32 %v1887, %v1927
      %1929 = vmatmul.f32.gmra.mxu0 %v377
      %v1930 = vpop.f32.mrf.mxu0
      %v1931 = vadd.f32 %v1890, %v1930
      %1932 = vmatmul.f32.gmra.mxu0 %v383
      %v1933 = vpop.f32.mrf.mxu0
      %v1934 = vadd.f32 %v1893, %v1933
      %1935 = vmatmul.f32.gmra.mxu0 %v389
      %v1936 = vpop.f32.mrf.mxu0
      %v1937 = vadd.f32 %v1896, %v1936
      %1938 = vmatmul.f32.gmra.mxu0 %v395
      %v1939 = vpop.f32.mrf.mxu0
      %v1940 = vadd.f32 %v1899, %v1939
      %1941 = vmatmul.f32.gmra.mxu0 %v401
      %v1942 = vpop.f32.mrf.mxu0
      %v1943 = vadd.f32 %v1902, %v1942
      %1944 = vdwg.mxu0
      %1945 = vmatpush.msra.mxu0 %v612
      %1946 = vmatpush.msra.mxu0 %v610
      %1947 = vmatpush.msra.mxu0 %v608
      %1948 = vmatpush.msra.mxu0 %v606
      %1949 = vmatpush.msra.mxu0 %v604
      %1950 = vmatpush.msra.mxu0 %v602
      %1951 = vmatpush.msra.mxu0 %v600
      %1952 = vmatpush.msra.mxu0 %v598
      %1953 = vmatpush.msra.mxu0 %v596
      %1954 = vmatpush.msra.mxu0 %v594
      %1955 = vmatpush.msra.mxu0 %v592
      %1956 = vmatpush.msra.mxu0 %v590
      %1957 = vmatpush.msra.mxu0 %v588
      %1958 = vmatpush.msra.mxu0 %v586
      %1959 = vmatpush.msra.mxu0 %v584
      %1960 = vmatpush.msra.mxu0 %v582
      %1961 = vmatmul.f32.gmra.mxu0 %v362
      %v1962 = vpop.f32.mrf.mxu0
      %v1963 = vadd.f32 %v1922, %v1962
      %1964 = vmatmul.f32.gmra.mxu0 %v368
      %v1965 = vpop.f32.mrf.mxu0
      %v1966 = vadd.f32 %v1925, %v1965
      %1967 = vmatmul.f32.gmra.mxu0 %v374
      %v1968 = vpop.f32.mrf.mxu0
      %v1969 = vadd.f32 %v1928, %v1968
      %1970 = vmatmul.f32.gmra.mxu0 %v380
      %v1971 = vpop.f32.mrf.mxu0
      %v1972 = vadd.f32 %v1931, %v1971
      %1973 = vmatmul.f32.gmra.mxu0 %v386
      %v1974 = vpop.f32.mrf.mxu0
      %v1975 = vadd.f32 %v1934, %v1974
      %1976 = vmatmul.f32.gmra.mxu0 %v392
      %v1977 = vpop.f32.mrf.mxu0
      %v1978 = vadd.f32 %v1937, %v1977
      %1979 = vmatmul.f32.gmra.mxu0 %v398
      %v1980 = vpop.f32.mrf.mxu0
      %v1981 = vadd.f32 %v1940, %v1980
      %1982 = vmatmul.f32.gmra.mxu0 %v404
      %v1983 = vpop.f32.mrf.mxu0
      %v1984 = vadd.f32 %v1943, %v1983
      %1985 = vdwg.mxu0
      %s1986 = sadd.s32 %s223, 2
      %s1987 = smul.u32 %s1986, 4
      %s1988 = smul.addr %s1987, 8
      %s1989 = scalar_lea.vmem %s211, %s1988
      %v1990 = vld [vmem:[%s1989] sm:$0xff]
      %v1991 = vld [vmem:[%s1989 + $0x8] sm:$0xff]
      %v1992 = vld [vmem:[%s1989 + $0x10] sm:$0x3]
      %v1993 = vld [vmem:[%s1989 + $0x18] sm:$0x3]
      %v1994 = vld [vmem:[%s1989 + $0x20] sm:$0xff]
      %v1995 = vld [vmem:[%s1989 + $0x28] sm:$0xff]
      %v1996 = vld [vmem:[%s1989 + $0x30] sm:$0x3]
      %v1997 = vld [vmem:[%s1989 + $0x38] sm:$0x3]
      %v1998 = vld [vmem:[%s1989 + $0x40] sm:$0xff]
      %v1999 = vld [vmem:[%s1989 + $0x48] sm:$0xff]
      %v2000 = vld [vmem:[%s1989 + $0x50] sm:$0x3]
      %v2001 = vld [vmem:[%s1989 + $0x58] sm:$0x3]
      %v2002 = vld [vmem:[%s1989 + $0x60] sm:$0xff]
      %v2003 = vld [vmem:[%s1989 + $0x68] sm:$0xff]
      %v2004 = vld [vmem:[%s1989 + $0x70] sm:$0x3]
      %v2005 = vld [vmem:[%s1989 + $0x78] sm:$0x3]
      %v2006 = vld [vmem:[%s1989 + $0x80] sm:$0xff]
      %v2007 = vld [vmem:[%s1989 + $0x88] sm:$0xff]
      %v2008 = vld [vmem:[%s1989 + $0x90] sm:$0x3]
      %v2009 = vld [vmem:[%s1989 + $0x98] sm:$0x3]
      %v2010 = vld [vmem:[%s1989 + $0xa0] sm:$0xff]
      %v2011 = vld [vmem:[%s1989 + $0xa8] sm:$0xff]
      %v2012 = vld [vmem:[%s1989 + $0xb0] sm:$0x3]
      %v2013 = vld [vmem:[%s1989 + $0xb8] sm:$0x3]
      %v2014 = vld [vmem:[%s1989 + $0xc0] sm:$0xff]
      %v2015 = vld [vmem:[%s1989 + $0xc8] sm:$0xff]
      %v2016 = vld [vmem:[%s1989 + $0xd0] sm:$0x3]
      %v2017 = vld [vmem:[%s1989 + $0xd8] sm:$0x3]
      %v2018 = vld [vmem:[%s1989 + $0xe0] sm:$0xff]
      %v2019 = vld [vmem:[%s1989 + $0xe8] sm:$0xff]
      %v2020 = vld [vmem:[%s1989 + $0xf0] sm:$0x3]
      %v2021 = vld [vmem:[%s1989 + $0xf8] sm:$0x3]
      %v2054 = vrot.slane %v1990, 1
      %v2055 = vrot.slane %v1992, 1
      %v2056 = vsel %vm291, %v2054, %v2055
      %v2057 = vrot.slane %v1991, 1
      %v2058 = vrot.slane %v1993, 1
      %v2059 = vsel %vm291, %v2057, %v2058
      %v2060 = vrot.slane %v1994, 1
      %v2061 = vrot.slane %v1996, 1
      %v2062 = vsel %vm291, %v2060, %v2061
      %v2063 = vrot.slane %v1995, 1
      %v2064 = vrot.slane %v1997, 1
      %v2065 = vsel %vm291, %v2063, %v2064
      %v2066 = vrot.slane %v1998, 1
      %v2067 = vrot.slane %v2000, 1
      %v2068 = vsel %vm291, %v2066, %v2067
      %v2069 = vrot.slane %v1999, 1
      %v2070 = vrot.slane %v2001, 1
      %v2071 = vsel %vm291, %v2069, %v2070
      %v2072 = vrot.slane %v2002, 1
      %v2073 = vrot.slane %v2004, 1
      %v2074 = vsel %vm291, %v2072, %v2073
      %v2075 = vrot.slane %v2003, 1
      %v2076 = vrot.slane %v2005, 1
      %v2077 = vsel %vm291, %v2075, %v2076
      %v2078 = vrot.slane %v2006, 1
      %v2079 = vrot.slane %v2008, 1
      %v2080 = vsel %vm291, %v2078, %v2079
      %v2081 = vrot.slane %v2007, 1
      %v2082 = vrot.slane %v2009, 1
      %v2083 = vsel %vm291, %v2081, %v2082
      %v2084 = vrot.slane %v2010, 1
      %v2085 = vrot.slane %v2012, 1
      %v2086 = vsel %vm291, %v2084, %v2085
      %v2087 = vrot.slane %v2011, 1
      %v2088 = vrot.slane %v2013, 1
      %v2089 = vsel %vm291, %v2087, %v2088
      %v2090 = vrot.slane %v2014, 1
      %v2091 = vrot.slane %v2016, 1
      %v2092 = vsel %vm291, %v2090, %v2091
      %v2093 = vrot.slane %v2015, 1
      %v2094 = vrot.slane %v2017, 1
      %v2095 = vsel %vm291, %v2093, %v2094
      %v2096 = vrot.slane %v2018, 1
      %v2097 = vrot.slane %v2020, 1
      %v2098 = vsel %vm291, %v2096, %v2097
      %v2099 = vrot.slane %v2019, 1
      %v2100 = vrot.slane %v2021, 1
      %v2101 = vsel %vm291, %v2099, %v2100
      %v2118 = vrot.slane %v1990, 2
      %v2119 = vrot.slane %v1992, 2
      %v2120 = vsel %vm356, %v2118, %v2119
      %v2121 = vrot.slane %v1991, 2
      %v2122 = vrot.slane %v1993, 2
      %v2123 = vsel %vm356, %v2121, %v2122
      %v2124 = vrot.slane %v1994, 2
      %v2125 = vrot.slane %v1996, 2
      %v2126 = vsel %vm356, %v2124, %v2125
      %v2127 = vrot.slane %v1995, 2
      %v2128 = vrot.slane %v1997, 2
      %v2129 = vsel %vm356, %v2127, %v2128
      %v2130 = vrot.slane %v1998, 2
      %v2131 = vrot.slane %v2000, 2
      %v2132 = vsel %vm356, %v2130, %v2131
      %v2133 = vrot.slane %v1999, 2
      %v2134 = vrot.slane %v2001, 2
      %v2135 = vsel %vm356, %v2133, %v2134
      %v2136 = vrot.slane %v2002, 2
      %v2137 = vrot.slane %v2004, 2
      %v2138 = vsel %vm356, %v2136, %v2137
      %v2139 = vrot.slane %v2003, 2
      %v2140 = vrot.slane %v2005, 2
      %v2141 = vsel %vm356, %v2139, %v2140
      %v2142 = vrot.slane %v2006, 2
      %v2143 = vrot.slane %v2008, 2
      %v2144 = vsel %vm356, %v2142, %v2143
      %v2145 = vrot.slane %v2007, 2
      %v2146 = vrot.slane %v2009, 2
      %v2147 = vsel %vm356, %v2145, %v2146
      %v2148 = vrot.slane %v2010, 2
      %v2149 = vrot.slane %v2012, 2
      %v2150 = vsel %vm356, %v2148, %v2149
      %v2151 = vrot.slane %v2011, 2
      %v2152 = vrot.slane %v2013, 2
      %v2153 = vsel %vm356, %v2151, %v2152
      %v2154 = vrot.slane %v2014, 2
      %v2155 = vrot.slane %v2016, 2
      %v2156 = vsel %vm356, %v2154, %v2155
      %v2157 = vrot.slane %v2015, 2
      %v2158 = vrot.slane %v2017, 2
      %v2159 = vsel %vm356, %v2157, %v2158
      %v2160 = vrot.slane %v2018, 2
      %v2161 = vrot.slane %v2020, 2
      %v2162 = vsel %vm356, %v2160, %v2161
      %v2163 = vrot.slane %v2019, 2
      %v2164 = vrot.slane %v2021, 2
      %v2165 = vsel %vm356, %v2163, %v2164
      %s2182 = scalar_lea.vmem %s1, 3072
      %v2183 = vld [vmem:[%s2182] sm:$0xff]
      %v2184 = vld [vmem:[%s2182 + $0x8] sm:$0xff]
      %v2185 = vld [vmem:[%s2182 + $0x10] sm:$0xff]
      %v2186 = vld [vmem:[%s2182 + $0x18] sm:$0xff]
      %v2187 = vld [vmem:[%s2182 + $0x20] sm:$0xff]
      %v2188 = vld [vmem:[%s2182 + $0x28] sm:$0xff]
      %v2189 = vld [vmem:[%s2182 + $0x30] sm:$0xff]
      %v2190 = vld [vmem:[%s2182 + $0x38] sm:$0xff]
      %v2191 = vld [vmem:[%s2182 + $0x40] sm:$0xff]
      %v2192 = vld [vmem:[%s2182 + $0x48] sm:$0xff]
      %v2193 = vld [vmem:[%s2182 + $0x50] sm:$0xff]
      %v2194 = vld [vmem:[%s2182 + $0x58] sm:$0xff]
      %v2195 = vld [vmem:[%s2182 + $0x60] sm:$0xff]
      %v2196 = vld [vmem:[%s2182 + $0x68] sm:$0xff]
      %v2197 = vld [vmem:[%s2182 + $0x70] sm:$0xff]
      %v2198 = vld [vmem:[%s2182 + $0x78] sm:$0xff]
      %v2199 = vld [vmem:[%s2182 + $0x80] sm:$0xff]
      %v2200 = vld [vmem:[%s2182 + $0x88] sm:$0xff]
      %v2201 = vld [vmem:[%s2182 + $0x90] sm:$0xff]
      %v2202 = vld [vmem:[%s2182 + $0x98] sm:$0xff]
      %v2203 = vld [vmem:[%s2182 + $0xa0] sm:$0xff]
      %v2204 = vld [vmem:[%s2182 + $0xa8] sm:$0xff]
      %v2205 = vld [vmem:[%s2182 + $0xb0] sm:$0xff]
      %v2206 = vld [vmem:[%s2182 + $0xb8] sm:$0xff]
      %v2207 = vld [vmem:[%s2182 + $0xc0] sm:$0xff]
      %v2208 = vld [vmem:[%s2182 + $0xc8] sm:$0xff]
      %v2209 = vld [vmem:[%s2182 + $0xd0] sm:$0xff]
      %v2210 = vld [vmem:[%s2182 + $0xd8] sm:$0xff]
      %v2211 = vld [vmem:[%s2182 + $0xe0] sm:$0xff]
      %v2212 = vld [vmem:[%s2182 + $0xe8] sm:$0xff]
      %v2213 = vld [vmem:[%s2182 + $0xf0] sm:$0xff]
      %v2214 = vld [vmem:[%s2182 + $0xf8] sm:$0xff]
      %v2215 = vld [vmem:[%s2182 + $0x100] sm:$0xff]
      %v2216 = vld [vmem:[%s2182 + $0x108] sm:$0xff]
      %v2217 = vld [vmem:[%s2182 + $0x110] sm:$0xff]
      %v2218 = vld [vmem:[%s2182 + $0x118] sm:$0xff]
      %v2219 = vld [vmem:[%s2182 + $0x120] sm:$0xff]
      %v2220 = vld [vmem:[%s2182 + $0x128] sm:$0xff]
      %v2221 = vld [vmem:[%s2182 + $0x130] sm:$0xff]
      %v2222 = vld [vmem:[%s2182 + $0x138] sm:$0xff]
      %v2223 = vld [vmem:[%s2182 + $0x140] sm:$0xff]
      %v2224 = vld [vmem:[%s2182 + $0x148] sm:$0xff]
      %v2225 = vld [vmem:[%s2182 + $0x150] sm:$0xff]
      %v2226 = vld [vmem:[%s2182 + $0x158] sm:$0xff]
      %v2227 = vld [vmem:[%s2182 + $0x160] sm:$0xff]
      %v2228 = vld [vmem:[%s2182 + $0x168] sm:$0xff]
      %v2229 = vld [vmem:[%s2182 + $0x170] sm:$0xff]
      %v2230 = vld [vmem:[%s2182 + $0x178] sm:$0xff]
      %v2231 = vld [vmem:[%s2182 + $0x180] sm:$0xff]
      %v2232 = vld [vmem:[%s2182 + $0x188] sm:$0xff]
      %v2233 = vld [vmem:[%s2182 + $0x190] sm:$0xff]
      %v2234 = vld [vmem:[%s2182 + $0x198] sm:$0xff]
      %v2235 = vld [vmem:[%s2182 + $0x1a0] sm:$0xff]
      %v2236 = vld [vmem:[%s2182 + $0x1a8] sm:$0xff]
      %v2237 = vld [vmem:[%s2182 + $0x1b0] sm:$0xff]
      %v2238 = vld [vmem:[%s2182 + $0x1b8] sm:$0xff]
      %v2239 = vld [vmem:[%s2182 + $0x1c0] sm:$0xff]
      %v2240 = vld [vmem:[%s2182 + $0x1c8] sm:$0xff]
      %v2241 = vld [vmem:[%s2182 + $0x1d0] sm:$0xff]
      %v2242 = vld [vmem:[%s2182 + $0x1d8] sm:$0xff]
      %v2243 = vld [vmem:[%s2182 + $0x1e0] sm:$0xff]
      %v2244 = vld [vmem:[%s2182 + $0x1e8] sm:$0xff]
      %v2245 = vld [vmem:[%s2182 + $0x1f0] sm:$0xff]
      %v2246 = vld [vmem:[%s2182 + $0x1f8] sm:$0xff]
      %v2247 = vld [vmem:[%s2182 + $0x200] sm:$0xff]
      %v2248 = vld [vmem:[%s2182 + $0x208] sm:$0xff]
      %v2249 = vld [vmem:[%s2182 + $0x210] sm:$0xff]
      %v2250 = vld [vmem:[%s2182 + $0x218] sm:$0xff]
      %v2251 = vld [vmem:[%s2182 + $0x220] sm:$0xff]
      %v2252 = vld [vmem:[%s2182 + $0x228] sm:$0xff]
      %v2253 = vld [vmem:[%s2182 + $0x230] sm:$0xff]
      %v2254 = vld [vmem:[%s2182 + $0x238] sm:$0xff]
      %v2255 = vld [vmem:[%s2182 + $0x240] sm:$0xff]
      %v2256 = vld [vmem:[%s2182 + $0x248] sm:$0xff]
      %v2257 = vld [vmem:[%s2182 + $0x250] sm:$0xff]
      %v2258 = vld [vmem:[%s2182 + $0x258] sm:$0xff]
      %v2259 = vld [vmem:[%s2182 + $0x260] sm:$0xff]
      %v2260 = vld [vmem:[%s2182 + $0x268] sm:$0xff]
      %v2261 = vld [vmem:[%s2182 + $0x270] sm:$0xff]
      %v2262 = vld [vmem:[%s2182 + $0x278] sm:$0xff]
      %v2263 = vld [vmem:[%s2182 + $0x280] sm:$0xff]
      %v2264 = vld [vmem:[%s2182 + $0x288] sm:$0xff]
      %v2265 = vld [vmem:[%s2182 + $0x290] sm:$0xff]
      %v2266 = vld [vmem:[%s2182 + $0x298] sm:$0xff]
      %v2267 = vld [vmem:[%s2182 + $0x2a0] sm:$0xff]
      %v2268 = vld [vmem:[%s2182 + $0x2a8] sm:$0xff]
      %v2269 = vld [vmem:[%s2182 + $0x2b0] sm:$0xff]
      %v2270 = vld [vmem:[%s2182 + $0x2b8] sm:$0xff]
      %v2271 = vld [vmem:[%s2182 + $0x2c0] sm:$0xff]
      %v2272 = vld [vmem:[%s2182 + $0x2c8] sm:$0xff]
      %v2273 = vld [vmem:[%s2182 + $0x2d0] sm:$0xff]
      %v2274 = vld [vmem:[%s2182 + $0x2d8] sm:$0xff]
      %v2275 = vld [vmem:[%s2182 + $0x2e0] sm:$0xff]
      %v2276 = vld [vmem:[%s2182 + $0x2e8] sm:$0xff]
      %v2277 = vld [vmem:[%s2182 + $0x2f0] sm:$0xff]
      %v2278 = vld [vmem:[%s2182 + $0x2f8] sm:$0xff]
      %v2279 = vld [vmem:[%s2182 + $0x300] sm:$0xff]
      %v2280 = vld [vmem:[%s2182 + $0x308] sm:$0xff]
      %v2281 = vld [vmem:[%s2182 + $0x310] sm:$0xff]
      %v2282 = vld [vmem:[%s2182 + $0x318] sm:$0xff]
      %v2283 = vld [vmem:[%s2182 + $0x320] sm:$0xff]
      %v2284 = vld [vmem:[%s2182 + $0x328] sm:$0xff]
      %v2285 = vld [vmem:[%s2182 + $0x330] sm:$0xff]
      %v2286 = vld [vmem:[%s2182 + $0x338] sm:$0xff]
      %v2287 = vld [vmem:[%s2182 + $0x340] sm:$0xff]
      %v2288 = vld [vmem:[%s2182 + $0x348] sm:$0xff]
      %v2289 = vld [vmem:[%s2182 + $0x350] sm:$0xff]
      %v2290 = vld [vmem:[%s2182 + $0x358] sm:$0xff]
      %v2291 = vld [vmem:[%s2182 + $0x360] sm:$0xff]
      %v2292 = vld [vmem:[%s2182 + $0x368] sm:$0xff]
      %v2293 = vld [vmem:[%s2182 + $0x370] sm:$0xff]
      %v2294 = vld [vmem:[%s2182 + $0x378] sm:$0xff]
      %v2295 = vld [vmem:[%s2182 + $0x380] sm:$0xff]
      %v2296 = vld [vmem:[%s2182 + $0x388] sm:$0xff]
      %v2297 = vld [vmem:[%s2182 + $0x390] sm:$0xff]
      %v2298 = vld [vmem:[%s2182 + $0x398] sm:$0xff]
      %v2299 = vld [vmem:[%s2182 + $0x3a0] sm:$0xff]
      %v2300 = vld [vmem:[%s2182 + $0x3a8] sm:$0xff]
      %v2301 = vld [vmem:[%s2182 + $0x3b0] sm:$0xff]
      %v2302 = vld [vmem:[%s2182 + $0x3b8] sm:$0xff]
      %v2303 = vld [vmem:[%s2182 + $0x3c0] sm:$0xff]
      %v2304 = vld [vmem:[%s2182 + $0x3c8] sm:$0xff]
      %v2305 = vld [vmem:[%s2182 + $0x3d0] sm:$0xff]
      %v2306 = vld [vmem:[%s2182 + $0x3d8] sm:$0xff]
      %v2307 = vld [vmem:[%s2182 + $0x3e0] sm:$0xff]
      %v2308 = vld [vmem:[%s2182 + $0x3e8] sm:$0xff]
      %v2309 = vld [vmem:[%s2182 + $0x3f0] sm:$0xff]
      %v2310 = vld [vmem:[%s2182 + $0x3f8] sm:$0xff]
      %v2311 = vld [vmem:[%s2182 + $0x400] sm:$0xff]
      %v2312 = vld [vmem:[%s2182 + $0x408] sm:$0xff]
      %v2313 = vld [vmem:[%s2182 + $0x410] sm:$0xff]
      %v2314 = vld [vmem:[%s2182 + $0x418] sm:$0xff]
      %v2315 = vld [vmem:[%s2182 + $0x420] sm:$0xff]
      %v2316 = vld [vmem:[%s2182 + $0x428] sm:$0xff]
      %v2317 = vld [vmem:[%s2182 + $0x430] sm:$0xff]
      %v2318 = vld [vmem:[%s2182 + $0x438] sm:$0xff]
      %v2319 = vld [vmem:[%s2182 + $0x440] sm:$0xff]
      %v2320 = vld [vmem:[%s2182 + $0x448] sm:$0xff]
      %v2321 = vld [vmem:[%s2182 + $0x450] sm:$0xff]
      %v2322 = vld [vmem:[%s2182 + $0x458] sm:$0xff]
      %v2323 = vld [vmem:[%s2182 + $0x460] sm:$0xff]
      %v2324 = vld [vmem:[%s2182 + $0x468] sm:$0xff]
      %v2325 = vld [vmem:[%s2182 + $0x470] sm:$0xff]
      %v2326 = vld [vmem:[%s2182 + $0x478] sm:$0xff]
      %v2327 = vld [vmem:[%s2182 + $0x480] sm:$0xff]
      %v2328 = vld [vmem:[%s2182 + $0x488] sm:$0xff]
      %v2329 = vld [vmem:[%s2182 + $0x490] sm:$0xff]
      %v2330 = vld [vmem:[%s2182 + $0x498] sm:$0xff]
      %v2331 = vld [vmem:[%s2182 + $0x4a0] sm:$0xff]
      %v2332 = vld [vmem:[%s2182 + $0x4a8] sm:$0xff]
      %v2333 = vld [vmem:[%s2182 + $0x4b0] sm:$0xff]
      %v2334 = vld [vmem:[%s2182 + $0x4b8] sm:$0xff]
      %v2335 = vld [vmem:[%s2182 + $0x4c0] sm:$0xff]
      %v2336 = vld [vmem:[%s2182 + $0x4c8] sm:$0xff]
      %v2337 = vld [vmem:[%s2182 + $0x4d0] sm:$0xff]
      %v2338 = vld [vmem:[%s2182 + $0x4d8] sm:$0xff]
      %v2339 = vld [vmem:[%s2182 + $0x4e0] sm:$0xff]
      %v2340 = vld [vmem:[%s2182 + $0x4e8] sm:$0xff]
      %v2341 = vld [vmem:[%s2182 + $0x4f0] sm:$0xff]
      %v2342 = vld [vmem:[%s2182 + $0x4f8] sm:$0xff]
      %v2343 = vld [vmem:[%s2182 + $0x500] sm:$0xff]
      %v2344 = vld [vmem:[%s2182 + $0x508] sm:$0xff]
      %v2345 = vld [vmem:[%s2182 + $0x510] sm:$0xff]
      %v2346 = vld [vmem:[%s2182 + $0x518] sm:$0xff]
      %v2347 = vld [vmem:[%s2182 + $0x520] sm:$0xff]
      %v2348 = vld [vmem:[%s2182 + $0x528] sm:$0xff]
      %v2349 = vld [vmem:[%s2182 + $0x530] sm:$0xff]
      %v2350 = vld [vmem:[%s2182 + $0x538] sm:$0xff]
      %v2351 = vld [vmem:[%s2182 + $0x540] sm:$0xff]
      %v2352 = vld [vmem:[%s2182 + $0x548] sm:$0xff]
      %v2353 = vld [vmem:[%s2182 + $0x550] sm:$0xff]
      %v2354 = vld [vmem:[%s2182 + $0x558] sm:$0xff]
      %v2355 = vld [vmem:[%s2182 + $0x560] sm:$0xff]
      %v2356 = vld [vmem:[%s2182 + $0x568] sm:$0xff]
      %v2357 = vld [vmem:[%s2182 + $0x570] sm:$0xff]
      %v2358 = vld [vmem:[%s2182 + $0x578] sm:$0xff]
      %v2359 = vld [vmem:[%s2182 + $0x580] sm:$0xff]
      %v2360 = vld [vmem:[%s2182 + $0x588] sm:$0xff]
      %v2361 = vld [vmem:[%s2182 + $0x590] sm:$0xff]
      %v2362 = vld [vmem:[%s2182 + $0x598] sm:$0xff]
      %v2363 = vld [vmem:[%s2182 + $0x5a0] sm:$0xff]
      %v2364 = vld [vmem:[%s2182 + $0x5a8] sm:$0xff]
      %v2365 = vld [vmem:[%s2182 + $0x5b0] sm:$0xff]
      %v2366 = vld [vmem:[%s2182 + $0x5b8] sm:$0xff]
      %v2367 = vld [vmem:[%s2182 + $0x5c0] sm:$0xff]
      %v2368 = vld [vmem:[%s2182 + $0x5c8] sm:$0xff]
      %v2369 = vld [vmem:[%s2182 + $0x5d0] sm:$0xff]
      %v2370 = vld [vmem:[%s2182 + $0x5d8] sm:$0xff]
      %v2371 = vld [vmem:[%s2182 + $0x5e0] sm:$0xff]
      %v2372 = vld [vmem:[%s2182 + $0x5e8] sm:$0xff]
      %v2373 = vld [vmem:[%s2182 + $0x5f0] sm:$0xff]
      %v2374 = vld [vmem:[%s2182 + $0x5f8] sm:$0xff]
      %2375 = vmatpush.msra.mxu0 %v2213
      %2376 = vmatpush.msra.mxu0 %v2211
      %2377 = vmatpush.msra.mxu0 %v2209
      %2378 = vmatpush.msra.mxu0 %v2207
      %2379 = vmatpush.msra.mxu0 %v2205
      %2380 = vmatpush.msra.mxu0 %v2203
      %2381 = vmatpush.msra.mxu0 %v2201
      %2382 = vmatpush.msra.mxu0 %v2199
      %2383 = vmatpush.msra.mxu0 %v2197
      %2384 = vmatpush.msra.mxu0 %v2195
      %2385 = vmatpush.msra.mxu0 %v2193
      %2386 = vmatpush.msra.mxu0 %v2191
      %2387 = vmatpush.msra.mxu0 %v2189
      %2388 = vmatpush.msra.mxu0 %v2187
      %2389 = vmatpush.msra.mxu0 %v2185
      %2390 = vmatpush.msra.mxu0 %v2183
      %2391 = vmatmul.f32.gmra.mxu0 %v1990
      %v2392 = vpop.f32.mrf.mxu0
      %v2393 = vadd.f32 0.0, %v2392
      %2394 = vmatmul.f32.gmra.mxu0 %v1994
      %v2395 = vpop.f32.mrf.mxu0
      %v2396 = vadd.f32 0.0, %v2395
      %2397 = vmatmul.f32.gmra.mxu0 %v1998
      %v2398 = vpop.f32.mrf.mxu0
      %v2399 = vadd.f32 0.0, %v2398
      %2400 = vmatmul.f32.gmra.mxu0 %v2002
      %v2401 = vpop.f32.mrf.mxu0
      %v2402 = vadd.f32 0.0, %v2401
      %2403 = vmatmul.f32.gmra.mxu0 %v2006
      %v2404 = vpop.f32.mrf.mxu0
      %v2405 = vadd.f32 0.0, %v2404
      %2406 = vmatmul.f32.gmra.mxu0 %v2010
      %v2407 = vpop.f32.mrf.mxu0
      %v2408 = vadd.f32 0.0, %v2407
      %2409 = vmatmul.f32.gmra.mxu0 %v2014
      %v2410 = vpop.f32.mrf.mxu0
      %v2411 = vadd.f32 0.0, %v2410
      %2412 = vmatmul.f32.gmra.mxu0 %v2018
      %v2413 = vpop.f32.mrf.mxu0
      %v2414 = vadd.f32 0.0, %v2413
      %2415 = vdwg.mxu0
      %2416 = vmatpush.msra.mxu0 %v2245
      %2417 = vmatpush.msra.mxu0 %v2243
      %2418 = vmatpush.msra.mxu0 %v2241
      %2419 = vmatpush.msra.mxu0 %v2239
      %2420 = vmatpush.msra.mxu0 %v2237
      %2421 = vmatpush.msra.mxu0 %v2235
      %2422 = vmatpush.msra.mxu0 %v2233
      %2423 = vmatpush.msra.mxu0 %v2231
      %2424 = vmatpush.msra.mxu0 %v2229
      %2425 = vmatpush.msra.mxu0 %v2227
      %2426 = vmatpush.msra.mxu0 %v2225
      %2427 = vmatpush.msra.mxu0 %v2223
      %2428 = vmatpush.msra.mxu0 %v2221
      %2429 = vmatpush.msra.mxu0 %v2219
      %2430 = vmatpush.msra.mxu0 %v2217
      %2431 = vmatpush.msra.mxu0 %v2215
      %2432 = vmatmul.f32.gmra.mxu0 %v1991
      %v2433 = vpop.f32.mrf.mxu0
      %v2434 = vadd.f32 %v2393, %v2433
      %2435 = vmatmul.f32.gmra.mxu0 %v1995
      %v2436 = vpop.f32.mrf.mxu0
      %v2437 = vadd.f32 %v2396, %v2436
      %2438 = vmatmul.f32.gmra.mxu0 %v1999
      %v2439 = vpop.f32.mrf.mxu0
      %v2440 = vadd.f32 %v2399, %v2439
      %2441 = vmatmul.f32.gmra.mxu0 %v2003
      %v2442 = vpop.f32.mrf.mxu0
      %v2443 = vadd.f32 %v2402, %v2442
      %2444 = vmatmul.f32.gmra.mxu0 %v2007
      %v2445 = vpop.f32.mrf.mxu0
      %v2446 = vadd.f32 %v2405, %v2445
      %2447 = vmatmul.f32.gmra.mxu0 %v2011
      %v2448 = vpop.f32.mrf.mxu0
      %v2449 = vadd.f32 %v2408, %v2448
      %2450 = vmatmul.f32.gmra.mxu0 %v2015
      %v2451 = vpop.f32.mrf.mxu0
      %v2452 = vadd.f32 %v2411, %v2451
      %2453 = vmatmul.f32.gmra.mxu0 %v2019
      %v2454 = vpop.f32.mrf.mxu0
      %v2455 = vadd.f32 %v2414, %v2454
      %2456 = vdwg.mxu0
      %2457 = vmatpush.msra.mxu0 %v2277
      %2458 = vmatpush.msra.mxu0 %v2275
      %2459 = vmatpush.msra.mxu0 %v2273
      %2460 = vmatpush.msra.mxu0 %v2271
      %2461 = vmatpush.msra.mxu0 %v2269
      %2462 = vmatpush.msra.mxu0 %v2267
      %2463 = vmatpush.msra.mxu0 %v2265
      %2464 = vmatpush.msra.mxu0 %v2263
      %2465 = vmatpush.msra.mxu0 %v2261
      %2466 = vmatpush.msra.mxu0 %v2259
      %2467 = vmatpush.msra.mxu0 %v2257
      %2468 = vmatpush.msra.mxu0 %v2255
      %2469 = vmatpush.msra.mxu0 %v2253
      %2470 = vmatpush.msra.mxu0 %v2251
      %2471 = vmatpush.msra.mxu0 %v2249
      %2472 = vmatpush.msra.mxu0 %v2247
      %2473 = vmatmul.f32.gmra.mxu0 %v2056
      %v2474 = vpop.f32.mrf.mxu0
      %v2475 = vadd.f32 %v2434, %v2474
      %2476 = vmatmul.f32.gmra.mxu0 %v2062
      %v2477 = vpop.f32.mrf.mxu0
      %v2478 = vadd.f32 %v2437, %v2477
      %2479 = vmatmul.f32.gmra.mxu0 %v2068
      %v2480 = vpop.f32.mrf.mxu0
      %v2481 = vadd.f32 %v2440, %v2480
      %2482 = vmatmul.f32.gmra.mxu0 %v2074
      %v2483 = vpop.f32.mrf.mxu0
      %v2484 = vadd.f32 %v2443, %v2483
      %2485 = vmatmul.f32.gmra.mxu0 %v2080
      %v2486 = vpop.f32.mrf.mxu0
      %v2487 = vadd.f32 %v2446, %v2486
      %2488 = vmatmul.f32.gmra.mxu0 %v2086
      %v2489 = vpop.f32.mrf.mxu0
      %v2490 = vadd.f32 %v2449, %v2489
      %2491 = vmatmul.f32.gmra.mxu0 %v2092
      %v2492 = vpop.f32.mrf.mxu0
      %v2493 = vadd.f32 %v2452, %v2492
      %2494 = vmatmul.f32.gmra.mxu0 %v2098
      %v2495 = vpop.f32.mrf.mxu0
      %v2496 = vadd.f32 %v2455, %v2495
      %2497 = vdwg.mxu0
      %2498 = vmatpush.msra.mxu0 %v2309
      %2499 = vmatpush.msra.mxu0 %v2307
      %2500 = vmatpush.msra.mxu0 %v2305
      %2501 = vmatpush.msra.mxu0 %v2303
      %2502 = vmatpush.msra.mxu0 %v2301
      %2503 = vmatpush.msra.mxu0 %v2299
      %2504 = vmatpush.msra.mxu0 %v2297
      %2505 = vmatpush.msra.mxu0 %v2295
      %2506 = vmatpush.msra.mxu0 %v2293
      %2507 = vmatpush.msra.mxu0 %v2291
      %2508 = vmatpush.msra.mxu0 %v2289
      %2509 = vmatpush.msra.mxu0 %v2287
      %2510 = vmatpush.msra.mxu0 %v2285
      %2511 = vmatpush.msra.mxu0 %v2283
      %2512 = vmatpush.msra.mxu0 %v2281
      %2513 = vmatpush.msra.mxu0 %v2279
      %2514 = vmatmul.f32.gmra.mxu0 %v2059
      %v2515 = vpop.f32.mrf.mxu0
      %v2516 = vadd.f32 %v2475, %v2515
      %2517 = vmatmul.f32.gmra.mxu0 %v2065
      %v2518 = vpop.f32.mrf.mxu0
      %v2519 = vadd.f32 %v2478, %v2518
      %2520 = vmatmul.f32.gmra.mxu0 %v2071
      %v2521 = vpop.f32.mrf.mxu0
      %v2522 = vadd.f32 %v2481, %v2521
      %2523 = vmatmul.f32.gmra.mxu0 %v2077
      %v2524 = vpop.f32.mrf.mxu0
      %v2525 = vadd.f32 %v2484, %v2524
      %2526 = vmatmul.f32.gmra.mxu0 %v2083
      %v2527 = vpop.f32.mrf.mxu0
      %v2528 = vadd.f32 %v2487, %v2527
      %2529 = vmatmul.f32.gmra.mxu0 %v2089
      %v2530 = vpop.f32.mrf.mxu0
      %v2531 = vadd.f32 %v2490, %v2530
      %2532 = vmatmul.f32.gmra.mxu0 %v2095
      %v2533 = vpop.f32.mrf.mxu0
      %v2534 = vadd.f32 %v2493, %v2533
      %2535 = vmatmul.f32.gmra.mxu0 %v2101
      %v2536 = vpop.f32.mrf.mxu0
      %v2537 = vadd.f32 %v2496, %v2536
      %2538 = vdwg.mxu0
      %2539 = vmatpush.msra.mxu0 %v2341
      %2540 = vmatpush.msra.mxu0 %v2339
      %2541 = vmatpush.msra.mxu0 %v2337
      %2542 = vmatpush.msra.mxu0 %v2335
      %2543 = vmatpush.msra.mxu0 %v2333
      %2544 = vmatpush.msra.mxu0 %v2331
      %2545 = vmatpush.msra.mxu0 %v2329
      %2546 = vmatpush.msra.mxu0 %v2327
      %2547 = vmatpush.msra.mxu0 %v2325
      %2548 = vmatpush.msra.mxu0 %v2323
      %2549 = vmatpush.msra.mxu0 %v2321
      %2550 = vmatpush.msra.mxu0 %v2319
      %2551 = vmatpush.msra.mxu0 %v2317
      %2552 = vmatpush.msra.mxu0 %v2315
      %2553 = vmatpush.msra.mxu0 %v2313
      %2554 = vmatpush.msra.mxu0 %v2311
      %2555 = vmatmul.f32.gmra.mxu0 %v2120
      %v2556 = vpop.f32.mrf.mxu0
      %v2557 = vadd.f32 %v2516, %v2556
      %2558 = vmatmul.f32.gmra.mxu0 %v2126
      %v2559 = vpop.f32.mrf.mxu0
      %v2560 = vadd.f32 %v2519, %v2559
      %2561 = vmatmul.f32.gmra.mxu0 %v2132
      %v2562 = vpop.f32.mrf.mxu0
      %v2563 = vadd.f32 %v2522, %v2562
      %2564 = vmatmul.f32.gmra.mxu0 %v2138
      %v2565 = vpop.f32.mrf.mxu0
      %v2566 = vadd.f32 %v2525, %v2565
      %2567 = vmatmul.f32.gmra.mxu0 %v2144
      %v2568 = vpop.f32.mrf.mxu0
      %v2569 = vadd.f32 %v2528, %v2568
      %2570 = vmatmul.f32.gmra.mxu0 %v2150
      %v2571 = vpop.f32.mrf.mxu0
      %v2572 = vadd.f32 %v2531, %v2571
      %2573 = vmatmul.f32.gmra.mxu0 %v2156
      %v2574 = vpop.f32.mrf.mxu0
      %v2575 = vadd.f32 %v2534, %v2574
      %2576 = vmatmul.f32.gmra.mxu0 %v2162
      %v2577 = vpop.f32.mrf.mxu0
      %v2578 = vadd.f32 %v2537, %v2577
      %2579 = vdwg.mxu0
      %2580 = vmatpush.msra.mxu0 %v2373
      %2581 = vmatpush.msra.mxu0 %v2371
      %2582 = vmatpush.msra.mxu0 %v2369
      %2583 = vmatpush.msra.mxu0 %v2367
      %2584 = vmatpush.msra.mxu0 %v2365
      %2585 = vmatpush.msra.mxu0 %v2363
      %2586 = vmatpush.msra.mxu0 %v2361
      %2587 = vmatpush.msra.mxu0 %v2359
      %2588 = vmatpush.msra.mxu0 %v2357
      %2589 = vmatpush.msra.mxu0 %v2355
      %2590 = vmatpush.msra.mxu0 %v2353
      %2591 = vmatpush.msra.mxu0 %v2351
      %2592 = vmatpush.msra.mxu0 %v2349
      %2593 = vmatpush.msra.mxu0 %v2347
      %2594 = vmatpush.msra.mxu0 %v2345
      %2595 = vmatpush.msra.mxu0 %v2343
      %2596 = vmatmul.f32.gmra.mxu0 %v2123
      %v2597 = vpop.f32.mrf.mxu0
      %v2598 = vadd.f32 %v2557, %v2597
      %2599 = vmatmul.f32.gmra.mxu0 %v2129
      %v2600 = vpop.f32.mrf.mxu0
      %v2601 = vadd.f32 %v2560, %v2600
      %2602 = vmatmul.f32.gmra.mxu0 %v2135
      %v2603 = vpop.f32.mrf.mxu0
      %v2604 = vadd.f32 %v2563, %v2603
      %2605 = vmatmul.f32.gmra.mxu0 %v2141
      %v2606 = vpop.f32.mrf.mxu0
      %v2607 = vadd.f32 %v2566, %v2606
      %2608 = vmatmul.f32.gmra.mxu0 %v2147
      %v2609 = vpop.f32.mrf.mxu0
      %v2610 = vadd.f32 %v2569, %v2609
      %2611 = vmatmul.f32.gmra.mxu0 %v2153
      %v2612 = vpop.f32.mrf.mxu0
      %v2613 = vadd.f32 %v2572, %v2612
      %2614 = vmatmul.f32.gmra.mxu0 %v2159
      %v2615 = vpop.f32.mrf.mxu0
      %v2616 = vadd.f32 %v2575, %v2615
      %2617 = vmatmul.f32.gmra.mxu0 %v2165
      %v2618 = vpop.f32.mrf.mxu0
      %v2619 = vadd.f32 %v2578, %v2618
      %2620 = vdwg.mxu0
      %2621 = vmatpush.msra.mxu0 %v2214
      %2622 = vmatpush.msra.mxu0 %v2212
      %2623 = vmatpush.msra.mxu0 %v2210
      %2624 = vmatpush.msra.mxu0 %v2208
      %2625 = vmatpush.msra.mxu0 %v2206
      %2626 = vmatpush.msra.mxu0 %v2204
      %2627 = vmatpush.msra.mxu0 %v2202
      %2628 = vmatpush.msra.mxu0 %v2200
      %2629 = vmatpush.msra.mxu0 %v2198
      %2630 = vmatpush.msra.mxu0 %v2196
      %2631 = vmatpush.msra.mxu0 %v2194
      %2632 = vmatpush.msra.mxu0 %v2192
      %2633 = vmatpush.msra.mxu0 %v2190
      %2634 = vmatpush.msra.mxu0 %v2188
      %2635 = vmatpush.msra.mxu0 %v2186
      %2636 = vmatpush.msra.mxu0 %v2184
      %2637 = vmatmul.f32.gmra.mxu0 %v1990
      %v2638 = vpop.f32.mrf.mxu0
      %v2639 = vadd.f32 0.0, %v2638
      %2640 = vmatmul.f32.gmra.mxu0 %v1994
      %v2641 = vpop.f32.mrf.mxu0
      %v2642 = vadd.f32 0.0, %v2641
      %2643 = vmatmul.f32.gmra.mxu0 %v1998
      %v2644 = vpop.f32.mrf.mxu0
      %v2645 = vadd.f32 0.0, %v2644
      %2646 = vmatmul.f32.gmra.mxu0 %v2002
      %v2647 = vpop.f32.mrf.mxu0
      %v2648 = vadd.f32 0.0, %v2647
      %2649 = vmatmul.f32.gmra.mxu0 %v2006
      %v2650 = vpop.f32.mrf.mxu0
      %v2651 = vadd.f32 0.0, %v2650
      %2652 = vmatmul.f32.gmra.mxu0 %v2010
      %v2653 = vpop.f32.mrf.mxu0
      %v2654 = vadd.f32 0.0, %v2653
      %2655 = vmatmul.f32.gmra.mxu0 %v2014
      %v2656 = vpop.f32.mrf.mxu0
      %v2657 = vadd.f32 0.0, %v2656
      %2658 = vmatmul.f32.gmra.mxu0 %v2018
      %v2659 = vpop.f32.mrf.mxu0
      %v2660 = vadd.f32 0.0, %v2659
      %2661 = vdwg.mxu0
      %2662 = vmatpush.msra.mxu0 %v2246
      %2663 = vmatpush.msra.mxu0 %v2244
      %2664 = vmatpush.msra.mxu0 %v2242
      %2665 = vmatpush.msra.mxu0 %v2240
      %2666 = vmatpush.msra.mxu0 %v2238
      %2667 = vmatpush.msra.mxu0 %v2236
      %2668 = vmatpush.msra.mxu0 %v2234
      %2669 = vmatpush.msra.mxu0 %v2232
      %2670 = vmatpush.msra.mxu0 %v2230
      %2671 = vmatpush.msra.mxu0 %v2228
      %2672 = vmatpush.msra.mxu0 %v2226
      %2673 = vmatpush.msra.mxu0 %v2224
      %2674 = vmatpush.msra.mxu0 %v2222
      %2675 = vmatpush.msra.mxu0 %v2220
      %2676 = vmatpush.msra.mxu0 %v2218
      %2677 = vmatpush.msra.mxu0 %v2216
      %2678 = vmatmul.f32.gmra.mxu0 %v1991
      %v2679 = vpop.f32.mrf.mxu0
      %v2680 = vadd.f32 %v2639, %v2679
      %2681 = vmatmul.f32.gmra.mxu0 %v1995
      %v2682 = vpop.f32.mrf.mxu0
      %v2683 = vadd.f32 %v2642, %v2682
      %2684 = vmatmul.f32.gmra.mxu0 %v1999
      %v2685 = vpop.f32.mrf.mxu0
      %v2686 = vadd.f32 %v2645, %v2685
      %2687 = vmatmul.f32.gmra.mxu0 %v2003
      %v2688 = vpop.f32.mrf.mxu0
      %v2689 = vadd.f32 %v2648, %v2688
      %2690 = vmatmul.f32.gmra.mxu0 %v2007
      %v2691 = vpop.f32.mrf.mxu0
      %v2692 = vadd.f32 %v2651, %v2691
      %2693 = vmatmul.f32.gmra.mxu0 %v2011
      %v2694 = vpop.f32.mrf.mxu0
      %v2695 = vadd.f32 %v2654, %v2694
      %2696 = vmatmul.f32.gmra.mxu0 %v2015
      %v2697 = vpop.f32.mrf.mxu0
      %v2698 = vadd.f32 %v2657, %v2697
      %2699 = vmatmul.f32.gmra.mxu0 %v2019
      %v2700 = vpop.f32.mrf.mxu0
      %v2701 = vadd.f32 %v2660, %v2700
      %2702 = vdwg.mxu0
      %2703 = vmatpush.msra.mxu0 %v2278
      %2704 = vmatpush.msra.mxu0 %v2276
      %2705 = vmatpush.msra.mxu0 %v2274
      %2706 = vmatpush.msra.mxu0 %v2272
      %2707 = vmatpush.msra.mxu0 %v2270
      %2708 = vmatpush.msra.mxu0 %v2268
      %2709 = vmatpush.msra.mxu0 %v2266
      %2710 = vmatpush.msra.mxu0 %v2264
      %2711 = vmatpush.msra.mxu0 %v2262
      %2712 = vmatpush.msra.mxu0 %v2260
      %2713 = vmatpush.msra.mxu0 %v2258
      %2714 = vmatpush.msra.mxu0 %v2256
      %2715 = vmatpush.msra.mxu0 %v2254
      %2716 = vmatpush.msra.mxu0 %v2252
      %2717 = vmatpush.msra.mxu0 %v2250
      %2718 = vmatpush.msra.mxu0 %v2248
      %2719 = vmatmul.f32.gmra.mxu0 %v2056
      %v2720 = vpop.f32.mrf.mxu0
      %v2721 = vadd.f32 %v2680, %v2720
      %2722 = vmatmul.f32.gmra.mxu0 %v2062
      %v2723 = vpop.f32.mrf.mxu0
      %v2724 = vadd.f32 %v2683, %v2723
      %2725 = vmatmul.f32.gmra.mxu0 %v2068
      %v2726 = vpop.f32.mrf.mxu0
      %v2727 = vadd.f32 %v2686, %v2726
      %2728 = vmatmul.f32.gmra.mxu0 %v2074
      %v2729 = vpop.f32.mrf.mxu0
      %v2730 = vadd.f32 %v2689, %v2729
      %2731 = vmatmul.f32.gmra.mxu0 %v2080
      %v2732 = vpop.f32.mrf.mxu0
      %v2733 = vadd.f32 %v2692, %v2732
      %2734 = vmatmul.f32.gmra.mxu0 %v2086
      %v2735 = vpop.f32.mrf.mxu0
      %v2736 = vadd.f32 %v2695, %v2735
      %2737 = vmatmul.f32.gmra.mxu0 %v2092
      %v2738 = vpop.f32.mrf.mxu0
      %v2739 = vadd.f32 %v2698, %v2738
      %2740 = vmatmul.f32.gmra.mxu0 %v2098
      %v2741 = vpop.f32.mrf.mxu0
      %v2742 = vadd.f32 %v2701, %v2741
      %2743 = vdwg.mxu0
      %2744 = vmatpush.msra.mxu0 %v2310
      %2745 = vmatpush.msra.mxu0 %v2308
      %2746 = vmatpush.msra.mxu0 %v2306
      %2747 = vmatpush.msra.mxu0 %v2304
      %2748 = vmatpush.msra.mxu0 %v2302
      %2749 = vmatpush.msra.mxu0 %v2300
      %2750 = vmatpush.msra.mxu0 %v2298
      %2751 = vmatpush.msra.mxu0 %v2296
      %2752 = vmatpush.msra.mxu0 %v2294
      %2753 = vmatpush.msra.mxu0 %v2292
      %2754 = vmatpush.msra.mxu0 %v2290
      %2755 = vmatpush.msra.mxu0 %v2288
      %2756 = vmatpush.msra.mxu0 %v2286
      %2757 = vmatpush.msra.mxu0 %v2284
      %2758 = vmatpush.msra.mxu0 %v2282
      %2759 = vmatpush.msra.mxu0 %v2280
      %2760 = vmatmul.f32.gmra.mxu0 %v2059
      %v2761 = vpop.f32.mrf.mxu0
      %v2762 = vadd.f32 %v2721, %v2761
      %2763 = vmatmul.f32.gmra.mxu0 %v2065
      %v2764 = vpop.f32.mrf.mxu0
      %v2765 = vadd.f32 %v2724, %v2764
      %2766 = vmatmul.f32.gmra.mxu0 %v2071
      %v2767 = vpop.f32.mrf.mxu0
      %v2768 = vadd.f32 %v2727, %v2767
      %2769 = vmatmul.f32.gmra.mxu0 %v2077
      %v2770 = vpop.f32.mrf.mxu0
      %v2771 = vadd.f32 %v2730, %v2770
      %2772 = vmatmul.f32.gmra.mxu0 %v2083
      %v2773 = vpop.f32.mrf.mxu0
      %v2774 = vadd.f32 %v2733, %v2773
      %2775 = vmatmul.f32.gmra.mxu0 %v2089
      %v2776 = vpop.f32.mrf.mxu0
      %v2777 = vadd.f32 %v2736, %v2776
      %2778 = vmatmul.f32.gmra.mxu0 %v2095
      %v2779 = vpop.f32.mrf.mxu0
      %v2780 = vadd.f32 %v2739, %v2779
      %2781 = vmatmul.f32.gmra.mxu0 %v2101
      %v2782 = vpop.f32.mrf.mxu0
      %v2783 = vadd.f32 %v2742, %v2782
      %2784 = vdwg.mxu0
      %2785 = vmatpush.msra.mxu0 %v2342
      %2786 = vmatpush.msra.mxu0 %v2340
      %2787 = vmatpush.msra.mxu0 %v2338
      %2788 = vmatpush.msra.mxu0 %v2336
      %2789 = vmatpush.msra.mxu0 %v2334
      %2790 = vmatpush.msra.mxu0 %v2332
      %2791 = vmatpush.msra.mxu0 %v2330
      %2792 = vmatpush.msra.mxu0 %v2328
      %2793 = vmatpush.msra.mxu0 %v2326
      %2794 = vmatpush.msra.mxu0 %v2324
      %2795 = vmatpush.msra.mxu0 %v2322
      %2796 = vmatpush.msra.mxu0 %v2320
      %2797 = vmatpush.msra.mxu0 %v2318
      %2798 = vmatpush.msra.mxu0 %v2316
      %2799 = vmatpush.msra.mxu0 %v2314
      %2800 = vmatpush.msra.mxu0 %v2312
      %2801 = vmatmul.f32.gmra.mxu0 %v2120
      %v2802 = vpop.f32.mrf.mxu0
      %v2803 = vadd.f32 %v2762, %v2802
      %2804 = vmatmul.f32.gmra.mxu0 %v2126
      %v2805 = vpop.f32.mrf.mxu0
      %v2806 = vadd.f32 %v2765, %v2805
      %2807 = vmatmul.f32.gmra.mxu0 %v2132
      %v2808 = vpop.f32.mrf.mxu0
      %v2809 = vadd.f32 %v2768, %v2808
      %2810 = vmatmul.f32.gmra.mxu0 %v2138
      %v2811 = vpop.f32.mrf.mxu0
      %v2812 = vadd.f32 %v2771, %v2811
      %2813 = vmatmul.f32.gmra.mxu0 %v2144
      %v2814 = vpop.f32.mrf.mxu0
      %v2815 = vadd.f32 %v2774, %v2814
      %2816 = vmatmul.f32.gmra.mxu0 %v2150
      %v2817 = vpop.f32.mrf.mxu0
      %v2818 = vadd.f32 %v2777, %v2817
      %2819 = vmatmul.f32.gmra.mxu0 %v2156
      %v2820 = vpop.f32.mrf.mxu0
      %v2821 = vadd.f32 %v2780, %v2820
      %2822 = vmatmul.f32.gmra.mxu0 %v2162
      %v2823 = vpop.f32.mrf.mxu0
      %v2824 = vadd.f32 %v2783, %v2823
      %2825 = vdwg.mxu0
      %2826 = vmatpush.msra.mxu0 %v2374
      %2827 = vmatpush.msra.mxu0 %v2372
      %2828 = vmatpush.msra.mxu0 %v2370
      %2829 = vmatpush.msra.mxu0 %v2368
      %2830 = vmatpush.msra.mxu0 %v2366
      %2831 = vmatpush.msra.mxu0 %v2364
      %2832 = vmatpush.msra.mxu0 %v2362
      %2833 = vmatpush.msra.mxu0 %v2360
      %2834 = vmatpush.msra.mxu0 %v2358
      %2835 = vmatpush.msra.mxu0 %v2356
      %2836 = vmatpush.msra.mxu0 %v2354
      %2837 = vmatpush.msra.mxu0 %v2352
      %2838 = vmatpush.msra.mxu0 %v2350
      %2839 = vmatpush.msra.mxu0 %v2348
      %2840 = vmatpush.msra.mxu0 %v2346
      %2841 = vmatpush.msra.mxu0 %v2344
      %2842 = vmatmul.f32.gmra.mxu0 %v2123
      %v2843 = vpop.f32.mrf.mxu0
      %v2844 = vadd.f32 %v2803, %v2843
      %2845 = vmatmul.f32.gmra.mxu0 %v2129
      %v2846 = vpop.f32.mrf.mxu0
      %v2847 = vadd.f32 %v2806, %v2846
      %2848 = vmatmul.f32.gmra.mxu0 %v2135
      %v2849 = vpop.f32.mrf.mxu0
      %v2850 = vadd.f32 %v2809, %v2849
      %2851 = vmatmul.f32.gmra.mxu0 %v2141
      %v2852 = vpop.f32.mrf.mxu0
      %v2853 = vadd.f32 %v2812, %v2852
      %2854 = vmatmul.f32.gmra.mxu0 %v2147
      %v2855 = vpop.f32.mrf.mxu0
      %v2856 = vadd.f32 %v2815, %v2855
      %2857 = vmatmul.f32.gmra.mxu0 %v2153
      %v2858 = vpop.f32.mrf.mxu0
      %v2859 = vadd.f32 %v2818, %v2858
      %2860 = vmatmul.f32.gmra.mxu0 %v2159
      %v2861 = vpop.f32.mrf.mxu0
      %v2862 = vadd.f32 %v2821, %v2861
      %2863 = vmatmul.f32.gmra.mxu0 %v2165
      %v2864 = vpop.f32.mrf.mxu0
      %v2865 = vadd.f32 %v2824, %v2864
      %2866 = vdwg.mxu0
      %v2867 = vadd.f32 %v1717, %v2598
      %v2868 = vadd.f32 %v1963, %v2844
      %v2869 = vadd.f32 %v1720, %v2601
      %v2870 = vadd.f32 %v1966, %v2847
      %v2871 = vadd.f32 %v1723, %v2604
      %v2872 = vadd.f32 %v1969, %v2850
      %v2873 = vadd.f32 %v1726, %v2607
      %v2874 = vadd.f32 %v1972, %v2853
      %v2875 = vadd.f32 %v1729, %v2610
      %v2876 = vadd.f32 %v1975, %v2856
      %v2877 = vadd.f32 %v1732, %v2613
      %v2878 = vadd.f32 %v1978, %v2859
      %v2879 = vadd.f32 %v1735, %v2616
      %v2880 = vadd.f32 %v1981, %v2862
      %v2881 = vadd.f32 %v1738, %v2619
      %v2882 = vadd.f32 %v1984, %v2865
      %v2883 = vld [vmem:[%s2] sm:$0x3]
      %v2885 = vperm.slane %v2883, 0
      %v2886 = vperm.slane %v2883, 1
      %v2889 = vmul.f32 %v2867, %v2885
      %v2890 = vmul.f32 %v2868, %v2886
      %v2891 = vmul.f32 %v2869, %v2885
      %v2892 = vmul.f32 %v2870, %v2886
      %v2893 = vmul.f32 %v2871, %v2885
      %v2894 = vmul.f32 %v2872, %v2886
      %v2895 = vmul.f32 %v2873, %v2885
      %v2896 = vmul.f32 %v2874, %v2886
      %v2897 = vmul.f32 %v2875, %v2885
      %v2898 = vmul.f32 %v2876, %v2886
      %v2899 = vmul.f32 %v2877, %v2885
      %v2900 = vmul.f32 %v2878, %v2886
      %v2901 = vmul.f32 %v2879, %v2885
      %v2902 = vmul.f32 %v2880, %v2886
      %v2903 = vmul.f32 %v2881, %v2885
      %v2904 = vmul.f32 %v2882, %v2886
      %v2905 = vld [vmem:[%s3] sm:$0x3]
      %v2907 = vperm.slane %v2905, 0
      %v2908 = vperm.slane %v2905, 1
      %v2911 = vadd.f32 %v2889, %v2907
      %v2912 = vadd.f32 %v2890, %v2908
      %v2913 = vadd.f32 %v2891, %v2907
      %v2914 = vadd.f32 %v2892, %v2908
      %v2915 = vadd.f32 %v2893, %v2907
      %v2916 = vadd.f32 %v2894, %v2908
      %v2917 = vadd.f32 %v2895, %v2907
      %v2918 = vadd.f32 %v2896, %v2908
      %v2919 = vadd.f32 %v2897, %v2907
      %v2920 = vadd.f32 %v2898, %v2908
      %v2921 = vadd.f32 %v2899, %v2907
      %v2922 = vadd.f32 %v2900, %v2908
      %v2923 = vadd.f32 %v2901, %v2907
      %v2924 = vadd.f32 %v2902, %v2908
      %v2925 = vadd.f32 %v2903, %v2907
      %v2926 = vadd.f32 %v2904, %v2908
      %v2927 = vmax.f32 %v2911, 0.0
      %v2928 = vmax.f32 %v2912, 0.0
      %v2929 = vmax.f32 %v2913, 0.0
      %v2930 = vmax.f32 %v2914, 0.0
      %v2931 = vmax.f32 %v2915, 0.0
      %v2932 = vmax.f32 %v2916, 0.0
      %v2933 = vmax.f32 %v2917, 0.0
      %v2934 = vmax.f32 %v2918, 0.0
      %v2935 = vmax.f32 %v2919, 0.0
      %v2936 = vmax.f32 %v2920, 0.0
      %v2937 = vmax.f32 %v2921, 0.0
      %v2938 = vmax.f32 %v2922, 0.0
      %v2939 = vmax.f32 %v2923, 0.0
      %v2940 = vmax.f32 %v2924, 0.0
      %v2941 = vmax.f32 %v2925, 0.0
      %v2942 = vmax.f32 %v2926, 0.0
      %2943 = vst [vmem:[%s221] sm:$0xff] %v2927
      %2944 = vst [vmem:[%s221 + $0x8] sm:$0xff] %v2928
      %2945 = vst [vmem:[%s221 + $0x10] sm:$0xff] %v2929
      %2946 = vst [vmem:[%s221 + $0x18] sm:$0xff] %v2930
      %2947 = vst [vmem:[%s221 + $0x20] sm:$0xff] %v2931
      %2948 = vst [vmem:[%s221 + $0x28] sm:$0xff] %v2932
      %2949 = vst [vmem:[%s221 + $0x30] sm:$0xff] %v2933
      %2950 = vst [vmem:[%s221 + $0x38] sm:$0xff] %v2934
      %2951 = vst [vmem:[%s221 + $0x40] sm:$0xff] %v2935
      %2952 = vst [vmem:[%s221 + $0x48] sm:$0xff] %v2936
      %2953 = vst [vmem:[%s221 + $0x50] sm:$0xff] %v2937
      %2954 = vst [vmem:[%s221 + $0x58] sm:$0xff] %v2938
      %2955 = vst [vmem:[%s221 + $0x60] sm:$0xff] %v2939
      %2956 = vst [vmem:[%s221 + $0x68] sm:$0xff] %v2940
      %2957 = vst [vmem:[%s221 + $0x70] sm:$0xff] %v2941
      %2958 = vst [vmem:[%s221 + $0x78] sm:$0xff] %v2942
      %s2959 = smul.u32 8, %s20
      %p2960 = scmp.lt.s32.totalorder %s19, 1
      %s2961 = scalar_select %p2960, %s19, 1
      %p2962 = scmp.lt.s32.totalorder %s2959, 7
      %s2963 = scalar_select %p2962, %s2959, 7
      %s2964 = smul.addr %s2963, 2
      %s2965 = smul.addr %s2961, 16
      %s2966 = sadd.s32 %s2964, %s2965
      %s2967 = smul.addr %s2966, 8
      %s2968 = scalar_lea.vmem %s4, %s2967
      // Predicated region
      $region37: #{branch3_forward.4} parent=35 // pred_check
        %p2969 = pneg %p136
      $region38: #{branch3_forward.4} parent=35 // pred_check_branch
        %2971 = sbr.rel (%p2969) target = $region40
      $region39: #{branch3_forward.4} parent=35 // pred_region
        %s2972 = smul.u32 8, %s20
      $region40: #{branch3_forward.4} parent=35 // pred_fallthru
        _
    $region36: #{branch3_forward.4} parent=5 // pred_fallthru
      _
    %p2973 = scmp.le.s32.totalorder 2, %s10
    // Predicated region
    $region41: #{branch3_forward.4} parent=5 // pred_check
      %p2974 = pneg %p2973
    $region42: #{branch3_forward.4} parent=5 // pred_check_branch
      %2976 = sbr.rel (%p2974) target = $region44
    $region43: #{branch3_forward.4} parent=5 // pred_region
      %s2977 = ssub.s32 %s10, 2
      // Predicated region
      $region45: #{branch3_forward.4} parent=43 // pred_check
        %p2978 = pneg %p142
      $region46: #{branch3_forward.4} parent=43 // pred_check_branch
        %2980 = sbr.rel (%p2978) target = $region48
      $region47: #{branch3_forward.4} parent=43 // pred_region
        %s2981 = smul.u32 8, %s22
        %p2982 = scmp.lt.s32.totalorder %s21, 1
        %s2983 = scalar_select %p2982, %s21, 1
        %p2984 = scmp.lt.s32.totalorder %s2981, 7
        %s2985 = scalar_select %p2984, %s2981, 7
        %s2986 = smul.addr %s2985, 2
        %s2987 = smul.addr %s2983, 16
        %s2988 = sadd.s32 %s2986, %s2987
        %s2989 = smul.addr %s2988, 8
        %s2990 = scalar_lea.vmem %s4, %s2989
      $region48: #{branch3_forward.4} parent=43 // pred_fallthru
        _
    $region44: #{branch3_forward.4} parent=5 // pred_fallthru
      _
  $region6: #{branch3_forward.4} parent=0 // loop_footer
    %s14 = sadd.s32 1, %s10
  $region7: #{branch3_forward.4} parent=0 // loop_footer_branch
    %9 = sbr.rel target = $region3
  $region8: #{branch3_forward.4} parent=0 // loop_exit
    _

// kernel: branch3_forward.3
$region0: #{branch3_forward.3}
  #allocation0 [shape = 'u32[]', space=smem, size = 0x4, offset = 0x4, fixed_abs, tag = 'smem constant byte address 0x4 - core index']
  #allocation1 [shape = 'u32[72,128]{1,0:T(1,128)}', space=vmem, size = 0x9000, scoped, tag = 'internal scratch']
  %s0 = inlined_call_operand.vmem [shape: f32[2,12,12,128], index: 0, kind: input, shape index: {}]
  %s1 = inlined_call_operand.vmem [shape: f32[3,384,256], index: 1, kind: input, shape index: {}]
  %s2 = inlined_call_operand.vmem [shape: f32[1,256], index: 2, kind: input, shape index: {}]
  %s3 = inlined_call_operand.vmem [shape: f32[1,256], index: 3, kind: input, shape index: {}]
  %s4 = inlined_call_operand.vmem [shape: f32[2,10,10,256], index: 4, kind: output, shape index: {}]
  %s5 = sld [smem:[#allocation0]]
  $region49: #{branch3_forward.3} parent=0
    _
  %s7 = ssub.s32 1, %s5
  %s8 = scalar_select 0, %s7, %s5
  loop: start=0, step=1, limit=4
  $region2: #{branch3_forward.3} parent=0 // loop_pre_header
    _
  $region3: #{branch3_forward.3} parent=0 // loop_header
    %s10 = sphi 0, %s14
    %p11 = scmp.ge.s32.totalorder %s10, 4
    %s17 = sphi 0, %s29
    %s18 = sphi 0, %s25
    %s19 = sphi 0, %s17
    %s20 = sphi 0, %s18
    %s21 = sphi 0, %s19
    %s22 = sphi 0, %s20
    %s32 = sphi 0, %s34
    %s35 = sphi 0, %s32
    %s36 = sphi 0, %s35
    %s52 = sphi 0, %s36
    %s56 = sphi 0, %s56
    %s58 = sphi 0, %s56
    %s59 = sphi 0, %s58
    %s73 = sphi 0, %s59
    %s77 = sphi 0, %s77
    %s79 = sphi 0, %s77
    %s80 = sphi 0, %s79
    %s94 = sphi 0, %s80
    %s98 = sphi 0, %s98
    %s100 = sphi 0, %s98
    %s101 = sphi 0, %s100
    %s115 = sphi 0, %s101
    %s123 = sphi 0, %s125
    %s126 = sphi 0, %s123
    %s127 = sphi 0, %s126
    %s143 = sphi 0, %s127
  $region4: #{branch3_forward.3} parent=0 // loop_header_branch
    %13 = sbr.rel (%p11) target = $region8
  $region5: #{branch3_forward.3} parent=0 // loop_body
    %s15 = ssub.s32 %s10, 1
    %s16 = ssub.s32 %s10, 2
    %s23 = sadd.s32 1, %s18
    %p24 = scmp.ge.s32.totalorder %s23, 1
    %s25 = scalar_select %p24, 0, %s23
    %s26 = sadd.s32 1, %s17
    %s27 = scalar_select %p24, %s26, %s17
    %p28 = scmp.ge.s32.totalorder %s27, 2
    %s29 = scalar_select %p28, 0, %s27
    %s30 = ssub.s32 %s17, %s29
    %p31 = scmp.eq.s32.totalorder %s30, 0
    %s33 = sadd.s32 %s32, 1
    %s34 = scalar_select %p31, %s32, %s33
    %p37 = pneg %p31
    %p38 = scmp.eq.s32.totalorder %s10, 1
    %p39 = por %p37, %p38
    %p40 = scmp.ne.s32.totalorder %s32, %s35
    %p41 = scmp.eq.s32.totalorder %s10, 0
    %p42 = por %p40, %p41
    %p43 = scmp.ne.s32.totalorder %s32, %s35
    %p44 = scmp.eq.s32.totalorder %s15, 1
    %p45 = por %p43, %p44
    %p46 = scmp.ne.s32.totalorder %s35, %s36
    %p47 = scmp.eq.s32.totalorder %s15, 0
    %p48 = por %p46, %p47
    %p49 = scmp.ne.s32.totalorder %s35, %s36
    %p50 = scmp.eq.s32.totalorder %s16, 1
    %p51 = por %p49, %p50
    %p53 = scmp.ne.s32.totalorder %s36, %s52
    %p54 = scmp.eq.s32.totalorder %s16, 0
    %p55 = por %p53, %p54
    %s57 = sadd.s32 %s56, 1
    %p60 = scmp.eq.s32.totalorder %s10, 1
    %p61 = scmp.ne.s32.totalorder %s56, %s58
    %p62 = scmp.eq.s32.totalorder %s10, 0
    %p63 = por %p61, %p62
    %p64 = scmp.ne.s32.totalorder %s56, %s58
    %p65 = scmp.eq.s32.totalorder %s15, 1
    %p66 = por %p64, %p65
    %p67 = scmp.ne.s32.totalorder %s58, %s59
    %p68 = scmp.eq.s32.totalorder %s15, 0
    %p69 = por %p67, %p68
    %p70 = scmp.ne.s32.totalorder %s58, %s59
    %p71 = scmp.eq.s32.totalorder %s16, 1
    %p72 = por %p70, %p71
    %p74 = scmp.ne.s32.totalorder %s59, %s73
    %p75 = scmp.eq.s32.totalorder %s16, 0
    %p76 = por %p74, %p75
    %s78 = sadd.s32 %s77, 1
    %p81 = scmp.eq.s32.totalorder %s10, 1
    %p82 = scmp.ne.s32.totalorder %s77, %s79
    %p83 = scmp.eq.s32.totalorder %s10, 0
    %p84 = por %p82, %p83
    %p85 = scmp.ne.s32.totalorder %s77, %s79
    %p86 = scmp.eq.s32.totalorder %s15, 1
    %p87 = por %p85, %p86
    %p88 = scmp.ne.s32.totalorder %s79, %s80
    %p89 = scmp.eq.s32.totalorder %s15, 0
    %p90 = por %p88, %p89
    %p91 = scmp.ne.s32.totalorder %s79, %s80
    %p92 = scmp.eq.s32.totalorder %s16, 1
    %p93 = por %p91, %p92
    %p95 = scmp.ne.s32.totalorder %s80, %s94
    %p96 = scmp.eq.s32.totalorder %s16, 0
    %p97 = por %p95, %p96
    %s99 = sadd.s32 %s98, 1
    %p102 = scmp.eq.s32.totalorder %s10, 1
    %p103 = scmp.ne.s32.totalorder %s98, %s100
    %p104 = scmp.eq.s32.totalorder %s10, 0
    %p105 = por %p103, %p104
    %p106 = scmp.ne.s32.totalorder %s98, %s100
    %p107 = scmp.eq.s32.totalorder %s15, 1
    %p108 = por %p106, %p107
    %p109 = scmp.ne.s32.totalorder %s100, %s101
    %p110 = scmp.eq.s32.totalorder %s15, 0
    %p111 = por %p109, %p110
    %p112 = scmp.ne.s32.totalorder %s100, %s101
    %p113 = scmp.eq.s32.totalorder %s16, 1
    %p114 = por %p112, %p113
    %p116 = scmp.ne.s32.totalorder %s101, %s115
    %p117 = scmp.eq.s32.totalorder %s16, 0
    %p118 = por %p116, %p117
    %s119 = ssub.s32 %s17, %s29
    %s120 = ssub.s32 %s18, %s25
    %s121 = sor.u32 %s119, %s120
    %p122 = scmp.eq.s32.totalorder %s121, 0
    %s124 = sadd.s32 %s123, 1
    %s125 = scalar_select %p122, %s123, %s124
    %p128 = pneg %p122
    %p129 = scmp.eq.s32.totalorder %s10, 1
    %p130 = por %p128, %p129
    %p131 = scmp.ne.s32.totalorder %s123, %s126
    %p132 = scmp.eq.s32.totalorder %s10, 0
    %p133 = por %p131, %p132
    %p134 = scmp.ne.s32.totalorder %s123, %s126
    %p135 = scmp.eq.s32.totalorder %s15, 1
    %p136 = por %p134, %p135
    %p137 = scmp.ne.s32.totalorder %s126, %s127
    %p138 = scmp.eq.s32.totalorder %s15, 0
    %p139 = por %p137, %p138
    %p140 = scmp.ne.s32.totalorder %s126, %s127
    %p141 = scmp.eq.s32.totalorder %s16, 1
    %p142 = por %p140, %p141
    %p144 = scmp.ne.s32.totalorder %s127, %s143
    %p145 = scmp.eq.s32.totalorder %s16, 0
    %p146 = por %p144, %p145
    %p147 = scmp.le.s32.totalorder 1, %s10
    %p148 = scmp.lt.s32.totalorder %s10, 3
    %p149 = pnand %p147, %p148
    %p150 = pneg %p149
    // Predicated region
    $region9: #{branch3_forward.3} parent=5 // pred_check
      _
    $region10: #{branch3_forward.3} parent=5 // pred_check_branch
      %152 = sbr.rel (%p149) target = $region12
    $region11: #{branch3_forward.3} parent=5 // pred_region
      %s153 = ssub.s32 %s10, 1
      // Predicated region
      $region13: #{branch3_forward.3} parent=11 // pred_check
        %p154 = pneg %p69
      $region14: #{branch3_forward.3} parent=11 // pred_check_branch
        %156 = sbr.rel (%p154) target = $region16
      $region15: #{branch3_forward.3} parent=11 // pred_region
        _
      $region16: #{branch3_forward.3} parent=11 // pred_fallthru
        _
      // Predicated region
      $region17: #{branch3_forward.3} parent=11 // pred_check
        %p157 = pneg %p90
      $region18: #{branch3_forward.3} parent=11 // pred_check_branch
        %159 = sbr.rel (%p157) target = $region20
      $region19: #{branch3_forward.3} parent=11 // pred_region
        _
      $region20: #{branch3_forward.3} parent=11 // pred_fallthru
        _
      // Predicated region
      $region21: #{branch3_forward.3} parent=11 // pred_check
        %p160 = pneg %p111
      $region22: #{branch3_forward.3} parent=11 // pred_check_branch
        %162 = sbr.rel (%p160) target = $region24
      $region23: #{branch3_forward.3} parent=11 // pred_region
        _
      $region24: #{branch3_forward.3} parent=11 // pred_fallthru
        _
    $region12: #{branch3_forward.3} parent=5 // pred_fallthru
      _
    %p163 = scmp.lt.s32.totalorder %s10, 2
    // Predicated region
    $region25: #{branch3_forward.3} parent=5 // pred_check
      %p164 = pneg %p163
    $region26: #{branch3_forward.3} parent=5 // pred_check_branch
      %166 = sbr.rel (%p164) target = $region28
    $region27: #{branch3_forward.3} parent=5 // pred_region
      // Predicated region
      $region29: #{branch3_forward.3} parent=27 // pred_check
        %p167 = pneg %p42
      $region30: #{branch3_forward.3} parent=27 // pred_check_branch
        %169 = sbr.rel (%p167) target = $region32
      $region31: #{branch3_forward.3} parent=27 // pred_region
        %p170 = scmp.lt.s32.totalorder %s17, 1
        %s171 = scalar_select %p170, %s17, 1
        %s172 = smul.addr %s171, 24
        %s173 = smul.addr %s172, 8
        %s174 = scalar_lea.vmem %s0, %s173
      $region32: #{branch3_forward.3} parent=27 // pred_fallthru
        _
    $region28: #{branch3_forward.3} parent=5 // pred_fallthru
      _
    %p175 = scmp.le.s32.totalorder 1, %s10
    %p176 = scmp.lt.s32.totalorder %s10, 3
    %p177 = pnand %p175, %p176
    %p178 = pneg %p177
    // Predicated region
    $region33: #{branch3_forward.3} parent=5 // pred_check
      _
    $region34: #{branch3_forward.3} parent=5 // pred_check_branch
      %180 = sbr.rel (%p177) target = $region36
    $region35: #{branch3_forward.3} parent=5 // pred_region
      %s181 = ssub.s32 %s10, 1
      %p182 = scmp.lt.s32.totalorder %s19, 1
      %s183 = scalar_select %p182, %s19, 1
      %s184 = smul.addr %s183, 24
      %s185 = smul.addr %s184, 8
      %s186 = scalar_lea.vmem %s0, %s185
      %p187 = pneg %p48
      %p188 = pneg %p45
      %p189 = pneg %p69
      %p190 = pneg %p66
      %p191 = pneg %p90
      %p192 = pneg %p87
      %p193 = pneg %p111
      %p194 = pneg %p108
      %p195 = pneg %p139
      %p196 = pneg %p136
      %s197 = smul.u32 10, %s20
      %p198 = scmp.lt.s32.totalorder %s19, 1
      %s199 = scalar_select %p198, %s19, 1
      %p200 = scmp.lt.s32.totalorder %s197, 9
      %s201 = scalar_select %p200, %s197, 9
      %s202 = smul.addr %s201, 4
      %s203 = smul.addr %s199, 40
      %s204 = sadd.s32 %s202, %s203
      %s205 = smul.addr %s204, 8
      %s206 = scalar_lea.vmem %s4, %s205
      %p207 = scmp.lt.s32.totalorder %s19, 1
      %s208 = scalar_select %p207, %s19, 1
      %s209 = smul.addr %s208, 24
      %s210 = smul.addr %s209, 8
      %s211 = scalar_lea.vmem %s0, %s210
      %s212 = smul.u32 10, %s20
      %p213 = scmp.lt.s32.totalorder %s19, 1
      %s214 = scalar_select %p213, %s19, 1
      %p215 = scmp.lt.s32.totalorder %s212, 9
      %s216 = scalar_select %p215, %s212, 9
      %s217 = smul.addr %s216, 4
      %s218 = smul.addr %s214, 40
      %s219 = sadd.s32 %s217, %s218
      %s220 = smul.addr %s219, 8
      %s221 = scalar_lea.vmem %s4, %s220
      %s222 = smul.u32 10, %s20
      %s223 = smul.u32 %s20, 10
      %s224 = smul.u32 %s223, 16
      %s225 = scalar_lea.vmem %s211, %s224
      %v226 = vld [vmem:[%s225] sm:$0xff]
      %v227 = vld [vmem:[%s225 + $0x8] sm:$0xf]
      %v228 = vld [vmem:[%s225 + $0x10] sm:$0xff]
      %v229 = vld [vmem:[%s225 + $0x18] sm:$0xf]
      %v230 = vld [vmem:[%s225 + $0x20] sm:$0xff]
      %v231 = vld [vmem:[%s225 + $0x28] sm:$0xf]
      %v232 = vld [vmem:[%s225 + $0x30] sm:$0xff]
      %v233 = vld [vmem:[%s225 + $0x38] sm:$0xf]
      %v234 = vld [vmem:[%s225 + $0x40] sm:$0xff]
      %v235 = vld [vmem:[%s225 + $0x48] sm:$0xf]
      %v236 = vld [vmem:[%s225 + $0x50] sm:$0xff]
      %v237 = vld [vmem:[%s225 + $0x58] sm:$0xf]
      %v238 = vld [vmem:[%s225 + $0x60] sm:$0xff]
      %v239 = vld [vmem:[%s225 + $0x68] sm:$0xf]
      %v240 = vld [vmem:[%s225 + $0x70] sm:$0xff]
      %v241 = vld [vmem:[%s225 + $0x78] sm:$0xf]
      %v242 = vld [vmem:[%s225 + $0x80] sm:$0xff]
      %v243 = vld [vmem:[%s225 + $0x88] sm:$0xf]
      %v244 = vld [vmem:[%s225 + $0x90] sm:$0xff]
      %v245 = vld [vmem:[%s225 + $0x98] sm:$0xf]
      %vm266 = vcmask 1046528
      %v267 = vrot.slane %v226, 1
      %v268 = vrot.slane %v227, 1
      %v269 = vsel %vm266, %v267, %v268
      %v270 = vrot.slane %v228, 1
      %v271 = vrot.slane %v229, 1
      %v272 = vsel %vm266, %v270, %v271
      %v273 = vrot.slane %v230, 1
      %v274 = vrot.slane %v231, 1
      %v275 = vsel %vm266, %v273, %v274
      %v276 = vrot.slane %v232, 1
      %v277 = vrot.slane %v233, 1
      %v278 = vsel %vm266, %v276, %v277
      %v279 = vrot.slane %v234, 1
      %v280 = vrot.slane %v235, 1
      %v281 = vsel %vm266, %v279, %v280
      %v282 = vrot.slane %v236, 1
      %v283 = vrot.slane %v237, 1
      %v284 = vsel %vm266, %v282, %v283
      %v285 = vrot.slane %v238, 1
      %v286 = vrot.slane %v239, 1
      %v287 = vsel %vm266, %v285, %v286
      %v288 = vrot.slane %v240, 1
      %v289 = vrot.slane %v241, 1
      %v290 = vsel %vm266, %v288, %v289
      %v291 = vrot.slane %v242, 1
      %v292 = vrot.slane %v243, 1
      %v293 = vsel %vm266, %v291, %v292
      %v294 = vrot.slane %v244, 1
      %v295 = vrot.slane %v245, 1
      %v296 = vsel %vm266, %v294, %v295
      %vm297 = vcmask 1045504
      %v298 = vrot.slane %v226, 2
      %v299 = vrot.slane %v227, 2
      %v300 = vsel %vm297, %v298, %v299
      %v301 = vrot.slane %v228, 2
      %v302 = vrot.slane %v229, 2
      %v303 = vsel %vm297, %v301, %v302
      %v304 = vrot.slane %v230, 2
      %v305 = vrot.slane %v231, 2
      %v306 = vsel %vm297, %v304, %v305
      %v307 = vrot.slane %v232, 2
      %v308 = vrot.slane %v233, 2
      %v309 = vsel %vm297, %v307, %v308
      %v310 = vrot.slane %v234, 2
      %v311 = vrot.slane %v235, 2
      %v312 = vsel %vm297, %v310, %v311
      %v313 = vrot.slane %v236, 2
      %v314 = vrot.slane %v237, 2
      %v315 = vsel %vm297, %v313, %v314
      %v316 = vrot.slane %v238, 2
      %v317 = vrot.slane %v239, 2
      %v318 = vsel %vm297, %v316, %v317
      %v319 = vrot.slane %v240, 2
      %v320 = vrot.slane %v241, 2
      %v321 = vsel %vm297, %v319, %v320
      %v322 = vrot.slane %v242, 2
      %v323 = vrot.slane %v243, 2
      %v324 = vsel %vm297, %v322, %v323
      %v325 = vrot.slane %v244, 2
      %v326 = vrot.slane %v245, 2
      %v327 = vsel %vm297, %v325, %v326
      %v328 = vrot.slane %v269, 6
      %v329 = vrot.slane %v300, 4
      %v330 = vrot.slane %v268, 6
      %v331 = vrot.slane %v299, 4
      %v332 = vrot.slane %v272, 6
      %v333 = vrot.slane %v303, 4
      %v334 = vrot.slane %v271, 6
      %v335 = vrot.slane %v302, 4
      %v336 = vrot.slane %v275, 6
      %v337 = vrot.slane %v306, 4
      %v338 = vrot.slane %v274, 6
      %v339 = vrot.slane %v305, 4
      %v340 = vrot.slane %v278, 6
      %v341 = vrot.slane %v309, 4
      %v342 = vrot.slane %v277, 6
      %v343 = vrot.slane %v308, 4
      %v344 = vrot.slane %v281, 6
      %v345 = vrot.slane %v312, 4
      %v346 = vrot.slane %v280, 6
      %v347 = vrot.slane %v311, 4
      %v348 = vrot.slane %v284, 6
      %v349 = vrot.slane %v315, 4
      %v350 = vrot.slane %v283, 6
      %v351 = vrot.slane %v314, 4
      %v352 = vrot.slane %v287, 6
      %v353 = vrot.slane %v318, 4
      %v354 = vrot.slane %v286, 6
      %v355 = vrot.slane %v317, 4
      %v356 = vrot.slane %v290, 6
      %v357 = vrot.slane %v321, 4
      %v358 = vrot.slane %v289, 6
      %v359 = vrot.slane %v320, 4
      %v360 = vrot.slane %v293, 6
      %v361 = vrot.slane %v324, 4
      %v362 = vrot.slane %v292, 6
      %v363 = vrot.slane %v323, 4
      %v364 = vrot.slane %v296, 6
      %v365 = vrot.slane %v327, 4
      %v366 = vrot.slane %v295, 6
      %v367 = vrot.slane %v326, 4
      %vm368 = vcmask 1041408
      %v369 = vsel %vm368, %v226, %v328
      %vm370 = vcmask 1043456
      %v371 = vsel %vm370, %v369, %v329
      %vm372 = vcmask 1043458
      %v373 = vsel %vm372, %v226, %v328
      %vm374 = vcmask 1045506
      %v375 = vsel %vm374, %v373, %v329
      %v376 = vrot.slane %v375, 2
      %vm377 = vcmask 1045508
      %v378 = vsel %vm377, %v226, %v328
      %v379 = vsel %vm370, %v329, %v378
      %v380 = vrot.slane %v379, 4
      %v381 = vsel %vm297, %v328, %v226
      %v382 = vsel %vm374, %v329, %v381
      %v383 = vrot.slane %v382, 6
      %v384 = vsel %vm368, %v227, %v330
      %v385 = vsel %vm370, %v384, %v331
      %v386 = vsel %vm368, %v228, %v332
      %v387 = vsel %vm370, %v386, %v333
      %v388 = vsel %vm372, %v228, %v332
      %v389 = vsel %vm374, %v388, %v333
      %v390 = vrot.slane %v389, 2
      %v391 = vsel %vm377, %v228, %v332
      %v392 = vsel %vm370, %v333, %v391
      %v393 = vrot.slane %v392, 4
      %v394 = vsel %vm297, %v332, %v228
      %v395 = vsel %vm374, %v333, %v394
      %v396 = vrot.slane %v395, 6
      %v397 = vsel %vm368, %v229, %v334
      %v398 = vsel %vm370, %v397, %v335
      %v399 = vsel %vm368, %v230, %v336
      %v400 = vsel %vm370, %v399, %v337
      %v401 = vsel %vm372, %v230, %v336
      %v402 = vsel %vm374, %v401, %v337
      %v403 = vrot.slane %v402, 2
      %v404 = vsel %vm377, %v230, %v336
      %v405 = vsel %vm370, %v337, %v404
      %v406 = vrot.slane %v405, 4
      %v407 = vsel %vm297, %v336, %v230
      %v408 = vsel %vm374, %v337, %v407
      %v409 = vrot.slane %v408, 6
      %v410 = vsel %vm368, %v231, %v338
      %v411 = vsel %vm370, %v410, %v339
      %v412 = vsel %vm368, %v232, %v340
      %v413 = vsel %vm370, %v412, %v341
      %v414 = vsel %vm372, %v232, %v340
      %v415 = vsel %vm374, %v414, %v341
      %v416 = vrot.slane %v415, 2
      %v417 = vsel %vm377, %v232, %v340
      %v418 = vsel %vm370, %v341, %v417
      %v419 = vrot.slane %v418, 4
      %v420 = vsel %vm297, %v340, %v232
      %v421 = vsel %vm374, %v341, %v420
      %v422 = vrot.slane %v421, 6
      %v423 = vsel %vm368, %v233, %v342
      %v424 = vsel %vm370, %v423, %v343
      %v425 = vsel %vm368, %v234, %v344
      %v426 = vsel %vm370, %v425, %v345
      %v427 = vsel %vm372, %v234, %v344
      %v428 = vsel %vm374, %v427, %v345
      %v429 = vrot.slane %v428, 2
      %v430 = vsel %vm377, %v234, %v344
      %v431 = vsel %vm370, %v345, %v430
      %v432 = vrot.slane %v431, 4
      %v433 = vsel %vm297, %v344, %v234
      %v434 = vsel %vm374, %v345, %v433
      %v435 = vrot.slane %v434, 6
      %v436 = vsel %vm368, %v235, %v346
      %v437 = vsel %vm370, %v436, %v347
      %v438 = vsel %vm368, %v236, %v348
      %v439 = vsel %vm370, %v438, %v349
      %v440 = vsel %vm372, %v236, %v348
      %v441 = vsel %vm374, %v440, %v349
      %v442 = vrot.slane %v441, 2
      %v443 = vsel %vm377, %v236, %v348
      %v444 = vsel %vm370, %v349, %v443
      %v445 = vrot.slane %v444, 4
      %v446 = vsel %vm297, %v348, %v236
      %v447 = vsel %vm374, %v349, %v446
      %v448 = vrot.slane %v447, 6
      %v449 = vsel %vm368, %v237, %v350
      %v450 = vsel %vm370, %v449, %v351
      %v451 = vsel %vm368, %v238, %v352
      %v452 = vsel %vm370, %v451, %v353
      %v453 = vsel %vm372, %v238, %v352
      %v454 = vsel %vm374, %v453, %v353
      %v455 = vrot.slane %v454, 2
      %v456 = vsel %vm377, %v238, %v352
      %v457 = vsel %vm370, %v353, %v456
      %v458 = vrot.slane %v457, 4
      %v459 = vsel %vm297, %v352, %v238
      %v460 = vsel %vm374, %v353, %v459
      %v461 = vrot.slane %v460, 6
      %v462 = vsel %vm368, %v239, %v354
      %v463 = vsel %vm370, %v462, %v355
      %v464 = vsel %vm368, %v240, %v356
      %v465 = vsel %vm370, %v464, %v357
      %v466 = vsel %vm372, %v240, %v356
      %v467 = vsel %vm374, %v466, %v357
      %v468 = vrot.slane %v467, 2
      %v469 = vsel %vm377, %v240, %v356
      %v470 = vsel %vm370, %v357, %v469
      %v471 = vrot.slane %v470, 4
      %v472 = vsel %vm297, %v356, %v240
      %v473 = vsel %vm374, %v357, %v472
      %v474 = vrot.slane %v473, 6
      %v475 = vsel %vm368, %v241, %v358
      %v476 = vsel %vm370, %v475, %v359
      %v477 = vsel %vm368, %v242, %v360
      %v478 = vsel %vm370, %v477, %v361
      %v479 = vsel %vm372, %v242, %v360
      %v480 = vsel %vm374, %v479, %v361
      %v481 = vrot.slane %v480, 2
      %v482 = vsel %vm377, %v242, %v360
      %v483 = vsel %vm370, %v361, %v482
      %v484 = vrot.slane %v483, 4
      %v485 = vsel %vm297, %v360, %v242
      %v486 = vsel %vm374, %v361, %v485
      %v487 = vrot.slane %v486, 6
      %v488 = vsel %vm368, %v243, %v362
      %v489 = vsel %vm370, %v488, %v363
      %v490 = vsel %vm368, %v244, %v364
      %v491 = vsel %vm370, %v490, %v365
      %v492 = vsel %vm372, %v244, %v364
      %v493 = vsel %vm374, %v492, %v365
      %v494 = vrot.slane %v493, 2
      %v495 = vsel %vm377, %v244, %v364
      %v496 = vsel %vm370, %v365, %v495
      %v497 = vrot.slane %v496, 4
      %v498 = vsel %vm297, %v364, %v244
      %v499 = vsel %vm374, %v365, %v498
      %v500 = vrot.slane %v499, 6
      %v501 = vsel %vm368, %v245, %v366
      %v502 = vsel %vm370, %v501, %v367
      %v503 = vld [vmem:[%s1] sm:$0xff]
      %v504 = vld [vmem:[%s1 + $0x8] sm:$0xff]
      %v505 = vld [vmem:[%s1 + $0x10] sm:$0xff]
      %v506 = vld [vmem:[%s1 + $0x18] sm:$0xff]
      %v507 = vld [vmem:[%s1 + $0x20] sm:$0xff]
      %v508 = vld [vmem:[%s1 + $0x28] sm:$0xff]
      %v509 = vld [vmem:[%s1 + $0x30] sm:$0xff]
      %v510 = vld [vmem:[%s1 + $0x38] sm:$0xff]
      %v511 = vld [vmem:[%s1 + $0x40] sm:$0xff]
      %v512 = vld [vmem:[%s1 + $0x48] sm:$0xff]
      %v513 = vld [vmem:[%s1 + $0x50] sm:$0xff]
      %v514 = vld [vmem:[%s1 + $0x58] sm:$0xff]
      %v515 = vld [vmem:[%s1 + $0x60] sm:$0xff]
      %v516 = vld [vmem:[%s1 + $0x68] sm:$0xff]
      %v517 = vld [vmem:[%s1 + $0x70] sm:$0xff]
      %v518 = vld [vmem:[%s1 + $0x78] sm:$0xff]
      %v519 = vld [vmem:[%s1 + $0x80] sm:$0xff]
      %v520 = vld [vmem:[%s1 + $0x88] sm:$0xff]
      %v521 = vld [vmem:[%s1 + $0x90] sm:$0xff]
      %v522 = vld [vmem:[%s1 + $0x98] sm:$0xff]
      %v523 = vld [vmem:[%s1 + $0xa0] sm:$0xff]
      %v524 = vld [vmem:[%s1 + $0xa8] sm:$0xff]
      %v525 = vld [vmem:[%s1 + $0xb0] sm:$0xff]
      %v526 = vld [vmem:[%s1 + $0xb8] sm:$0xff]
      %v527 = vld [vmem:[%s1 + $0xc0] sm:$0xff]
      %v528 = vld [vmem:[%s1 + $0xc8] sm:$0xff]
      %v529 = vld [vmem:[%s1 + $0xd0] sm:$0xff]
      %v530 = vld [vmem:[%s1 + $0xd8] sm:$0xff]
      %v531 = vld [vmem:[%s1 + $0xe0] sm:$0xff]
      %v532 = vld [vmem:[%s1 + $0xe8] sm:$0xff]
      %v533 = vld [vmem:[%s1 + $0xf0] sm:$0xff]
      %v534 = vld [vmem:[%s1 + $0xf8] sm:$0xff]
      %v535 = vld [vmem:[%s1 + $0x100] sm:$0xff]
      %v536 = vld [vmem:[%s1 + $0x108] sm:$0xff]
      %v537 = vld [vmem:[%s1 + $0x110] sm:$0xff]
      %v538 = vld [vmem:[%s1 + $0x118] sm:$0xff]
      %v539 = vld [vmem:[%s1 + $0x120] sm:$0xff]
      %v540 = vld [vmem:[%s1 + $0x128] sm:$0xff]
      %v541 = vld [vmem:[%s1 + $0x130] sm:$0xff]
      %v542 = vld [vmem:[%s1 + $0x138] sm:$0xff]
      %v543 = vld [vmem:[%s1 + $0x140] sm:$0xff]
      %v544 = vld [vmem:[%s1 + $0x148] sm:$0xff]
      %v545 = vld [vmem:[%s1 + $0x150] sm:$0xff]
      %v546 = vld [vmem:[%s1 + $0x158] sm:$0xff]
      %v547 = vld [vmem:[%s1 + $0x160] sm:$0xff]
      %v548 = vld [vmem:[%s1 + $0x168] sm:$0xff]
      %v549 = vld [vmem:[%s1 + $0x170] sm:$0xff]
      %v550 = vld [vmem:[%s1 + $0x178] sm:$0xff]
      %v551 = vld [vmem:[%s1 + $0x180] sm:$0xff]
      %v552 = vld [vmem:[%s1 + $0x188] sm:$0xff]
      %v553 = vld [vmem:[%s1 + $0x190] sm:$0xff]
      %v554 = vld [vmem:[%s1 + $0x198] sm:$0xff]
      %v555 = vld [vmem:[%s1 + $0x1a0] sm:$0xff]
      %v556 = vld [vmem:[%s1 + $0x1a8] sm:$0xff]
      %v557 = vld [vmem:[%s1 + $0x1b0] sm:$0xff]
      %v558 = vld [vmem:[%s1 + $0x1b8] sm:$0xff]
      %v559 = vld [vmem:[%s1 + $0x1c0] sm:$0xff]
      %v560 = vld [vmem:[%s1 + $0x1c8] sm:$0xff]
      %v561 = vld [vmem:[%s1 + $0x1d0] sm:$0xff]
      %v562 = vld [vmem:[%s1 + $0x1d8] sm:$0xff]
      %v563 = vld [vmem:[%s1 + $0x1e0] sm:$0xff]
      %v564 = vld [vmem:[%s1 + $0x1e8] sm:$0xff]
      %v565 = vld [vmem:[%s1 + $0x1f0] sm:$0xff]
      %v566 = vld [vmem:[%s1 + $0x1f8] sm:$0xff]
      %v567 = vld [vmem:[%s1 + $0x200] sm:$0xff]
      %v568 = vld [vmem:[%s1 + $0x208] sm:$0xff]
      %v569 = vld [vmem:[%s1 + $0x210] sm:$0xff]
      %v570 = vld [vmem:[%s1 + $0x218] sm:$0xff]
      %v571 = vld [vmem:[%s1 + $0x220] sm:$0xff]
      %v572 = vld [vmem:[%s1 + $0x228] sm:$0xff]
      %v573 = vld [vmem:[%s1 + $0x230] sm:$0xff]
      %v574 = vld [vmem:[%s1 + $0x238] sm:$0xff]
      %v575 = vld [vmem:[%s1 + $0x240] sm:$0xff]
      %v576 = vld [vmem:[%s1 + $0x248] sm:$0xff]
      %v577 = vld [vmem:[%s1 + $0x250] sm:$0xff]
      %v578 = vld [vmem:[%s1 + $0x258] sm:$0xff]
      %v579 = vld [vmem:[%s1 + $0x260] sm:$0xff]
      %v580 = vld [vmem:[%s1 + $0x268] sm:$0xff]
      %v581 = vld [vmem:[%s1 + $0x270] sm:$0xff]
      %v582 = vld [vmem:[%s1 + $0x278] sm:$0xff]
      %v583 = vld [vmem:[%s1 + $0x280] sm:$0xff]
      %v584 = vld [vmem:[%s1 + $0x288] sm:$0xff]
      %v585 = vld [vmem:[%s1 + $0x290] sm:$0xff]
      %v586 = vld [vmem:[%s1 + $0x298] sm:$0xff]
      %v587 = vld [vmem:[%s1 + $0x2a0] sm:$0xff]
      %v588 = vld [vmem:[%s1 + $0x2a8] sm:$0xff]
      %v589 = vld [vmem:[%s1 + $0x2b0] sm:$0xff]
      %v590 = vld [vmem:[%s1 + $0x2b8] sm:$0xff]
      %v591 = vld [vmem:[%s1 + $0x2c0] sm:$0xff]
      %v592 = vld [vmem:[%s1 + $0x2c8] sm:$0xff]
      %v593 = vld [vmem:[%s1 + $0x2d0] sm:$0xff]
      %v594 = vld [vmem:[%s1 + $0x2d8] sm:$0xff]
      %v595 = vld [vmem:[%s1 + $0x2e0] sm:$0xff]
      %v596 = vld [vmem:[%s1 + $0x2e8] sm:$0xff]
      %v597 = vld [vmem:[%s1 + $0x2f0] sm:$0xff]
      %v598 = vld [vmem:[%s1 + $0x2f8] sm:$0xff]
      %s599 = sadd.s32 %s223, 1
      %s600 = smul.u32 %s599, 16
      %s601 = scalar_lea.vmem %s211, %s600
      %v602 = vld [vmem:[%s601] sm:$0xff]
      %v603 = vld [vmem:[%s601 + $0x8] sm:$0xf]
      %v604 = vld [vmem:[%s601 + $0x10] sm:$0xff]
      %v605 = vld [vmem:[%s601 + $0x18] sm:$0xf]
      %v606 = vld [vmem:[%s601 + $0x20] sm:$0xff]
      %v607 = vld [vmem:[%s601 + $0x28] sm:$0xf]
      %v608 = vld [vmem:[%s601 + $0x30] sm:$0xff]
      %v609 = vld [vmem:[%s601 + $0x38] sm:$0xf]
      %v610 = vld [vmem:[%s601 + $0x40] sm:$0xff]
      %v611 = vld [vmem:[%s601 + $0x48] sm:$0xf]
      %v612 = vld [vmem:[%s601 + $0x50] sm:$0xff]
      %v613 = vld [vmem:[%s601 + $0x58] sm:$0xf]
      %v614 = vld [vmem:[%s601 + $0x60] sm:$0xff]
      %v615 = vld [vmem:[%s601 + $0x68] sm:$0xf]
      %v616 = vld [vmem:[%s601 + $0x70] sm:$0xff]
      %v617 = vld [vmem:[%s601 + $0x78] sm:$0xf]
      %v618 = vld [vmem:[%s601 + $0x80] sm:$0xff]
      %v619 = vld [vmem:[%s601 + $0x88] sm:$0xf]
      %v620 = vld [vmem:[%s601 + $0x90] sm:$0xff]
      %v621 = vld [vmem:[%s601 + $0x98] sm:$0xf]
      %v642 = vrot.slane %v602, 1
      %v643 = vrot.slane %v603, 1
      %v644 = vsel %vm266, %v642, %v643
      %v645 = vrot.slane %v604, 1
      %v646 = vrot.slane %v605, 1
      %v647 = vsel %vm266, %v645, %v646
      %v648 = vrot.slane %v606, 1
      %v649 = vrot.slane %v607, 1
      %v650 = vsel %vm266, %v648, %v649
      %v651 = vrot.slane %v608, 1
      %v652 = vrot.slane %v609, 1
      %v653 = vsel %vm266, %v651, %v652
      %v654 = vrot.slane %v610, 1
      %v655 = vrot.slane %v611, 1
      %v656 = vsel %vm266, %v654, %v655
      %v657 = vrot.slane %v612, 1
      %v658 = vrot.slane %v613, 1
      %v659 = vsel %vm266, %v657, %v658
      %v660 = vrot.slane %v614, 1
      %v661 = vrot.slane %v615, 1
      %v662 = vsel %vm266, %v660, %v661
      %v663 = vrot.slane %v616, 1
      %v664 = vrot.slane %v617, 1
      %v665 = vsel %vm266, %v663, %v664
      %v666 = vrot.slane %v618, 1
      %v667 = vrot.slane %v619, 1
      %v668 = vsel %vm266, %v666, %v667
      %v669 = vrot.slane %v620, 1
      %v670 = vrot.slane %v621, 1
      %v671 = vsel %vm266, %v669, %v670
      %v672 = vrot.slane %v602, 2
      %v673 = vrot.slane %v603, 2
      %v674 = vsel %vm297, %v672, %v673
      %v675 = vrot.slane %v604, 2
      %v676 = vrot.slane %v605, 2
      %v677 = vsel %vm297, %v675, %v676
      %v678 = vrot.slane %v606, 2
      %v679 = vrot.slane %v607, 2
      %v680 = vsel %vm297, %v678, %v679
      %v681 = vrot.slane %v608, 2
      %v682 = vrot.slane %v609, 2
      %v683 = vsel %vm297, %v681, %v682
      %v684 = vrot.slane %v610, 2
      %v685 = vrot.slane %v611, 2
      %v686 = vsel %vm297, %v684, %v685
      %v687 = vrot.slane %v612, 2
      %v688 = vrot.slane %v613, 2
      %v689 = vsel %vm297, %v687, %v688
      %v690 = vrot.slane %v614, 2
      %v691 = vrot.slane %v615, 2
      %v692 = vsel %vm297, %v690, %v691
      %v693 = vrot.slane %v616, 2
      %v694 = vrot.slane %v617, 2
      %v695 = vsel %vm297, %v693, %v694
      %v696 = vrot.slane %v618, 2
      %v697 = vrot.slane %v619, 2
      %v698 = vsel %vm297, %v696, %v697
      %v699 = vrot.slane %v620, 2
      %v700 = vrot.slane %v621, 2
      %v701 = vsel %vm297, %v699, %v700
      %v702 = vrot.slane %v644, 6
      %v703 = vrot.slane %v674, 4
      %v704 = vrot.slane %v643, 6
      %v705 = vrot.slane %v673, 4
      %v706 = vrot.slane %v647, 6
      %v707 = vrot.slane %v677, 4
      %v708 = vrot.slane %v646, 6
      %v709 = vrot.slane %v676, 4
      %v710 = vrot.slane %v650, 6
      %v711 = vrot.slane %v680, 4
      %v712 = vrot.slane %v649, 6
      %v713 = vrot.slane %v679, 4
      %v714 = vrot.slane %v653, 6
      %v715 = vrot.slane %v683, 4
      %v716 = vrot.slane %v652, 6
      %v717 = vrot.slane %v682, 4
      %v718 = vrot.slane %v656, 6
      %v719 = vrot.slane %v686, 4
      %v720 = vrot.slane %v655, 6
      %v721 = vrot.slane %v685, 4
      %v722 = vrot.slane %v659, 6
      %v723 = vrot.slane %v689, 4
      %v724 = vrot.slane %v658, 6
      %v725 = vrot.slane %v688, 4
      %v726 = vrot.slane %v662, 6
      %v727 = vrot.slane %v692, 4
      %v728 = vrot.slane %v661, 6
      %v729 = vrot.slane %v691, 4
      %v730 = vrot.slane %v665, 6
      %v731 = vrot.slane %v695, 4
      %v732 = vrot.slane %v664, 6
      %v733 = vrot.slane %v694, 4
      %v734 = vrot.slane %v668, 6
      %v735 = vrot.slane %v698, 4
      %v736 = vrot.slane %v667, 6
      %v737 = vrot.slane %v697, 4
      %v738 = vrot.slane %v671, 6
      %v739 = vrot.slane %v701, 4
      %v740 = vrot.slane %v670, 6
      %v741 = vrot.slane %v700, 4
      %v742 = vsel %vm368, %v602, %v702
      %v743 = vsel %vm370, %v742, %v703
      %v744 = vsel %vm372, %v602, %v702
      %v745 = vsel %vm374, %v744, %v703
      %v746 = vrot.slane %v745, 2
      %v747 = vsel %vm377, %v602, %v702
      %v748 = vsel %vm370, %v703, %v747
      %v749 = vrot.slane %v748, 4
      %v750 = vsel %vm297, %v702, %v602
      %v751 = vsel %vm374, %v703, %v750
      %v752 = vrot.slane %v751, 6
      %v753 = vsel %vm368, %v603, %v704
      %v754 = vsel %vm370, %v753, %v705
      %v755 = vsel %vm368, %v604, %v706
      %v756 = vsel %vm370, %v755, %v707
      %v757 = vsel %vm372, %v604, %v706
      %v758 = vsel %vm374, %v757, %v707
      %v759 = vrot.slane %v758, 2
      %v760 = vsel %vm377, %v604, %v706
      %v761 = vsel %vm370, %v707, %v760
      %v762 = vrot.slane %v761, 4
      %v763 = vsel %vm297, %v706, %v604
      %v764 = vsel %vm374, %v707, %v763
      %v765 = vrot.slane %v764, 6
      %v766 = vsel %vm368, %v605, %v708
      %v767 = vsel %vm370, %v766, %v709
      %v768 = vsel %vm368, %v606, %v710
      %v769 = vsel %vm370, %v768, %v711
      %v770 = vsel %vm372, %v606, %v710
      %v771 = vsel %vm374, %v770, %v711
      %v772 = vrot.slane %v771, 2
      %v773 = vsel %vm377, %v606, %v710
      %v774 = vsel %vm370, %v711, %v773
      %v775 = vrot.slane %v774, 4
      %v776 = vsel %vm297, %v710, %v606
      %v777 = vsel %vm374, %v711, %v776
      %v778 = vrot.slane %v777, 6
      %v779 = vsel %vm368, %v607, %v712
      %v780 = vsel %vm370, %v779, %v713
      %v781 = vsel %vm368, %v608, %v714
      %v782 = vsel %vm370, %v781, %v715
      %v783 = vsel %vm372, %v608, %v714
      %v784 = vsel %vm374, %v783, %v715
      %v785 = vrot.slane %v784, 2
      %v786 = vsel %vm377, %v608, %v714
      %v787 = vsel %vm370, %v715, %v786
      %v788 = vrot.slane %v787, 4
      %v789 = vsel %vm297, %v714, %v608
      %v790 = vsel %vm374, %v715, %v789
      %v791 = vrot.slane %v790, 6
      %v792 = vsel %vm368, %v609, %v716
      %v793 = vsel %vm370, %v792, %v717
      %v794 = vsel %vm368, %v610, %v718
      %v795 = vsel %vm370, %v794, %v719
      %v796 = vsel %vm372, %v610, %v718
      %v797 = vsel %vm374, %v796, %v719
      %v798 = vrot.slane %v797, 2
      %v799 = vsel %vm377, %v610, %v718
      %v800 = vsel %vm370, %v719, %v799
      %v801 = vrot.slane %v800, 4
      %v802 = vsel %vm297, %v718, %v610
      %v803 = vsel %vm374, %v719, %v802
      %v804 = vrot.slane %v803, 6
      %v805 = vsel %vm368, %v611, %v720
      %v806 = vsel %vm370, %v805, %v721
      %v807 = vsel %vm368, %v612, %v722
      %v808 = vsel %vm370, %v807, %v723
      %v809 = vsel %vm372, %v612, %v722
      %v810 = vsel %vm374, %v809, %v723
      %v811 = vrot.slane %v810, 2
      %v812 = vsel %vm377, %v612, %v722
      %v813 = vsel %vm370, %v723, %v812
      %v814 = vrot.slane %v813, 4
      %v815 = vsel %vm297, %v722, %v612
      %v816 = vsel %vm374, %v723, %v815
      %v817 = vrot.slane %v816, 6
      %v818 = vsel %vm368, %v613, %v724
      %v819 = vsel %vm370, %v818, %v725
      %v820 = vsel %vm368, %v614, %v726
      %v821 = vsel %vm370, %v820, %v727
      %v822 = vsel %vm372, %v614, %v726
      %v823 = vsel %vm374, %v822, %v727
      %v824 = vrot.slane %v823, 2
      %v825 = vsel %vm377, %v614, %v726
      %v826 = vsel %vm370, %v727, %v825
      %v827 = vrot.slane %v826, 4
      %v828 = vsel %vm297, %v726, %v614
      %v829 = vsel %vm374, %v727, %v828
      %v830 = vrot.slane %v829, 6
      %v831 = vsel %vm368, %v615, %v728
      %v832 = vsel %vm370, %v831, %v729
      %v833 = vsel %vm368, %v616, %v730
      %v834 = vsel %vm370, %v833, %v731
      %v835 = vsel %vm372, %v616, %v730
      %v836 = vsel %vm374, %v835, %v731
      %v837 = vrot.slane %v836, 2
      %v838 = vsel %vm377, %v616, %v730
      %v839 = vsel %vm370, %v731, %v838
      %v840 = vrot.slane %v839, 4
      %v841 = vsel %vm297, %v730, %v616
      %v842 = vsel %vm374, %v731, %v841
      %v843 = vrot.slane %v842, 6
      %v844 = vsel %vm368, %v617, %v732
      %v845 = vsel %vm370, %v844, %v733
      %v846 = vsel %vm368, %v618, %v734
      %v847 = vsel %vm370, %v846, %v735
      %v848 = vsel %vm372, %v618, %v734
      %v849 = vsel %vm374, %v848, %v735
      %v850 = vrot.slane %v849, 2
      %v851 = vsel %vm377, %v618, %v734
      %v852 = vsel %vm370, %v735, %v851
      %v853 = vrot.slane %v852, 4
      %v854 = vsel %vm297, %v734, %v618
      %v855 = vsel %vm374, %v735, %v854
      %v856 = vrot.slane %v855, 6
      %v857 = vsel %vm368, %v619, %v736
      %v858 = vsel %vm370, %v857, %v737
      %v859 = vsel %vm368, %v620, %v738
      %v860 = vsel %vm370, %v859, %v739
      %v861 = vsel %vm372, %v620, %v738
      %v862 = vsel %vm374, %v861, %v739
      %v863 = vrot.slane %v862, 2
      %v864 = vsel %vm377, %v620, %v738
      %v865 = vsel %vm370, %v739, %v864
      %v866 = vrot.slane %v865, 4
      %v867 = vsel %vm297, %v738, %v620
      %v868 = vsel %vm374, %v739, %v867
      %v869 = vrot.slane %v868, 6
      %v870 = vsel %vm368, %v621, %v740
      %v871 = vsel %vm370, %v870, %v741
      %s872 = scalar_lea.vmem %s1, 768
      %v873 = vld [vmem:[%s872] sm:$0xff]
      %v874 = vld [vmem:[%s872 + $0x8] sm:$0xff]
      %v875 = vld [vmem:[%s872 + $0x10] sm:$0xff]
      %v876 = vld [vmem:[%s872 + $0x18] sm:$0xff]
      %v877 = vld [vmem:[%s872 + $0x20] sm:$0xff]
      %v878 = vld [vmem:[%s872 + $0x28] sm:$0xff]
      %v879 = vld [vmem:[%s872 + $0x30] sm:$0xff]
      %v880 = vld [vmem:[%s872 + $0x38] sm:$0xff]
      %v881 = vld [vmem:[%s872 + $0x40] sm:$0xff]
      %v882 = vld [vmem:[%s872 + $0x48] sm:$0xff]
      %v883 = vld [vmem:[%s872 + $0x50] sm:$0xff]
      %v884 = vld [vmem:[%s872 + $0x58] sm:$0xff]
      %v885 = vld [vmem:[%s872 + $0x60] sm:$0xff]
      %v886 = vld [vmem:[%s872 + $0x68] sm:$0xff]
      %v887 = vld [vmem:[%s872 + $0x70] sm:$0xff]
      %v888 = vld [vmem:[%s872 + $0x78] sm:$0xff]
      %v889 = vld [vmem:[%s872 + $0x80] sm:$0xff]
      %v890 = vld [vmem:[%s872 + $0x88] sm:$0xff]
      %v891 = vld [vmem:[%s872 + $0x90] sm:$0xff]
      %v892 = vld [vmem:[%s872 + $0x98] sm:$0xff]
      %v893 = vld [vmem:[%s872 + $0xa0] sm:$0xff]
      %v894 = vld [vmem:[%s872 + $0xa8] sm:$0xff]
      %v895 = vld [vmem:[%s872 + $0xb0] sm:$0xff]
      %v896 = vld [vmem:[%s872 + $0xb8] sm:$0xff]
      %v897 = vld [vmem:[%s872 + $0xc0] sm:$0xff]
      %v898 = vld [vmem:[%s872 + $0xc8] sm:$0xff]
      %v899 = vld [vmem:[%s872 + $0xd0] sm:$0xff]
      %v900 = vld [vmem:[%s872 + $0xd8] sm:$0xff]
      %v901 = vld [vmem:[%s872 + $0xe0] sm:$0xff]
      %v902 = vld [vmem:[%s872 + $0xe8] sm:$0xff]
      %v903 = vld [vmem:[%s872 + $0xf0] sm:$0xff]
      %v904 = vld [vmem:[%s872 + $0xf8] sm:$0xff]
      %v905 = vld [vmem:[%s872 + $0x100] sm:$0xff]
      %v906 = vld [vmem:[%s872 + $0x108] sm:$0xff]
      %v907 = vld [vmem:[%s872 + $0x110] sm:$0xff]
      %v908 = vld [vmem:[%s872 + $0x118] sm:$0xff]
      %v909 = vld [vmem:[%s872 + $0x120] sm:$0xff]
      %v910 = vld [vmem:[%s872 + $0x128] sm:$0xff]
      %v911 = vld [vmem:[%s872 + $0x130] sm:$0xff]
      %v912 = vld [vmem:[%s872 + $0x138] sm:$0xff]
      %v913 = vld [vmem:[%s872 + $0x140] sm:$0xff]
      %v914 = vld [vmem:[%s872 + $0x148] sm:$0xff]
      %v915 = vld [vmem:[%s872 + $0x150] sm:$0xff]
      %v916 = vld [vmem:[%s872 + $0x158] sm:$0xff]
      %v917 = vld [vmem:[%s872 + $0x160] sm:$0xff]
      %v918 = vld [vmem:[%s872 + $0x168] sm:$0xff]
      %v919 = vld [vmem:[%s872 + $0x170] sm:$0xff]
      %v920 = vld [vmem:[%s872 + $0x178] sm:$0xff]
      %v921 = vld [vmem:[%s872 + $0x180] sm:$0xff]
      %v922 = vld [vmem:[%s872 + $0x188] sm:$0xff]
      %v923 = vld [vmem:[%s872 + $0x190] sm:$0xff]
      %v924 = vld [vmem:[%s872 + $0x198] sm:$0xff]
      %v925 = vld [vmem:[%s872 + $0x1a0] sm:$0xff]
      %v926 = vld [vmem:[%s872 + $0x1a8] sm:$0xff]
      %v927 = vld [vmem:[%s872 + $0x1b0] sm:$0xff]
      %v928 = vld [vmem:[%s872 + $0x1b8] sm:$0xff]
      %v929 = vld [vmem:[%s872 + $0x1c0] sm:$0xff]
      %v930 = vld [vmem:[%s872 + $0x1c8] sm:$0xff]
      %v931 = vld [vmem:[%s872 + $0x1d0] sm:$0xff]
      %v932 = vld [vmem:[%s872 + $0x1d8] sm:$0xff]
      %v933 = vld [vmem:[%s872 + $0x1e0] sm:$0xff]
      %v934 = vld [vmem:[%s872 + $0x1e8] sm:$0xff]
      %v935 = vld [vmem:[%s872 + $0x1f0] sm:$0xff]
      %v936 = vld [vmem:[%s872 + $0x1f8] sm:$0xff]
      %v937 = vld [vmem:[%s872 + $0x200] sm:$0xff]
      %v938 = vld [vmem:[%s872 + $0x208] sm:$0xff]
      %v939 = vld [vmem:[%s872 + $0x210] sm:$0xff]
      %v940 = vld [vmem:[%s872 + $0x218] sm:$0xff]
      %v941 = vld [vmem:[%s872 + $0x220] sm:$0xff]
      %v942 = vld [vmem:[%s872 + $0x228] sm:$0xff]
      %v943 = vld [vmem:[%s872 + $0x230] sm:$0xff]
      %v944 = vld [vmem:[%s872 + $0x238] sm:$0xff]
      %v945 = vld [vmem:[%s872 + $0x240] sm:$0xff]
      %v946 = vld [vmem:[%s872 + $0x248] sm:$0xff]
      %v947 = vld [vmem:[%s872 + $0x250] sm:$0xff]
      %v948 = vld [vmem:[%s872 + $0x258] sm:$0xff]
      %v949 = vld [vmem:[%s872 + $0x260] sm:$0xff]
      %v950 = vld [vmem:[%s872 + $0x268] sm:$0xff]
      %v951 = vld [vmem:[%s872 + $0x270] sm:$0xff]
      %v952 = vld [vmem:[%s872 + $0x278] sm:$0xff]
      %v953 = vld [vmem:[%s872 + $0x280] sm:$0xff]
      %v954 = vld [vmem:[%s872 + $0x288] sm:$0xff]
      %v955 = vld [vmem:[%s872 + $0x290] sm:$0xff]
      %v956 = vld [vmem:[%s872 + $0x298] sm:$0xff]
      %v957 = vld [vmem:[%s872 + $0x2a0] sm:$0xff]
      %v958 = vld [vmem:[%s872 + $0x2a8] sm:$0xff]
      %v959 = vld [vmem:[%s872 + $0x2b0] sm:$0xff]
      %v960 = vld [vmem:[%s872 + $0x2b8] sm:$0xff]
      %v961 = vld [vmem:[%s872 + $0x2c0] sm:$0xff]
      %v962 = vld [vmem:[%s872 + $0x2c8] sm:$0xff]
      %v963 = vld [vmem:[%s872 + $0x2d0] sm:$0xff]
      %v964 = vld [vmem:[%s872 + $0x2d8] sm:$0xff]
      %v965 = vld [vmem:[%s872 + $0x2e0] sm:$0xff]
      %v966 = vld [vmem:[%s872 + $0x2e8] sm:$0xff]
      %v967 = vld [vmem:[%s872 + $0x2f0] sm:$0xff]
      %v968 = vld [vmem:[%s872 + $0x2f8] sm:$0xff]
      %969 = vst [vmem:[#allocation1] ss:$4 sm:$0xff] %v743
      %s970 = scalar_lea.vmem [#allocation1], 1
      %971 = vst [vmem:[%s970] ss:$4 sm:$0xff] %v746
      %s972 = scalar_lea.vmem [#allocation1], 2
      %973 = vst [vmem:[%s972] ss:$4 sm:$0xff] %v749
      %s974 = scalar_lea.vmem [#allocation1], 3
      %975 = vst [vmem:[%s974] ss:$4 sm:$0xff] %v752
      %s976 = scalar_lea.vmem [#allocation1], 32
      %977 = vst [vmem:[%s976] ss:$4 sm:$0xff] %v754
      %s978 = scalar_lea.vmem [#allocation1], 33
      %979 = vst [vmem:[%s978] ss:$4 sm:$0xff] %v756
      %s980 = scalar_lea.vmem [#allocation1], 34
      %981 = vst [vmem:[%s980] ss:$4 sm:$0xff] %v759
      %s982 = scalar_lea.vmem [#allocation1], 35
      %983 = vst [vmem:[%s982] ss:$4 sm:$0xff] %v762
      %v984 = vld.sshfl [vmem:[#allocation1] sm:$0xff pattern:$0x73625140]
      %v985 = vld.sshfl [vmem:[#allocation1 + $0x8] sm:$0xff pattern:$0x73625140]
      %v986 = vld.sshfl [vmem:[#allocation1 + $0x10] sm:$0xff pattern:$0x73625140]
      %v987 = vld.sshfl [vmem:[#allocation1 + $0x20] sm:$0xff pattern:$0x73625140]
      %v988 = vld.sshfl [vmem:[#allocation1 + $0x28] sm:$0xff pattern:$0x73625140]
      %v989 = vld.sshfl [vmem:[#allocation1 + $0x30] sm:$0xff pattern:$0x73625140]
      %990 = vst [vmem:[#allocation1] ss:$4 sm:$0xff] %v765
      %991 = vst [vmem:[%s970] ss:$4 sm:$0xff] %v767
      %992 = vst [vmem:[%s972] ss:$4 sm:$0xff] %v769
      %993 = vst [vmem:[%s974] ss:$4 sm:$0xff] %v772
      %994 = vst [vmem:[%s976] ss:$4 sm:$0xff] %v775
      %995 = vst [vmem:[%s978] ss:$4 sm:$0xff] %v778
      %996 = vst [vmem:[%s980] ss:$4 sm:$0xff] %v780
      %997 = vst [vmem:[%s982] ss:$4 sm:$0xff] %v782
      %v998 = vld.sshfl [vmem:[#allocation1] sm:$0xff pattern:$0x73625140]
      %v999 = vld.sshfl [vmem:[#allocation1 + $0x8] sm:$0xff pattern:$0x73625140]
      %v1000 = vld.sshfl [vmem:[#allocation1 + $0x10] sm:$0xff pattern:$0x73625140]
      %v1001 = vld.sshfl [vmem:[#allocation1 + $0x20] sm:$0xff pattern:$0x73625140]
      %v1002 = vld.sshfl [vmem:[#allocation1 + $0x28] sm:$0xff pattern:$0x73625140]
      %v1003 = vld.sshfl [vmem:[#allocation1 + $0x30] sm:$0xff pattern:$0x73625140]
      %1004 = vst [vmem:[#allocation1] ss:$4 sm:$0xff] %v785
      %1005 = vst [vmem:[%s970] ss:$4 sm:$0xff] %v788
      %1006 = vst [vmem:[%s972] ss:$4 sm:$0xff] %v791
      %1007 = vst [vmem:[%s974] ss:$4 sm:$0xff] %v793
      %1008 = vst [vmem:[%s976] ss:$4 sm:$0xff] %v795
      %1009 = vst [vmem:[%s978] ss:$4 sm:$0xff] %v798
      %1010 = vst [vmem:[%s980] ss:$4 sm:$0xff] %v801
      %1011 = vst [vmem:[%s982] ss:$4 sm:$0xff] %v804
      %v1012 = vld.sshfl [vmem:[#allocation1] sm:$0xff pattern:$0x73625140]
      %v1013 = vld.sshfl [vmem:[#allocation1 + $0x8] sm:$0xff pattern:$0x73625140]
      %v1014 = vld.sshfl [vmem:[#allocation1 + $0x10] sm:$0xff pattern:$0x73625140]
      %v1015 = vld.sshfl [vmem:[#allocation1 + $0x20] sm:$0xff pattern:$0x73625140]
      %v1016 = vld.sshfl [vmem:[#allocation1 + $0x28] sm:$0xff pattern:$0x73625140]
      %v1017 = vld.sshfl [vmem:[#allocation1 + $0x30] sm:$0xff pattern:$0x73625140]
      %1018 = vst [vmem:[#allocation1] ss:$4 sm:$0xff] %v806
      %1019 = vst [vmem:[%s970] ss:$4 sm:$0xff] %v808
      %1020 = vst [vmem:[%s972] ss:$4 sm:$0xff] %v811
      %1021 = vst [vmem:[%s974] ss:$4 sm:$0xff] %v814
      %1022 = vst [vmem:[%s976] ss:$4 sm:$0xff] %v817
      %1023 = vst [vmem:[%s978] ss:$4 sm:$0xff] %v819
      %1024 = vst [vmem:[%s980] ss:$4 sm:$0xff] %v821
      %1025 = vst [vmem:[%s982] ss:$4 sm:$0xff] %v824
      %v1026 = vld.sshfl [vmem:[#allocation1] sm:$0xff pattern:$0x73625140]
      %v1027 = vld.sshfl [vmem:[#allocation1 + $0x8] sm:$0xff pattern:$0x73625140]
      %v1028 = vld.sshfl [vmem:[#allocation1 + $0x10] sm:$0xff pattern:$0x73625140]
      %v1029 = vld.sshfl [vmem:[#allocation1 + $0x20] sm:$0xff pattern:$0x73625140]
      %v1030 = vld.sshfl [vmem:[#allocation1 + $0x28] sm:$0xff pattern:$0x73625140]
      %v1031 = vld.sshfl [vmem:[#allocation1 + $0x30] sm:$0xff pattern:$0x73625140]
      %1032 = vst [vmem:[#allocation1] ss:$4 sm:$0xff] %v827
      %1033 = vst [vmem:[%s970] ss:$4 sm:$0xff] %v830
      %1034 = vst [vmem:[%s972] ss:$4 sm:$0xff] %v832
      %1035 = vst [vmem:[%s974] ss:$4 sm:$0xff] %v834
      %1036 = vst [vmem:[%s976] ss:$4 sm:$0xff] %v837
      %1037 = vst [vmem:[%s978] ss:$4 sm:$0xff] %v840
      %1038 = vst [vmem:[%s980] ss:$4 sm:$0xff] %v843
      %1039 = vst [vmem:[%s982] ss:$4 sm:$0xff] %v845
      %v1040 = vld.sshfl [vmem:[#allocation1] sm:$0xff pattern:$0x73625140]
      %v1041 = vld.sshfl [vmem:[#allocation1 + $0x8] sm:$0xff pattern:$0x73625140]
      %v1042 = vld.sshfl [vmem:[#allocation1 + $0x10] sm:$0xff pattern:$0x73625140]
      %v1043 = vld.sshfl [vmem:[#allocation1 + $0x20] sm:$0xff pattern:$0x73625140]
      %v1044 = vld.sshfl [vmem:[#allocation1 + $0x28] sm:$0xff pattern:$0x73625140]
      %v1045 = vld.sshfl [vmem:[#allocation1 + $0x30] sm:$0xff pattern:$0x73625140]
      %1046 = vst [vmem:[#allocation1] ss:$4 sm:$0xff] %v847
      %1047 = vst [vmem:[%s970] ss:$4 sm:$0xff] %v850
      %1048 = vst [vmem:[%s972] ss:$4 sm:$0xff] %v853
      %1049 = vst [vmem:[%s974] ss:$4 sm:$0xff] %v856
      %1050 = vst [vmem:[%s976] ss:$4 sm:$0xff] %v858
      %1051 = vst [vmem:[%s978] ss:$4 sm:$0xff] %v860
      %1052 = vst [vmem:[%s980] ss:$4 sm:$0xff] %v863
      %1053 = vst [vmem:[%s982] ss:$4 sm:$0xff] %v866
      %v1054 = vld.sshfl [vmem:[#allocation1] sm:$0xff pattern:$0x73625140]
      %v1055 = vld.sshfl [vmem:[#allocation1 + $0x8] sm:$0xff pattern:$0x73625140]
      %v1056 = vld.sshfl [vmem:[#allocation1 + $0x10] sm:$0xff pattern:$0x73625140]
      %v1057 = vld.sshfl [vmem:[#allocation1 + $0x20] sm:$0xff pattern:$0x73625140]
      %v1058 = vld.sshfl [vmem:[#allocation1 + $0x28] sm:$0xff pattern:$0x73625140]
      %v1059 = vld.sshfl [vmem:[#allocation1 + $0x30] sm:$0xff pattern:$0x73625140]
      %1060 = vst [vmem:[#allocation1] ss:$4 sm:$0xff] %v869
      %1061 = vst [vmem:[%s970] ss:$4 sm:$0xff] %v871
      %v1062 = vld.sshfl [vmem:[#allocation1] sm:$0xff pattern:$0x73625140]
      %v1063 = vld.sshfl [vmem:[#allocation1 + $0x8] sm:$0xff pattern:$0x73625140]
      %v1064 = vld.sshfl [vmem:[#allocation1 + $0x10] sm:$0xff pattern:$0x73625140]
      %1104 = vmatpush.msra.mxu0 %v903
      %1105 = vmatpush.msra.mxu0 %v901
      %1106 = vmatpush.msra.mxu0 %v899
      %1107 = vmatpush.msra.mxu0 %v897
      %1108 = vmatpush.msra.mxu0 %v895
      %1109 = vmatpush.msra.mxu0 %v893
      %1110 = vmatpush.msra.mxu0 %v891
      %1111 = vmatpush.msra.mxu0 %v889
      %1112 = vmatpush.msra.mxu0 %v887
      %1113 = vmatpush.msra.mxu0 %v885
      %1114 = vmatpush.msra.mxu0 %v883
      %1115 = vmatpush.msra.mxu0 %v881
      %1116 = vmatpush.msra.mxu0 %v879
      %1117 = vmatpush.msra.mxu0 %v877
      %1118 = vmatpush.msra.mxu0 %v875
      %1119 = vmatpush.msra.mxu0 %v873
      %1120 = vmatmul.f32.gmra.mxu0 %v984
      %v1121 = vpop.f32.mrf.mxu0
      %v1122 = vadd.f32 0.0, %v1121
      %1123 = vmatmul.f32.gmra.mxu0 %v987
      %v1124 = vpop.f32.mrf.mxu0
      %v1125 = vadd.f32 0.0, %v1124
      %1126 = vmatmul.f32.gmra.mxu0 %v998
      %v1127 = vpop.f32.mrf.mxu0
      %v1128 = vadd.f32 0.0, %v1127
      %1129 = vmatmul.f32.gmra.mxu0 %v1001
      %v1130 = vpop.f32.mrf.mxu0
      %v1131 = vadd.f32 0.0, %v1130
      %1132 = vmatmul.f32.gmra.mxu0 %v1012
      %v1133 = vpop.f32.mrf.mxu0
      %v1134 = vadd.f32 0.0, %v1133
      %1135 = vmatmul.f32.gmra.mxu0 %v1015
      %v1136 = vpop.f32.mrf.mxu0
      %v1137 = vadd.f32 0.0, %v1136
      %1138 = vmatmul.f32.gmra.mxu0 %v1026
      %v1139 = vpop.f32.mrf.mxu0
      %v1140 = vadd.f32 0.0, %v1139
      %1141 = vmatmul.f32.gmra.mxu0 %v1029
      %v1142 = vpop.f32.mrf.mxu0
      %v1143 = vadd.f32 0.0, %v1142
      %1144 = vmatmul.f32.gmra.mxu0 %v1040
      %v1145 = vpop.f32.mrf.mxu0
      %v1146 = vadd.f32 0.0, %v1145
      %1147 = vmatmul.f32.gmra.mxu0 %v1043
      %v1148 = vpop.f32.mrf.mxu0
      %v1149 = vadd.f32 0.0, %v1148
      %1150 = vmatmul.f32.gmra.mxu0 %v1054
      %v1151 = vpop.f32.mrf.mxu0
      %v1152 = vadd.f32 0.0, %v1151
      %1153 = vmatmul.f32.gmra.mxu0 %v1057
      %v1154 = vpop.f32.mrf.mxu0
      %v1155 = vadd.f32 0.0, %v1154
      %1156 = vmatmul.f32.gmra.mxu0 %v1062
      %v1157 = vpop.f32.mrf.mxu0
      %v1158 = vadd.f32 0.0, %v1157
      %1159 = vdwg.mxu0
      %1160 = vmatpush.msra.mxu0 %v935
      %1161 = vmatpush.msra.mxu0 %v933
      %1162 = vmatpush.msra.mxu0 %v931
      %1163 = vmatpush.msra.mxu0 %v929
      %1164 = vmatpush.msra.mxu0 %v927
      %1165 = vmatpush.msra.mxu0 %v925
      %1166 = vmatpush.msra.mxu0 %v923
      %1167 = vmatpush.msra.mxu0 %v921
      %1168 = vmatpush.msra.mxu0 %v919
      %1169 = vmatpush.msra.mxu0 %v917
      %1170 = vmatpush.msra.mxu0 %v915
      %1171 = vmatpush.msra.mxu0 %v913
      %1172 = vmatpush.msra.mxu0 %v911
      %1173 = vmatpush.msra.mxu0 %v909
      %1174 = vmatpush.msra.mxu0 %v907
      %1175 = vmatpush.msra.mxu0 %v905
      %1176 = vmatmul.f32.gmra.mxu0 %v985
      %v1177 = vpop.f32.mrf.mxu0
      %v1178 = vadd.f32 %v1122, %v1177
      %1179 = vmatmul.f32.gmra.mxu0 %v988
      %v1180 = vpop.f32.mrf.mxu0
      %v1181 = vadd.f32 %v1125, %v1180
      %1182 = vmatmul.f32.gmra.mxu0 %v999
      %v1183 = vpop.f32.mrf.mxu0
      %v1184 = vadd.f32 %v1128, %v1183
      %1185 = vmatmul.f32.gmra.mxu0 %v1002
      %v1186 = vpop.f32.mrf.mxu0
      %v1187 = vadd.f32 %v1131, %v1186
      %1188 = vmatmul.f32.gmra.mxu0 %v1013
      %v1189 = vpop.f32.mrf.mxu0
      %v1190 = vadd.f32 %v1134, %v1189
      %1191 = vmatmul.f32.gmra.mxu0 %v1016
      %v1192 = vpop.f32.mrf.mxu0
      %v1193 = vadd.f32 %v1137, %v1192
      %1194 = vmatmul.f32.gmra.mxu0 %v1027
      %v1195 = vpop.f32.mrf.mxu0
      %v1196 = vadd.f32 %v1140, %v1195
      %1197 = vmatmul.f32.gmra.mxu0 %v1030
      %v1198 = vpop.f32.mrf.mxu0
      %v1199 = vadd.f32 %v1143, %v1198
      %1200 = vmatmul.f32.gmra.mxu0 %v1041
      %v1201 = vpop.f32.mrf.mxu0
      %v1202 = vadd.f32 %v1146, %v1201
      %1203 = vmatmul.f32.gmra.mxu0 %v1044
      %v1204 = vpop.f32.mrf.mxu0
      %v1205 = vadd.f32 %v1149, %v1204
      %1206 = vmatmul.f32.gmra.mxu0 %v1055
      %v1207 = vpop.f32.mrf.mxu0
      %v1208 = vadd.f32 %v1152, %v1207
      %1209 = vmatmul.f32.gmra.mxu0 %v1058
      %v1210 = vpop.f32.mrf.mxu0
      %v1211 = vadd.f32 %v1155, %v1210
      %1212 = vmatmul.f32.gmra.mxu0 %v1063
      %v1213 = vpop.f32.mrf.mxu0
      %v1214 = vadd.f32 %v1158, %v1213
      %1215 = vdwg.mxu0
      %1216 = vmatpush.msra.mxu0 %v967
      %1217 = vmatpush.msra.mxu0 %v965
      %1218 = vmatpush.msra.mxu0 %v963
      %1219 = vmatpush.msra.mxu0 %v961
      %1220 = vmatpush.msra.mxu0 %v959
      %1221 = vmatpush.msra.mxu0 %v957
      %1222 = vmatpush.msra.mxu0 %v955
      %1223 = vmatpush.msra.mxu0 %v953
      %1224 = vmatpush.msra.mxu0 %v951
      %1225 = vmatpush.msra.mxu0 %v949
      %1226 = vmatpush.msra.mxu0 %v947
      %1227 = vmatpush.msra.mxu0 %v945
      %1228 = vmatpush.msra.mxu0 %v943
      %1229 = vmatpush.msra.mxu0 %v941
      %1230 = vmatpush.msra.mxu0 %v939
      %1231 = vmatpush.msra.mxu0 %v937
      %1232 = vmatmul.f32.gmra.mxu0 %v986
      %v1233 = vpop.f32.mrf.mxu0
      %v1234 = vadd.f32 %v1178, %v1233
      %1235 = vmatmul.f32.gmra.mxu0 %v989
      %v1236 = vpop.f32.mrf.mxu0
      %v1237 = vadd.f32 %v1181, %v1236
      %1238 = vmatmul.f32.gmra.mxu0 %v1000
      %v1239 = vpop.f32.mrf.mxu0
      %v1240 = vadd.f32 %v1184, %v1239
      %1241 = vmatmul.f32.gmra.mxu0 %v1003
      %v1242 = vpop.f32.mrf.mxu0
      %v1243 = vadd.f32 %v1187, %v1242
      %1244 = vmatmul.f32.gmra.mxu0 %v1014
      %v1245 = vpop.f32.mrf.mxu0
      %v1246 = vadd.f32 %v1190, %v1245
      %1247 = vmatmul.f32.gmra.mxu0 %v1017
      %v1248 = vpop.f32.mrf.mxu0
      %v1249 = vadd.f32 %v1193, %v1248
      %1250 = vmatmul.f32.gmra.mxu0 %v1028
      %v1251 = vpop.f32.mrf.mxu0
      %v1252 = vadd.f32 %v1196, %v1251
      %1253 = vmatmul.f32.gmra.mxu0 %v1031
      %v1254 = vpop.f32.mrf.mxu0
      %v1255 = vadd.f32 %v1199, %v1254
      %1256 = vmatmul.f32.gmra.mxu0 %v1042
      %v1257 = vpop.f32.mrf.mxu0
      %v1258 = vadd.f32 %v1202, %v1257
      %1259 = vmatmul.f32.gmra.mxu0 %v1045
      %v1260 = vpop.f32.mrf.mxu0
      %v1261 = vadd.f32 %v1205, %v1260
      %1262 = vmatmul.f32.gmra.mxu0 %v1056
      %v1263 = vpop.f32.mrf.mxu0
      %v1264 = vadd.f32 %v1208, %v1263
      %1265 = vmatmul.f32.gmra.mxu0 %v1059
      %v1266 = vpop.f32.mrf.mxu0
      %v1267 = vadd.f32 %v1211, %v1266
      %1268 = vmatmul.f32.gmra.mxu0 %v1064
      %v1269 = vpop.f32.mrf.mxu0
      %v1270 = vadd.f32 %v1214, %v1269
      %1271 = vdwg.mxu0
      %1272 = vmatpush.msra.mxu0 %v904
      %1273 = vmatpush.msra.mxu0 %v902
      %1274 = vmatpush.msra.mxu0 %v900
      %1275 = vmatpush.msra.mxu0 %v898
      %1276 = vmatpush.msra.mxu0 %v896
      %1277 = vmatpush.msra.mxu0 %v894
      %1278 = vmatpush.msra.mxu0 %v892
      %1279 = vmatpush.msra.mxu0 %v890
      %1280 = vmatpush.msra.mxu0 %v888
      %1281 = vmatpush.msra.mxu0 %v886
      %1282 = vmatpush.msra.mxu0 %v884
      %1283 = vmatpush.msra.mxu0 %v882
      %1284 = vmatpush.msra.mxu0 %v880
      %1285 = vmatpush.msra.mxu0 %v878
      %1286 = vmatpush.msra.mxu0 %v876
      %1287 = vmatpush.msra.mxu0 %v874
      %1288 = vmatmul.f32.gmra.mxu0 %v984
      %v1289 = vpop.f32.mrf.mxu0
      %v1290 = vadd.f32 0.0, %v1289
      %1291 = vmatmul.f32.gmra.mxu0 %v987
      %v1292 = vpop.f32.mrf.mxu0
      %v1293 = vadd.f32 0.0, %v1292
      %1294 = vmatmul.f32.gmra.mxu0 %v998
      %v1295 = vpop.f32.mrf.mxu0
      %v1296 = vadd.f32 0.0, %v1295
      %1297 = vmatmul.f32.gmra.mxu0 %v1001
      %v1298 = vpop.f32.mrf.mxu0
      %v1299 = vadd.f32 0.0, %v1298
      %1300 = vmatmul.f32.gmra.mxu0 %v1012
      %v1301 = vpop.f32.mrf.mxu0
      %v1302 = vadd.f32 0.0, %v1301
      %1303 = vmatmul.f32.gmra.mxu0 %v1015
      %v1304 = vpop.f32.mrf.mxu0
      %v1305 = vadd.f32 0.0, %v1304
      %1306 = vmatmul.f32.gmra.mxu0 %v1026
      %v1307 = vpop.f32.mrf.mxu0
      %v1308 = vadd.f32 0.0, %v1307
      %1309 = vmatmul.f32.gmra.mxu0 %v1029
      %v1310 = vpop.f32.mrf.mxu0
      %v1311 = vadd.f32 0.0, %v1310
      %1312 = vmatmul.f32.gmra.mxu0 %v1040
      %v1313 = vpop.f32.mrf.mxu0
      %v1314 = vadd.f32 0.0, %v1313
      %1315 = vmatmul.f32.gmra.mxu0 %v1043
      %v1316 = vpop.f32.mrf.mxu0
      %v1317 = vadd.f32 0.0, %v1316
      %1318 = vmatmul.f32.gmra.mxu0 %v1054
      %v1319 = vpop.f32.mrf.mxu0
      %v1320 = vadd.f32 0.0, %v1319
      %1321 = vmatmul.f32.gmra.mxu0 %v1057
      %v1322 = vpop.f32.mrf.mxu0
      %v1323 = vadd.f32 0.0, %v1322
      %1324 = vmatmul.f32.gmra.mxu0 %v1062
      %v1325 = vpop.f32.mrf.mxu0
      %v1326 = vadd.f32 0.0, %v1325
      %1327 = vdwg.mxu0
      %1328 = vmatpush.msra.mxu0 %v936
      %1329 = vmatpush.msra.mxu0 %v934
      %1330 = vmatpush.msra.mxu0 %v932
      %1331 = vmatpush.msra.mxu0 %v930
      %1332 = vmatpush.msra.mxu0 %v928
      %1333 = vmatpush.msra.mxu0 %v926
      %1334 = vmatpush.msra.mxu0 %v924
      %1335 = vmatpush.msra.mxu0 %v922
      %1336 = vmatpush.msra.mxu0 %v920
      %1337 = vmatpush.msra.mxu0 %v918
      %1338 = vmatpush.msra.mxu0 %v916
      %1339 = vmatpush.msra.mxu0 %v914
      %1340 = vmatpush.msra.mxu0 %v912
      %1341 = vmatpush.msra.mxu0 %v910
      %1342 = vmatpush.msra.mxu0 %v908
      %1343 = vmatpush.msra.mxu0 %v906
      %1344 = vmatmul.f32.gmra.mxu0 %v985
      %v1345 = vpop.f32.mrf.mxu0
      %v1346 = vadd.f32 %v1290, %v1345
      %1347 = vmatmul.f32.gmra.mxu0 %v988
      %v1348 = vpop.f32.mrf.mxu0
      %v1349 = vadd.f32 %v1293, %v1348
      %1350 = vmatmul.f32.gmra.mxu0 %v999
      %v1351 = vpop.f32.mrf.mxu0
      %v1352 = vadd.f32 %v1296, %v1351
      %1353 = vmatmul.f32.gmra.mxu0 %v1002
      %v1354 = vpop.f32.mrf.mxu0
      %v1355 = vadd.f32 %v1299, %v1354
      %1356 = vmatmul.f32.gmra.mxu0 %v1013
      %v1357 = vpop.f32.mrf.mxu0
      %v1358 = vadd.f32 %v1302, %v1357
      %1359 = vmatmul.f32.gmra.mxu0 %v1016
      %v1360 = vpop.f32.mrf.mxu0
      %v1361 = vadd.f32 %v1305, %v1360
      %1362 = vmatmul.f32.gmra.mxu0 %v1027
      %v1363 = vpop.f32.mrf.mxu0
      %v1364 = vadd.f32 %v1308, %v1363
      %1365 = vmatmul.f32.gmra.mxu0 %v1030
      %v1366 = vpop.f32.mrf.mxu0
      %v1367 = vadd.f32 %v1311, %v1366
      %1368 = vmatmul.f32.gmra.mxu0 %v1041
      %v1369 = vpop.f32.mrf.mxu0
      %v1370 = vadd.f32 %v1314, %v1369
      %1371 = vmatmul.f32.gmra.mxu0 %v1044
      %v1372 = vpop.f32.mrf.mxu0
      %v1373 = vadd.f32 %v1317, %v1372
      %1374 = vmatmul.f32.gmra.mxu0 %v1055
      %v1375 = vpop.f32.mrf.mxu0
      %v1376 = vadd.f32 %v1320, %v1375
      %1377 = vmatmul.f32.gmra.mxu0 %v1058
      %v1378 = vpop.f32.mrf.mxu0
      %v1379 = vadd.f32 %v1323, %v1378
      %1380 = vmatmul.f32.gmra.mxu0 %v1063
      %v1381 = vpop.f32.mrf.mxu0
      %v1382 = vadd.f32 %v1326, %v1381
      %1383 = vdwg.mxu0
      %1384 = vmatpush.msra.mxu0 %v968
      %1385 = vmatpush.msra.mxu0 %v966
      %1386 = vmatpush.msra.mxu0 %v964
      %1387 = vmatpush.msra.mxu0 %v962
      %1388 = vmatpush.msra.mxu0 %v960
      %1389 = vmatpush.msra.mxu0 %v958
      %1390 = vmatpush.msra.mxu0 %v956
      %1391 = vmatpush.msra.mxu0 %v954
      %1392 = vmatpush.msra.mxu0 %v952
      %1393 = vmatpush.msra.mxu0 %v950
      %1394 = vmatpush.msra.mxu0 %v948
      %1395 = vmatpush.msra.mxu0 %v946
      %1396 = vmatpush.msra.mxu0 %v944
      %1397 = vmatpush.msra.mxu0 %v942
      %1398 = vmatpush.msra.mxu0 %v940
      %1399 = vmatpush.msra.mxu0 %v938
      %1400 = vmatmul.f32.gmra.mxu0 %v986
      %v1401 = vpop.f32.mrf.mxu0
      %v1402 = vadd.f32 %v1346, %v1401
      %1403 = vmatmul.f32.gmra.mxu0 %v989
      %v1404 = vpop.f32.mrf.mxu0
      %v1405 = vadd.f32 %v1349, %v1404
      %1406 = vmatmul.f32.gmra.mxu0 %v1000
      %v1407 = vpop.f32.mrf.mxu0
      %v1408 = vadd.f32 %v1352, %v1407
      %1409 = vmatmul.f32.gmra.mxu0 %v1003
      %v1410 = vpop.f32.mrf.mxu0
      %v1411 = vadd.f32 %v1355, %v1410
      %1412 = vmatmul.f32.gmra.mxu0 %v1014
      %v1413 = vpop.f32.mrf.mxu0
      %v1414 = vadd.f32 %v1358, %v1413
      %1415 = vmatmul.f32.gmra.mxu0 %v1017
      %v1416 = vpop.f32.mrf.mxu0
      %v1417 = vadd.f32 %v1361, %v1416
      %1418 = vmatmul.f32.gmra.mxu0 %v1028
      %v1419 = vpop.f32.mrf.mxu0
      %v1420 = vadd.f32 %v1364, %v1419
      %1421 = vmatmul.f32.gmra.mxu0 %v1031
      %v1422 = vpop.f32.mrf.mxu0
      %v1423 = vadd.f32 %v1367, %v1422
      %1424 = vmatmul.f32.gmra.mxu0 %v1042
      %v1425 = vpop.f32.mrf.mxu0
      %v1426 = vadd.f32 %v1370, %v1425
      %1427 = vmatmul.f32.gmra.mxu0 %v1045
      %v1428 = vpop.f32.mrf.mxu0
      %v1429 = vadd.f32 %v1373, %v1428
      %1430 = vmatmul.f32.gmra.mxu0 %v1056
      %v1431 = vpop.f32.mrf.mxu0
      %v1432 = vadd.f32 %v1376, %v1431
      %1433 = vmatmul.f32.gmra.mxu0 %v1059
      %v1434 = vpop.f32.mrf.mxu0
      %v1435 = vadd.f32 %v1379, %v1434
      %1436 = vmatmul.f32.gmra.mxu0 %v1064
      %v1437 = vpop.f32.mrf.mxu0
      %v1438 = vadd.f32 %v1382, %v1437
      %1439 = vdwg.mxu0
      %1440 = vst [vmem:[#allocation1] ss:$4 sm:$0xff] %v371
      %s1441 = scalar_lea.vmem [#allocation1], 1
      %1442 = vst [vmem:[%s1441] ss:$4 sm:$0xff] %v376
      %s1443 = scalar_lea.vmem [#allocation1], 2
      %1444 = vst [vmem:[%s1443] ss:$4 sm:$0xff] %v380
      %s1445 = scalar_lea.vmem [#allocation1], 3
      %1446 = vst [vmem:[%s1445] ss:$4 sm:$0xff] %v383
      %s1447 = scalar_lea.vmem [#allocation1], 32
      %1448 = vst [vmem:[%s1447] ss:$4 sm:$0xff] %v385
      %s1449 = scalar_lea.vmem [#allocation1], 33
      %1450 = vst [vmem:[%s1449] ss:$4 sm:$0xff] %v387
      %s1451 = scalar_lea.vmem [#allocation1], 34
      %1452 = vst [vmem:[%s1451] ss:$4 sm:$0xff] %v390
      %s1453 = scalar_lea.vmem [#allocation1], 35
      %1454 = vst [vmem:[%s1453] ss:$4 sm:$0xff] %v393
      %v1455 = vld.sshfl [vmem:[#allocation1] sm:$0xff pattern:$0x73625140]
      %v1456 = vld.sshfl [vmem:[#allocation1 + $0x8] sm:$0xff pattern:$0x73625140]
      %v1457 = vld.sshfl [vmem:[#allocation1 + $0x10] sm:$0xff pattern:$0x73625140]
      %v1458 = vld.sshfl [vmem:[#allocation1 + $0x20] sm:$0xff pattern:$0x73625140]
      %v1459 = vld.sshfl [vmem:[#allocation1 + $0x28] sm:$0xff pattern:$0x73625140]
      %v1460 = vld.sshfl [vmem:[#allocation1 + $0x30] sm:$0xff pattern:$0x73625140]
      %1461 = vst [vmem:[#allocation1] ss:$4 sm:$0xff] %v396
      %1462 = vst [vmem:[%s1441] ss:$4 sm:$0xff] %v398
      %1463 = vst [vmem:[%s1443] ss:$4 sm:$0xff] %v400
      %1464 = vst [vmem:[%s1445] ss:$4 sm:$0xff] %v403
      %1465 = vst [vmem:[%s1447] ss:$4 sm:$0xff] %v406
      %1466 = vst [vmem:[%s1449] ss:$4 sm:$0xff] %v409
      %1467 = vst [vmem:[%s1451] ss:$4 sm:$0xff] %v411
      %1468 = vst [vmem:[%s1453] ss:$4 sm:$0xff] %v413
      %v1469 = vld.sshfl [vmem:[#allocation1] sm:$0xff pattern:$0x73625140]
      %v1470 = vld.sshfl [vmem:[#allocation1 + $0x8] sm:$0xff pattern:$0x73625140]
      %v1471 = vld.sshfl [vmem:[#allocation1 + $0x10] sm:$0xff pattern:$0x73625140]
      %v1472 = vld.sshfl [vmem:[#allocation1 + $0x20] sm:$0xff pattern:$0x73625140]
      %v1473 = vld.sshfl [vmem:[#allocation1 + $0x28] sm:$0xff pattern:$0x73625140]
      %v1474 = vld.sshfl [vmem:[#allocation1 + $0x30] sm:$0xff pattern:$0x73625140]
      %1475 = vst [vmem:[#allocation1] ss:$4 sm:$0xff] %v416
      %1476 = vst [vmem:[%s1441] ss:$4 sm:$0xff] %v419
      %1477 = vst [vmem:[%s1443] ss:$4 sm:$0xff] %v422
      %1478 = vst [vmem:[%s1445] ss:$4 sm:$0xff] %v424
      %1479 = vst [vmem:[%s1447] ss:$4 sm:$0xff] %v426
      %1480 = vst [vmem:[%s1449] ss:$4 sm:$0xff] %v429
      %1481 = vst [vmem:[%s1451] ss:$4 sm:$0xff] %v432
      %1482 = vst [vmem:[%s1453] ss:$4 sm:$0xff] %v435
      %v1483 = vld.sshfl [vmem:[#allocation1] sm:$0xff pattern:$0x73625140]
      %v1484 = vld.sshfl [vmem:[#allocation1 + $0x8] sm:$0xff pattern:$0x73625140]
      %v1485 = vld.sshfl [vmem:[#allocation1 + $0x10] sm:$0xff pattern:$0x73625140]
      %v1486 = vld.sshfl [vmem:[#allocation1 + $0x20] sm:$0xff pattern:$0x73625140]
      %v1487 = vld.sshfl [vmem:[#allocation1 + $0x28] sm:$0xff pattern:$0x73625140]
      %v1488 = vld.sshfl [vmem:[#allocation1 + $0x30] sm:$0xff pattern:$0x73625140]
      %1489 = vst [vmem:[#allocation1] ss:$4 sm:$0xff] %v437
      %1490 = vst [vmem:[%s1441] ss:$4 sm:$0xff] %v439
      %1491 = vst [vmem:[%s1443] ss:$4 sm:$0xff] %v442
      %1492 = vst [vmem:[%s1445] ss:$4 sm:$0xff] %v445
      %1493 = vst [vmem:[%s1447] ss:$4 sm:$0xff] %v448
      %1494 = vst [vmem:[%s1449] ss:$4 sm:$0xff] %v450
      %1495 = vst [vmem:[%s1451] ss:$4 sm:$0xff] %v452
      %1496 = vst [vmem:[%s1453] ss:$4 sm:$0xff] %v455
      %v1497 = vld.sshfl [vmem:[#allocation1] sm:$0xff pattern:$0x73625140]
      %v1498 = vld.sshfl [vmem:[#allocation1 + $0x8] sm:$0xff pattern:$0x73625140]
      %v1499 = vld.sshfl [vmem:[#allocation1 + $0x10] sm:$0xff pattern:$0x73625140]
      %v1500 = vld.sshfl [vmem:[#allocation1 + $0x20] sm:$0xff pattern:$0x73625140]
      %v1501 = vld.sshfl [vmem:[#allocation1 + $0x28] sm:$0xff pattern:$0x73625140]
      %v1502 = vld.sshfl [vmem:[#allocation1 + $0x30] sm:$0xff pattern:$0x73625140]
      %1503 = vst [vmem:[#allocation1] ss:$4 sm:$0xff] %v458
      %1504 = vst [vmem:[%s1441] ss:$4 sm:$0xff] %v461
      %1505 = vst [vmem:[%s1443] ss:$4 sm:$0xff] %v463
      %1506 = vst [vmem:[%s1445] ss:$4 sm:$0xff] %v465
      %1507 = vst [vmem:[%s1447] ss:$4 sm:$0xff] %v468
      %1508 = vst [vmem:[%s1449] ss:$4 sm:$0xff] %v471
      %1509 = vst [vmem:[%s1451] ss:$4 sm:$0xff] %v474
      %1510 = vst [vmem:[%s1453] ss:$4 sm:$0xff] %v476
      %v1511 = vld.sshfl [vmem:[#allocation1] sm:$0xff pattern:$0x73625140]
      %v1512 = vld.sshfl [vmem:[#allocation1 + $0x8] sm:$0xff pattern:$0x73625140]
      %v1513 = vld.sshfl [vmem:[#allocation1 + $0x10] sm:$0xff pattern:$0x73625140]
      %v1514 = vld.sshfl [vmem:[#allocation1 + $0x20] sm:$0xff pattern:$0x73625140]
      %v1515 = vld.sshfl [vmem:[#allocation1 + $0x28] sm:$0xff pattern:$0x73625140]
      %v1516 = vld.sshfl [vmem:[#allocation1 + $0x30] sm:$0xff pattern:$0x73625140]
      %1517 = vst [vmem:[#allocation1] ss:$4 sm:$0xff] %v478
      %1518 = vst [vmem:[%s1441] ss:$4 sm:$0xff] %v481
      %1519 = vst [vmem:[%s1443] ss:$4 sm:$0xff] %v484
      %1520 = vst [vmem:[%s1445] ss:$4 sm:$0xff] %v487
      %1521 = vst [vmem:[%s1447] ss:$4 sm:$0xff] %v489
      %1522 = vst [vmem:[%s1449] ss:$4 sm:$0xff] %v491
      %1523 = vst [vmem:[%s1451] ss:$4 sm:$0xff] %v494
      %1524 = vst [vmem:[%s1453] ss:$4 sm:$0xff] %v497
      %v1525 = vld.sshfl [vmem:[#allocation1] sm:$0xff pattern:$0x73625140]
      %v1526 = vld.sshfl [vmem:[#allocation1 + $0x8] sm:$0xff pattern:$0x73625140]
      %v1527 = vld.sshfl [vmem:[#allocation1 + $0x10] sm:$0xff pattern:$0x73625140]
      %v1528 = vld.sshfl [vmem:[#allocation1 + $0x20] sm:$0xff pattern:$0x73625140]
      %v1529 = vld.sshfl [vmem:[#allocation1 + $0x28] sm:$0xff pattern:$0x73625140]
      %v1530 = vld.sshfl [vmem:[#allocation1 + $0x30] sm:$0xff pattern:$0x73625140]
      %1531 = vst [vmem:[#allocation1] ss:$4 sm:$0xff] %v500
      %1532 = vst [vmem:[%s1441] ss:$4 sm:$0xff] %v502
      %v1533 = vld.sshfl [vmem:[#allocation1] sm:$0xff pattern:$0x73625140]
      %v1534 = vld.sshfl [vmem:[#allocation1 + $0x8] sm:$0xff pattern:$0x73625140]
      %v1535 = vld.sshfl [vmem:[#allocation1 + $0x10] sm:$0xff pattern:$0x73625140]
      %1575 = vmatpush.msra.mxu0 %v533
      %1576 = vmatpush.msra.mxu0 %v531
      %1577 = vmatpush.msra.mxu0 %v529
      %1578 = vmatpush.msra.mxu0 %v527
      %1579 = vmatpush.msra.mxu0 %v525
      %1580 = vmatpush.msra.mxu0 %v523
      %1581 = vmatpush.msra.mxu0 %v521
      %1582 = vmatpush.msra.mxu0 %v519
      %1583 = vmatpush.msra.mxu0 %v517
      %1584 = vmatpush.msra.mxu0 %v515
      %1585 = vmatpush.msra.mxu0 %v513
      %1586 = vmatpush.msra.mxu0 %v511
      %1587 = vmatpush.msra.mxu0 %v509
      %1588 = vmatpush.msra.mxu0 %v507
      %1589 = vmatpush.msra.mxu0 %v505
      %1590 = vmatpush.msra.mxu0 %v503
      %1591 = vmatmul.f32.gmra.mxu0 %v1455
      %v1592 = vpop.f32.mrf.mxu0
      %v1593 = vadd.f32 %v1234, %v1592
      %1594 = vmatmul.f32.gmra.mxu0 %v1458
      %v1595 = vpop.f32.mrf.mxu0
      %v1596 = vadd.f32 %v1237, %v1595
      %1597 = vmatmul.f32.gmra.mxu0 %v1469
      %v1598 = vpop.f32.mrf.mxu0
      %v1599 = vadd.f32 %v1240, %v1598
      %1600 = vmatmul.f32.gmra.mxu0 %v1472
      %v1601 = vpop.f32.mrf.mxu0
      %v1602 = vadd.f32 %v1243, %v1601
      %1603 = vmatmul.f32.gmra.mxu0 %v1483
      %v1604 = vpop.f32.mrf.mxu0
      %v1605 = vadd.f32 %v1246, %v1604
      %1606 = vmatmul.f32.gmra.mxu0 %v1486
      %v1607 = vpop.f32.mrf.mxu0
      %v1608 = vadd.f32 %v1249, %v1607
      %1609 = vmatmul.f32.gmra.mxu0 %v1497
      %v1610 = vpop.f32.mrf.mxu0
      %v1611 = vadd.f32 %v1252, %v1610
      %1612 = vmatmul.f32.gmra.mxu0 %v1500
      %v1613 = vpop.f32.mrf.mxu0
      %v1614 = vadd.f32 %v1255, %v1613
      %1615 = vmatmul.f32.gmra.mxu0 %v1511
      %v1616 = vpop.f32.mrf.mxu0
      %v1617 = vadd.f32 %v1258, %v1616
      %1618 = vmatmul.f32.gmra.mxu0 %v1514
      %v1619 = vpop.f32.mrf.mxu0
      %v1620 = vadd.f32 %v1261, %v1619
      %1621 = vmatmul.f32.gmra.mxu0 %v1525
      %v1622 = vpop.f32.mrf.mxu0
      %v1623 = vadd.f32 %v1264, %v1622
      %1624 = vmatmul.f32.gmra.mxu0 %v1528
      %v1625 = vpop.f32.mrf.mxu0
      %v1626 = vadd.f32 %v1267, %v1625
      %1627 = vmatmul.f32.gmra.mxu0 %v1533
      %v1628 = vpop.f32.mrf.mxu0
      %v1629 = vadd.f32 %v1270, %v1628
      %1630 = vdwg.mxu0
      %1631 = vmatpush.msra.mxu0 %v565
      %1632 = vmatpush.msra.mxu0 %v563
      %1633 = vmatpush.msra.mxu0 %v561
      %1634 = vmatpush.msra.mxu0 %v559
      %1635 = vmatpush.msra.mxu0 %v557
      %1636 = vmatpush.msra.mxu0 %v555
      %1637 = vmatpush.msra.mxu0 %v553
      %1638 = vmatpush.msra.mxu0 %v551
      %1639 = vmatpush.msra.mxu0 %v549
      %1640 = vmatpush.msra.mxu0 %v547
      %1641 = vmatpush.msra.mxu0 %v545
      %1642 = vmatpush.msra.mxu0 %v543
      %1643 = vmatpush.msra.mxu0 %v541
      %1644 = vmatpush.msra.mxu0 %v539
      %1645 = vmatpush.msra.mxu0 %v537
      %1646 = vmatpush.msra.mxu0 %v535
      %1647 = vmatmul.f32.gmra.mxu0 %v1456
      %v1648 = vpop.f32.mrf.mxu0
      %v1649 = vadd.f32 %v1593, %v1648
      %1650 = vmatmul.f32.gmra.mxu0 %v1459
      %v1651 = vpop.f32.mrf.mxu0
      %v1652 = vadd.f32 %v1596, %v1651
      %1653 = vmatmul.f32.gmra.mxu0 %v1470
      %v1654 = vpop.f32.mrf.mxu0
      %v1655 = vadd.f32 %v1599, %v1654
      %1656 = vmatmul.f32.gmra.mxu0 %v1473
      %v1657 = vpop.f32.mrf.mxu0
      %v1658 = vadd.f32 %v1602, %v1657
      %1659 = vmatmul.f32.gmra.mxu0 %v1484
      %v1660 = vpop.f32.mrf.mxu0
      %v1661 = vadd.f32 %v1605, %v1660
      %1662 = vmatmul.f32.gmra.mxu0 %v1487
      %v1663 = vpop.f32.mrf.mxu0
      %v1664 = vadd.f32 %v1608, %v1663
      %1665 = vmatmul.f32.gmra.mxu0 %v1498
      %v1666 = vpop.f32.mrf.mxu0
      %v1667 = vadd.f32 %v1611, %v1666
      %1668 = vmatmul.f32.gmra.mxu0 %v1501
      %v1669 = vpop.f32.mrf.mxu0
      %v1670 = vadd.f32 %v1614, %v1669
      %1671 = vmatmul.f32.gmra.mxu0 %v1512
      %v1672 = vpop.f32.mrf.mxu0
      %v1673 = vadd.f32 %v1617, %v1672
      %1674 = vmatmul.f32.gmra.mxu0 %v1515
      %v1675 = vpop.f32.mrf.mxu0
      %v1676 = vadd.f32 %v1620, %v1675
      %1677 = vmatmul.f32.gmra.mxu0 %v1526
      %v1678 = vpop.f32.mrf.mxu0
      %v1679 = vadd.f32 %v1623, %v1678
      %1680 = vmatmul.f32.gmra.mxu0 %v1529
      %v1681 = vpop.f32.mrf.mxu0
      %v1682 = vadd.f32 %v1626, %v1681
      %1683 = vmatmul.f32.gmra.mxu0 %v1534
      %v1684 = vpop.f32.mrf.mxu0
      %v1685 = vadd.f32 %v1629, %v1684
      %1686 = vdwg.mxu0
      %1687 = vmatpush.msra.mxu0 %v597
      %1688 = vmatpush.msra.mxu0 %v595
      %1689 = vmatpush.msra.mxu0 %v593
      %1690 = vmatpush.msra.mxu0 %v591
      %1691 = vmatpush.msra.mxu0 %v589
      %1692 = vmatpush.msra.mxu0 %v587
      %1693 = vmatpush.msra.mxu0 %v585
      %1694 = vmatpush.msra.mxu0 %v583
      %1695 = vmatpush.msra.mxu0 %v581
      %1696 = vmatpush.msra.mxu0 %v579
      %1697 = vmatpush.msra.mxu0 %v577
      %1698 = vmatpush.msra.mxu0 %v575
      %1699 = vmatpush.msra.mxu0 %v573
      %1700 = vmatpush.msra.mxu0 %v571
      %1701 = vmatpush.msra.mxu0 %v569
      %1702 = vmatpush.msra.mxu0 %v567
      %1703 = vmatmul.f32.gmra.mxu0 %v1457
      %v1704 = vpop.f32.mrf.mxu0
      %v1705 = vadd.f32 %v1649, %v1704
      %1706 = vmatmul.f32.gmra.mxu0 %v1460
      %v1707 = vpop.f32.mrf.mxu0
      %v1708 = vadd.f32 %v1652, %v1707
      %1709 = vmatmul.f32.gmra.mxu0 %v1471
      %v1710 = vpop.f32.mrf.mxu0
      %v1711 = vadd.f32 %v1655, %v1710
      %1712 = vmatmul.f32.gmra.mxu0 %v1474
      %v1713 = vpop.f32.mrf.mxu0
      %v1714 = vadd.f32 %v1658, %v1713
      %1715 = vmatmul.f32.gmra.mxu0 %v1485
      %v1716 = vpop.f32.mrf.mxu0
      %v1717 = vadd.f32 %v1661, %v1716
      %1718 = vmatmul.f32.gmra.mxu0 %v1488
      %v1719 = vpop.f32.mrf.mxu0
      %v1720 = vadd.f32 %v1664, %v1719
      %1721 = vmatmul.f32.gmra.mxu0 %v1499
      %v1722 = vpop.f32.mrf.mxu0
      %v1723 = vadd.f32 %v1667, %v1722
      %1724 = vmatmul.f32.gmra.mxu0 %v1502
      %v1725 = vpop.f32.mrf.mxu0
      %v1726 = vadd.f32 %v1670, %v1725
      %1727 = vmatmul.f32.gmra.mxu0 %v1513
      %v1728 = vpop.f32.mrf.mxu0
      %v1729 = vadd.f32 %v1673, %v1728
      %1730 = vmatmul.f32.gmra.mxu0 %v1516
      %v1731 = vpop.f32.mrf.mxu0
      %v1732 = vadd.f32 %v1676, %v1731
      %1733 = vmatmul.f32.gmra.mxu0 %v1527
      %v1734 = vpop.f32.mrf.mxu0
      %v1735 = vadd.f32 %v1679, %v1734
      %1736 = vmatmul.f32.gmra.mxu0 %v1530
      %v1737 = vpop.f32.mrf.mxu0
      %v1738 = vadd.f32 %v1682, %v1737
      %1739 = vmatmul.f32.gmra.mxu0 %v1535
      %v1740 = vpop.f32.mrf.mxu0
      %v1741 = vadd.f32 %v1685, %v1740
      %1742 = vdwg.mxu0
      %1743 = vmatpush.msra.mxu0 %v534
      %1744 = vmatpush.msra.mxu0 %v532
      %1745 = vmatpush.msra.mxu0 %v530
      %1746 = vmatpush.msra.mxu0 %v528
      %1747 = vmatpush.msra.mxu0 %v526
      %1748 = vmatpush.msra.mxu0 %v524
      %1749 = vmatpush.msra.mxu0 %v522
      %1750 = vmatpush.msra.mxu0 %v520
      %1751 = vmatpush.msra.mxu0 %v518
      %1752 = vmatpush.msra.mxu0 %v516
      %1753 = vmatpush.msra.mxu0 %v514
      %1754 = vmatpush.msra.mxu0 %v512
      %1755 = vmatpush.msra.mxu0 %v510
      %1756 = vmatpush.msra.mxu0 %v508
      %1757 = vmatpush.msra.mxu0 %v506
      %1758 = vmatpush.msra.mxu0 %v504
      %1759 = vmatmul.f32.gmra.mxu0 %v1455
      %v1760 = vpop.f32.mrf.mxu0
      %v1761 = vadd.f32 %v1402, %v1760
      %1762 = vmatmul.f32.gmra.mxu0 %v1458
      %v1763 = vpop.f32.mrf.mxu0
      %v1764 = vadd.f32 %v1405, %v1763
      %1765 = vmatmul.f32.gmra.mxu0 %v1469
      %v1766 = vpop.f32.mrf.mxu0
      %v1767 = vadd.f32 %v1408, %v1766
      %1768 = vmatmul.f32.gmra.mxu0 %v1472
      %v1769 = vpop.f32.mrf.mxu0
      %v1770 = vadd.f32 %v1411, %v1769
      %1771 = vmatmul.f32.gmra.mxu0 %v1483
      %v1772 = vpop.f32.mrf.mxu0
      %v1773 = vadd.f32 %v1414, %v1772
      %1774 = vmatmul.f32.gmra.mxu0 %v1486
      %v1775 = vpop.f32.mrf.mxu0
      %v1776 = vadd.f32 %v1417, %v1775
      %1777 = vmatmul.f32.gmra.mxu0 %v1497
      %v1778 = vpop.f32.mrf.mxu0
      %v1779 = vadd.f32 %v1420, %v1778
      %1780 = vmatmul.f32.gmra.mxu0 %v1500
      %v1781 = vpop.f32.mrf.mxu0
      %v1782 = vadd.f32 %v1423, %v1781
      %1783 = vmatmul.f32.gmra.mxu0 %v1511
      %v1784 = vpop.f32.mrf.mxu0
      %v1785 = vadd.f32 %v1426, %v1784
      %1786 = vmatmul.f32.gmra.mxu0 %v1514
      %v1787 = vpop.f32.mrf.mxu0
      %v1788 = vadd.f32 %v1429, %v1787
      %1789 = vmatmul.f32.gmra.mxu0 %v1525
      %v1790 = vpop.f32.mrf.mxu0
      %v1791 = vadd.f32 %v1432, %v1790
      %1792 = vmatmul.f32.gmra.mxu0 %v1528
      %v1793 = vpop.f32.mrf.mxu0
      %v1794 = vadd.f32 %v1435, %v1793
      %1795 = vmatmul.f32.gmra.mxu0 %v1533
      %v1796 = vpop.f32.mrf.mxu0
      %v1797 = vadd.f32 %v1438, %v1796
      %1798 = vdwg.mxu0
      %1799 = vmatpush.msra.mxu0 %v566
      %1800 = vmatpush.msra.mxu0 %v564
      %1801 = vmatpush.msra.mxu0 %v562
      %1802 = vmatpush.msra.mxu0 %v560
      %1803 = vmatpush.msra.mxu0 %v558
      %1804 = vmatpush.msra.mxu0 %v556
      %1805 = vmatpush.msra.mxu0 %v554
      %1806 = vmatpush.msra.mxu0 %v552
      %1807 = vmatpush.msra.mxu0 %v550
      %1808 = vmatpush.msra.mxu0 %v548
      %1809 = vmatpush.msra.mxu0 %v546
      %1810 = vmatpush.msra.mxu0 %v544
      %1811 = vmatpush.msra.mxu0 %v542
      %1812 = vmatpush.msra.mxu0 %v540
      %1813 = vmatpush.msra.mxu0 %v538
      %1814 = vmatpush.msra.mxu0 %v536
      %1815 = vmatmul.f32.gmra.mxu0 %v1456
      %v1816 = vpop.f32.mrf.mxu0
      %v1817 = vadd.f32 %v1761, %v1816
      %1818 = vmatmul.f32.gmra.mxu0 %v1459
      %v1819 = vpop.f32.mrf.mxu0
      %v1820 = vadd.f32 %v1764, %v1819
      %1821 = vmatmul.f32.gmra.mxu0 %v1470
      %v1822 = vpop.f32.mrf.mxu0
      %v1823 = vadd.f32 %v1767, %v1822
      %1824 = vmatmul.f32.gmra.mxu0 %v1473
      %v1825 = vpop.f32.mrf.mxu0
      %v1826 = vadd.f32 %v1770, %v1825
      %1827 = vmatmul.f32.gmra.mxu0 %v1484
      %v1828 = vpop.f32.mrf.mxu0
      %v1829 = vadd.f32 %v1773, %v1828
      %1830 = vmatmul.f32.gmra.mxu0 %v1487
      %v1831 = vpop.f32.mrf.mxu0
      %v1832 = vadd.f32 %v1776, %v1831
      %1833 = vmatmul.f32.gmra.mxu0 %v1498
      %v1834 = vpop.f32.mrf.mxu0
      %v1835 = vadd.f32 %v1779, %v1834
      %1836 = vmatmul.f32.gmra.mxu0 %v1501
      %v1837 = vpop.f32.mrf.mxu0
      %v1838 = vadd.f32 %v1782, %v1837
      %1839 = vmatmul.f32.gmra.mxu0 %v1512
      %v1840 = vpop.f32.mrf.mxu0
      %v1841 = vadd.f32 %v1785, %v1840
      %1842 = vmatmul.f32.gmra.mxu0 %v1515
      %v1843 = vpop.f32.mrf.mxu0
      %v1844 = vadd.f32 %v1788, %v1843
      %1845 = vmatmul.f32.gmra.mxu0 %v1526
      %v1846 = vpop.f32.mrf.mxu0
      %v1847 = vadd.f32 %v1791, %v1846
      %1848 = vmatmul.f32.gmra.mxu0 %v1529
      %v1849 = vpop.f32.mrf.mxu0
      %v1850 = vadd.f32 %v1794, %v1849
      %1851 = vmatmul.f32.gmra.mxu0 %v1534
      %v1852 = vpop.f32.mrf.mxu0
      %v1853 = vadd.f32 %v1797, %v1852
      %1854 = vdwg.mxu0
      %1855 = vmatpush.msra.mxu0 %v598
      %1856 = vmatpush.msra.mxu0 %v596
      %1857 = vmatpush.msra.mxu0 %v594
      %1858 = vmatpush.msra.mxu0 %v592
      %1859 = vmatpush.msra.mxu0 %v590
      %1860 = vmatpush.msra.mxu0 %v588
      %1861 = vmatpush.msra.mxu0 %v586
      %1862 = vmatpush.msra.mxu0 %v584
      %1863 = vmatpush.msra.mxu0 %v582
      %1864 = vmatpush.msra.mxu0 %v580
      %1865 = vmatpush.msra.mxu0 %v578
      %1866 = vmatpush.msra.mxu0 %v576
      %1867 = vmatpush.msra.mxu0 %v574
      %1868 = vmatpush.msra.mxu0 %v572
      %1869 = vmatpush.msra.mxu0 %v570
      %1870 = vmatpush.msra.mxu0 %v568
      %1871 = vmatmul.f32.gmra.mxu0 %v1457
      %v1872 = vpop.f32.mrf.mxu0
      %v1873 = vadd.f32 %v1817, %v1872
      %1874 = vmatmul.f32.gmra.mxu0 %v1460
      %v1875 = vpop.f32.mrf.mxu0
      %v1876 = vadd.f32 %v1820, %v1875
      %1877 = vmatmul.f32.gmra.mxu0 %v1471
      %v1878 = vpop.f32.mrf.mxu0
      %v1879 = vadd.f32 %v1823, %v1878
      %1880 = vmatmul.f32.gmra.mxu0 %v1474
      %v1881 = vpop.f32.mrf.mxu0
      %v1882 = vadd.f32 %v1826, %v1881
      %1883 = vmatmul.f32.gmra.mxu0 %v1485
      %v1884 = vpop.f32.mrf.mxu0
      %v1885 = vadd.f32 %v1829, %v1884
      %1886 = vmatmul.f32.gmra.mxu0 %v1488
      %v1887 = vpop.f32.mrf.mxu0
      %v1888 = vadd.f32 %v1832, %v1887
      %1889 = vmatmul.f32.gmra.mxu0 %v1499
      %v1890 = vpop.f32.mrf.mxu0
      %v1891 = vadd.f32 %v1835, %v1890
      %1892 = vmatmul.f32.gmra.mxu0 %v1502
      %v1893 = vpop.f32.mrf.mxu0
      %v1894 = vadd.f32 %v1838, %v1893
      %1895 = vmatmul.f32.gmra.mxu0 %v1513
      %v1896 = vpop.f32.mrf.mxu0
      %v1897 = vadd.f32 %v1841, %v1896
      %1898 = vmatmul.f32.gmra.mxu0 %v1516
      %v1899 = vpop.f32.mrf.mxu0
      %v1900 = vadd.f32 %v1844, %v1899
      %1901 = vmatmul.f32.gmra.mxu0 %v1527
      %v1902 = vpop.f32.mrf.mxu0
      %v1903 = vadd.f32 %v1847, %v1902
      %1904 = vmatmul.f32.gmra.mxu0 %v1530
      %v1905 = vpop.f32.mrf.mxu0
      %v1906 = vadd.f32 %v1850, %v1905
      %1907 = vmatmul.f32.gmra.mxu0 %v1535
      %v1908 = vpop.f32.mrf.mxu0
      %v1909 = vadd.f32 %v1853, %v1908
      %1910 = vdwg.mxu0
      %s1911 = sadd.s32 %s223, 2
      %s1912 = smul.u32 %s1911, 16
      %s1913 = scalar_lea.vmem %s211, %s1912
      %v1914 = vld [vmem:[%s1913] sm:$0xff]
      %v1915 = vld [vmem:[%s1913 + $0x8] sm:$0xf]
      %v1916 = vld [vmem:[%s1913 + $0x10] sm:$0xff]
      %v1917 = vld [vmem:[%s1913 + $0x18] sm:$0xf]
      %v1918 = vld [vmem:[%s1913 + $0x20] sm:$0xff]
      %v1919 = vld [vmem:[%s1913 + $0x28] sm:$0xf]
      %v1920 = vld [vmem:[%s1913 + $0x30] sm:$0xff]
      %v1921 = vld [vmem:[%s1913 + $0x38] sm:$0xf]
      %v1922 = vld [vmem:[%s1913 + $0x40] sm:$0xff]
      %v1923 = vld [vmem:[%s1913 + $0x48] sm:$0xf]
      %v1924 = vld [vmem:[%s1913 + $0x50] sm:$0xff]
      %v1925 = vld [vmem:[%s1913 + $0x58] sm:$0xf]
      %v1926 = vld [vmem:[%s1913 + $0x60] sm:$0xff]
      %v1927 = vld [vmem:[%s1913 + $0x68] sm:$0xf]
      %v1928 = vld [vmem:[%s1913 + $0x70] sm:$0xff]
      %v1929 = vld [vmem:[%s1913 + $0x78] sm:$0xf]
      %v1930 = vld [vmem:[%s1913 + $0x80] sm:$0xff]
      %v1931 = vld [vmem:[%s1913 + $0x88] sm:$0xf]
      %v1932 = vld [vmem:[%s1913 + $0x90] sm:$0xff]
      %v1933 = vld [vmem:[%s1913 + $0x98] sm:$0xf]
      %v1954 = vrot.slane %v1914, 1
      %v1955 = vrot.slane %v1915, 1
      %v1956 = vsel %vm266, %v1954, %v1955
      %v1957 = vrot.slane %v1916, 1
      %v1958 = vrot.slane %v1917, 1
      %v1959 = vsel %vm266, %v1957, %v1958
      %v1960 = vrot.slane %v1918, 1
      %v1961 = vrot.slane %v1919, 1
      %v1962 = vsel %vm266, %v1960, %v1961
      %v1963 = vrot.slane %v1920, 1
      %v1964 = vrot.slane %v1921, 1
      %v1965 = vsel %vm266, %v1963, %v1964
      %v1966 = vrot.slane %v1922, 1
      %v1967 = vrot.slane %v1923, 1
      %v1968 = vsel %vm266, %v1966, %v1967
      %v1969 = vrot.slane %v1924, 1
      %v1970 = vrot.slane %v1925, 1
      %v1971 = vsel %vm266, %v1969, %v1970
      %v1972 = vrot.slane %v1926, 1
      %v1973 = vrot.slane %v1927, 1
      %v1974 = vsel %vm266, %v1972, %v1973
      %v1975 = vrot.slane %v1928, 1
      %v1976 = vrot.slane %v1929, 1
      %v1977 = vsel %vm266, %v1975, %v1976
      %v1978 = vrot.slane %v1930, 1
      %v1979 = vrot.slane %v1931, 1
      %v1980 = vsel %vm266, %v1978, %v1979
      %v1981 = vrot.slane %v1932, 1
      %v1982 = vrot.slane %v1933, 1
      %v1983 = vsel %vm266, %v1981, %v1982
      %v1984 = vrot.slane %v1914, 2
      %v1985 = vrot.slane %v1915, 2
      %v1986 = vsel %vm297, %v1984, %v1985
      %v1987 = vrot.slane %v1916, 2
      %v1988 = vrot.slane %v1917, 2
      %v1989 = vsel %vm297, %v1987, %v1988
      %v1990 = vrot.slane %v1918, 2
      %v1991 = vrot.slane %v1919, 2
      %v1992 = vsel %vm297, %v1990, %v1991
      %v1993 = vrot.slane %v1920, 2
      %v1994 = vrot.slane %v1921, 2
      %v1995 = vsel %vm297, %v1993, %v1994
      %v1996 = vrot.slane %v1922, 2
      %v1997 = vrot.slane %v1923, 2
      %v1998 = vsel %vm297, %v1996, %v1997
      %v1999 = vrot.slane %v1924, 2
      %v2000 = vrot.slane %v1925, 2
      %v2001 = vsel %vm297, %v1999, %v2000
      %v2002 = vrot.slane %v1926, 2
      %v2003 = vrot.slane %v1927, 2
      %v2004 = vsel %vm297, %v2002, %v2003
      %v2005 = vrot.slane %v1928, 2
      %v2006 = vrot.slane %v1929, 2
      %v2007 = vsel %vm297, %v2005, %v2006
      %v2008 = vrot.slane %v1930, 2
      %v2009 = vrot.slane %v1931, 2
      %v2010 = vsel %vm297, %v2008, %v2009
      %v2011 = vrot.slane %v1932, 2
      %v2012 = vrot.slane %v1933, 2
      %v2013 = vsel %vm297, %v2011, %v2012
      %v2014 = vrot.slane %v1956, 6
      %v2015 = vrot.slane %v1986, 4
      %v2016 = vrot.slane %v1955, 6
      %v2017 = vrot.slane %v1985, 4
      %v2018 = vrot.slane %v1959, 6
      %v2019 = vrot.slane %v1989, 4
      %v2020 = vrot.slane %v1958, 6
      %v2021 = vrot.slane %v1988, 4
      %v2022 = vrot.slane %v1962, 6
      %v2023 = vrot.slane %v1992, 4
      %v2024 = vrot.slane %v1961, 6
      %v2025 = vrot.slane %v1991, 4
      %v2026 = vrot.slane %v1965, 6
      %v2027 = vrot.slane %v1995, 4
      %v2028 = vrot.slane %v1964, 6
      %v2029 = vrot.slane %v1994, 4
      %v2030 = vrot.slane %v1968, 6
      %v2031 = vrot.slane %v1998, 4
      %v2032 = vrot.slane %v1967, 6
      %v2033 = vrot.slane %v1997, 4
      %v2034 = vrot.slane %v1971, 6
      %v2035 = vrot.slane %v2001, 4
      %v2036 = vrot.slane %v1970, 6
      %v2037 = vrot.slane %v2000, 4
      %v2038 = vrot.slane %v1974, 6
      %v2039 = vrot.slane %v2004, 4
      %v2040 = vrot.slane %v1973, 6
      %v2041 = vrot.slane %v2003, 4
      %v2042 = vrot.slane %v1977, 6
      %v2043 = vrot.slane %v2007, 4
      %v2044 = vrot.slane %v1976, 6
      %v2045 = vrot.slane %v2006, 4
      %v2046 = vrot.slane %v1980, 6
      %v2047 = vrot.slane %v2010, 4
      %v2048 = vrot.slane %v1979, 6
      %v2049 = vrot.slane %v2009, 4
      %v2050 = vrot.slane %v1983, 6
      %v2051 = vrot.slane %v2013, 4
      %v2052 = vrot.slane %v1982, 6
      %v2053 = vrot.slane %v2012, 4
      %v2054 = vsel %vm368, %v1914, %v2014
      %v2055 = vsel %vm370, %v2054, %v2015
      %v2056 = vsel %vm372, %v1914, %v2014
      %v2057 = vsel %vm374, %v2056, %v2015
      %v2058 = vrot.slane %v2057, 2
      %v2059 = vsel %vm377, %v1914, %v2014
      %v2060 = vsel %vm370, %v2015, %v2059
      %v2061 = vrot.slane %v2060, 4
      %v2062 = vsel %vm297, %v2014, %v1914
      %v2063 = vsel %vm374, %v2015, %v2062
      %v2064 = vrot.slane %v2063, 6
      %v2065 = vsel %vm368, %v1915, %v2016
      %v2066 = vsel %vm370, %v2065, %v2017
      %v2067 = vsel %vm368, %v1916, %v2018
      %v2068 = vsel %vm370, %v2067, %v2019
      %v2069 = vsel %vm372, %v1916, %v2018
      %v2070 = vsel %vm374, %v2069, %v2019
      %v2071 = vrot.slane %v2070, 2
      %v2072 = vsel %vm377, %v1916, %v2018
      %v2073 = vsel %vm370, %v2019, %v2072
      %v2074 = vrot.slane %v2073, 4
      %v2075 = vsel %vm297, %v2018, %v1916
      %v2076 = vsel %vm374, %v2019, %v2075
      %v2077 = vrot.slane %v2076, 6
      %v2078 = vsel %vm368, %v1917, %v2020
      %v2079 = vsel %vm370, %v2078, %v2021
      %v2080 = vsel %vm368, %v1918, %v2022
      %v2081 = vsel %vm370, %v2080, %v2023
      %v2082 = vsel %vm372, %v1918, %v2022
      %v2083 = vsel %vm374, %v2082, %v2023
      %v2084 = vrot.slane %v2083, 2
      %v2085 = vsel %vm377, %v1918, %v2022
      %v2086 = vsel %vm370, %v2023, %v2085
      %v2087 = vrot.slane %v2086, 4
      %v2088 = vsel %vm297, %v2022, %v1918
      %v2089 = vsel %vm374, %v2023, %v2088
      %v2090 = vrot.slane %v2089, 6
      %v2091 = vsel %vm368, %v1919, %v2024
      %v2092 = vsel %vm370, %v2091, %v2025
      %v2093 = vsel %vm368, %v1920, %v2026
      %v2094 = vsel %vm370, %v2093, %v2027
      %v2095 = vsel %vm372, %v1920, %v2026
      %v2096 = vsel %vm374, %v2095, %v2027
      %v2097 = vrot.slane %v2096, 2
      %v2098 = vsel %vm377, %v1920, %v2026
      %v2099 = vsel %vm370, %v2027, %v2098
      %v2100 = vrot.slane %v2099, 4
      %v2101 = vsel %vm297, %v2026, %v1920
      %v2102 = vsel %vm374, %v2027, %v2101
      %v2103 = vrot.slane %v2102, 6
      %v2104 = vsel %vm368, %v1921, %v2028
      %v2105 = vsel %vm370, %v2104, %v2029
      %v2106 = vsel %vm368, %v1922, %v2030
      %v2107 = vsel %vm370, %v2106, %v2031
      %v2108 = vsel %vm372, %v1922, %v2030
      %v2109 = vsel %vm374, %v2108, %v2031
      %v2110 = vrot.slane %v2109, 2
      %v2111 = vsel %vm377, %v1922, %v2030
      %v2112 = vsel %vm370, %v2031, %v2111
      %v2113 = vrot.slane %v2112, 4
      %v2114 = vsel %vm297, %v2030, %v1922
      %v2115 = vsel %vm374, %v2031, %v2114
      %v2116 = vrot.slane %v2115, 6
      %v2117 = vsel %vm368, %v1923, %v2032
      %v2118 = vsel %vm370, %v2117, %v2033
      %v2119 = vsel %vm368, %v1924, %v2034
      %v2120 = vsel %vm370, %v2119, %v2035
      %v2121 = vsel %vm372, %v1924, %v2034
      %v2122 = vsel %vm374, %v2121, %v2035
      %v2123 = vrot.slane %v2122, 2
      %v2124 = vsel %vm377, %v1924, %v2034
      %v2125 = vsel %vm370, %v2035, %v2124
      %v2126 = vrot.slane %v2125, 4
      %v2127 = vsel %vm297, %v2034, %v1924
      %v2128 = vsel %vm374, %v2035, %v2127
      %v2129 = vrot.slane %v2128, 6
      %v2130 = vsel %vm368, %v1925, %v2036
      %v2131 = vsel %vm370, %v2130, %v2037
      %v2132 = vsel %vm368, %v1926, %v2038
      %v2133 = vsel %vm370, %v2132, %v2039
      %v2134 = vsel %vm372, %v1926, %v2038
      %v2135 = vsel %vm374, %v2134, %v2039
      %v2136 = vrot.slane %v2135, 2
      %v2137 = vsel %vm377, %v1926, %v2038
      %v2138 = vsel %vm370, %v2039, %v2137
      %v2139 = vrot.slane %v2138, 4
      %v2140 = vsel %vm297, %v2038, %v1926
      %v2141 = vsel %vm374, %v2039, %v2140
      %v2142 = vrot.slane %v2141, 6
      %v2143 = vsel %vm368, %v1927, %v2040
      %v2144 = vsel %vm370, %v2143, %v2041
      %v2145 = vsel %vm368, %v1928, %v2042
      %v2146 = vsel %vm370, %v2145, %v2043
      %v2147 = vsel %vm372, %v1928, %v2042
      %v2148 = vsel %vm374, %v2147, %v2043
      %v2149 = vrot.slane %v2148, 2
      %v2150 = vsel %vm377, %v1928, %v2042
      %v2151 = vsel %vm370, %v2043, %v2150
      %v2152 = vrot.slane %v2151, 4
      %v2153 = vsel %vm297, %v2042, %v1928
      %v2154 = vsel %vm374, %v2043, %v2153
      %v2155 = vrot.slane %v2154, 6
      %v2156 = vsel %vm368, %v1929, %v2044
      %v2157 = vsel %vm370, %v2156, %v2045
      %v2158 = vsel %vm368, %v1930, %v2046
      %v2159 = vsel %vm370, %v2158, %v2047
      %v2160 = vsel %vm372, %v1930, %v2046
      %v2161 = vsel %vm374, %v2160, %v2047
      %v2162 = vrot.slane %v2161, 2
      %v2163 = vsel %vm377, %v1930, %v2046
      %v2164 = vsel %vm370, %v2047, %v2163
      %v2165 = vrot.slane %v2164, 4
      %v2166 = vsel %vm297, %v2046, %v1930
      %v2167 = vsel %vm374, %v2047, %v2166
      %v2168 = vrot.slane %v2167, 6
      %v2169 = vsel %vm368, %v1931, %v2048
      %v2170 = vsel %vm370, %v2169, %v2049
      %v2171 = vsel %vm368, %v1932, %v2050
      %v2172 = vsel %vm370, %v2171, %v2051
      %v2173 = vsel %vm372, %v1932, %v2050
      %v2174 = vsel %vm374, %v2173, %v2051
      %v2175 = vrot.slane %v2174, 2
      %v2176 = vsel %vm377, %v1932, %v2050
      %v2177 = vsel %vm370, %v2051, %v2176
      %v2178 = vrot.slane %v2177, 4
      %v2179 = vsel %vm297, %v2050, %v1932
      %v2180 = vsel %vm374, %v2051, %v2179
      %v2181 = vrot.slane %v2180, 6
      %v2182 = vsel %vm368, %v1933, %v2052
      %v2183 = vsel %vm370, %v2182, %v2053
      %s2184 = scalar_lea.vmem %s1, 1536
      %v2185 = vld [vmem:[%s2184] sm:$0xff]
      %v2186 = vld [vmem:[%s2184 + $0x8] sm:$0xff]
      %v2187 = vld [vmem:[%s2184 + $0x10] sm:$0xff]
      %v2188 = vld [vmem:[%s2184 + $0x18] sm:$0xff]
      %v2189 = vld [vmem:[%s2184 + $0x20] sm:$0xff]
      %v2190 = vld [vmem:[%s2184 + $0x28] sm:$0xff]
      %v2191 = vld [vmem:[%s2184 + $0x30] sm:$0xff]
      %v2192 = vld [vmem:[%s2184 + $0x38] sm:$0xff]
      %v2193 = vld [vmem:[%s2184 + $0x40] sm:$0xff]
      %v2194 = vld [vmem:[%s2184 + $0x48] sm:$0xff]
      %v2195 = vld [vmem:[%s2184 + $0x50] sm:$0xff]
      %v2196 = vld [vmem:[%s2184 + $0x58] sm:$0xff]
      %v2197 = vld [vmem:[%s2184 + $0x60] sm:$0xff]
      %v2198 = vld [vmem:[%s2184 + $0x68] sm:$0xff]
      %v2199 = vld [vmem:[%s2184 + $0x70] sm:$0xff]
      %v2200 = vld [vmem:[%s2184 + $0x78] sm:$0xff]
      %v2201 = vld [vmem:[%s2184 + $0x80] sm:$0xff]
      %v2202 = vld [vmem:[%s2184 + $0x88] sm:$0xff]
      %v2203 = vld [vmem:[%s2184 + $0x90] sm:$0xff]
      %v2204 = vld [vmem:[%s2184 + $0x98] sm:$0xff]
      %v2205 = vld [vmem:[%s2184 + $0xa0] sm:$0xff]
      %v2206 = vld [vmem:[%s2184 + $0xa8] sm:$0xff]
      %v2207 = vld [vmem:[%s2184 + $0xb0] sm:$0xff]
      %v2208 = vld [vmem:[%s2184 + $0xb8] sm:$0xff]
      %v2209 = vld [vmem:[%s2184 + $0xc0] sm:$0xff]
      %v2210 = vld [vmem:[%s2184 + $0xc8] sm:$0xff]
      %v2211 = vld [vmem:[%s2184 + $0xd0] sm:$0xff]
      %v2212 = vld [vmem:[%s2184 + $0xd8] sm:$0xff]
      %v2213 = vld [vmem:[%s2184 + $0xe0] sm:$0xff]
      %v2214 = vld [vmem:[%s2184 + $0xe8] sm:$0xff]
      %v2215 = vld [vmem:[%s2184 + $0xf0] sm:$0xff]
      %v2216 = vld [vmem:[%s2184 + $0xf8] sm:$0xff]
      %v2217 = vld [vmem:[%s2184 + $0x100] sm:$0xff]
      %v2218 = vld [vmem:[%s2184 + $0x108] sm:$0xff]
      %v2219 = vld [vmem:[%s2184 + $0x110] sm:$0xff]
      %v2220 = vld [vmem:[%s2184 + $0x118] sm:$0xff]
      %v2221 = vld [vmem:[%s2184 + $0x120] sm:$0xff]
      %v2222 = vld [vmem:[%s2184 + $0x128] sm:$0xff]
      %v2223 = vld [vmem:[%s2184 + $0x130] sm:$0xff]
      %v2224 = vld [vmem:[%s2184 + $0x138] sm:$0xff]
      %v2225 = vld [vmem:[%s2184 + $0x140] sm:$0xff]
      %v2226 = vld [vmem:[%s2184 + $0x148] sm:$0xff]
      %v2227 = vld [vmem:[%s2184 + $0x150] sm:$0xff]
      %v2228 = vld [vmem:[%s2184 + $0x158] sm:$0xff]
      %v2229 = vld [vmem:[%s2184 + $0x160] sm:$0xff]
      %v2230 = vld [vmem:[%s2184 + $0x168] sm:$0xff]
      %v2231 = vld [vmem:[%s2184 + $0x170] sm:$0xff]
      %v2232 = vld [vmem:[%s2184 + $0x178] sm:$0xff]
      %v2233 = vld [vmem:[%s2184 + $0x180] sm:$0xff]
      %v2234 = vld [vmem:[%s2184 + $0x188] sm:$0xff]
      %v2235 = vld [vmem:[%s2184 + $0x190] sm:$0xff]
      %v2236 = vld [vmem:[%s2184 + $0x198] sm:$0xff]
      %v2237 = vld [vmem:[%s2184 + $0x1a0] sm:$0xff]
      %v2238 = vld [vmem:[%s2184 + $0x1a8] sm:$0xff]
      %v2239 = vld [vmem:[%s2184 + $0x1b0] sm:$0xff]
      %v2240 = vld [vmem:[%s2184 + $0x1b8] sm:$0xff]
      %v2241 = vld [vmem:[%s2184 + $0x1c0] sm:$0xff]
      %v2242 = vld [vmem:[%s2184 + $0x1c8] sm:$0xff]
      %v2243 = vld [vmem:[%s2184 + $0x1d0] sm:$0xff]
      %v2244 = vld [vmem:[%s2184 + $0x1d8] sm:$0xff]
      %v2245 = vld [vmem:[%s2184 + $0x1e0] sm:$0xff]
      %v2246 = vld [vmem:[%s2184 + $0x1e8] sm:$0xff]
      %v2247 = vld [vmem:[%s2184 + $0x1f0] sm:$0xff]
      %v2248 = vld [vmem:[%s2184 + $0x1f8] sm:$0xff]
      %v2249 = vld [vmem:[%s2184 + $0x200] sm:$0xff]
      %v2250 = vld [vmem:[%s2184 + $0x208] sm:$0xff]
      %v2251 = vld [vmem:[%s2184 + $0x210] sm:$0xff]
      %v2252 = vld [vmem:[%s2184 + $0x218] sm:$0xff]
      %v2253 = vld [vmem:[%s2184 + $0x220] sm:$0xff]
      %v2254 = vld [vmem:[%s2184 + $0x228] sm:$0xff]
      %v2255 = vld [vmem:[%s2184 + $0x230] sm:$0xff]
      %v2256 = vld [vmem:[%s2184 + $0x238] sm:$0xff]
      %v2257 = vld [vmem:[%s2184 + $0x240] sm:$0xff]
      %v2258 = vld [vmem:[%s2184 + $0x248] sm:$0xff]
      %v2259 = vld [vmem:[%s2184 + $0x250] sm:$0xff]
      %v2260 = vld [vmem:[%s2184 + $0x258] sm:$0xff]
      %v2261 = vld [vmem:[%s2184 + $0x260] sm:$0xff]
      %v2262 = vld [vmem:[%s2184 + $0x268] sm:$0xff]
      %v2263 = vld [vmem:[%s2184 + $0x270] sm:$0xff]
      %v2264 = vld [vmem:[%s2184 + $0x278] sm:$0xff]
      %v2265 = vld [vmem:[%s2184 + $0x280] sm:$0xff]
      %v2266 = vld [vmem:[%s2184 + $0x288] sm:$0xff]
      %v2267 = vld [vmem:[%s2184 + $0x290] sm:$0xff]
      %v2268 = vld [vmem:[%s2184 + $0x298] sm:$0xff]
      %v2269 = vld [vmem:[%s2184 + $0x2a0] sm:$0xff]
      %v2270 = vld [vmem:[%s2184 + $0x2a8] sm:$0xff]
      %v2271 = vld [vmem:[%s2184 + $0x2b0] sm:$0xff]
      %v2272 = vld [vmem:[%s2184 + $0x2b8] sm:$0xff]
      %v2273 = vld [vmem:[%s2184 + $0x2c0] sm:$0xff]
      %v2274 = vld [vmem:[%s2184 + $0x2c8] sm:$0xff]
      %v2275 = vld [vmem:[%s2184 + $0x2d0] sm:$0xff]
      %v2276 = vld [vmem:[%s2184 + $0x2d8] sm:$0xff]
      %v2277 = vld [vmem:[%s2184 + $0x2e0] sm:$0xff]
      %v2278 = vld [vmem:[%s2184 + $0x2e8] sm:$0xff]
      %v2279 = vld [vmem:[%s2184 + $0x2f0] sm:$0xff]
      %v2280 = vld [vmem:[%s2184 + $0x2f8] sm:$0xff]
      %2281 = vst [vmem:[#allocation1] ss:$4 sm:$0xff] %v2055
      %s2282 = scalar_lea.vmem [#allocation1], 1
      %2283 = vst [vmem:[%s2282] ss:$4 sm:$0xff] %v2058
      %s2284 = scalar_lea.vmem [#allocation1], 2
      %2285 = vst [vmem:[%s2284] ss:$4 sm:$0xff] %v2061
      %s2286 = scalar_lea.vmem [#allocation1], 3
      %2287 = vst [vmem:[%s2286] ss:$4 sm:$0xff] %v2064
      %s2288 = scalar_lea.vmem [#allocation1], 32
      %2289 = vst [vmem:[%s2288] ss:$4 sm:$0xff] %v2066
      %s2290 = scalar_lea.vmem [#allocation1], 33
      %2291 = vst [vmem:[%s2290] ss:$4 sm:$0xff] %v2068
      %s2292 = scalar_lea.vmem [#allocation1], 34
      %2293 = vst [vmem:[%s2292] ss:$4 sm:$0xff] %v2071
      %s2294 = scalar_lea.vmem [#allocation1], 35
      %2295 = vst [vmem:[%s2294] ss:$4 sm:$0xff] %v2074
      %v2296 = vld.sshfl [vmem:[#allocation1] sm:$0xff pattern:$0x73625140]
      %v2297 = vld.sshfl [vmem:[#allocation1 + $0x8] sm:$0xff pattern:$0x73625140]
      %v2298 = vld.sshfl [vmem:[#allocation1 + $0x10] sm:$0xff pattern:$0x73625140]
      %v2299 = vld.sshfl [vmem:[#allocation1 + $0x20] sm:$0xff pattern:$0x73625140]
      %v2300 = vld.sshfl [vmem:[#allocation1 + $0x28] sm:$0xff pattern:$0x73625140]
      %v2301 = vld.sshfl [vmem:[#allocation1 + $0x30] sm:$0xff pattern:$0x73625140]
      %2302 = vst [vmem:[#allocation1] ss:$4 sm:$0xff] %v2077
      %2303 = vst [vmem:[%s2282] ss:$4 sm:$0xff] %v2079
      %2304 = vst [vmem:[%s2284] ss:$4 sm:$0xff] %v2081
      %2305 = vst [vmem:[%s2286] ss:$4 sm:$0xff] %v2084
      %2306 = vst [vmem:[%s2288] ss:$4 sm:$0xff] %v2087
      %2307 = vst [vmem:[%s2290] ss:$4 sm:$0xff] %v2090
      %2308 = vst [vmem:[%s2292] ss:$4 sm:$0xff] %v2092
      %2309 = vst [vmem:[%s2294] ss:$4 sm:$0xff] %v2094
      %v2310 = vld.sshfl [vmem:[#allocation1] sm:$0xff pattern:$0x73625140]
      %v2311 = vld.sshfl [vmem:[#allocation1 + $0x8] sm:$0xff pattern:$0x73625140]
      %v2312 = vld.sshfl [vmem:[#allocation1 + $0x10] sm:$0xff pattern:$0x73625140]
      %v2313 = vld.sshfl [vmem:[#allocation1 + $0x20] sm:$0xff pattern:$0x73625140]
      %v2314 = vld.sshfl [vmem:[#allocation1 + $0x28] sm:$0xff pattern:$0x73625140]
      %v2315 = vld.sshfl [vmem:[#allocation1 + $0x30] sm:$0xff pattern:$0x73625140]
      %2316 = vst [vmem:[#allocation1] ss:$4 sm:$0xff] %v2097
      %2317 = vst [vmem:[%s2282] ss:$4 sm:$0xff] %v2100
      %2318 = vst [vmem:[%s2284] ss:$4 sm:$0xff] %v2103
      %2319 = vst [vmem:[%s2286] ss:$4 sm:$0xff] %v2105
      %2320 = vst [vmem:[%s2288] ss:$4 sm:$0xff] %v2107
      %2321 = vst [vmem:[%s2290] ss:$4 sm:$0xff] %v2110
      %2322 = vst [vmem:[%s2292] ss:$4 sm:$0xff] %v2113
      %2323 = vst [vmem:[%s2294] ss:$4 sm:$0xff] %v2116
      %v2324 = vld.sshfl [vmem:[#allocation1] sm:$0xff pattern:$0x73625140]
      %v2325 = vld.sshfl [vmem:[#allocation1 + $0x8] sm:$0xff pattern:$0x73625140]
      %v2326 = vld.sshfl [vmem:[#allocation1 + $0x10] sm:$0xff pattern:$0x73625140]
      %v2327 = vld.sshfl [vmem:[#allocation1 + $0x20] sm:$0xff pattern:$0x73625140]
      %v2328 = vld.sshfl [vmem:[#allocation1 + $0x28] sm:$0xff pattern:$0x73625140]
      %v2329 = vld.sshfl [vmem:[#allocation1 + $0x30] sm:$0xff pattern:$0x73625140]
      %2330 = vst [vmem:[#allocation1] ss:$4 sm:$0xff] %v2118
      %2331 = vst [vmem:[%s2282] ss:$4 sm:$0xff] %v2120
      %2332 = vst [vmem:[%s2284] ss:$4 sm:$0xff] %v2123
      %2333 = vst [vmem:[%s2286] ss:$4 sm:$0xff] %v2126
      %2334 = vst [vmem:[%s2288] ss:$4 sm:$0xff] %v2129
      %2335 = vst [vmem:[%s2290] ss:$4 sm:$0xff] %v2131
      %2336 = vst [vmem:[%s2292] ss:$4 sm:$0xff] %v2133
      %2337 = vst [vmem:[%s2294] ss:$4 sm:$0xff] %v2136
      %v2338 = vld.sshfl [vmem:[#allocation1] sm:$0xff pattern:$0x73625140]
      %v2339 = vld.sshfl [vmem:[#allocation1 + $0x8] sm:$0xff pattern:$0x73625140]
      %v2340 = vld.sshfl [vmem:[#allocation1 + $0x10] sm:$0xff pattern:$0x73625140]
      %v2341 = vld.sshfl [vmem:[#allocation1 + $0x20] sm:$0xff pattern:$0x73625140]
      %v2342 = vld.sshfl [vmem:[#allocation1 + $0x28] sm:$0xff pattern:$0x73625140]
      %v2343 = vld.sshfl [vmem:[#allocation1 + $0x30] sm:$0xff pattern:$0x73625140]
      %2344 = vst [vmem:[#allocation1] ss:$4 sm:$0xff] %v2139
      %2345 = vst [vmem:[%s2282] ss:$4 sm:$0xff] %v2142
      %2346 = vst [vmem:[%s2284] ss:$4 sm:$0xff] %v2144
      %2347 = vst [vmem:[%s2286] ss:$4 sm:$0xff] %v2146
      %2348 = vst [vmem:[%s2288] ss:$4 sm:$0xff] %v2149
      %2349 = vst [vmem:[%s2290] ss:$4 sm:$0xff] %v2152
      %2350 = vst [vmem:[%s2292] ss:$4 sm:$0xff] %v2155
      %2351 = vst [vmem:[%s2294] ss:$4 sm:$0xff] %v2157
      %v2352 = vld.sshfl [vmem:[#allocation1] sm:$0xff pattern:$0x73625140]
      %v2353 = vld.sshfl [vmem:[#allocation1 + $0x8] sm:$0xff pattern:$0x73625140]
      %v2354 = vld.sshfl [vmem:[#allocation1 + $0x10] sm:$0xff pattern:$0x73625140]
      %v2355 = vld.sshfl [vmem:[#allocation1 + $0x20] sm:$0xff pattern:$0x73625140]
      %v2356 = vld.sshfl [vmem:[#allocation1 + $0x28] sm:$0xff pattern:$0x73625140]
      %v2357 = vld.sshfl [vmem:[#allocation1 + $0x30] sm:$0xff pattern:$0x73625140]
      %2358 = vst [vmem:[#allocation1] ss:$4 sm:$0xff] %v2159
      %2359 = vst [vmem:[%s2282] ss:$4 sm:$0xff] %v2162
      %2360 = vst [vmem:[%s2284] ss:$4 sm:$0xff] %v2165
      %2361 = vst [vmem:[%s2286] ss:$4 sm:$0xff] %v2168
      %2362 = vst [vmem:[%s2288] ss:$4 sm:$0xff] %v2170
      %2363 = vst [vmem:[%s2290] ss:$4 sm:$0xff] %v2172
      %2364 = vst [vmem:[%s2292] ss:$4 sm:$0xff] %v2175
      %2365 = vst [vmem:[%s2294] ss:$4 sm:$0xff] %v2178
      %v2366 = vld.sshfl [vmem:[#allocation1] sm:$0xff pattern:$0x73625140]
      %v2367 = vld.sshfl [vmem:[#allocation1 + $0x8] sm:$0xff pattern:$0x73625140]
      %v2368 = vld.sshfl [vmem:[#allocation1 + $0x10] sm:$0xff pattern:$0x73625140]
      %v2369 = vld.sshfl [vmem:[#allocation1 + $0x20] sm:$0xff pattern:$0x73625140]
      %v2370 = vld.sshfl [vmem:[#allocation1 + $0x28] sm:$0xff pattern:$0x73625140]
      %v2371 = vld.sshfl [vmem:[#allocation1 + $0x30] sm:$0xff pattern:$0x73625140]
      %2372 = vst [vmem:[#allocation1] ss:$4 sm:$0xff] %v2181
      %2373 = vst [vmem:[%s2282] ss:$4 sm:$0xff] %v2183
      %v2374 = vld.sshfl [vmem:[#allocation1] sm:$0xff pattern:$0x73625140]
      %v2375 = vld.sshfl [vmem:[#allocation1 + $0x8] sm:$0xff pattern:$0x73625140]
      %v2376 = vld.sshfl [vmem:[#allocation1 + $0x10] sm:$0xff pattern:$0x73625140]
      %2416 = vmatpush.msra.mxu0 %v2215
      %2417 = vmatpush.msra.mxu0 %v2213
      %2418 = vmatpush.msra.mxu0 %v2211
      %2419 = vmatpush.msra.mxu0 %v2209
      %2420 = vmatpush.msra.mxu0 %v2207
      %2421 = vmatpush.msra.mxu0 %v2205
      %2422 = vmatpush.msra.mxu0 %v2203
      %2423 = vmatpush.msra.mxu0 %v2201
      %2424 = vmatpush.msra.mxu0 %v2199
      %2425 = vmatpush.msra.mxu0 %v2197
      %2426 = vmatpush.msra.mxu0 %v2195
      %2427 = vmatpush.msra.mxu0 %v2193
      %2428 = vmatpush.msra.mxu0 %v2191
      %2429 = vmatpush.msra.mxu0 %v2189
      %2430 = vmatpush.msra.mxu0 %v2187
      %2431 = vmatpush.msra.mxu0 %v2185
      %2432 = vmatmul.f32.gmra.mxu0 %v2296
      %v2433 = vpop.f32.mrf.mxu0
      %v2434 = vadd.f32 0.0, %v2433
      %2435 = vmatmul.f32.gmra.mxu0 %v2299
      %v2436 = vpop.f32.mrf.mxu0
      %v2437 = vadd.f32 0.0, %v2436
      %2438 = vmatmul.f32.gmra.mxu0 %v2310
      %v2439 = vpop.f32.mrf.mxu0
      %v2440 = vadd.f32 0.0, %v2439
      %2441 = vmatmul.f32.gmra.mxu0 %v2313
      %v2442 = vpop.f32.mrf.mxu0
      %v2443 = vadd.f32 0.0, %v2442
      %2444 = vmatmul.f32.gmra.mxu0 %v2324
      %v2445 = vpop.f32.mrf.mxu0
      %v2446 = vadd.f32 0.0, %v2445
      %2447 = vmatmul.f32.gmra.mxu0 %v2327
      %v2448 = vpop.f32.mrf.mxu0
      %v2449 = vadd.f32 0.0, %v2448
      %2450 = vmatmul.f32.gmra.mxu0 %v2338
      %v2451 = vpop.f32.mrf.mxu0
      %v2452 = vadd.f32 0.0, %v2451
      %2453 = vmatmul.f32.gmra.mxu0 %v2341
      %v2454 = vpop.f32.mrf.mxu0
      %v2455 = vadd.f32 0.0, %v2454
      %2456 = vmatmul.f32.gmra.mxu0 %v2352
      %v2457 = vpop.f32.mrf.mxu0
      %v2458 = vadd.f32 0.0, %v2457
      %2459 = vmatmul.f32.gmra.mxu0 %v2355
      %v2460 = vpop.f32.mrf.mxu0
      %v2461 = vadd.f32 0.0, %v2460
      %2462 = vmatmul.f32.gmra.mxu0 %v2366
      %v2463 = vpop.f32.mrf.mxu0
      %v2464 = vadd.f32 0.0, %v2463
      %2465 = vmatmul.f32.gmra.mxu0 %v2369
      %v2466 = vpop.f32.mrf.mxu0
      %v2467 = vadd.f32 0.0, %v2466
      %2468 = vmatmul.f32.gmra.mxu0 %v2374
      %v2469 = vpop.f32.mrf.mxu0
      %v2470 = vadd.f32 0.0, %v2469
      %2471 = vdwg.mxu0
      %2472 = vmatpush.msra.mxu0 %v2247
      %2473 = vmatpush.msra.mxu0 %v2245
      %2474 = vmatpush.msra.mxu0 %v2243
      %2475 = vmatpush.msra.mxu0 %v2241
      %2476 = vmatpush.msra.mxu0 %v2239
      %2477 = vmatpush.msra.mxu0 %v2237
      %2478 = vmatpush.msra.mxu0 %v2235
      %2479 = vmatpush.msra.mxu0 %v2233
      %2480 = vmatpush.msra.mxu0 %v2231
      %2481 = vmatpush.msra.mxu0 %v2229
      %2482 = vmatpush.msra.mxu0 %v2227
      %2483 = vmatpush.msra.mxu0 %v2225
      %2484 = vmatpush.msra.mxu0 %v2223
      %2485 = vmatpush.msra.mxu0 %v2221
      %2486 = vmatpush.msra.mxu0 %v2219
      %2487 = vmatpush.msra.mxu0 %v2217
      %2488 = vmatmul.f32.gmra.mxu0 %v2297
      %v2489 = vpop.f32.mrf.mxu0
      %v2490 = vadd.f32 %v2434, %v2489
      %2491 = vmatmul.f32.gmra.mxu0 %v2300
      %v2492 = vpop.f32.mrf.mxu0
      %v2493 = vadd.f32 %v2437, %v2492
      %2494 = vmatmul.f32.gmra.mxu0 %v2311
      %v2495 = vpop.f32.mrf.mxu0
      %v2496 = vadd.f32 %v2440, %v2495
      %2497 = vmatmul.f32.gmra.mxu0 %v2314
      %v2498 = vpop.f32.mrf.mxu0
      %v2499 = vadd.f32 %v2443, %v2498
      %2500 = vmatmul.f32.gmra.mxu0 %v2325
      %v2501 = vpop.f32.mrf.mxu0
      %v2502 = vadd.f32 %v2446, %v2501
      %2503 = vmatmul.f32.gmra.mxu0 %v2328
      %v2504 = vpop.f32.mrf.mxu0
      %v2505 = vadd.f32 %v2449, %v2504
      %2506 = vmatmul.f32.gmra.mxu0 %v2339
      %v2507 = vpop.f32.mrf.mxu0
      %v2508 = vadd.f32 %v2452, %v2507
      %2509 = vmatmul.f32.gmra.mxu0 %v2342
      %v2510 = vpop.f32.mrf.mxu0
      %v2511 = vadd.f32 %v2455, %v2510
      %2512 = vmatmul.f32.gmra.mxu0 %v2353
      %v2513 = vpop.f32.mrf.mxu0
      %v2514 = vadd.f32 %v2458, %v2513
      %2515 = vmatmul.f32.gmra.mxu0 %v2356
      %v2516 = vpop.f32.mrf.mxu0
      %v2517 = vadd.f32 %v2461, %v2516
      %2518 = vmatmul.f32.gmra.mxu0 %v2367
      %v2519 = vpop.f32.mrf.mxu0
      %v2520 = vadd.f32 %v2464, %v2519
      %2521 = vmatmul.f32.gmra.mxu0 %v2370
      %v2522 = vpop.f32.mrf.mxu0
      %v2523 = vadd.f32 %v2467, %v2522
      %2524 = vmatmul.f32.gmra.mxu0 %v2375
      %v2525 = vpop.f32.mrf.mxu0
      %v2526 = vadd.f32 %v2470, %v2525
      %2527 = vdwg.mxu0
      %2528 = vmatpush.msra.mxu0 %v2279
      %2529 = vmatpush.msra.mxu0 %v2277
      %2530 = vmatpush.msra.mxu0 %v2275
      %2531 = vmatpush.msra.mxu0 %v2273
      %2532 = vmatpush.msra.mxu0 %v2271
      %2533 = vmatpush.msra.mxu0 %v2269
      %2534 = vmatpush.msra.mxu0 %v2267
      %2535 = vmatpush.msra.mxu0 %v2265
      %2536 = vmatpush.msra.mxu0 %v2263
      %2537 = vmatpush.msra.mxu0 %v2261
      %2538 = vmatpush.msra.mxu0 %v2259
      %2539 = vmatpush.msra.mxu0 %v2257
      %2540 = vmatpush.msra.mxu0 %v2255
      %2541 = vmatpush.msra.mxu0 %v2253
      %2542 = vmatpush.msra.mxu0 %v2251
      %2543 = vmatpush.msra.mxu0 %v2249
      %2544 = vmatmul.f32.gmra.mxu0 %v2298
      %v2545 = vpop.f32.mrf.mxu0
      %v2546 = vadd.f32 %v2490, %v2545
      %2547 = vmatmul.f32.gmra.mxu0 %v2301
      %v2548 = vpop.f32.mrf.mxu0
      %v2549 = vadd.f32 %v2493, %v2548
      %2550 = vmatmul.f32.gmra.mxu0 %v2312
      %v2551 = vpop.f32.mrf.mxu0
      %v2552 = vadd.f32 %v2496, %v2551
      %2553 = vmatmul.f32.gmra.mxu0 %v2315
      %v2554 = vpop.f32.mrf.mxu0
      %v2555 = vadd.f32 %v2499, %v2554
      %2556 = vmatmul.f32.gmra.mxu0 %v2326
      %v2557 = vpop.f32.mrf.mxu0
      %v2558 = vadd.f32 %v2502, %v2557
      %2559 = vmatmul.f32.gmra.mxu0 %v2329
      %v2560 = vpop.f32.mrf.mxu0
      %v2561 = vadd.f32 %v2505, %v2560
      %2562 = vmatmul.f32.gmra.mxu0 %v2340
      %v2563 = vpop.f32.mrf.mxu0
      %v2564 = vadd.f32 %v2508, %v2563
      %2565 = vmatmul.f32.gmra.mxu0 %v2343
      %v2566 = vpop.f32.mrf.mxu0
      %v2567 = vadd.f32 %v2511, %v2566
      %2568 = vmatmul.f32.gmra.mxu0 %v2354
      %v2569 = vpop.f32.mrf.mxu0
      %v2570 = vadd.f32 %v2514, %v2569
      %2571 = vmatmul.f32.gmra.mxu0 %v2357
      %v2572 = vpop.f32.mrf.mxu0
      %v2573 = vadd.f32 %v2517, %v2572
      %2574 = vmatmul.f32.gmra.mxu0 %v2368
      %v2575 = vpop.f32.mrf.mxu0
      %v2576 = vadd.f32 %v2520, %v2575
      %2577 = vmatmul.f32.gmra.mxu0 %v2371
      %v2578 = vpop.f32.mrf.mxu0
      %v2579 = vadd.f32 %v2523, %v2578
      %2580 = vmatmul.f32.gmra.mxu0 %v2376
      %v2581 = vpop.f32.mrf.mxu0
      %v2582 = vadd.f32 %v2526, %v2581
      %2583 = vdwg.mxu0
      %2584 = vmatpush.msra.mxu0 %v2216
      %2585 = vmatpush.msra.mxu0 %v2214
      %2586 = vmatpush.msra.mxu0 %v2212
      %2587 = vmatpush.msra.mxu0 %v2210
      %2588 = vmatpush.msra.mxu0 %v2208
      %2589 = vmatpush.msra.mxu0 %v2206
      %2590 = vmatpush.msra.mxu0 %v2204
      %2591 = vmatpush.msra.mxu0 %v2202
      %2592 = vmatpush.msra.mxu0 %v2200
      %2593 = vmatpush.msra.mxu0 %v2198
      %2594 = vmatpush.msra.mxu0 %v2196
      %2595 = vmatpush.msra.mxu0 %v2194
      %2596 = vmatpush.msra.mxu0 %v2192
      %2597 = vmatpush.msra.mxu0 %v2190
      %2598 = vmatpush.msra.mxu0 %v2188
      %2599 = vmatpush.msra.mxu0 %v2186
      %2600 = vmatmul.f32.gmra.mxu0 %v2296
      %v2601 = vpop.f32.mrf.mxu0
      %v2602 = vadd.f32 0.0, %v2601
      %2603 = vmatmul.f32.gmra.mxu0 %v2299
      %v2604 = vpop.f32.mrf.mxu0
      %v2605 = vadd.f32 0.0, %v2604
      %2606 = vmatmul.f32.gmra.mxu0 %v2310
      %v2607 = vpop.f32.mrf.mxu0
      %v2608 = vadd.f32 0.0, %v2607
      %2609 = vmatmul.f32.gmra.mxu0 %v2313
      %v2610 = vpop.f32.mrf.mxu0
      %v2611 = vadd.f32 0.0, %v2610
      %2612 = vmatmul.f32.gmra.mxu0 %v2324
      %v2613 = vpop.f32.mrf.mxu0
      %v2614 = vadd.f32 0.0, %v2613
      %2615 = vmatmul.f32.gmra.mxu0 %v2327
      %v2616 = vpop.f32.mrf.mxu0
      %v2617 = vadd.f32 0.0, %v2616
      %2618 = vmatmul.f32.gmra.mxu0 %v2338
      %v2619 = vpop.f32.mrf.mxu0
      %v2620 = vadd.f32 0.0, %v2619
      %2621 = vmatmul.f32.gmra.mxu0 %v2341
      %v2622 = vpop.f32.mrf.mxu0
      %v2623 = vadd.f32 0.0, %v2622
      %2624 = vmatmul.f32.gmra.mxu0 %v2352
      %v2625 = vpop.f32.mrf.mxu0
      %v2626 = vadd.f32 0.0, %v2625
      %2627 = vmatmul.f32.gmra.mxu0 %v2355
      %v2628 = vpop.f32.mrf.mxu0
      %v2629 = vadd.f32 0.0, %v2628
      %2630 = vmatmul.f32.gmra.mxu0 %v2366
      %v2631 = vpop.f32.mrf.mxu0
      %v2632 = vadd.f32 0.0, %v2631
      %2633 = vmatmul.f32.gmra.mxu0 %v2369
      %v2634 = vpop.f32.mrf.mxu0
      %v2635 = vadd.f32 0.0, %v2634
      %2636 = vmatmul.f32.gmra.mxu0 %v2374
      %v2637 = vpop.f32.mrf.mxu0
      %v2638 = vadd.f32 0.0, %v2637
      %2639 = vdwg.mxu0
      %2640 = vmatpush.msra.mxu0 %v2248
      %2641 = vmatpush.msra.mxu0 %v2246
      %2642 = vmatpush.msra.mxu0 %v2244
      %2643 = vmatpush.msra.mxu0 %v2242
      %2644 = vmatpush.msra.mxu0 %v2240
      %2645 = vmatpush.msra.mxu0 %v2238
      %2646 = vmatpush.msra.mxu0 %v2236
      %2647 = vmatpush.msra.mxu0 %v2234
      %2648 = vmatpush.msra.mxu0 %v2232
      %2649 = vmatpush.msra.mxu0 %v2230
      %2650 = vmatpush.msra.mxu0 %v2228
      %2651 = vmatpush.msra.mxu0 %v2226
      %2652 = vmatpush.msra.mxu0 %v2224
      %2653 = vmatpush.msra.mxu0 %v2222
      %2654 = vmatpush.msra.mxu0 %v2220
      %2655 = vmatpush.msra.mxu0 %v2218
      %2656 = vmatmul.f32.gmra.mxu0 %v2297
      %v2657 = vpop.f32.mrf.mxu0
      %v2658 = vadd.f32 %v2602, %v2657
      %2659 = vmatmul.f32.gmra.mxu0 %v2300
      %v2660 = vpop.f32.mrf.mxu0
      %v2661 = vadd.f32 %v2605, %v2660
      %2662 = vmatmul.f32.gmra.mxu0 %v2311
      %v2663 = vpop.f32.mrf.mxu0
      %v2664 = vadd.f32 %v2608, %v2663
      %2665 = vmatmul.f32.gmra.mxu0 %v2314
      %v2666 = vpop.f32.mrf.mxu0
      %v2667 = vadd.f32 %v2611, %v2666
      %2668 = vmatmul.f32.gmra.mxu0 %v2325
      %v2669 = vpop.f32.mrf.mxu0
      %v2670 = vadd.f32 %v2614, %v2669
      %2671 = vmatmul.f32.gmra.mxu0 %v2328
      %v2672 = vpop.f32.mrf.mxu0
      %v2673 = vadd.f32 %v2617, %v2672
      %2674 = vmatmul.f32.gmra.mxu0 %v2339
      %v2675 = vpop.f32.mrf.mxu0
      %v2676 = vadd.f32 %v2620, %v2675
      %2677 = vmatmul.f32.gmra.mxu0 %v2342
      %v2678 = vpop.f32.mrf.mxu0
      %v2679 = vadd.f32 %v2623, %v2678
      %2680 = vmatmul.f32.gmra.mxu0 %v2353
      %v2681 = vpop.f32.mrf.mxu0
      %v2682 = vadd.f32 %v2626, %v2681
      %2683 = vmatmul.f32.gmra.mxu0 %v2356
      %v2684 = vpop.f32.mrf.mxu0
      %v2685 = vadd.f32 %v2629, %v2684
      %2686 = vmatmul.f32.gmra.mxu0 %v2367
      %v2687 = vpop.f32.mrf.mxu0
      %v2688 = vadd.f32 %v2632, %v2687
      %2689 = vmatmul.f32.gmra.mxu0 %v2370
      %v2690 = vpop.f32.mrf.mxu0
      %v2691 = vadd.f32 %v2635, %v2690
      %2692 = vmatmul.f32.gmra.mxu0 %v2375
      %v2693 = vpop.f32.mrf.mxu0
      %v2694 = vadd.f32 %v2638, %v2693
      %2695 = vdwg.mxu0
      %2696 = vmatpush.msra.mxu0 %v2280
      %2697 = vmatpush.msra.mxu0 %v2278
      %2698 = vmatpush.msra.mxu0 %v2276
      %2699 = vmatpush.msra.mxu0 %v2274
      %2700 = vmatpush.msra.mxu0 %v2272
      %2701 = vmatpush.msra.mxu0 %v2270
      %2702 = vmatpush.msra.mxu0 %v2268
      %2703 = vmatpush.msra.mxu0 %v2266
      %2704 = vmatpush.msra.mxu0 %v2264
      %2705 = vmatpush.msra.mxu0 %v2262
      %2706 = vmatpush.msra.mxu0 %v2260
      %2707 = vmatpush.msra.mxu0 %v2258
      %2708 = vmatpush.msra.mxu0 %v2256
      %2709 = vmatpush.msra.mxu0 %v2254
      %2710 = vmatpush.msra.mxu0 %v2252
      %2711 = vmatpush.msra.mxu0 %v2250
      %2712 = vmatmul.f32.gmra.mxu0 %v2298
      %v2713 = vpop.f32.mrf.mxu0
      %v2714 = vadd.f32 %v2658, %v2713
      %2715 = vmatmul.f32.gmra.mxu0 %v2301
      %v2716 = vpop.f32.mrf.mxu0
      %v2717 = vadd.f32 %v2661, %v2716
      %2718 = vmatmul.f32.gmra.mxu0 %v2312
      %v2719 = vpop.f32.mrf.mxu0
      %v2720 = vadd.f32 %v2664, %v2719
      %2721 = vmatmul.f32.gmra.mxu0 %v2315
      %v2722 = vpop.f32.mrf.mxu0
      %v2723 = vadd.f32 %v2667, %v2722
      %2724 = vmatmul.f32.gmra.mxu0 %v2326
      %v2725 = vpop.f32.mrf.mxu0
      %v2726 = vadd.f32 %v2670, %v2725
      %2727 = vmatmul.f32.gmra.mxu0 %v2329
      %v2728 = vpop.f32.mrf.mxu0
      %v2729 = vadd.f32 %v2673, %v2728
      %2730 = vmatmul.f32.gmra.mxu0 %v2340
      %v2731 = vpop.f32.mrf.mxu0
      %v2732 = vadd.f32 %v2676, %v2731
      %2733 = vmatmul.f32.gmra.mxu0 %v2343
      %v2734 = vpop.f32.mrf.mxu0
      %v2735 = vadd.f32 %v2679, %v2734
      %2736 = vmatmul.f32.gmra.mxu0 %v2354
      %v2737 = vpop.f32.mrf.mxu0
      %v2738 = vadd.f32 %v2682, %v2737
      %2739 = vmatmul.f32.gmra.mxu0 %v2357
      %v2740 = vpop.f32.mrf.mxu0
      %v2741 = vadd.f32 %v2685, %v2740
      %2742 = vmatmul.f32.gmra.mxu0 %v2368
      %v2743 = vpop.f32.mrf.mxu0
      %v2744 = vadd.f32 %v2688, %v2743
      %2745 = vmatmul.f32.gmra.mxu0 %v2371
      %v2746 = vpop.f32.mrf.mxu0
      %v2747 = vadd.f32 %v2691, %v2746
      %2748 = vmatmul.f32.gmra.mxu0 %v2376
      %v2749 = vpop.f32.mrf.mxu0
      %v2750 = vadd.f32 %v2694, %v2749
      %2751 = vdwg.mxu0
      %v2752 = vadd.f32 %v1705, %v2546
      %v2753 = vadd.f32 %v1873, %v2714
      %v2754 = vadd.f32 %v1708, %v2549
      %v2755 = vadd.f32 %v1876, %v2717
      %v2756 = vadd.f32 %v1711, %v2552
      %v2757 = vadd.f32 %v1879, %v2720
      %v2758 = vadd.f32 %v1714, %v2555
      %v2759 = vadd.f32 %v1882, %v2723
      %v2760 = vadd.f32 %v1717, %v2558
      %v2761 = vadd.f32 %v1885, %v2726
      %v2762 = vadd.f32 %v1720, %v2561
      %v2763 = vadd.f32 %v1888, %v2729
      %v2764 = vadd.f32 %v1723, %v2564
      %v2765 = vadd.f32 %v1891, %v2732
      %v2766 = vadd.f32 %v1726, %v2567
      %v2767 = vadd.f32 %v1894, %v2735
      %v2768 = vadd.f32 %v1729, %v2570
      %v2769 = vadd.f32 %v1897, %v2738
      %v2770 = vadd.f32 %v1732, %v2573
      %v2771 = vadd.f32 %v1900, %v2741
      %v2772 = vadd.f32 %v1735, %v2576
      %v2773 = vadd.f32 %v1903, %v2744
      %v2774 = vadd.f32 %v1738, %v2579
      %v2775 = vadd.f32 %v1906, %v2747
      %v2776 = vadd.f32 %v1741, %v2582
      %v2777 = vadd.f32 %v1909, %v2750
      %v2778 = vld [vmem:[%s2] sm:$0x3]
      %v2780 = vperm.slane %v2778, 0
      %v2781 = vperm.slane %v2778, 1
      %v2784 = vmul.f32 %v2752, %v2780
      %v2785 = vmul.f32 %v2753, %v2781
      %v2786 = vmul.f32 %v2754, %v2780
      %v2787 = vmul.f32 %v2755, %v2781
      %v2788 = vmul.f32 %v2756, %v2780
      %v2789 = vmul.f32 %v2757, %v2781
      %v2790 = vmul.f32 %v2758, %v2780
      %v2791 = vmul.f32 %v2759, %v2781
      %v2792 = vmul.f32 %v2760, %v2780
      %v2793 = vmul.f32 %v2761, %v2781
      %v2794 = vmul.f32 %v2762, %v2780
      %v2795 = vmul.f32 %v2763, %v2781
      %v2796 = vmul.f32 %v2764, %v2780
      %v2797 = vmul.f32 %v2765, %v2781
      %v2798 = vmul.f32 %v2766, %v2780
      %v2799 = vmul.f32 %v2767, %v2781
      %v2800 = vmul.f32 %v2768, %v2780
      %v2801 = vmul.f32 %v2769, %v2781
      %v2802 = vmul.f32 %v2770, %v2780
      %v2803 = vmul.f32 %v2771, %v2781
      %v2804 = vmul.f32 %v2772, %v2780
      %v2805 = vmul.f32 %v2773, %v2781
      %v2806 = vmul.f32 %v2774, %v2780
      %v2807 = vmul.f32 %v2775, %v2781
      %v2808 = vmul.f32 %v2776, %v2780
      %v2809 = vmul.f32 %v2777, %v2781
      %v2810 = vld [vmem:[%s3] sm:$0x3]
      %v2812 = vperm.slane %v2810, 0
      %v2813 = vperm.slane %v2810, 1
      %v2816 = vadd.f32 %v2784, %v2812
      %v2817 = vadd.f32 %v2785, %v2813
      %v2818 = vadd.f32 %v2786, %v2812
      %v2819 = vadd.f32 %v2787, %v2813
      %v2820 = vadd.f32 %v2788, %v2812
      %v2821 = vadd.f32 %v2789, %v2813
      %v2822 = vadd.f32 %v2790, %v2812
      %v2823 = vadd.f32 %v2791, %v2813
      %v2824 = vadd.f32 %v2792, %v2812
      %v2825 = vadd.f32 %v2793, %v2813
      %v2826 = vadd.f32 %v2794, %v2812
      %v2827 = vadd.f32 %v2795, %v2813
      %v2828 = vadd.f32 %v2796, %v2812
      %v2829 = vadd.f32 %v2797, %v2813
      %v2830 = vadd.f32 %v2798, %v2812
      %v2831 = vadd.f32 %v2799, %v2813
      %v2832 = vadd.f32 %v2800, %v2812
      %v2833 = vadd.f32 %v2801, %v2813
      %v2834 = vadd.f32 %v2802, %v2812
      %v2835 = vadd.f32 %v2803, %v2813
      %v2836 = vadd.f32 %v2804, %v2812
      %v2837 = vadd.f32 %v2805, %v2813
      %v2838 = vadd.f32 %v2806, %v2812
      %v2839 = vadd.f32 %v2807, %v2813
      %v2840 = vadd.f32 %v2808, %v2812
      %v2841 = vadd.f32 %v2809, %v2813
      %v2842 = vmax.f32 %v2816, 0.0
      %v2843 = vmax.f32 %v2817, 0.0
      %v2844 = vmax.f32 %v2818, 0.0
      %v2845 = vmax.f32 %v2819, 0.0
      %v2846 = vmax.f32 %v2820, 0.0
      %v2847 = vmax.f32 %v2821, 0.0
      %v2848 = vmax.f32 %v2822, 0.0
      %v2849 = vmax.f32 %v2823, 0.0
      %v2850 = vmax.f32 %v2824, 0.0
      %v2851 = vmax.f32 %v2825, 0.0
      %v2852 = vmax.f32 %v2826, 0.0
      %v2853 = vmax.f32 %v2827, 0.0
      %v2854 = vmax.f32 %v2828, 0.0
      %v2855 = vmax.f32 %v2829, 0.0
      %v2856 = vmax.f32 %v2830, 0.0
      %v2857 = vmax.f32 %v2831, 0.0
      %v2858 = vmax.f32 %v2832, 0.0
      %v2859 = vmax.f32 %v2833, 0.0
      %v2860 = vmax.f32 %v2834, 0.0
      %v2861 = vmax.f32 %v2835, 0.0
      %v2862 = vmax.f32 %v2836, 0.0
      %v2863 = vmax.f32 %v2837, 0.0
      %v2864 = vmax.f32 %v2838, 0.0
      %v2865 = vmax.f32 %v2839, 0.0
      %v2866 = vmax.f32 %v2840, 0.0
      %v2867 = vmax.f32 %v2841, 0.0
      %v2894 = vrot.slane %v2843, 6
      %v2895 = vrot.slane %v2845, 6
      %v2896 = vrot.slane %v2847, 6
      %v2897 = vrot.slane %v2849, 6
      %v2898 = vrot.slane %v2851, 6
      %v2899 = vrot.slane %v2853, 6
      %v2900 = vrot.slane %v2855, 6
      %v2901 = vrot.slane %v2857, 6
      %v2902 = vrot.slane %v2859, 6
      %v2903 = vrot.slane %v2861, 6
      %v2904 = vrot.slane %v2863, 6
      %v2905 = vrot.slane %v2865, 6
      %v2906 = vrot.slane %v2867, 6
      %v2907 = vsel %vm368, %v2842, %v2894
      %v2908 = vsel %vm372, %v2842, %v2894
      %v2909 = vrot.slane %v2908, 2
      %v2910 = vsel %vm377, %v2842, %v2894
      %v2911 = vrot.slane %v2910, 4
      %v2912 = vsel %vm297, %v2894, %v2842
      %v2913 = vrot.slane %v2912, 6
      %v2914 = vsel %vm368, %v2844, %v2895
      %v2915 = vsel %vm372, %v2844, %v2895
      %v2916 = vrot.slane %v2915, 2
      %v2917 = vsel %vm377, %v2844, %v2895
      %v2918 = vrot.slane %v2917, 4
      %v2919 = vsel %vm297, %v2895, %v2844
      %v2920 = vrot.slane %v2919, 6
      %v2921 = vsel %vm368, %v2846, %v2896
      %v2922 = vsel %vm372, %v2846, %v2896
      %v2923 = vrot.slane %v2922, 2
      %v2924 = vsel %vm377, %v2846, %v2896
      %v2925 = vrot.slane %v2924, 4
      %v2926 = vsel %vm297, %v2896, %v2846
      %v2927 = vrot.slane %v2926, 6
      %v2928 = vsel %vm368, %v2848, %v2897
      %v2929 = vsel %vm372, %v2848, %v2897
      %v2930 = vrot.slane %v2929, 2
      %v2931 = vsel %vm377, %v2848, %v2897
      %v2932 = vrot.slane %v2931, 4
      %v2933 = vsel %vm297, %v2897, %v2848
      %v2934 = vrot.slane %v2933, 6
      %v2935 = vsel %vm368, %v2850, %v2898
      %v2936 = vsel %vm372, %v2850, %v2898
      %v2937 = vrot.slane %v2936, 2
      %v2938 = vsel %vm377, %v2850, %v2898
      %v2939 = vrot.slane %v2938, 4
      %v2940 = vsel %vm297, %v2898, %v2850
      %v2941 = vrot.slane %v2940, 6
      %v2942 = vsel %vm368, %v2852, %v2899
      %v2943 = vsel %vm372, %v2852, %v2899
      %v2944 = vrot.slane %v2943, 2
      %v2945 = vsel %vm377, %v2852, %v2899
      %v2946 = vrot.slane %v2945, 4
      %v2947 = vsel %vm297, %v2899, %v2852
      %v2948 = vrot.slane %v2947, 6
      %v2949 = vsel %vm368, %v2854, %v2900
      %v2950 = vsel %vm372, %v2854, %v2900
      %v2951 = vrot.slane %v2950, 2
      %v2952 = vsel %vm377, %v2854, %v2900
      %v2953 = vrot.slane %v2952, 4
      %v2954 = vsel %vm297, %v2900, %v2854
      %v2955 = vrot.slane %v2954, 6
      %v2956 = vsel %vm368, %v2856, %v2901
      %v2957 = vsel %vm372, %v2856, %v2901
      %v2958 = vrot.slane %v2957, 2
      %v2959 = vsel %vm377, %v2856, %v2901
      %v2960 = vrot.slane %v2959, 4
      %v2961 = vsel %vm297, %v2901, %v2856
      %v2962 = vrot.slane %v2961, 6
      %v2963 = vsel %vm368, %v2858, %v2902
      %v2964 = vsel %vm372, %v2858, %v2902
      %v2965 = vrot.slane %v2964, 2
      %v2966 = vsel %vm377, %v2858, %v2902
      %v2967 = vrot.slane %v2966, 4
      %v2968 = vsel %vm297, %v2902, %v2858
      %v2969 = vrot.slane %v2968, 6
      %v2970 = vsel %vm368, %v2860, %v2903
      %v2971 = vsel %vm372, %v2860, %v2903
      %v2972 = vrot.slane %v2971, 2
      %v2973 = vsel %vm377, %v2860, %v2903
      %v2974 = vrot.slane %v2973, 4
      %v2975 = vsel %vm297, %v2903, %v2860
      %v2976 = vrot.slane %v2975, 6
      %v2977 = vsel %vm368, %v2862, %v2904
      %v2978 = vsel %vm372, %v2862, %v2904
      %v2979 = vrot.slane %v2978, 2
      %v2980 = vsel %vm377, %v2862, %v2904
      %v2981 = vrot.slane %v2980, 4
      %v2982 = vsel %vm297, %v2904, %v2862
      %v2983 = vrot.slane %v2982, 6
      %v2984 = vsel %vm368, %v2864, %v2905
      %v2985 = vsel %vm372, %v2864, %v2905
      %v2986 = vrot.slane %v2985, 2
      %v2987 = vsel %vm377, %v2864, %v2905
      %v2988 = vrot.slane %v2987, 4
      %v2989 = vsel %vm297, %v2905, %v2864
      %v2990 = vrot.slane %v2989, 6
      %v2991 = vsel %vm368, %v2866, %v2906
      %v2992 = vsel %vm372, %v2866, %v2906
      %v2993 = vrot.slane %v2992, 2
      %2994 = vst [vmem:[#allocation1] ss:$4 sm:$0xff] %v2907
      %s2995 = scalar_lea.vmem [#allocation1], 1
      %2996 = vst [vmem:[%s2995] ss:$4 sm:$0xff] %v2909
      %s2997 = scalar_lea.vmem [#allocation1], 2
      %2998 = vst [vmem:[%s2997] ss:$4 sm:$0xff] %v2911
      %s2999 = scalar_lea.vmem [#allocation1], 3
      %3000 = vst [vmem:[%s2999] ss:$4 sm:$0xff] %v2913
      %s3001 = scalar_lea.vmem [#allocation1], 32
      %3002 = vst [vmem:[%s3001] ss:$4 sm:$0xff] %v2914
      %v3003 = vld.sshfl [vmem:[#allocation1] sm:$0xff pattern:$0x73625140]
      %v3004 = vld.sshfl [vmem:[#allocation1 + $0x8] sm:$0xff pattern:$0x73625140]
      %v3005 = vld.sshfl [vmem:[#allocation1 + $0x20] sm:$0xff pattern:$0x73625140]
      %v3006 = vld.sshfl [vmem:[#allocation1 + $0x28] sm:$0xff pattern:$0x73625140]
      %3007 = vst [vmem:[#allocation1] ss:$4 sm:$0xff] %v2916
      %3008 = vst [vmem:[%s2995] ss:$4 sm:$0xff] %v2918
      %3009 = vst [vmem:[%s2997] ss:$4 sm:$0xff] %v2920
      %3010 = vst [vmem:[%s2999] ss:$4 sm:$0xff] %v2921
      %3011 = vst [vmem:[%s3001] ss:$4 sm:$0xff] %v2923
      %v3012 = vld.sshfl [vmem:[#allocation1] sm:$0xff pattern:$0x73625140]
      %v3013 = vld.sshfl [vmem:[#allocation1 + $0x8] sm:$0xff pattern:$0x73625140]
      %v3014 = vld.sshfl [vmem:[#allocation1 + $0x20] sm:$0xff pattern:$0x73625140]
      %v3015 = vld.sshfl [vmem:[#allocation1 + $0x28] sm:$0xff pattern:$0x73625140]
      %3016 = vst [vmem:[#allocation1] ss:$4 sm:$0xff] %v2925
      %3017 = vst [vmem:[%s2995] ss:$4 sm:$0xff] %v2927
      %3018 = vst [vmem:[%s2997] ss:$4 sm:$0xff] %v2928
      %3019 = vst [vmem:[%s2999] ss:$4 sm:$0xff] %v2930
      %3020 = vst [vmem:[%s3001] ss:$4 sm:$0xff] %v2932
      %v3021 = vld.sshfl [vmem:[#allocation1] sm:$0xff pattern:$0x73625140]
      %v3022 = vld.sshfl [vmem:[#allocation1 + $0x8] sm:$0xff pattern:$0x73625140]
      %v3023 = vld.sshfl [vmem:[#allocation1 + $0x20] sm:$0xff pattern:$0x73625140]
      %v3024 = vld.sshfl [vmem:[#allocation1 + $0x28] sm:$0xff pattern:$0x73625140]
      %3025 = vst [vmem:[#allocation1] ss:$4 sm:$0xff] %v2934
      %3026 = vst [vmem:[%s2995] ss:$4 sm:$0xff] %v2935
      %3027 = vst [vmem:[%s2997] ss:$4 sm:$0xff] %v2937
      %3028 = vst [vmem:[%s2999] ss:$4 sm:$0xff] %v2939
      %3029 = vst [vmem:[%s3001] ss:$4 sm:$0xff] %v2941
      %v3030 = vld.sshfl [vmem:[#allocation1] sm:$0xff pattern:$0x73625140]
      %v3031 = vld.sshfl [vmem:[#allocation1 + $0x8] sm:$0xff pattern:$0x73625140]
      %v3032 = vld.sshfl [vmem:[#allocation1 + $0x20] sm:$0xff pattern:$0x73625140]
      %v3033 = vld.sshfl [vmem:[#allocation1 + $0x28] sm:$0xff pattern:$0x73625140]
      %3034 = vst [vmem:[#allocation1] ss:$4 sm:$0xff] %v2942
      %3035 = vst [vmem:[%s2995] ss:$4 sm:$0xff] %v2944
      %3036 = vst [vmem:[%s2997] ss:$4 sm:$0xff] %v2946
      %3037 = vst [vmem:[%s2999] ss:$4 sm:$0xff] %v2948
      %3038 = vst [vmem:[%s3001] ss:$4 sm:$0xff] %v2949
      %v3039 = vld.sshfl [vmem:[#allocation1] sm:$0xff pattern:$0x73625140]
      %v3040 = vld.sshfl [vmem:[#allocation1 + $0x8] sm:$0xff pattern:$0x73625140]
      %v3041 = vld.sshfl [vmem:[#allocation1 + $0x20] sm:$0xff pattern:$0x73625140]
      %v3042 = vld.sshfl [vmem:[#allocation1 + $0x28] sm:$0xff pattern:$0x73625140]
      %3043 = vst [vmem:[#allocation1] ss:$4 sm:$0xff] %v2951
      %3044 = vst [vmem:[%s2995] ss:$4 sm:$0xff] %v2953
      %3045 = vst [vmem:[%s2997] ss:$4 sm:$0xff] %v2955
      %3046 = vst [vmem:[%s2999] ss:$4 sm:$0xff] %v2956
      %3047 = vst [vmem:[%s3001] ss:$4 sm:$0xff] %v2958
      %v3048 = vld.sshfl [vmem:[#allocation1] sm:$0xff pattern:$0x73625140]
      %v3049 = vld.sshfl [vmem:[#allocation1 + $0x8] sm:$0xff pattern:$0x73625140]
      %v3050 = vld.sshfl [vmem:[#allocation1 + $0x20] sm:$0xff pattern:$0x73625140]
      %v3051 = vld.sshfl [vmem:[#allocation1 + $0x28] sm:$0xff pattern:$0x73625140]
      %3052 = vst [vmem:[#allocation1] ss:$4 sm:$0xff] %v2960
      %3053 = vst [vmem:[%s2995] ss:$4 sm:$0xff] %v2962
      %3054 = vst [vmem:[%s2997] ss:$4 sm:$0xff] %v2963
      %3055 = vst [vmem:[%s2999] ss:$4 sm:$0xff] %v2965
      %3056 = vst [vmem:[%s3001] ss:$4 sm:$0xff] %v2967
      %v3057 = vld.sshfl [vmem:[#allocation1] sm:$0xff pattern:$0x73625140]
      %v3058 = vld.sshfl [vmem:[#allocation1 + $0x8] sm:$0xff pattern:$0x73625140]
      %v3059 = vld.sshfl [vmem:[#allocation1 + $0x20] sm:$0xff pattern:$0x73625140]
      %v3060 = vld.sshfl [vmem:[#allocation1 + $0x28] sm:$0xff pattern:$0x73625140]
      %3061 = vst [vmem:[#allocation1] ss:$4 sm:$0xff] %v2969
      %3062 = vst [vmem:[%s2995] ss:$4 sm:$0xff] %v2970
      %3063 = vst [vmem:[%s2997] ss:$4 sm:$0xff] %v2972
      %3064 = vst [vmem:[%s2999] ss:$4 sm:$0xff] %v2974
      %3065 = vst [vmem:[%s3001] ss:$4 sm:$0xff] %v2976
      %v3066 = vld.sshfl [vmem:[#allocation1] sm:$0xff pattern:$0x73625140]
      %v3067 = vld.sshfl [vmem:[#allocation1 + $0x8] sm:$0xff pattern:$0x73625140]
      %v3068 = vld.sshfl [vmem:[#allocation1 + $0x20] sm:$0xff pattern:$0x73625140]
      %v3069 = vld.sshfl [vmem:[#allocation1 + $0x28] sm:$0xff pattern:$0x73625140]
      %3070 = vst [vmem:[#allocation1] ss:$4 sm:$0xff] %v2977
      %3071 = vst [vmem:[%s2995] ss:$4 sm:$0xff] %v2979
      %3072 = vst [vmem:[%s2997] ss:$4 sm:$0xff] %v2981
      %3073 = vst [vmem:[%s2999] ss:$4 sm:$0xff] %v2983
      %3074 = vst [vmem:[%s3001] ss:$4 sm:$0xff] %v2984
      %v3075 = vld.sshfl [vmem:[#allocation1] sm:$0xff pattern:$0x73625140]
      %v3076 = vld.sshfl [vmem:[#allocation1 + $0x8] sm:$0xff pattern:$0x73625140]
      %v3077 = vld.sshfl [vmem:[#allocation1 + $0x20] sm:$0xff pattern:$0x73625140]
      %v3078 = vld.sshfl [vmem:[#allocation1 + $0x28] sm:$0xff pattern:$0x73625140]
      %3079 = vst [vmem:[#allocation1] ss:$4 sm:$0xff] %v2986
      %3080 = vst [vmem:[%s2995] ss:$4 sm:$0xff] %v2988
      %3081 = vst [vmem:[%s2997] ss:$4 sm:$0xff] %v2990
      %3082 = vst [vmem:[%s2999] ss:$4 sm:$0xff] %v2991
      %3083 = vst [vmem:[%s3001] ss:$4 sm:$0xff] %v2993
      %v3084 = vld.sshfl [vmem:[#allocation1] sm:$0xff pattern:$0x73625140]
      %v3085 = vld.sshfl [vmem:[#allocation1 + $0x8] sm:$0xff pattern:$0x73625140]
      %v3086 = vld.sshfl [vmem:[#allocation1 + $0x20] sm:$0xff pattern:$0x73625140]
      %v3087 = vld.sshfl [vmem:[#allocation1 + $0x28] sm:$0xff pattern:$0x73625140]
      %3128 = vst [vmem:[%s221] sm:$0xff] %v3003
      %3129 = vst [vmem:[%s221 + $0x8] sm:$0xff] %v3004
      %3130 = vst [vmem:[%s221 + $0x10] sm:$0x3] %v3005
      %3131 = vst [vmem:[%s221 + $0x18] sm:$0x3] %v3006
      %3132 = vst [vmem:[%s221 + $0x20] sm:$0xff] %v3012
      %3133 = vst [vmem:[%s221 + $0x28] sm:$0xff] %v3013
      %3134 = vst [vmem:[%s221 + $0x30] sm:$0x3] %v3014
      %3135 = vst [vmem:[%s221 + $0x38] sm:$0x3] %v3015
      %3136 = vst [vmem:[%s221 + $0x40] sm:$0xff] %v3021
      %3137 = vst [vmem:[%s221 + $0x48] sm:$0xff] %v3022
      %3138 = vst [vmem:[%s221 + $0x50] sm:$0x3] %v3023
      %3139 = vst [vmem:[%s221 + $0x58] sm:$0x3] %v3024
      %3140 = vst [vmem:[%s221 + $0x60] sm:$0xff] %v3030
      %3141 = vst [vmem:[%s221 + $0x68] sm:$0xff] %v3031
      %3142 = vst [vmem:[%s221 + $0x70] sm:$0x3] %v3032
      %3143 = vst [vmem:[%s221 + $0x78] sm:$0x3] %v3033
      %3144 = vst [vmem:[%s221 + $0x80] sm:$0xff] %v3039
      %3145 = vst [vmem:[%s221 + $0x88] sm:$0xff] %v3040
      %3146 = vst [vmem:[%s221 + $0x90] sm:$0x3] %v3041
      %3147 = vst [vmem:[%s221 + $0x98] sm:$0x3] %v3042
      %3148 = vst [vmem:[%s221 + $0xa0] sm:$0xff] %v3048
      %3149 = vst [vmem:[%s221 + $0xa8] sm:$0xff] %v3049
      %3150 = vst [vmem:[%s221 + $0xb0] sm:$0x3] %v3050
      %3151 = vst [vmem:[%s221 + $0xb8] sm:$0x3] %v3051
      %3152 = vst [vmem:[%s221 + $0xc0] sm:$0xff] %v3057
      %3153 = vst [vmem:[%s221 + $0xc8] sm:$0xff] %v3058
      %3154 = vst [vmem:[%s221 + $0xd0] sm:$0x3] %v3059
      %3155 = vst [vmem:[%s221 + $0xd8] sm:$0x3] %v3060
      %3156 = vst [vmem:[%s221 + $0xe0] sm:$0xff] %v3066
      %3157 = vst [vmem:[%s221 + $0xe8] sm:$0xff] %v3067
      %3158 = vst [vmem:[%s221 + $0xf0] sm:$0x3] %v3068
      %3159 = vst [vmem:[%s221 + $0xf8] sm:$0x3] %v3069
      %3160 = vst [vmem:[%s221 + $0x100] sm:$0xff] %v3075
      %3161 = vst [vmem:[%s221 + $0x108] sm:$0xff] %v3076
      %3162 = vst [vmem:[%s221 + $0x110] sm:$0x3] %v3077
      %3163 = vst [vmem:[%s221 + $0x118] sm:$0x3] %v3078
      %3164 = vst [vmem:[%s221 + $0x120] sm:$0xff] %v3084
      %3165 = vst [vmem:[%s221 + $0x128] sm:$0xff] %v3085
      %3166 = vst [vmem:[%s221 + $0x130] sm:$0x3] %v3086
      %3167 = vst [vmem:[%s221 + $0x138] sm:$0x3] %v3087
      %s3168 = smul.u32 10, %s20
      %p3169 = scmp.lt.s32.totalorder %s19, 1
      %s3170 = scalar_select %p3169, %s19, 1
      %p3171 = scmp.lt.s32.totalorder %s3168, 9
      %s3172 = scalar_select %p3171, %s3168, 9
      %s3173 = smul.addr %s3172, 4
      %s3174 = smul.addr %s3170, 40
      %s3175 = sadd.s32 %s3173, %s3174
      %s3176 = smul.addr %s3175, 8
      %s3177 = scalar_lea.vmem %s4, %s3176
      // Predicated region
      $region37: #{branch3_forward.3} parent=35 // pred_check
        %p3178 = pneg %p136
      $region38: #{branch3_forward.3} parent=35 // pred_check_branch
        %3180 = sbr.rel (%p3178) target = $region40
      $region39: #{branch3_forward.3} parent=35 // pred_region
        %s3181 = smul.u32 10, %s20
      $region40: #{branch3_forward.3} parent=35 // pred_fallthru
        _
    $region36: #{branch3_forward.3} parent=5 // pred_fallthru
      _
    %p3182 = scmp.le.s32.totalorder 2, %s10
    // Predicated region
    $region41: #{branch3_forward.3} parent=5 // pred_check
      %p3183 = pneg %p3182
    $region42: #{branch3_forward.3} parent=5 // pred_check_branch
      %3185 = sbr.rel (%p3183) target = $region44
    $region43: #{branch3_forward.3} parent=5 // pred_region
      %s3186 = ssub.s32 %s10, 2
      // Predicated region
      $region45: #{branch3_forward.3} parent=43 // pred_check
        %p3187 = pneg %p142
      $region46: #{branch3_forward.3} parent=43 // pred_check_branch
        %3189 = sbr.rel (%p3187) target = $region48
      $region47: #{branch3_forward.3} parent=43 // pred_region
        %s3190 = smul.u32 10, %s22
        %p3191 = scmp.lt.s32.totalorder %s21, 1
        %s3192 = scalar_select %p3191, %s21, 1
        %p3193 = scmp.lt.s32.totalorder %s3190, 9
        %s3194 = scalar_select %p3193, %s3190, 9
        %s3195 = smul.addr %s3194, 4
        %s3196 = smul.addr %s3192, 40
        %s3197 = sadd.s32 %s3195, %s3196
        %s3198 = smul.addr %s3197, 8
        %s3199 = scalar_lea.vmem %s4, %s3198
      $region48: #{branch3_forward.3} parent=43 // pred_fallthru
        _
    $region44: #{branch3_forward.3} parent=5 // pred_fallthru
      _
  $region6: #{branch3_forward.3} parent=0 // loop_footer
    %s14 = sadd.s32 1, %s10
  $region7: #{branch3_forward.3} parent=0 // loop_footer_branch
    %9 = sbr.rel target = $region3
  $region8: #{branch3_forward.3} parent=0 // loop_exit
    _

// kernel: branch3_forward.5
$region0: #{branch3_forward.5}
  #allocation0 [shape = 'u32[]', space=smem, size = 0x4, offset = 0x4, fixed_abs, tag = 'smem constant byte address 0x4 - core index']
  #allocation1 [shape = 'u32[72,128]{1,0:T(1,128)}', space=vmem, size = 0x9000, scoped, tag = 'internal scratch']
  %s0 = inlined_call_operand.vmem [shape: f32[2,8,8,256], index: 0, kind: input, shape index: {}]
  %s1 = inlined_call_operand.vmem [shape: f32[3,768,256], index: 1, kind: input, shape index: {}]
  %s2 = inlined_call_operand.vmem [shape: f32[1,256], index: 2, kind: input, shape index: {}]
  %s3 = inlined_call_operand.vmem [shape: f32[1,256], index: 3, kind: input, shape index: {}]
  %s4 = inlined_call_operand.vmem [shape: f32[2,6,6,256], index: 4, kind: output, shape index: {}]
  %s5 = sld [smem:[#allocation0]]
  $region49: #{branch3_forward.5} parent=0
    _
  %s7 = ssub.s32 1, %s5
  %s8 = scalar_select 0, %s7, %s5
  loop: start=0, step=1, limit=4
  $region2: #{branch3_forward.5} parent=0 // loop_pre_header
    _
  $region3: #{branch3_forward.5} parent=0 // loop_header
    %s10 = sphi 0, %s14
    %p11 = scmp.ge.s32.totalorder %s10, 4
    %s17 = sphi 0, %s29
    %s18 = sphi 0, %s25
    %s19 = sphi 0, %s17
    %s20 = sphi 0, %s18
    %s21 = sphi 0, %s19
    %s22 = sphi 0, %s20
    %s32 = sphi 0, %s34
    %s35 = sphi 0, %s32
    %s36 = sphi 0, %s35
    %s52 = sphi 0, %s36
    %s56 = sphi 0, %s56
    %s58 = sphi 0, %s56
    %s59 = sphi 0, %s58
    %s73 = sphi 0, %s59
    %s77 = sphi 0, %s77
    %s79 = sphi 0, %s77
    %s80 = sphi 0, %s79
    %s94 = sphi 0, %s80
    %s98 = sphi 0, %s98
    %s100 = sphi 0, %s98
    %s101 = sphi 0, %s100
    %s115 = sphi 0, %s101
    %s123 = sphi 0, %s125
    %s126 = sphi 0, %s123
    %s127 = sphi 0, %s126
    %s143 = sphi 0, %s127
  $region4: #{branch3_forward.5} parent=0 // loop_header_branch
    %13 = sbr.rel (%p11) target = $region8
  $region5: #{branch3_forward.5} parent=0 // loop_body
    %s15 = ssub.s32 %s10, 1
    %s16 = ssub.s32 %s10, 2
    %s23 = sadd.s32 1, %s18
    %p24 = scmp.ge.s32.totalorder %s23, 1
    %s25 = scalar_select %p24, 0, %s23
    %s26 = sadd.s32 1, %s17
    %s27 = scalar_select %p24, %s26, %s17
    %p28 = scmp.ge.s32.totalorder %s27, 2
    %s29 = scalar_select %p28, 0, %s27
    %s30 = ssub.s32 %s17, %s29
    %p31 = scmp.eq.s32.totalorder %s30, 0
    %s33 = sadd.s32 %s32, 1
    %s34 = scalar_select %p31, %s32, %s33
    %p37 = pneg %p31
    %p38 = scmp.eq.s32.totalorder %s10, 1
    %p39 = por %p37, %p38
    %p40 = scmp.ne.s32.totalorder %s32, %s35
    %p41 = scmp.eq.s32.totalorder %s10, 0
    %p42 = por %p40, %p41
    %p43 = scmp.ne.s32.totalorder %s32, %s35
    %p44 = scmp.eq.s32.totalorder %s15, 1
    %p45 = por %p43, %p44
    %p46 = scmp.ne.s32.totalorder %s35, %s36
    %p47 = scmp.eq.s32.totalorder %s15, 0
    %p48 = por %p46, %p47
    %p49 = scmp.ne.s32.totalorder %s35, %s36
    %p50 = scmp.eq.s32.totalorder %s16, 1
    %p51 = por %p49, %p50
    %p53 = scmp.ne.s32.totalorder %s36, %s52
    %p54 = scmp.eq.s32.totalorder %s16, 0
    %p55 = por %p53, %p54
    %s57 = sadd.s32 %s56, 1
    %p60 = scmp.eq.s32.totalorder %s10, 1
    %p61 = scmp.ne.s32.totalorder %s56, %s58
    %p62 = scmp.eq.s32.totalorder %s10, 0
    %p63 = por %p61, %p62
    %p64 = scmp.ne.s32.totalorder %s56, %s58
    %p65 = scmp.eq.s32.totalorder %s15, 1
    %p66 = por %p64, %p65
    %p67 = scmp.ne.s32.totalorder %s58, %s59
    %p68 = scmp.eq.s32.totalorder %s15, 0
    %p69 = por %p67, %p68
    %p70 = scmp.ne.s32.totalorder %s58, %s59
    %p71 = scmp.eq.s32.totalorder %s16, 1
    %p72 = por %p70, %p71
    %p74 = scmp.ne.s32.totalorder %s59, %s73
    %p75 = scmp.eq.s32.totalorder %s16, 0
    %p76 = por %p74, %p75
    %s78 = sadd.s32 %s77, 1
    %p81 = scmp.eq.s32.totalorder %s10, 1
    %p82 = scmp.ne.s32.totalorder %s77, %s79
    %p83 = scmp.eq.s32.totalorder %s10, 0
    %p84 = por %p82, %p83
    %p85 = scmp.ne.s32.totalorder %s77, %s79
    %p86 = scmp.eq.s32.totalorder %s15, 1
    %p87 = por %p85, %p86
    %p88 = scmp.ne.s32.totalorder %s79, %s80
    %p89 = scmp.eq.s32.totalorder %s15, 0
    %p90 = por %p88, %p89
    %p91 = scmp.ne.s32.totalorder %s79, %s80
    %p92 = scmp.eq.s32.totalorder %s16, 1
    %p93 = por %p91, %p92
    %p95 = scmp.ne.s32.totalorder %s80, %s94
    %p96 = scmp.eq.s32.totalorder %s16, 0
    %p97 = por %p95, %p96
    %s99 = sadd.s32 %s98, 1
    %p102 = scmp.eq.s32.totalorder %s10, 1
    %p103 = scmp.ne.s32.totalorder %s98, %s100
    %p104 = scmp.eq.s32.totalorder %s10, 0
    %p105 = por %p103, %p104
    %p106 = scmp.ne.s32.totalorder %s98, %s100
    %p107 = scmp.eq.s32.totalorder %s15, 1
    %p108 = por %p106, %p107
    %p109 = scmp.ne.s32.totalorder %s100, %s101
    %p110 = scmp.eq.s32.totalorder %s15, 0
    %p111 = por %p109, %p110
    %p112 = scmp.ne.s32.totalorder %s100, %s101
    %p113 = scmp.eq.s32.totalorder %s16, 1
    %p114 = por %p112, %p113
    %p116 = scmp.ne.s32.totalorder %s101, %s115
    %p117 = scmp.eq.s32.totalorder %s16, 0
    %p118 = por %p116, %p117
    %s119 = ssub.s32 %s17, %s29
    %s120 = ssub.s32 %s18, %s25
    %s121 = sor.u32 %s119, %s120
    %p122 = scmp.eq.s32.totalorder %s121, 0
    %s124 = sadd.s32 %s123, 1
    %s125 = scalar_select %p122, %s123, %s124
    %p128 = pneg %p122
    %p129 = scmp.eq.s32.totalorder %s10, 1
    %p130 = por %p128, %p129
    %p131 = scmp.ne.s32.totalorder %s123, %s126
    %p132 = scmp.eq.s32.totalorder %s10, 0
    %p133 = por %p131, %p132
    %p134 = scmp.ne.s32.totalorder %s123, %s126
    %p135 = scmp.eq.s32.totalorder %s15, 1
    %p136 = por %p134, %p135
    %p137 = scmp.ne.s32.totalorder %s126, %s127
    %p138 = scmp.eq.s32.totalorder %s15, 0
    %p139 = por %p137, %p138
    %p140 = scmp.ne.s32.totalorder %s126, %s127
    %p141 = scmp.eq.s32.totalorder %s16, 1
    %p142 = por %p140, %p141
    %p144 = scmp.ne.s32.totalorder %s127, %s143
    %p145 = scmp.eq.s32.totalorder %s16, 0
    %p146 = por %p144, %p145
    %p147 = scmp.le.s32.totalorder 1, %s10
    %p148 = scmp.lt.s32.totalorder %s10, 3
    %p149 = pnand %p147, %p148
    %p150 = pneg %p149
    // Predicated region
    $region9: #{branch3_forward.5} parent=5 // pred_check
      _
    $region10: #{branch3_forward.5} parent=5 // pred_check_branch
      %152 = sbr.rel (%p149) target = $region12
    $region11: #{branch3_forward.5} parent=5 // pred_region
      %s153 = ssub.s32 %s10, 1
      // Predicated region
      $region13: #{branch3_forward.5} parent=11 // pred_check
        %p154 = pneg %p69
      $region14: #{branch3_forward.5} parent=11 // pred_check_branch
        %156 = sbr.rel (%p154) target = $region16
      $region15: #{branch3_forward.5} parent=11 // pred_region
        _
      $region16: #{branch3_forward.5} parent=11 // pred_fallthru
        _
      // Predicated region
      $region17: #{branch3_forward.5} parent=11 // pred_check
        %p157 = pneg %p90
      $region18: #{branch3_forward.5} parent=11 // pred_check_branch
        %159 = sbr.rel (%p157) target = $region20
      $region19: #{branch3_forward.5} parent=11 // pred_region
        _
      $region20: #{branch3_forward.5} parent=11 // pred_fallthru
        _
      // Predicated region
      $region21: #{branch3_forward.5} parent=11 // pred_check
        %p160 = pneg %p111
      $region22: #{branch3_forward.5} parent=11 // pred_check_branch
        %162 = sbr.rel (%p160) target = $region24
      $region23: #{branch3_forward.5} parent=11 // pred_region
        _
      $region24: #{branch3_forward.5} parent=11 // pred_fallthru
        _
    $region12: #{branch3_forward.5} parent=5 // pred_fallthru
      _
    %p163 = scmp.lt.s32.totalorder %s10, 2
    // Predicated region
    $region25: #{branch3_forward.5} parent=5 // pred_check
      %p164 = pneg %p163
    $region26: #{branch3_forward.5} parent=5 // pred_check_branch
      %166 = sbr.rel (%p164) target = $region28
    $region27: #{branch3_forward.5} parent=5 // pred_region
      // Predicated region
      $region29: #{branch3_forward.5} parent=27 // pred_check
        %p167 = pneg %p42
      $region30: #{branch3_forward.5} parent=27 // pred_check_branch
        %169 = sbr.rel (%p167) target = $region32
      $region31: #{branch3_forward.5} parent=27 // pred_region
        %p170 = scmp.lt.s32.totalorder %s17, 1
        %s171 = scalar_select %p170, %s17, 1
        %s172 = smul.addr %s171, 16
        %s173 = smul.addr %s172, 8
        %s174 = scalar_lea.vmem %s0, %s173
      $region32: #{branch3_forward.5} parent=27 // pred_fallthru
        _
    $region28: #{branch3_forward.5} parent=5 // pred_fallthru
      _
    %p175 = scmp.le.s32.totalorder 1, %s10
    %p176 = scmp.lt.s32.totalorder %s10, 3
    %p177 = pnand %p175, %p176
    %p178 = pneg %p177
    // Predicated region
    $region33: #{branch3_forward.5} parent=5 // pred_check
      _
    $region34: #{branch3_forward.5} parent=5 // pred_check_branch
      %180 = sbr.rel (%p177) target = $region36
    $region35: #{branch3_forward.5} parent=5 // pred_region
      %s181 = ssub.s32 %s10, 1
      %p182 = scmp.lt.s32.totalorder %s19, 1
      %s183 = scalar_select %p182, %s19, 1
      %s184 = smul.addr %s183, 16
      %s185 = smul.addr %s184, 8
      %s186 = scalar_lea.vmem %s0, %s185
      %p187 = pneg %p48
      %p188 = pneg %p45
      %p189 = pneg %p69
      %p190 = pneg %p66
      %p191 = pneg %p90
      %p192 = pneg %p87
      %p193 = pneg %p111
      %p194 = pneg %p108
      %p195 = pneg %p139
      %p196 = pneg %p136
      %s197 = smul.u32 6, %s20
      %p198 = scmp.lt.s32.totalorder %s19, 1
      %s199 = scalar_select %p198, %s19, 1
      %p200 = scmp.lt.s32.totalorder %s197, 5
      %s201 = scalar_select %p200, %s197, 5
      %s202 = smul.addr %s201, 2
      %s203 = smul.addr %s199, 12
      %s204 = sadd.s32 %s202, %s203
      %s205 = smul.addr %s204, 8
      %s206 = scalar_lea.vmem %s4, %s205
      %p207 = scmp.lt.s32.totalorder %s19, 1
      %s208 = scalar_select %p207, %s19, 1
      %s209 = smul.addr %s208, 16
      %s210 = smul.addr %s209, 8
      %s211 = scalar_lea.vmem %s0, %s210
      %s212 = smul.u32 6, %s20
      %p213 = scmp.lt.s32.totalorder %s19, 1
      %s214 = scalar_select %p213, %s19, 1
      %p215 = scmp.lt.s32.totalorder %s212, 5
      %s216 = scalar_select %p215, %s212, 5
      %s217 = smul.addr %s216, 2
      %s218 = smul.addr %s214, 12
      %s219 = sadd.s32 %s217, %s218
      %s220 = smul.addr %s219, 8
      %s221 = scalar_lea.vmem %s4, %s220
      %s222 = smul.u32 6, %s20
      %s223 = smul.u32 %s20, 6
      %s224 = smul.u32 %s223, 2
      %s225 = smul.addr %s224, 8
      %s226 = scalar_lea.vmem %s211, %s225
      %v227 = vld [vmem:[%s226] sm:$0xff]
      %v228 = vld [vmem:[%s226 + $0x8] sm:$0xff]
      %v229 = vld [vmem:[%s226 + $0x10] sm:$0xff]
      %v230 = vld [vmem:[%s226 + $0x18] sm:$0xff]
      %v231 = vld [vmem:[%s226 + $0x20] sm:$0xff]
      %v232 = vld [vmem:[%s226 + $0x28] sm:$0xff]
      %v233 = vld [vmem:[%s226 + $0x30] sm:$0xff]
      %v234 = vld [vmem:[%s226 + $0x38] sm:$0xff]
      %v235 = vld [vmem:[%s226 + $0x40] sm:$0xff]
      %v236 = vld [vmem:[%s226 + $0x48] sm:$0xff]
      %v237 = vld [vmem:[%s226 + $0x50] sm:$0xff]
      %v238 = vld [vmem:[%s226 + $0x58] sm:$0xff]
      %v251 = vrot.slane %v227, 1
      %v252 = vrot.slane %v228, 1
      %v253 = vrot.slane %v229, 1
      %v254 = vrot.slane %v230, 1
      %v255 = vrot.slane %v231, 1
      %v256 = vrot.slane %v232, 1
      %v257 = vrot.slane %v233, 1
      %v258 = vrot.slane %v234, 1
      %v259 = vrot.slane %v235, 1
      %v260 = vrot.slane %v236, 1
      %v261 = vrot.slane %v237, 1
      %v262 = vrot.slane %v238, 1
      %v263 = vrot.slane %v227, 2
      %v264 = vrot.slane %v228, 2
      %v265 = vrot.slane %v229, 2
      %v266 = vrot.slane %v230, 2
      %v267 = vrot.slane %v231, 2
      %v268 = vrot.slane %v232, 2
      %v269 = vrot.slane %v233, 2
      %v270 = vrot.slane %v234, 2
      %v271 = vrot.slane %v235, 2
      %v272 = vrot.slane %v236, 2
      %v273 = vrot.slane %v237, 2
      %v274 = vrot.slane %v238, 2
      %v275 = vrot.slane %v228, 6
      %v276 = vrot.slane %v251, 4
      %v277 = vrot.slane %v252, 2
      %v278 = vrot.slane %v264, 6
      %v279 = vrot.slane %v230, 6
      %v280 = vrot.slane %v253, 4
      %v281 = vrot.slane %v254, 2
      %v282 = vrot.slane %v266, 6
      %v283 = vrot.slane %v232, 6
      %v284 = vrot.slane %v255, 4
      %v285 = vrot.slane %v256, 2
      %v286 = vrot.slane %v268, 6
      %v287 = vrot.slane %v234, 6
      %v288 = vrot.slane %v257, 4
      %v289 = vrot.slane %v258, 2
      %v290 = vrot.slane %v270, 6
      %v291 = vrot.slane %v236, 6
      %v292 = vrot.slane %v259, 4
      %v293 = vrot.slane %v260, 2
      %v294 = vrot.slane %v272, 6
      %v295 = vrot.slane %v238, 6
      %v296 = vrot.slane %v261, 4
      %v297 = vrot.slane %v262, 2
      %v298 = vrot.slane %v274, 6
      %vm299 = vcmask 1041408
      %v300 = vsel %vm299, %v227, %v275
      %vm301 = vcmask 1045508
      %v302 = vsel %vm301, %v276, %v277
      %vm303 = vcmask 1043456
      %v304 = vsel %vm303, %v300, %v302
      %v305 = vsel %vm299, %v263, %v278
      %vm306 = vcmask 1043458
      %v307 = vsel %vm306, %v227, %v275
      %vm308 = vcmask 1045504
      %v309 = vsel %vm308, %v277, %v276
      %vm310 = vcmask 1045506
      %v311 = vsel %vm310, %v307, %v309
      %v312 = vrot.slane %v311, 2
      %v313 = vsel %vm306, %v263, %v278
      %v314 = vrot.slane %v313, 2
      %v315 = vsel %vm301, %v227, %v275
      %v316 = vsel %vm299, %v276, %v277
      %v317 = vsel %vm303, %v316, %v315
      %v318 = vrot.slane %v317, 4
      %v319 = vsel %vm301, %v263, %v278
      %v320 = vrot.slane %v319, 4
      %v321 = vsel %vm299, %v229, %v279
      %v322 = vsel %vm301, %v280, %v281
      %v323 = vsel %vm303, %v321, %v322
      %v324 = vsel %vm299, %v265, %v282
      %v325 = vsel %vm306, %v229, %v279
      %v326 = vsel %vm308, %v281, %v280
      %v327 = vsel %vm310, %v325, %v326
      %v328 = vrot.slane %v327, 2
      %v329 = vsel %vm306, %v265, %v282
      %v330 = vrot.slane %v329, 2
      %v331 = vsel %vm301, %v229, %v279
      %v332 = vsel %vm299, %v280, %v281
      %v333 = vsel %vm303, %v332, %v331
      %v334 = vrot.slane %v333, 4
      %v335 = vsel %vm301, %v265, %v282
      %v336 = vrot.slane %v335, 4
      %v337 = vsel %vm299, %v231, %v283
      %v338 = vsel %vm301, %v284, %v285
      %v339 = vsel %vm303, %v337, %v338
      %v340 = vsel %vm299, %v267, %v286
      %v341 = vsel %vm306, %v231, %v283
      %v342 = vsel %vm308, %v285, %v284
      %v343 = vsel %vm310, %v341, %v342
      %v344 = vrot.slane %v343, 2
      %v345 = vsel %vm306, %v267, %v286
      %v346 = vrot.slane %v345, 2
      %v347 = vsel %vm301, %v231, %v283
      %v348 = vsel %vm299, %v284, %v285
      %v349 = vsel %vm303, %v348, %v347
      %v350 = vrot.slane %v349, 4
      %v351 = vsel %vm301, %v267, %v286
      %v352 = vrot.slane %v351, 4
      %v353 = vsel %vm299, %v233, %v287
      %v354 = vsel %vm301, %v288, %v289
      %v355 = vsel %vm303, %v353, %v354
      %v356 = vsel %vm299, %v269, %v290
      %v357 = vsel %vm306, %v233, %v287
      %v358 = vsel %vm308, %v289, %v288
      %v359 = vsel %vm310, %v357, %v358
      %v360 = vrot.slane %v359, 2
      %v361 = vsel %vm306, %v269, %v290
      %v362 = vrot.slane %v361, 2
      %v363 = vsel %vm301, %v233, %v287
      %v364 = vsel %vm299, %v288, %v289
      %v365 = vsel %vm303, %v364, %v363
      %v366 = vrot.slane %v365, 4
      %v367 = vsel %vm301, %v269, %v290
      %v368 = vrot.slane %v367, 4
      %v369 = vsel %vm299, %v235, %v291
      %v370 = vsel %vm301, %v292, %v293
      %v371 = vsel %vm303, %v369, %v370
      %v372 = vsel %vm299, %v271, %v294
      %v373 = vsel %vm306, %v235, %v291
      %v374 = vsel %vm308, %v293, %v292
      %v375 = vsel %vm310, %v373, %v374
      %v376 = vrot.slane %v375, 2
      %v377 = vsel %vm306, %v271, %v294
      %v378 = vrot.slane %v377, 2
      %v379 = vsel %vm301, %v235, %v291
      %v380 = vsel %vm299, %v292, %v293
      %v381 = vsel %vm303, %v380, %v379
      %v382 = vrot.slane %v381, 4
      %v383 = vsel %vm301, %v271, %v294
      %v384 = vrot.slane %v383, 4
      %v385 = vsel %vm299, %v237, %v295
      %v386 = vsel %vm301, %v296, %v297
      %v387 = vsel %vm303, %v385, %v386
      %v388 = vsel %vm299, %v273, %v298
      %v389 = vsel %vm306, %v237, %v295
      %v390 = vsel %vm308, %v297, %v296
      %v391 = vsel %vm310, %v389, %v390
      %v392 = vrot.slane %v391, 2
      %v393 = vsel %vm306, %v273, %v298
      %v394 = vrot.slane %v393, 2
      %v395 = vsel %vm301, %v237, %v295
      %v396 = vsel %vm299, %v296, %v297
      %v397 = vsel %vm303, %v396, %v395
      %v398 = vrot.slane %v397, 4
      %v399 = vsel %vm301, %v273, %v298
      %v400 = vrot.slane %v399, 4
      %v401 = vld [vmem:[%s1] sm:$0xff]
      %v402 = vld [vmem:[%s1 + $0x8] sm:$0xff]
      %v403 = vld [vmem:[%s1 + $0x10] sm:$0xff]
      %v404 = vld [vmem:[%s1 + $0x18] sm:$0xff]
      %v405 = vld [vmem:[%s1 + $0x20] sm:$0xff]
      %v406 = vld [vmem:[%s1 + $0x28] sm:$0xff]
      %v407 = vld [vmem:[%s1 + $0x30] sm:$0xff]
      %v408 = vld [vmem:[%s1 + $0x38] sm:$0xff]
      %v409 = vld [vmem:[%s1 + $0x40] sm:$0xff]
      %v410 = vld [vmem:[%s1 + $0x48] sm:$0xff]
      %v411 = vld [vmem:[%s1 + $0x50] sm:$0xff]
      %v412 = vld [vmem:[%s1 + $0x58] sm:$0xff]
      %v413 = vld [vmem:[%s1 + $0x60] sm:$0xff]
      %v414 = vld [vmem:[%s1 + $0x68] sm:$0xff]
      %v415 = vld [vmem:[%s1 + $0x70] sm:$0xff]
      %v416 = vld [vmem:[%s1 + $0x78] sm:$0xff]
      %v417 = vld [vmem:[%s1 + $0x80] sm:$0xff]
      %v418 = vld [vmem:[%s1 + $0x88] sm:$0xff]
      %v419 = vld [vmem:[%s1 + $0x90] sm:$0xff]
      %v420 = vld [vmem:[%s1 + $0x98] sm:$0xff]
      %v421 = vld [vmem:[%s1 + $0xa0] sm:$0xff]
      %v422 = vld [vmem:[%s1 + $0xa8] sm:$0xff]
      %v423 = vld [vmem:[%s1 + $0xb0] sm:$0xff]
      %v424 = vld [vmem:[%s1 + $0xb8] sm:$0xff]
      %v425 = vld [vmem:[%s1 + $0xc0] sm:$0xff]
      %v426 = vld [vmem:[%s1 + $0xc8] sm:$0xff]
      %v427 = vld [vmem:[%s1 + $0xd0] sm:$0xff]
      %v428 = vld [vmem:[%s1 + $0xd8] sm:$0xff]
      %v429 = vld [vmem:[%s1 + $0xe0] sm:$0xff]
      %v430 = vld [vmem:[%s1 + $0xe8] sm:$0xff]
      %v431 = vld [vmem:[%s1 + $0xf0] sm:$0xff]
      %v432 = vld [vmem:[%s1 + $0xf8] sm:$0xff]
      %v433 = vld [vmem:[%s1 + $0x100] sm:$0xff]
      %v434 = vld [vmem:[%s1 + $0x108] sm:$0xff]
      %v435 = vld [vmem:[%s1 + $0x110] sm:$0xff]
      %v436 = vld [vmem:[%s1 + $0x118] sm:$0xff]
      %v437 = vld [vmem:[%s1 + $0x120] sm:$0xff]
      %v438 = vld [vmem:[%s1 + $0x128] sm:$0xff]
      %v439 = vld [vmem:[%s1 + $0x130] sm:$0xff]
      %v440 = vld [vmem:[%s1 + $0x138] sm:$0xff]
      %v441 = vld [vmem:[%s1 + $0x140] sm:$0xff]
      %v442 = vld [vmem:[%s1 + $0x148] sm:$0xff]
      %v443 = vld [vmem:[%s1 + $0x150] sm:$0xff]
      %v444 = vld [vmem:[%s1 + $0x158] sm:$0xff]
      %v445 = vld [vmem:[%s1 + $0x160] sm:$0xff]
      %v446 = vld [vmem:[%s1 + $0x168] sm:$0xff]
      %v447 = vld [vmem:[%s1 + $0x170] sm:$0xff]
      %v448 = vld [vmem:[%s1 + $0x178] sm:$0xff]
      %v449 = vld [vmem:[%s1 + $0x180] sm:$0xff]
      %v450 = vld [vmem:[%s1 + $0x188] sm:$0xff]
      %v451 = vld [vmem:[%s1 + $0x190] sm:$0xff]
      %v452 = vld [vmem:[%s1 + $0x198] sm:$0xff]
      %v453 = vld [vmem:[%s1 + $0x1a0] sm:$0xff]
      %v454 = vld [vmem:[%s1 + $0x1a8] sm:$0xff]
      %v455 = vld [vmem:[%s1 + $0x1b0] sm:$0xff]
      %v456 = vld [vmem:[%s1 + $0x1b8] sm:$0xff]
      %v457 = vld [vmem:[%s1 + $0x1c0] sm:$0xff]
      %v458 = vld [vmem:[%s1 + $0x1c8] sm:$0xff]
      %v459 = vld [vmem:[%s1 + $0x1d0] sm:$0xff]
      %v460 = vld [vmem:[%s1 + $0x1d8] sm:$0xff]
      %v461 = vld [vmem:[%s1 + $0x1e0] sm:$0xff]
      %v462 = vld [vmem:[%s1 + $0x1e8] sm:$0xff]
      %v463 = vld [vmem:[%s1 + $0x1f0] sm:$0xff]
      %v464 = vld [vmem:[%s1 + $0x1f8] sm:$0xff]
      %v465 = vld [vmem:[%s1 + $0x200] sm:$0xff]
      %v466 = vld [vmem:[%s1 + $0x208] sm:$0xff]
      %v467 = vld [vmem:[%s1 + $0x210] sm:$0xff]
      %v468 = vld [vmem:[%s1 + $0x218] sm:$0xff]
      %v469 = vld [vmem:[%s1 + $0x220] sm:$0xff]
      %v470 = vld [vmem:[%s1 + $0x228] sm:$0xff]
      %v471 = vld [vmem:[%s1 + $0x230] sm:$0xff]
      %v472 = vld [vmem:[%s1 + $0x238] sm:$0xff]
      %v473 = vld [vmem:[%s1 + $0x240] sm:$0xff]
      %v474 = vld [vmem:[%s1 + $0x248] sm:$0xff]
      %v475 = vld [vmem:[%s1 + $0x250] sm:$0xff]
      %v476 = vld [vmem:[%s1 + $0x258] sm:$0xff]
      %v477 = vld [vmem:[%s1 + $0x260] sm:$0xff]
      %v478 = vld [vmem:[%s1 + $0x268] sm:$0xff]
      %v479 = vld [vmem:[%s1 + $0x270] sm:$0xff]
      %v480 = vld [vmem:[%s1 + $0x278] sm:$0xff]
      %v481 = vld [vmem:[%s1 + $0x280] sm:$0xff]
      %v482 = vld [vmem:[%s1 + $0x288] sm:$0xff]
      %v483 = vld [vmem:[%s1 + $0x290] sm:$0xff]
      %v484 = vld [vmem:[%s1 + $0x298] sm:$0xff]
      %v485 = vld [vmem:[%s1 + $0x2a0] sm:$0xff]
      %v486 = vld [vmem:[%s1 + $0x2a8] sm:$0xff]
      %v487 = vld [vmem:[%s1 + $0x2b0] sm:$0xff]
      %v488 = vld [vmem:[%s1 + $0x2b8] sm:$0xff]
      %v489 = vld [vmem:[%s1 + $0x2c0] sm:$0xff]
      %v490 = vld [vmem:[%s1 + $0x2c8] sm:$0xff]
      %v491 = vld [vmem:[%s1 + $0x2d0] sm:$0xff]
      %v492 = vld [vmem:[%s1 + $0x2d8] sm:$0xff]
      %v493 = vld [vmem:[%s1 + $0x2e0] sm:$0xff]
      %v494 = vld [vmem:[%s1 + $0x2e8] sm:$0xff]
      %v495 = vld [vmem:[%s1 + $0x2f0] sm:$0xff]
      %v496 = vld [vmem:[%s1 + $0x2f8] sm:$0xff]
      %v497 = vld [vmem:[%s1 + $0x300] sm:$0xff]
      %v498 = vld [vmem:[%s1 + $0x308] sm:$0xff]
      %v499 = vld [vmem:[%s1 + $0x310] sm:$0xff]
      %v500 = vld [vmem:[%s1 + $0x318] sm:$0xff]
      %v501 = vld [vmem:[%s1 + $0x320] sm:$0xff]
      %v502 = vld [vmem:[%s1 + $0x328] sm:$0xff]
      %v503 = vld [vmem:[%s1 + $0x330] sm:$0xff]
      %v504 = vld [vmem:[%s1 + $0x338] sm:$0xff]
      %v505 = vld [vmem:[%s1 + $0x340] sm:$0xff]
      %v506 = vld [vmem:[%s1 + $0x348] sm:$0xff]
      %v507 = vld [vmem:[%s1 + $0x350] sm:$0xff]
      %v508 = vld [vmem:[%s1 + $0x358] sm:$0xff]
      %v509 = vld [vmem:[%s1 + $0x360] sm:$0xff]
      %v510 = vld [vmem:[%s1 + $0x368] sm:$0xff]
      %v511 = vld [vmem:[%s1 + $0x370] sm:$0xff]
      %v512 = vld [vmem:[%s1 + $0x378] sm:$0xff]
      %v513 = vld [vmem:[%s1 + $0x380] sm:$0xff]
      %v514 = vld [vmem:[%s1 + $0x388] sm:$0xff]
      %v515 = vld [vmem:[%s1 + $0x390] sm:$0xff]
      %v516 = vld [vmem:[%s1 + $0x398] sm:$0xff]
      %v517 = vld [vmem:[%s1 + $0x3a0] sm:$0xff]
      %v518 = vld [vmem:[%s1 + $0x3a8] sm:$0xff]
      %v519 = vld [vmem:[%s1 + $0x3b0] sm:$0xff]
      %v520 = vld [vmem:[%s1 + $0x3b8] sm:$0xff]
      %v521 = vld [vmem:[%s1 + $0x3c0] sm:$0xff]
      %v522 = vld [vmem:[%s1 + $0x3c8] sm:$0xff]
      %v523 = vld [vmem:[%s1 + $0x3d0] sm:$0xff]
      %v524 = vld [vmem:[%s1 + $0x3d8] sm:$0xff]
      %v525 = vld [vmem:[%s1 + $0x3e0] sm:$0xff]
      %v526 = vld [vmem:[%s1 + $0x3e8] sm:$0xff]
      %v527 = vld [vmem:[%s1 + $0x3f0] sm:$0xff]
      %v528 = vld [vmem:[%s1 + $0x3f8] sm:$0xff]
      %v529 = vld [vmem:[%s1 + $0x400] sm:$0xff]
      %v530 = vld [vmem:[%s1 + $0x408] sm:$0xff]
      %v531 = vld [vmem:[%s1 + $0x410] sm:$0xff]
      %v532 = vld [vmem:[%s1 + $0x418] sm:$0xff]
      %v533 = vld [vmem:[%s1 + $0x420] sm:$0xff]
      %v534 = vld [vmem:[%s1 + $0x428] sm:$0xff]
      %v535 = vld [vmem:[%s1 + $0x430] sm:$0xff]
      %v536 = vld [vmem:[%s1 + $0x438] sm:$0xff]
      %v537 = vld [vmem:[%s1 + $0x440] sm:$0xff]
      %v538 = vld [vmem:[%s1 + $0x448] sm:$0xff]
      %v539 = vld [vmem:[%s1 + $0x450] sm:$0xff]
      %v540 = vld [vmem:[%s1 + $0x458] sm:$0xff]
      %v541 = vld [vmem:[%s1 + $0x460] sm:$0xff]
      %v542 = vld [vmem:[%s1 + $0x468] sm:$0xff]
      %v543 = vld [vmem:[%s1 + $0x470] sm:$0xff]
      %v544 = vld [vmem:[%s1 + $0x478] sm:$0xff]
      %v545 = vld [vmem:[%s1 + $0x480] sm:$0xff]
      %v546 = vld [vmem:[%s1 + $0x488] sm:$0xff]
      %v547 = vld [vmem:[%s1 + $0x490] sm:$0xff]
      %v548 = vld [vmem:[%s1 + $0x498] sm:$0xff]
      %v549 = vld [vmem:[%s1 + $0x4a0] sm:$0xff]
      %v550 = vld [vmem:[%s1 + $0x4a8] sm:$0xff]
      %v551 = vld [vmem:[%s1 + $0x4b0] sm:$0xff]
      %v552 = vld [vmem:[%s1 + $0x4b8] sm:$0xff]
      %v553 = vld [vmem:[%s1 + $0x4c0] sm:$0xff]
      %v554 = vld [vmem:[%s1 + $0x4c8] sm:$0xff]
      %v555 = vld [vmem:[%s1 + $0x4d0] sm:$0xff]
      %v556 = vld [vmem:[%s1 + $0x4d8] sm:$0xff]
      %v557 = vld [vmem:[%s1 + $0x4e0] sm:$0xff]
      %v558 = vld [vmem:[%s1 + $0x4e8] sm:$0xff]
      %v559 = vld [vmem:[%s1 + $0x4f0] sm:$0xff]
      %v560 = vld [vmem:[%s1 + $0x4f8] sm:$0xff]
      %v561 = vld [vmem:[%s1 + $0x500] sm:$0xff]
      %v562 = vld [vmem:[%s1 + $0x508] sm:$0xff]
      %v563 = vld [vmem:[%s1 + $0x510] sm:$0xff]
      %v564 = vld [vmem:[%s1 + $0x518] sm:$0xff]
      %v565 = vld [vmem:[%s1 + $0x520] sm:$0xff]
      %v566 = vld [vmem:[%s1 + $0x528] sm:$0xff]
      %v567 = vld [vmem:[%s1 + $0x530] sm:$0xff]
      %v568 = vld [vmem:[%s1 + $0x538] sm:$0xff]
      %v569 = vld [vmem:[%s1 + $0x540] sm:$0xff]
      %v570 = vld [vmem:[%s1 + $0x548] sm:$0xff]
      %v571 = vld [vmem:[%s1 + $0x550] sm:$0xff]
      %v572 = vld [vmem:[%s1 + $0x558] sm:$0xff]
      %v573 = vld [vmem:[%s1 + $0x560] sm:$0xff]
      %v574 = vld [vmem:[%s1 + $0x568] sm:$0xff]
      %v575 = vld [vmem:[%s1 + $0x570] sm:$0xff]
      %v576 = vld [vmem:[%s1 + $0x578] sm:$0xff]
      %v577 = vld [vmem:[%s1 + $0x580] sm:$0xff]
      %v578 = vld [vmem:[%s1 + $0x588] sm:$0xff]
      %v579 = vld [vmem:[%s1 + $0x590] sm:$0xff]
      %v580 = vld [vmem:[%s1 + $0x598] sm:$0xff]
      %v581 = vld [vmem:[%s1 + $0x5a0] sm:$0xff]
      %v582 = vld [vmem:[%s1 + $0x5a8] sm:$0xff]
      %v583 = vld [vmem:[%s1 + $0x5b0] sm:$0xff]
      %v584 = vld [vmem:[%s1 + $0x5b8] sm:$0xff]
      %v585 = vld [vmem:[%s1 + $0x5c0] sm:$0xff]
      %v586 = vld [vmem:[%s1 + $0x5c8] sm:$0xff]
      %v587 = vld [vmem:[%s1 + $0x5d0] sm:$0xff]
      %v588 = vld [vmem:[%s1 + $0x5d8] sm:$0xff]
      %v589 = vld [vmem:[%s1 + $0x5e0] sm:$0xff]
      %v590 = vld [vmem:[%s1 + $0x5e8] sm:$0xff]
      %v591 = vld [vmem:[%s1 + $0x5f0] sm:$0xff]
      %v592 = vld [vmem:[%s1 + $0x5f8] sm:$0xff]
      %s593 = sadd.s32 %s223, 1
      %s594 = smul.u32 %s593, 2
      %s595 = smul.addr %s594, 8
      %s596 = scalar_lea.vmem %s211, %s595
      %v597 = vld [vmem:[%s596] sm:$0xff]
      %v598 = vld [vmem:[%s596 + $0x8] sm:$0xff]
      %v599 = vld [vmem:[%s596 + $0x10] sm:$0xff]
      %v600 = vld [vmem:[%s596 + $0x18] sm:$0xff]
      %v601 = vld [vmem:[%s596 + $0x20] sm:$0xff]
      %v602 = vld [vmem:[%s596 + $0x28] sm:$0xff]
      %v603 = vld [vmem:[%s596 + $0x30] sm:$0xff]
      %v604 = vld [vmem:[%s596 + $0x38] sm:$0xff]
      %v605 = vld [vmem:[%s596 + $0x40] sm:$0xff]
      %v606 = vld [vmem:[%s596 + $0x48] sm:$0xff]
      %v607 = vld [vmem:[%s596 + $0x50] sm:$0xff]
      %v608 = vld [vmem:[%s596 + $0x58] sm:$0xff]
      %v621 = vrot.slane %v597, 1
      %v622 = vrot.slane %v598, 1
      %v623 = vrot.slane %v599, 1
      %v624 = vrot.slane %v600, 1
      %v625 = vrot.slane %v601, 1
      %v626 = vrot.slane %v602, 1
      %v627 = vrot.slane %v603, 1
      %v628 = vrot.slane %v604, 1
      %v629 = vrot.slane %v605, 1
      %v630 = vrot.slane %v606, 1
      %v631 = vrot.slane %v607, 1
      %v632 = vrot.slane %v608, 1
      %v633 = vrot.slane %v597, 2
      %v634 = vrot.slane %v598, 2
      %v635 = vrot.slane %v599, 2
      %v636 = vrot.slane %v600, 2
      %v637 = vrot.slane %v601, 2
      %v638 = vrot.slane %v602, 2
      %v639 = vrot.slane %v603, 2
      %v640 = vrot.slane %v604, 2
      %v641 = vrot.slane %v605, 2
      %v642 = vrot.slane %v606, 2
      %v643 = vrot.slane %v607, 2
      %v644 = vrot.slane %v608, 2
      %v645 = vrot.slane %v598, 6
      %v646 = vrot.slane %v621, 4
      %v647 = vrot.slane %v622, 2
      %v648 = vrot.slane %v634, 6
      %v649 = vrot.slane %v600, 6
      %v650 = vrot.slane %v623, 4
      %v651 = vrot.slane %v624, 2
      %v652 = vrot.slane %v636, 6
      %v653 = vrot.slane %v602, 6
      %v654 = vrot.slane %v625, 4
      %v655 = vrot.slane %v626, 2
      %v656 = vrot.slane %v638, 6
      %v657 = vrot.slane %v604, 6
      %v658 = vrot.slane %v627, 4
      %v659 = vrot.slane %v628, 2
      %v660 = vrot.slane %v640, 6
      %v661 = vrot.slane %v606, 6
      %v662 = vrot.slane %v629, 4
      %v663 = vrot.slane %v630, 2
      %v664 = vrot.slane %v642, 6
      %v665 = vrot.slane %v608, 6
      %v666 = vrot.slane %v631, 4
      %v667 = vrot.slane %v632, 2
      %v668 = vrot.slane %v644, 6
      %v669 = vsel %vm299, %v597, %v645
      %v670 = vsel %vm301, %v646, %v647
      %v671 = vsel %vm303, %v669, %v670
      %v672 = vsel %vm299, %v633, %v648
      %v673 = vsel %vm306, %v597, %v645
      %v674 = vsel %vm308, %v647, %v646
      %v675 = vsel %vm310, %v673, %v674
      %v676 = vrot.slane %v675, 2
      %v677 = vsel %vm306, %v633, %v648
      %v678 = vrot.slane %v677, 2
      %v679 = vsel %vm301, %v597, %v645
      %v680 = vsel %vm299, %v646, %v647
      %v681 = vsel %vm303, %v680, %v679
      %v682 = vrot.slane %v681, 4
      %v683 = vsel %vm301, %v633, %v648
      %v684 = vrot.slane %v683, 4
      %v685 = vsel %vm299, %v599, %v649
      %v686 = vsel %vm301, %v650, %v651
      %v687 = vsel %vm303, %v685, %v686
      %v688 = vsel %vm299, %v635, %v652
      %v689 = vsel %vm306, %v599, %v649
      %v690 = vsel %vm308, %v651, %v650
      %v691 = vsel %vm310, %v689, %v690
      %v692 = vrot.slane %v691, 2
      %v693 = vsel %vm306, %v635, %v652
      %v694 = vrot.slane %v693, 2
      %v695 = vsel %vm301, %v599, %v649
      %v696 = vsel %vm299, %v650, %v651
      %v697 = vsel %vm303, %v696, %v695
      %v698 = vrot.slane %v697, 4
      %v699 = vsel %vm301, %v635, %v652
      %v700 = vrot.slane %v699, 4
      %v701 = vsel %vm299, %v601, %v653
      %v702 = vsel %vm301, %v654, %v655
      %v703 = vsel %vm303, %v701, %v702
      %v704 = vsel %vm299, %v637, %v656
      %v705 = vsel %vm306, %v601, %v653
      %v706 = vsel %vm308, %v655, %v654
      %v707 = vsel %vm310, %v705, %v706
      %v708 = vrot.slane %v707, 2
      %v709 = vsel %vm306, %v637, %v656
      %v710 = vrot.slane %v709, 2
      %v711 = vsel %vm301, %v601, %v653
      %v712 = vsel %vm299, %v654, %v655
      %v713 = vsel %vm303, %v712, %v711
      %v714 = vrot.slane %v713, 4
      %v715 = vsel %vm301, %v637, %v656
      %v716 = vrot.slane %v715, 4
      %v717 = vsel %vm299, %v603, %v657
      %v718 = vsel %vm301, %v658, %v659
      %v719 = vsel %vm303, %v717, %v718
      %v720 = vsel %vm299, %v639, %v660
      %v721 = vsel %vm306, %v603, %v657
      %v722 = vsel %vm308, %v659, %v658
      %v723 = vsel %vm310, %v721, %v722
      %v724 = vrot.slane %v723, 2
      %v725 = vsel %vm306, %v639, %v660
      %v726 = vrot.slane %v725, 2
      %v727 = vsel %vm301, %v603, %v657
      %v728 = vsel %vm299, %v658, %v659
      %v729 = vsel %vm303, %v728, %v727
      %v730 = vrot.slane %v729, 4
      %v731 = vsel %vm301, %v639, %v660
      %v732 = vrot.slane %v731, 4
      %v733 = vsel %vm299, %v605, %v661
      %v734 = vsel %vm301, %v662, %v663
      %v735 = vsel %vm303, %v733, %v734
      %v736 = vsel %vm299, %v641, %v664
      %v737 = vsel %vm306, %v605, %v661
      %v738 = vsel %vm308, %v663, %v662
      %v739 = vsel %vm310, %v737, %v738
      %v740 = vrot.slane %v739, 2
      %v741 = vsel %vm306, %v641, %v664
      %v742 = vrot.slane %v741, 2
      %v743 = vsel %vm301, %v605, %v661
      %v744 = vsel %vm299, %v662, %v663
      %v745 = vsel %vm303, %v744, %v743
      %v746 = vrot.slane %v745, 4
      %v747 = vsel %vm301, %v641, %v664
      %v748 = vrot.slane %v747, 4
      %v749 = vsel %vm299, %v607, %v665
      %v750 = vsel %vm301, %v666, %v667
      %v751 = vsel %vm303, %v749, %v750
      %v752 = vsel %vm299, %v643, %v668
      %v753 = vsel %vm306, %v607, %v665
      %v754 = vsel %vm308, %v667, %v666
      %v755 = vsel %vm310, %v753, %v754
      %v756 = vrot.slane %v755, 2
      %v757 = vsel %vm306, %v643, %v668
      %v758 = vrot.slane %v757, 2
      %v759 = vsel %vm301, %v607, %v665
      %v760 = vsel %vm299, %v666, %v667
      %v761 = vsel %vm303, %v760, %v759
      %v762 = vrot.slane %v761, 4
      %v763 = vsel %vm301, %v643, %v668
      %v764 = vrot.slane %v763, 4
      %s765 = scalar_lea.vmem %s1, 1536
      %v766 = vld [vmem:[%s765] sm:$0xff]
      %v767 = vld [vmem:[%s765 + $0x8] sm:$0xff]
      %v768 = vld [vmem:[%s765 + $0x10] sm:$0xff]
      %v769 = vld [vmem:[%s765 + $0x18] sm:$0xff]
      %v770 = vld [vmem:[%s765 + $0x20] sm:$0xff]
      %v771 = vld [vmem:[%s765 + $0x28] sm:$0xff]
      %v772 = vld [vmem:[%s765 + $0x30] sm:$0xff]
      %v773 = vld [vmem:[%s765 + $0x38] sm:$0xff]
      %v774 = vld [vmem:[%s765 + $0x40] sm:$0xff]
      %v775 = vld [vmem:[%s765 + $0x48] sm:$0xff]
      %v776 = vld [vmem:[%s765 + $0x50] sm:$0xff]
      %v777 = vld [vmem:[%s765 + $0x58] sm:$0xff]
      %v778 = vld [vmem:[%s765 + $0x60] sm:$0xff]
      %v779 = vld [vmem:[%s765 + $0x68] sm:$0xff]
      %v780 = vld [vmem:[%s765 + $0x70] sm:$0xff]
      %v781 = vld [vmem:[%s765 + $0x78] sm:$0xff]
      %v782 = vld [vmem:[%s765 + $0x80] sm:$0xff]
      %v783 = vld [vmem:[%s765 + $0x88] sm:$0xff]
      %v784 = vld [vmem:[%s765 + $0x90] sm:$0xff]
      %v785 = vld [vmem:[%s765 + $0x98] sm:$0xff]
      %v786 = vld [vmem:[%s765 + $0xa0] sm:$0xff]
      %v787 = vld [vmem:[%s765 + $0xa8] sm:$0xff]
      %v788 = vld [vmem:[%s765 + $0xb0] sm:$0xff]
      %v789 = vld [vmem:[%s765 + $0xb8] sm:$0xff]
      %v790 = vld [vmem:[%s765 + $0xc0] sm:$0xff]
      %v791 = vld [vmem:[%s765 + $0xc8] sm:$0xff]
      %v792 = vld [vmem:[%s765 + $0xd0] sm:$0xff]
      %v793 = vld [vmem:[%s765 + $0xd8] sm:$0xff]
      %v794 = vld [vmem:[%s765 + $0xe0] sm:$0xff]
      %v795 = vld [vmem:[%s765 + $0xe8] sm:$0xff]
      %v796 = vld [vmem:[%s765 + $0xf0] sm:$0xff]
      %v797 = vld [vmem:[%s765 + $0xf8] sm:$0xff]
      %v798 = vld [vmem:[%s765 + $0x100] sm:$0xff]
      %v799 = vld [vmem:[%s765 + $0x108] sm:$0xff]
      %v800 = vld [vmem:[%s765 + $0x110] sm:$0xff]
      %v801 = vld [vmem:[%s765 + $0x118] sm:$0xff]
      %v802 = vld [vmem:[%s765 + $0x120] sm:$0xff]
      %v803 = vld [vmem:[%s765 + $0x128] sm:$0xff]
      %v804 = vld [vmem:[%s765 + $0x130] sm:$0xff]
      %v805 = vld [vmem:[%s765 + $0x138] sm:$0xff]
      %v806 = vld [vmem:[%s765 + $0x140] sm:$0xff]
      %v807 = vld [vmem:[%s765 + $0x148] sm:$0xff]
      %v808 = vld [vmem:[%s765 + $0x150] sm:$0xff]
      %v809 = vld [vmem:[%s765 + $0x158] sm:$0xff]
      %v810 = vld [vmem:[%s765 + $0x160] sm:$0xff]
      %v811 = vld [vmem:[%s765 + $0x168] sm:$0xff]
      %v812 = vld [vmem:[%s765 + $0x170] sm:$0xff]
      %v813 = vld [vmem:[%s765 + $0x178] sm:$0xff]
      %v814 = vld [vmem:[%s765 + $0x180] sm:$0xff]
      %v815 = vld [vmem:[%s765 + $0x188] sm:$0xff]
      %v816 = vld [vmem:[%s765 + $0x190] sm:$0xff]
      %v817 = vld [vmem:[%s765 + $0x198] sm:$0xff]
      %v818 = vld [vmem:[%s765 + $0x1a0] sm:$0xff]
      %v819 = vld [vmem:[%s765 + $0x1a8] sm:$0xff]
      %v820 = vld [vmem:[%s765 + $0x1b0] sm:$0xff]
      %v821 = vld [vmem:[%s765 + $0x1b8] sm:$0xff]
      %v822 = vld [vmem:[%s765 + $0x1c0] sm:$0xff]
      %v823 = vld [vmem:[%s765 + $0x1c8] sm:$0xff]
      %v824 = vld [vmem:[%s765 + $0x1d0] sm:$0xff]
      %v825 = vld [vmem:[%s765 + $0x1d8] sm:$0xff]
      %v826 = vld [vmem:[%s765 + $0x1e0] sm:$0xff]
      %v827 = vld [vmem:[%s765 + $0x1e8] sm:$0xff]
      %v828 = vld [vmem:[%s765 + $0x1f0] sm:$0xff]
      %v829 = vld [vmem:[%s765 + $0x1f8] sm:$0xff]
      %v830 = vld [vmem:[%s765 + $0x200] sm:$0xff]
      %v831 = vld [vmem:[%s765 + $0x208] sm:$0xff]
      %v832 = vld [vmem:[%s765 + $0x210] sm:$0xff]
      %v833 = vld [vmem:[%s765 + $0x218] sm:$0xff]
      %v834 = vld [vmem:[%s765 + $0x220] sm:$0xff]
      %v835 = vld [vmem:[%s765 + $0x228] sm:$0xff]
      %v836 = vld [vmem:[%s765 + $0x230] sm:$0xff]
      %v837 = vld [vmem:[%s765 + $0x238] sm:$0xff]
      %v838 = vld [vmem:[%s765 + $0x240] sm:$0xff]
      %v839 = vld [vmem:[%s765 + $0x248] sm:$0xff]
      %v840 = vld [vmem:[%s765 + $0x250] sm:$0xff]
      %v841 = vld [vmem:[%s765 + $0x258] sm:$0xff]
      %v842 = vld [vmem:[%s765 + $0x260] sm:$0xff]
      %v843 = vld [vmem:[%s765 + $0x268] sm:$0xff]
      %v844 = vld [vmem:[%s765 + $0x270] sm:$0xff]
      %v845 = vld [vmem:[%s765 + $0x278] sm:$0xff]
      %v846 = vld [vmem:[%s765 + $0x280] sm:$0xff]
      %v847 = vld [vmem:[%s765 + $0x288] sm:$0xff]
      %v848 = vld [vmem:[%s765 + $0x290] sm:$0xff]
      %v849 = vld [vmem:[%s765 + $0x298] sm:$0xff]
      %v850 = vld [vmem:[%s765 + $0x2a0] sm:$0xff]
      %v851 = vld [vmem:[%s765 + $0x2a8] sm:$0xff]
      %v852 = vld [vmem:[%s765 + $0x2b0] sm:$0xff]
      %v853 = vld [vmem:[%s765 + $0x2b8] sm:$0xff]
      %v854 = vld [vmem:[%s765 + $0x2c0] sm:$0xff]
      %v855 = vld [vmem:[%s765 + $0x2c8] sm:$0xff]
      %v856 = vld [vmem:[%s765 + $0x2d0] sm:$0xff]
      %v857 = vld [vmem:[%s765 + $0x2d8] sm:$0xff]
      %v858 = vld [vmem:[%s765 + $0x2e0] sm:$0xff]
      %v859 = vld [vmem:[%s765 + $0x2e8] sm:$0xff]
      %v860 = vld [vmem:[%s765 + $0x2f0] sm:$0xff]
      %v861 = vld [vmem:[%s765 + $0x2f8] sm:$0xff]
      %v862 = vld [vmem:[%s765 + $0x300] sm:$0xff]
      %v863 = vld [vmem:[%s765 + $0x308] sm:$0xff]
      %v864 = vld [vmem:[%s765 + $0x310] sm:$0xff]
      %v865 = vld [vmem:[%s765 + $0x318] sm:$0xff]
      %v866 = vld [vmem:[%s765 + $0x320] sm:$0xff]
      %v867 = vld [vmem:[%s765 + $0x328] sm:$0xff]
      %v868 = vld [vmem:[%s765 + $0x330] sm:$0xff]
      %v869 = vld [vmem:[%s765 + $0x338] sm:$0xff]
      %v870 = vld [vmem:[%s765 + $0x340] sm:$0xff]
      %v871 = vld [vmem:[%s765 + $0x348] sm:$0xff]
      %v872 = vld [vmem:[%s765 + $0x350] sm:$0xff]
      %v873 = vld [vmem:[%s765 + $0x358] sm:$0xff]
      %v874 = vld [vmem:[%s765 + $0x360] sm:$0xff]
      %v875 = vld [vmem:[%s765 + $0x368] sm:$0xff]
      %v876 = vld [vmem:[%s765 + $0x370] sm:$0xff]
      %v877 = vld [vmem:[%s765 + $0x378] sm:$0xff]
      %v878 = vld [vmem:[%s765 + $0x380] sm:$0xff]
      %v879 = vld [vmem:[%s765 + $0x388] sm:$0xff]
      %v880 = vld [vmem:[%s765 + $0x390] sm:$0xff]
      %v881 = vld [vmem:[%s765 + $0x398] sm:$0xff]
      %v882 = vld [vmem:[%s765 + $0x3a0] sm:$0xff]
      %v883 = vld [vmem:[%s765 + $0x3a8] sm:$0xff]
      %v884 = vld [vmem:[%s765 + $0x3b0] sm:$0xff]
      %v885 = vld [vmem:[%s765 + $0x3b8] sm:$0xff]
      %v886 = vld [vmem:[%s765 + $0x3c0] sm:$0xff]
      %v887 = vld [vmem:[%s765 + $0x3c8] sm:$0xff]
      %v888 = vld [vmem:[%s765 + $0x3d0] sm:$0xff]
      %v889 = vld [vmem:[%s765 + $0x3d8] sm:$0xff]
      %v890 = vld [vmem:[%s765 + $0x3e0] sm:$0xff]
      %v891 = vld [vmem:[%s765 + $0x3e8] sm:$0xff]
      %v892 = vld [vmem:[%s765 + $0x3f0] sm:$0xff]
      %v893 = vld [vmem:[%s765 + $0x3f8] sm:$0xff]
      %v894 = vld [vmem:[%s765 + $0x400] sm:$0xff]
      %v895 = vld [vmem:[%s765 + $0x408] sm:$0xff]
      %v896 = vld [vmem:[%s765 + $0x410] sm:$0xff]
      %v897 = vld [vmem:[%s765 + $0x418] sm:$0xff]
      %v898 = vld [vmem:[%s765 + $0x420] sm:$0xff]
      %v899 = vld [vmem:[%s765 + $0x428] sm:$0xff]
      %v900 = vld [vmem:[%s765 + $0x430] sm:$0xff]
      %v901 = vld [vmem:[%s765 + $0x438] sm:$0xff]
      %v902 = vld [vmem:[%s765 + $0x440] sm:$0xff]
      %v903 = vld [vmem:[%s765 + $0x448] sm:$0xff]
      %v904 = vld [vmem:[%s765 + $0x450] sm:$0xff]
      %v905 = vld [vmem:[%s765 + $0x458] sm:$0xff]
      %v906 = vld [vmem:[%s765 + $0x460] sm:$0xff]
      %v907 = vld [vmem:[%s765 + $0x468] sm:$0xff]
      %v908 = vld [vmem:[%s765 + $0x470] sm:$0xff]
      %v909 = vld [vmem:[%s765 + $0x478] sm:$0xff]
      %v910 = vld [vmem:[%s765 + $0x480] sm:$0xff]
      %v911 = vld [vmem:[%s765 + $0x488] sm:$0xff]
      %v912 = vld [vmem:[%s765 + $0x490] sm:$0xff]
      %v913 = vld [vmem:[%s765 + $0x498] sm:$0xff]
      %v914 = vld [vmem:[%s765 + $0x4a0] sm:$0xff]
      %v915 = vld [vmem:[%s765 + $0x4a8] sm:$0xff]
      %v916 = vld [vmem:[%s765 + $0x4b0] sm:$0xff]
      %v917 = vld [vmem:[%s765 + $0x4b8] sm:$0xff]
      %v918 = vld [vmem:[%s765 + $0x4c0] sm:$0xff]
      %v919 = vld [vmem:[%s765 + $0x4c8] sm:$0xff]
      %v920 = vld [vmem:[%s765 + $0x4d0] sm:$0xff]
      %v921 = vld [vmem:[%s765 + $0x4d8] sm:$0xff]
      %v922 = vld [vmem:[%s765 + $0x4e0] sm:$0xff]
      %v923 = vld [vmem:[%s765 + $0x4e8] sm:$0xff]
      %v924 = vld [vmem:[%s765 + $0x4f0] sm:$0xff]
      %v925 = vld [vmem:[%s765 + $0x4f8] sm:$0xff]
      %v926 = vld [vmem:[%s765 + $0x500] sm:$0xff]
      %v927 = vld [vmem:[%s765 + $0x508] sm:$0xff]
      %v928 = vld [vmem:[%s765 + $0x510] sm:$0xff]
      %v929 = vld [vmem:[%s765 + $0x518] sm:$0xff]
      %v930 = vld [vmem:[%s765 + $0x520] sm:$0xff]
      %v931 = vld [vmem:[%s765 + $0x528] sm:$0xff]
      %v932 = vld [vmem:[%s765 + $0x530] sm:$0xff]
      %v933 = vld [vmem:[%s765 + $0x538] sm:$0xff]
      %v934 = vld [vmem:[%s765 + $0x540] sm:$0xff]
      %v935 = vld [vmem:[%s765 + $0x548] sm:$0xff]
      %v936 = vld [vmem:[%s765 + $0x550] sm:$0xff]
      %v937 = vld [vmem:[%s765 + $0x558] sm:$0xff]
      %v938 = vld [vmem:[%s765 + $0x560] sm:$0xff]
      %v939 = vld [vmem:[%s765 + $0x568] sm:$0xff]
      %v940 = vld [vmem:[%s765 + $0x570] sm:$0xff]
      %v941 = vld [vmem:[%s765 + $0x578] sm:$0xff]
      %v942 = vld [vmem:[%s765 + $0x580] sm:$0xff]
      %v943 = vld [vmem:[%s765 + $0x588] sm:$0xff]
      %v944 = vld [vmem:[%s765 + $0x590] sm:$0xff]
      %v945 = vld [vmem:[%s765 + $0x598] sm:$0xff]
      %v946 = vld [vmem:[%s765 + $0x5a0] sm:$0xff]
      %v947 = vld [vmem:[%s765 + $0x5a8] sm:$0xff]
      %v948 = vld [vmem:[%s765 + $0x5b0] sm:$0xff]
      %v949 = vld [vmem:[%s765 + $0x5b8] sm:$0xff]
      %v950 = vld [vmem:[%s765 + $0x5c0] sm:$0xff]
      %v951 = vld [vmem:[%s765 + $0x5c8] sm:$0xff]
      %v952 = vld [vmem:[%s765 + $0x5d0] sm:$0xff]
      %v953 = vld [vmem:[%s765 + $0x5d8] sm:$0xff]
      %v954 = vld [vmem:[%s765 + $0x5e0] sm:$0xff]
      %v955 = vld [vmem:[%s765 + $0x5e8] sm:$0xff]
      %v956 = vld [vmem:[%s765 + $0x5f0] sm:$0xff]
      %v957 = vld [vmem:[%s765 + $0x5f8] sm:$0xff]
      %958 = vst [vmem:[#allocation1] ss:$4 sm:$0xff] %v671
      %s959 = scalar_lea.vmem [#allocation1], 1
      %960 = vst [vmem:[%s959] ss:$4 sm:$0xff] %v676
      %s961 = scalar_lea.vmem [#allocation1], 2
      %962 = vst [vmem:[%s961] ss:$4 sm:$0xff] %v682
      %s963 = scalar_lea.vmem [#allocation1], 3
      %964 = vst [vmem:[%s963] ss:$4 sm:$0xff] %v687
      %s965 = scalar_lea.vmem [#allocation1], 32
      %966 = vst [vmem:[%s965] ss:$4 sm:$0xff] %v672
      %s967 = scalar_lea.vmem [#allocation1], 33
      %968 = vst [vmem:[%s967] ss:$4 sm:$0xff] %v678
      %s969 = scalar_lea.vmem [#allocation1], 34
      %970 = vst [vmem:[%s969] ss:$4 sm:$0xff] %v684
      %s971 = scalar_lea.vmem [#allocation1], 35
      %972 = vst [vmem:[%s971] ss:$4 sm:$0xff] %v688
      %v973 = vld.sshfl [vmem:[#allocation1] sm:$0xff pattern:$0x73625140]
      %v974 = vld.sshfl [vmem:[#allocation1 + $0x8] sm:$0xff pattern:$0x73625140]
      %v975 = vld.sshfl [vmem:[#allocation1 + $0x10] sm:$0xff pattern:$0x73625140]
      %v976 = vld.sshfl [vmem:[#allocation1 + $0x18] sm:$0xff pattern:$0x73625140]
      %v977 = vld.sshfl [vmem:[#allocation1 + $0x20] sm:$0xff pattern:$0x73625140]
      %v978 = vld.sshfl [vmem:[#allocation1 + $0x28] sm:$0xff pattern:$0x73625140]
      %979 = vst [vmem:[#allocation1] ss:$4 sm:$0xff] %v692
      %980 = vst [vmem:[%s959] ss:$4 sm:$0xff] %v698
      %981 = vst [vmem:[%s961] ss:$4 sm:$0xff] %v703
      %982 = vst [vmem:[%s963] ss:$4 sm:$0xff] %v708
      %983 = vst [vmem:[%s965] ss:$4 sm:$0xff] %v694
      %984 = vst [vmem:[%s967] ss:$4 sm:$0xff] %v700
      %985 = vst [vmem:[%s969] ss:$4 sm:$0xff] %v704
      %986 = vst [vmem:[%s971] ss:$4 sm:$0xff] %v710
      %v987 = vld.sshfl [vmem:[#allocation1] sm:$0xff pattern:$0x73625140]
      %v988 = vld.sshfl [vmem:[#allocation1 + $0x8] sm:$0xff pattern:$0x73625140]
      %v989 = vld.sshfl [vmem:[#allocation1 + $0x10] sm:$0xff pattern:$0x73625140]
      %v990 = vld.sshfl [vmem:[#allocation1 + $0x18] sm:$0xff pattern:$0x73625140]
      %v991 = vld.sshfl [vmem:[#allocation1 + $0x20] sm:$0xff pattern:$0x73625140]
      %v992 = vld.sshfl [vmem:[#allocation1 + $0x28] sm:$0xff pattern:$0x73625140]
      %993 = vst [vmem:[#allocation1] ss:$4 sm:$0xff] %v714
      %994 = vst [vmem:[%s959] ss:$4 sm:$0xff] %v719
      %995 = vst [vmem:[%s961] ss:$4 sm:$0xff] %v724
      %996 = vst [vmem:[%s963] ss:$4 sm:$0xff] %v730
      %997 = vst [vmem:[%s965] ss:$4 sm:$0xff] %v716
      %998 = vst [vmem:[%s967] ss:$4 sm:$0xff] %v720
      %999 = vst [vmem:[%s969] ss:$4 sm:$0xff] %v726
      %1000 = vst [vmem:[%s971] ss:$4 sm:$0xff] %v732
      %v1001 = vld.sshfl [vmem:[#allocation1] sm:$0xff pattern:$0x73625140]
      %v1002 = vld.sshfl [vmem:[#allocation1 + $0x8] sm:$0xff pattern:$0x73625140]
      %v1003 = vld.sshfl [vmem:[#allocation1 + $0x10] sm:$0xff pattern:$0x73625140]
      %v1004 = vld.sshfl [vmem:[#allocation1 + $0x18] sm:$0xff pattern:$0x73625140]
      %v1005 = vld.sshfl [vmem:[#allocation1 + $0x20] sm:$0xff pattern:$0x73625140]
      %v1006 = vld.sshfl [vmem:[#allocation1 + $0x28] sm:$0xff pattern:$0x73625140]
      %1007 = vst [vmem:[#allocation1] ss:$4 sm:$0xff] %v735
      %1008 = vst [vmem:[%s959] ss:$4 sm:$0xff] %v740
      %1009 = vst [vmem:[%s961] ss:$4 sm:$0xff] %v746
      %1010 = vst [vmem:[%s963] ss:$4 sm:$0xff] %v751
      %1011 = vst [vmem:[%s965] ss:$4 sm:$0xff] %v736
      %1012 = vst [vmem:[%s967] ss:$4 sm:$0xff] %v742
      %1013 = vst [vmem:[%s969] ss:$4 sm:$0xff] %v748
      %1014 = vst [vmem:[%s971] ss:$4 sm:$0xff] %v752
      %v1015 = vld.sshfl [vmem:[#allocation1] sm:$0xff pattern:$0x73625140]
      %v1016 = vld.sshfl [vmem:[#allocation1 + $0x8] sm:$0xff pattern:$0x73625140]
      %v1017 = vld.sshfl [vmem:[#allocation1 + $0x10] sm:$0xff pattern:$0x73625140]
      %v1018 = vld.sshfl [vmem:[#allocation1 + $0x18] sm:$0xff pattern:$0x73625140]
      %v1019 = vld.sshfl [vmem:[#allocation1 + $0x20] sm:$0xff pattern:$0x73625140]
      %v1020 = vld.sshfl [vmem:[#allocation1 + $0x28] sm:$0xff pattern:$0x73625140]
      %1021 = vst [vmem:[#allocation1] ss:$4 sm:$0xff] %v756
      %1022 = vst [vmem:[%s959] ss:$4 sm:$0xff] %v762
      %1023 = vst [vmem:[%s965] ss:$4 sm:$0xff] %v758
      %1024 = vst [vmem:[%s967] ss:$4 sm:$0xff] %v764
      %v1025 = vld.sshfl [vmem:[#allocation1] sm:$0xff pattern:$0x73625140]
      %v1026 = vld.sshfl [vmem:[#allocation1 + $0x8] sm:$0xff pattern:$0x73625140]
      %v1027 = vld.sshfl [vmem:[#allocation1 + $0x10] sm:$0xff pattern:$0x73625140]
      %v1028 = vld.sshfl [vmem:[#allocation1 + $0x18] sm:$0xff pattern:$0x73625140]
      %v1029 = vld.sshfl [vmem:[#allocation1 + $0x20] sm:$0xff pattern:$0x73625140]
      %v1030 = vld.sshfl [vmem:[#allocation1 + $0x28] sm:$0xff pattern:$0x73625140]
      %1061 = vmatpush.msra.mxu0 %v796
      %1062 = vmatpush.msra.mxu0 %v794
      %1063 = vmatpush.msra.mxu0 %v792
      %1064 = vmatpush.msra.mxu0 %v790
      %1065 = vmatpush.msra.mxu0 %v788
      %1066 = vmatpush.msra.mxu0 %v786
      %1067 = vmatpush.msra.mxu0 %v784
      %1068 = vmatpush.msra.mxu0 %v782
      %1069 = vmatpush.msra.mxu0 %v780
      %1070 = vmatpush.msra.mxu0 %v778
      %1071 = vmatpush.msra.mxu0 %v776
      %1072 = vmatpush.msra.mxu0 %v774
      %1073 = vmatpush.msra.mxu0 %v772
      %1074 = vmatpush.msra.mxu0 %v770
      %1075 = vmatpush.msra.mxu0 %v768
      %1076 = vmatpush.msra.mxu0 %v766
      %1077 = vmatmul.f32.gmra.mxu0 %v973
      %v1078 = vpop.f32.mrf.mxu0
      %v1079 = vadd.f32 0.0, %v1078
      %1080 = vmatmul.f32.gmra.mxu0 %v987
      %v1081 = vpop.f32.mrf.mxu0
      %v1082 = vadd.f32 0.0, %v1081
      %1083 = vmatmul.f32.gmra.mxu0 %v1001
      %v1084 = vpop.f32.mrf.mxu0
      %v1085 = vadd.f32 0.0, %v1084
      %1086 = vmatmul.f32.gmra.mxu0 %v1015
      %v1087 = vpop.f32.mrf.mxu0
      %v1088 = vadd.f32 0.0, %v1087
      %1089 = vmatmul.f32.gmra.mxu0 %v1025
      %v1090 = vpop.f32.mrf.mxu0
      %v1091 = vadd.f32 0.0, %v1090
      %1092 = vdwg.mxu0
      %1093 = vmatpush.msra.mxu0 %v828
      %1094 = vmatpush.msra.mxu0 %v826
      %1095 = vmatpush.msra.mxu0 %v824
      %1096 = vmatpush.msra.mxu0 %v822
      %1097 = vmatpush.msra.mxu0 %v820
      %1098 = vmatpush.msra.mxu0 %v818
      %1099 = vmatpush.msra.mxu0 %v816
      %1100 = vmatpush.msra.mxu0 %v814
      %1101 = vmatpush.msra.mxu0 %v812
      %1102 = vmatpush.msra.mxu0 %v810
      %1103 = vmatpush.msra.mxu0 %v808
      %1104 = vmatpush.msra.mxu0 %v806
      %1105 = vmatpush.msra.mxu0 %v804
      %1106 = vmatpush.msra.mxu0 %v802
      %1107 = vmatpush.msra.mxu0 %v800
      %1108 = vmatpush.msra.mxu0 %v798
      %1109 = vmatmul.f32.gmra.mxu0 %v974
      %v1110 = vpop.f32.mrf.mxu0
      %v1111 = vadd.f32 %v1079, %v1110
      %1112 = vmatmul.f32.gmra.mxu0 %v988
      %v1113 = vpop.f32.mrf.mxu0
      %v1114 = vadd.f32 %v1082, %v1113
      %1115 = vmatmul.f32.gmra.mxu0 %v1002
      %v1116 = vpop.f32.mrf.mxu0
      %v1117 = vadd.f32 %v1085, %v1116
      %1118 = vmatmul.f32.gmra.mxu0 %v1016
      %v1119 = vpop.f32.mrf.mxu0
      %v1120 = vadd.f32 %v1088, %v1119
      %1121 = vmatmul.f32.gmra.mxu0 %v1026
      %v1122 = vpop.f32.mrf.mxu0
      %v1123 = vadd.f32 %v1091, %v1122
      %1124 = vdwg.mxu0
      %1125 = vmatpush.msra.mxu0 %v860
      %1126 = vmatpush.msra.mxu0 %v858
      %1127 = vmatpush.msra.mxu0 %v856
      %1128 = vmatpush.msra.mxu0 %v854
      %1129 = vmatpush.msra.mxu0 %v852
      %1130 = vmatpush.msra.mxu0 %v850
      %1131 = vmatpush.msra.mxu0 %v848
      %1132 = vmatpush.msra.mxu0 %v846
      %1133 = vmatpush.msra.mxu0 %v844
      %1134 = vmatpush.msra.mxu0 %v842
      %1135 = vmatpush.msra.mxu0 %v840
      %1136 = vmatpush.msra.mxu0 %v838
      %1137 = vmatpush.msra.mxu0 %v836
      %1138 = vmatpush.msra.mxu0 %v834
      %1139 = vmatpush.msra.mxu0 %v832
      %1140 = vmatpush.msra.mxu0 %v830
      %1141 = vmatmul.f32.gmra.mxu0 %v975
      %v1142 = vpop.f32.mrf.mxu0
      %v1143 = vadd.f32 %v1111, %v1142
      %1144 = vmatmul.f32.gmra.mxu0 %v989
      %v1145 = vpop.f32.mrf.mxu0
      %v1146 = vadd.f32 %v1114, %v1145
      %1147 = vmatmul.f32.gmra.mxu0 %v1003
      %v1148 = vpop.f32.mrf.mxu0
      %v1149 = vadd.f32 %v1117, %v1148
      %1150 = vmatmul.f32.gmra.mxu0 %v1017
      %v1151 = vpop.f32.mrf.mxu0
      %v1152 = vadd.f32 %v1120, %v1151
      %1153 = vmatmul.f32.gmra.mxu0 %v1027
      %v1154 = vpop.f32.mrf.mxu0
      %v1155 = vadd.f32 %v1123, %v1154
      %1156 = vdwg.mxu0
      %1157 = vmatpush.msra.mxu0 %v892
      %1158 = vmatpush.msra.mxu0 %v890
      %1159 = vmatpush.msra.mxu0 %v888
      %1160 = vmatpush.msra.mxu0 %v886
      %1161 = vmatpush.msra.mxu0 %v884
      %1162 = vmatpush.msra.mxu0 %v882
      %1163 = vmatpush.msra.mxu0 %v880
      %1164 = vmatpush.msra.mxu0 %v878
      %1165 = vmatpush.msra.mxu0 %v876
      %1166 = vmatpush.msra.mxu0 %v874
      %1167 = vmatpush.msra.mxu0 %v872
      %1168 = vmatpush.msra.mxu0 %v870
      %1169 = vmatpush.msra.mxu0 %v868
      %1170 = vmatpush.msra.mxu0 %v866
      %1171 = vmatpush.msra.mxu0 %v864
      %1172 = vmatpush.msra.mxu0 %v862
      %1173 = vmatmul.f32.gmra.mxu0 %v976
      %v1174 = vpop.f32.mrf.mxu0
      %v1175 = vadd.f32 %v1143, %v1174
      %1176 = vmatmul.f32.gmra.mxu0 %v990
      %v1177 = vpop.f32.mrf.mxu0
      %v1178 = vadd.f32 %v1146, %v1177
      %1179 = vmatmul.f32.gmra.mxu0 %v1004
      %v1180 = vpop.f32.mrf.mxu0
      %v1181 = vadd.f32 %v1149, %v1180
      %1182 = vmatmul.f32.gmra.mxu0 %v1018
      %v1183 = vpop.f32.mrf.mxu0
      %v1184 = vadd.f32 %v1152, %v1183
      %1185 = vmatmul.f32.gmra.mxu0 %v1028
      %v1186 = vpop.f32.mrf.mxu0
      %v1187 = vadd.f32 %v1155, %v1186
      %1188 = vdwg.mxu0
      %1189 = vmatpush.msra.mxu0 %v924
      %1190 = vmatpush.msra.mxu0 %v922
      %1191 = vmatpush.msra.mxu0 %v920
      %1192 = vmatpush.msra.mxu0 %v918
      %1193 = vmatpush.msra.mxu0 %v916
      %1194 = vmatpush.msra.mxu0 %v914
      %1195 = vmatpush.msra.mxu0 %v912
      %1196 = vmatpush.msra.mxu0 %v910
      %1197 = vmatpush.msra.mxu0 %v908
      %1198 = vmatpush.msra.mxu0 %v906
      %1199 = vmatpush.msra.mxu0 %v904
      %1200 = vmatpush.msra.mxu0 %v902
      %1201 = vmatpush.msra.mxu0 %v900
      %1202 = vmatpush.msra.mxu0 %v898
      %1203 = vmatpush.msra.mxu0 %v896
      %1204 = vmatpush.msra.mxu0 %v894
      %1205 = vmatmul.f32.gmra.mxu0 %v977
      %v1206 = vpop.f32.mrf.mxu0
      %v1207 = vadd.f32 %v1175, %v1206
      %1208 = vmatmul.f32.gmra.mxu0 %v991
      %v1209 = vpop.f32.mrf.mxu0
      %v1210 = vadd.f32 %v1178, %v1209
      %1211 = vmatmul.f32.gmra.mxu0 %v1005
      %v1212 = vpop.f32.mrf.mxu0
      %v1213 = vadd.f32 %v1181, %v1212
      %1214 = vmatmul.f32.gmra.mxu0 %v1019
      %v1215 = vpop.f32.mrf.mxu0
      %v1216 = vadd.f32 %v1184, %v1215
      %1217 = vmatmul.f32.gmra.mxu0 %v1029
      %v1218 = vpop.f32.mrf.mxu0
      %v1219 = vadd.f32 %v1187, %v1218
      %1220 = vdwg.mxu0
      %1221 = vmatpush.msra.mxu0 %v956
      %1222 = vmatpush.msra.mxu0 %v954
      %1223 = vmatpush.msra.mxu0 %v952
      %1224 = vmatpush.msra.mxu0 %v950
      %1225 = vmatpush.msra.mxu0 %v948
      %1226 = vmatpush.msra.mxu0 %v946
      %1227 = vmatpush.msra.mxu0 %v944
      %1228 = vmatpush.msra.mxu0 %v942
      %1229 = vmatpush.msra.mxu0 %v940
      %1230 = vmatpush.msra.mxu0 %v938
      %1231 = vmatpush.msra.mxu0 %v936
      %1232 = vmatpush.msra.mxu0 %v934
      %1233 = vmatpush.msra.mxu0 %v932
      %1234 = vmatpush.msra.mxu0 %v930
      %1235 = vmatpush.msra.mxu0 %v928
      %1236 = vmatpush.msra.mxu0 %v926
      %1237 = vmatmul.f32.gmra.mxu0 %v978
      %v1238 = vpop.f32.mrf.mxu0
      %v1239 = vadd.f32 %v1207, %v1238
      %1240 = vmatmul.f32.gmra.mxu0 %v992
      %v1241 = vpop.f32.mrf.mxu0
      %v1242 = vadd.f32 %v1210, %v1241
      %1243 = vmatmul.f32.gmra.mxu0 %v1006
      %v1244 = vpop.f32.mrf.mxu0
      %v1245 = vadd.f32 %v1213, %v1244
      %1246 = vmatmul.f32.gmra.mxu0 %v1020
      %v1247 = vpop.f32.mrf.mxu0
      %v1248 = vadd.f32 %v1216, %v1247
      %1249 = vmatmul.f32.gmra.mxu0 %v1030
      %v1250 = vpop.f32.mrf.mxu0
      %v1251 = vadd.f32 %v1219, %v1250
      %1252 = vdwg.mxu0
      %1253 = vmatpush.msra.mxu0 %v797
      %1254 = vmatpush.msra.mxu0 %v795
      %1255 = vmatpush.msra.mxu0 %v793
      %1256 = vmatpush.msra.mxu0 %v791
      %1257 = vmatpush.msra.mxu0 %v789
      %1258 = vmatpush.msra.mxu0 %v787
      %1259 = vmatpush.msra.mxu0 %v785
      %1260 = vmatpush.msra.mxu0 %v783
      %1261 = vmatpush.msra.mxu0 %v781
      %1262 = vmatpush.msra.mxu0 %v779
      %1263 = vmatpush.msra.mxu0 %v777
      %1264 = vmatpush.msra.mxu0 %v775
      %1265 = vmatpush.msra.mxu0 %v773
      %1266 = vmatpush.msra.mxu0 %v771
      %1267 = vmatpush.msra.mxu0 %v769
      %1268 = vmatpush.msra.mxu0 %v767
      %1269 = vmatmul.f32.gmra.mxu0 %v973
      %v1270 = vpop.f32.mrf.mxu0
      %v1271 = vadd.f32 0.0, %v1270
      %1272 = vmatmul.f32.gmra.mxu0 %v987
      %v1273 = vpop.f32.mrf.mxu0
      %v1274 = vadd.f32 0.0, %v1273
      %1275 = vmatmul.f32.gmra.mxu0 %v1001
      %v1276 = vpop.f32.mrf.mxu0
      %v1277 = vadd.f32 0.0, %v1276
      %1278 = vmatmul.f32.gmra.mxu0 %v1015
      %v1279 = vpop.f32.mrf.mxu0
      %v1280 = vadd.f32 0.0, %v1279
      %1281 = vmatmul.f32.gmra.mxu0 %v1025
      %v1282 = vpop.f32.mrf.mxu0
      %v1283 = vadd.f32 0.0, %v1282
      %1284 = vdwg.mxu0
      %1285 = vmatpush.msra.mxu0 %v829
      %1286 = vmatpush.msra.mxu0 %v827
      %1287 = vmatpush.msra.mxu0 %v825
      %1288 = vmatpush.msra.mxu0 %v823
      %1289 = vmatpush.msra.mxu0 %v821
      %1290 = vmatpush.msra.mxu0 %v819
      %1291 = vmatpush.msra.mxu0 %v817
      %1292 = vmatpush.msra.mxu0 %v815
      %1293 = vmatpush.msra.mxu0 %v813
      %1294 = vmatpush.msra.mxu0 %v811
      %1295 = vmatpush.msra.mxu0 %v809
      %1296 = vmatpush.msra.mxu0 %v807
      %1297 = vmatpush.msra.mxu0 %v805
      %1298 = vmatpush.msra.mxu0 %v803
      %1299 = vmatpush.msra.mxu0 %v801
      %1300 = vmatpush.msra.mxu0 %v799
      %1301 = vmatmul.f32.gmra.mxu0 %v974
      %v1302 = vpop.f32.mrf.mxu0
      %v1303 = vadd.f32 %v1271, %v1302
      %1304 = vmatmul.f32.gmra.mxu0 %v988
      %v1305 = vpop.f32.mrf.mxu0
      %v1306 = vadd.f32 %v1274, %v1305
      %1307 = vmatmul.f32.gmra.mxu0 %v1002
      %v1308 = vpop.f32.mrf.mxu0
      %v1309 = vadd.f32 %v1277, %v1308
      %1310 = vmatmul.f32.gmra.mxu0 %v1016
      %v1311 = vpop.f32.mrf.mxu0
      %v1312 = vadd.f32 %v1280, %v1311
      %1313 = vmatmul.f32.gmra.mxu0 %v1026
      %v1314 = vpop.f32.mrf.mxu0
      %v1315 = vadd.f32 %v1283, %v1314
      %1316 = vdwg.mxu0
      %1317 = vmatpush.msra.mxu0 %v861
      %1318 = vmatpush.msra.mxu0 %v859
      %1319 = vmatpush.msra.mxu0 %v857
      %1320 = vmatpush.msra.mxu0 %v855
      %1321 = vmatpush.msra.mxu0 %v853
      %1322 = vmatpush.msra.mxu0 %v851
      %1323 = vmatpush.msra.mxu0 %v849
      %1324 = vmatpush.msra.mxu0 %v847
      %1325 = vmatpush.msra.mxu0 %v845
      %1326 = vmatpush.msra.mxu0 %v843
      %1327 = vmatpush.msra.mxu0 %v841
      %1328 = vmatpush.msra.mxu0 %v839
      %1329 = vmatpush.msra.mxu0 %v837
      %1330 = vmatpush.msra.mxu0 %v835
      %1331 = vmatpush.msra.mxu0 %v833
      %1332 = vmatpush.msra.mxu0 %v831
      %1333 = vmatmul.f32.gmra.mxu0 %v975
      %v1334 = vpop.f32.mrf.mxu0
      %v1335 = vadd.f32 %v1303, %v1334
      %1336 = vmatmul.f32.gmra.mxu0 %v989
      %v1337 = vpop.f32.mrf.mxu0
      %v1338 = vadd.f32 %v1306, %v1337
      %1339 = vmatmul.f32.gmra.mxu0 %v1003
      %v1340 = vpop.f32.mrf.mxu0
      %v1341 = vadd.f32 %v1309, %v1340
      %1342 = vmatmul.f32.gmra.mxu0 %v1017
      %v1343 = vpop.f32.mrf.mxu0
      %v1344 = vadd.f32 %v1312, %v1343
      %1345 = vmatmul.f32.gmra.mxu0 %v1027
      %v1346 = vpop.f32.mrf.mxu0
      %v1347 = vadd.f32 %v1315, %v1346
      %1348 = vdwg.mxu0
      %1349 = vmatpush.msra.mxu0 %v893
      %1350 = vmatpush.msra.mxu0 %v891
      %1351 = vmatpush.msra.mxu0 %v889
      %1352 = vmatpush.msra.mxu0 %v887
      %1353 = vmatpush.msra.mxu0 %v885
      %1354 = vmatpush.msra.mxu0 %v883
      %1355 = vmatpush.msra.mxu0 %v881
      %1356 = vmatpush.msra.mxu0 %v879
      %1357 = vmatpush.msra.mxu0 %v877
      %1358 = vmatpush.msra.mxu0 %v875
      %1359 = vmatpush.msra.mxu0 %v873
      %1360 = vmatpush.msra.mxu0 %v871
      %1361 = vmatpush.msra.mxu0 %v869
      %1362 = vmatpush.msra.mxu0 %v867
      %1363 = vmatpush.msra.mxu0 %v865
      %1364 = vmatpush.msra.mxu0 %v863
      %1365 = vmatmul.f32.gmra.mxu0 %v976
      %v1366 = vpop.f32.mrf.mxu0
      %v1367 = vadd.f32 %v1335, %v1366
      %1368 = vmatmul.f32.gmra.mxu0 %v990
      %v1369 = vpop.f32.mrf.mxu0
      %v1370 = vadd.f32 %v1338, %v1369
      %1371 = vmatmul.f32.gmra.mxu0 %v1004
      %v1372 = vpop.f32.mrf.mxu0
      %v1373 = vadd.f32 %v1341, %v1372
      %1374 = vmatmul.f32.gmra.mxu0 %v1018
      %v1375 = vpop.f32.mrf.mxu0
      %v1376 = vadd.f32 %v1344, %v1375
      %1377 = vmatmul.f32.gmra.mxu0 %v1028
      %v1378 = vpop.f32.mrf.mxu0
      %v1379 = vadd.f32 %v1347, %v1378
      %1380 = vdwg.mxu0
      %1381 = vmatpush.msra.mxu0 %v925
      %1382 = vmatpush.msra.mxu0 %v923
      %1383 = vmatpush.msra.mxu0 %v921
      %1384 = vmatpush.msra.mxu0 %v919
      %1385 = vmatpush.msra.mxu0 %v917
      %1386 = vmatpush.msra.mxu0 %v915
      %1387 = vmatpush.msra.mxu0 %v913
      %1388 = vmatpush.msra.mxu0 %v911
      %1389 = vmatpush.msra.mxu0 %v909
      %1390 = vmatpush.msra.mxu0 %v907
      %1391 = vmatpush.msra.mxu0 %v905
      %1392 = vmatpush.msra.mxu0 %v903
      %1393 = vmatpush.msra.mxu0 %v901
      %1394 = vmatpush.msra.mxu0 %v899
      %1395 = vmatpush.msra.mxu0 %v897
      %1396 = vmatpush.msra.mxu0 %v895
      %1397 = vmatmul.f32.gmra.mxu0 %v977
      %v1398 = vpop.f32.mrf.mxu0
      %v1399 = vadd.f32 %v1367, %v1398
      %1400 = vmatmul.f32.gmra.mxu0 %v991
      %v1401 = vpop.f32.mrf.mxu0
      %v1402 = vadd.f32 %v1370, %v1401
      %1403 = vmatmul.f32.gmra.mxu0 %v1005
      %v1404 = vpop.f32.mrf.mxu0
      %v1405 = vadd.f32 %v1373, %v1404
      %1406 = vmatmul.f32.gmra.mxu0 %v1019
      %v1407 = vpop.f32.mrf.mxu0
      %v1408 = vadd.f32 %v1376, %v1407
      %1409 = vmatmul.f32.gmra.mxu0 %v1029
      %v1410 = vpop.f32.mrf.mxu0
      %v1411 = vadd.f32 %v1379, %v1410
      %1412 = vdwg.mxu0
      %1413 = vmatpush.msra.mxu0 %v957
      %1414 = vmatpush.msra.mxu0 %v955
      %1415 = vmatpush.msra.mxu0 %v953
      %1416 = vmatpush.msra.mxu0 %v951
      %1417 = vmatpush.msra.mxu0 %v949
      %1418 = vmatpush.msra.mxu0 %v947
      %1419 = vmatpush.msra.mxu0 %v945
      %1420 = vmatpush.msra.mxu0 %v943
      %1421 = vmatpush.msra.mxu0 %v941
      %1422 = vmatpush.msra.mxu0 %v939
      %1423 = vmatpush.msra.mxu0 %v937
      %1424 = vmatpush.msra.mxu0 %v935
      %1425 = vmatpush.msra.mxu0 %v933
      %1426 = vmatpush.msra.mxu0 %v931
      %1427 = vmatpush.msra.mxu0 %v929
      %1428 = vmatpush.msra.mxu0 %v927
      %1429 = vmatmul.f32.gmra.mxu0 %v978
      %v1430 = vpop.f32.mrf.mxu0
      %v1431 = vadd.f32 %v1399, %v1430
      %1432 = vmatmul.f32.gmra.mxu0 %v992
      %v1433 = vpop.f32.mrf.mxu0
      %v1434 = vadd.f32 %v1402, %v1433
      %1435 = vmatmul.f32.gmra.mxu0 %v1006
      %v1436 = vpop.f32.mrf.mxu0
      %v1437 = vadd.f32 %v1405, %v1436
      %1438 = vmatmul.f32.gmra.mxu0 %v1020
      %v1439 = vpop.f32.mrf.mxu0
      %v1440 = vadd.f32 %v1408, %v1439
      %1441 = vmatmul.f32.gmra.mxu0 %v1030
      %v1442 = vpop.f32.mrf.mxu0
      %v1443 = vadd.f32 %v1411, %v1442
      %1444 = vdwg.mxu0
      %1445 = vst [vmem:[#allocation1] ss:$4 sm:$0xff] %v304
      %s1446 = scalar_lea.vmem [#allocation1], 1
      %1447 = vst [vmem:[%s1446] ss:$4 sm:$0xff] %v312
      %s1448 = scalar_lea.vmem [#allocation1], 2
      %1449 = vst [vmem:[%s1448] ss:$4 sm:$0xff] %v318
      %s1450 = scalar_lea.vmem [#allocation1], 3
      %1451 = vst [vmem:[%s1450] ss:$4 sm:$0xff] %v323
      %s1452 = scalar_lea.vmem [#allocation1], 32
      %1453 = vst [vmem:[%s1452] ss:$4 sm:$0xff] %v305
      %s1454 = scalar_lea.vmem [#allocation1], 33
      %1455 = vst [vmem:[%s1454] ss:$4 sm:$0xff] %v314
      %s1456 = scalar_lea.vmem [#allocation1], 34
      %1457 = vst [vmem:[%s1456] ss:$4 sm:$0xff] %v320
      %s1458 = scalar_lea.vmem [#allocation1], 35
      %1459 = vst [vmem:[%s1458] ss:$4 sm:$0xff] %v324
      %v1460 = vld.sshfl [vmem:[#allocation1] sm:$0xff pattern:$0x73625140]
      %v1461 = vld.sshfl [vmem:[#allocation1 + $0x8] sm:$0xff pattern:$0x73625140]
      %v1462 = vld.sshfl [vmem:[#allocation1 + $0x10] sm:$0xff pattern:$0x73625140]
      %v1463 = vld.sshfl [vmem:[#allocation1 + $0x18] sm:$0xff pattern:$0x73625140]
      %v1464 = vld.sshfl [vmem:[#allocation1 + $0x20] sm:$0xff pattern:$0x73625140]
      %v1465 = vld.sshfl [vmem:[#allocation1 + $0x28] sm:$0xff pattern:$0x73625140]
      %1466 = vst [vmem:[#allocation1] ss:$4 sm:$0xff] %v328
      %1467 = vst [vmem:[%s1446] ss:$4 sm:$0xff] %v334
      %1468 = vst [vmem:[%s1448] ss:$4 sm:$0xff] %v339
      %1469 = vst [vmem:[%s1450] ss:$4 sm:$0xff] %v344
      %1470 = vst [vmem:[%s1452] ss:$4 sm:$0xff] %v330
      %1471 = vst [vmem:[%s1454] ss:$4 sm:$0xff] %v336
      %1472 = vst [vmem:[%s1456] ss:$4 sm:$0xff] %v340
      %1473 = vst [vmem:[%s1458] ss:$4 sm:$0xff] %v346
      %v1474 = vld.sshfl [vmem:[#allocation1] sm:$0xff pattern:$0x73625140]
      %v1475 = vld.sshfl [vmem:[#allocation1 + $0x8] sm:$0xff pattern:$0x73625140]
      %v1476 = vld.sshfl [vmem:[#allocation1 + $0x10] sm:$0xff pattern:$0x73625140]
      %v1477 = vld.sshfl [vmem:[#allocation1 + $0x18] sm:$0xff pattern:$0x73625140]
      %v1478 = vld.sshfl [vmem:[#allocation1 + $0x20] sm:$0xff pattern:$0x73625140]
      %v1479 = vld.sshfl [vmem:[#allocation1 + $0x28] sm:$0xff pattern:$0x73625140]
      %1480 = vst [vmem:[#allocation1] ss:$4 sm:$0xff] %v350
      %1481 = vst [vmem:[%s1446] ss:$4 sm:$0xff] %v355
      %1482 = vst [vmem:[%s1448] ss:$4 sm:$0xff] %v360
      %1483 = vst [vmem:[%s1450] ss:$4 sm:$0xff] %v366
      %1484 = vst [vmem:[%s1452] ss:$4 sm:$0xff] %v352
      %1485 = vst [vmem:[%s1454] ss:$4 sm:$0xff] %v356
      %1486 = vst [vmem:[%s1456] ss:$4 sm:$0xff] %v362
      %1487 = vst [vmem:[%s1458] ss:$4 sm:$0xff] %v368
      %v1488 = vld.sshfl [vmem:[#allocation1] sm:$0xff pattern:$0x73625140]
      %v1489 = vld.sshfl [vmem:[#allocation1 + $0x8] sm:$0xff pattern:$0x73625140]
      %v1490 = vld.sshfl [vmem:[#allocation1 + $0x10] sm:$0xff pattern:$0x73625140]
      %v1491 = vld.sshfl [vmem:[#allocation1 + $0x18] sm:$0xff pattern:$0x73625140]
      %v1492 = vld.sshfl [vmem:[#allocation1 + $0x20] sm:$0xff pattern:$0x73625140]
      %v1493 = vld.sshfl [vmem:[#allocation1 + $0x28] sm:$0xff pattern:$0x73625140]
      %1494 = vst [vmem:[#allocation1] ss:$4 sm:$0xff] %v371
      %1495 = vst [vmem:[%s1446] ss:$4 sm:$0xff] %v376
      %1496 = vst [vmem:[%s1448] ss:$4 sm:$0xff] %v382
      %1497 = vst [vmem:[%s1450] ss:$4 sm:$0xff] %v387
      %1498 = vst [vmem:[%s1452] ss:$4 sm:$0xff] %v372
      %1499 = vst [vmem:[%s1454] ss:$4 sm:$0xff] %v378
      %1500 = vst [vmem:[%s1456] ss:$4 sm:$0xff] %v384
      %1501 = vst [vmem:[%s1458] ss:$4 sm:$0xff] %v388
      %v1502 = vld.sshfl [vmem:[#allocation1] sm:$0xff pattern:$0x73625140]
      %v1503 = vld.sshfl [vmem:[#allocation1 + $0x8] sm:$0xff pattern:$0x73625140]
      %v1504 = vld.sshfl [vmem:[#allocation1 + $0x10] sm:$0xff pattern:$0x73625140]
      %v1505 = vld.sshfl [vmem:[#allocation1 + $0x18] sm:$0xff pattern:$0x73625140]
      %v1506 = vld.sshfl [vmem:[#allocation1 + $0x20] sm:$0xff pattern:$0x73625140]
      %v1507 = vld.sshfl [vmem:[#allocation1 + $0x28] sm:$0xff pattern:$0x73625140]
      %1508 = vst [vmem:[#allocation1] ss:$4 sm:$0xff] %v392
      %1509 = vst [vmem:[%s1446] ss:$4 sm:$0xff] %v398
      %1510 = vst [vmem:[%s1452] ss:$4 sm:$0xff] %v394
      %1511 = vst [vmem:[%s1454] ss:$4 sm:$0xff] %v400
      %v1512 = vld.sshfl [vmem:[#allocation1] sm:$0xff pattern:$0x73625140]
      %v1513 = vld.sshfl [vmem:[#allocation1 + $0x8] sm:$0xff pattern:$0x73625140]
      %v1514 = vld.sshfl [vmem:[#allocation1 + $0x10] sm:$0xff pattern:$0x73625140]
      %v1515 = vld.sshfl [vmem:[#allocation1 + $0x18] sm:$0xff pattern:$0x73625140]
      %v1516 = vld.sshfl [vmem:[#allocation1 + $0x20] sm:$0xff pattern:$0x73625140]
      %v1517 = vld.sshfl [vmem:[#allocation1 + $0x28] sm:$0xff pattern:$0x73625140]
      %1548 = vmatpush.msra.mxu0 %v431
      %1549 = vmatpush.msra.mxu0 %v429
      %1550 = vmatpush.msra.mxu0 %v427
      %1551 = vmatpush.msra.mxu0 %v425
      %1552 = vmatpush.msra.mxu0 %v423
      %1553 = vmatpush.msra.mxu0 %v421
      %1554 = vmatpush.msra.mxu0 %v419
      %1555 = vmatpush.msra.mxu0 %v417
      %1556 = vmatpush.msra.mxu0 %v415
      %1557 = vmatpush.msra.mxu0 %v413
      %1558 = vmatpush.msra.mxu0 %v411
      %1559 = vmatpush.msra.mxu0 %v409
      %1560 = vmatpush.msra.mxu0 %v407
      %1561 = vmatpush.msra.mxu0 %v405
      %1562 = vmatpush.msra.mxu0 %v403
      %1563 = vmatpush.msra.mxu0 %v401
      %1564 = vmatmul.f32.gmra.mxu0 %v1460
      %v1565 = vpop.f32.mrf.mxu0
      %v1566 = vadd.f32 %v1239, %v1565
      %1567 = vmatmul.f32.gmra.mxu0 %v1474
      %v1568 = vpop.f32.mrf.mxu0
      %v1569 = vadd.f32 %v1242, %v1568
      %1570 = vmatmul.f32.gmra.mxu0 %v1488
      %v1571 = vpop.f32.mrf.mxu0
      %v1572 = vadd.f32 %v1245, %v1571
      %1573 = vmatmul.f32.gmra.mxu0 %v1502
      %v1574 = vpop.f32.mrf.mxu0
      %v1575 = vadd.f32 %v1248, %v1574
      %1576 = vmatmul.f32.gmra.mxu0 %v1512
      %v1577 = vpop.f32.mrf.mxu0
      %v1578 = vadd.f32 %v1251, %v1577
      %1579 = vdwg.mxu0
      %1580 = vmatpush.msra.mxu0 %v463
      %1581 = vmatpush.msra.mxu0 %v461
      %1582 = vmatpush.msra.mxu0 %v459
      %1583 = vmatpush.msra.mxu0 %v457
      %1584 = vmatpush.msra.mxu0 %v455
      %1585 = vmatpush.msra.mxu0 %v453
      %1586 = vmatpush.msra.mxu0 %v451
      %1587 = vmatpush.msra.mxu0 %v449
      %1588 = vmatpush.msra.mxu0 %v447
      %1589 = vmatpush.msra.mxu0 %v445
      %1590 = vmatpush.msra.mxu0 %v443
      %1591 = vmatpush.msra.mxu0 %v441
      %1592 = vmatpush.msra.mxu0 %v439
      %1593 = vmatpush.msra.mxu0 %v437
      %1594 = vmatpush.msra.mxu0 %v435
      %1595 = vmatpush.msra.mxu0 %v433
      %1596 = vmatmul.f32.gmra.mxu0 %v1461
      %v1597 = vpop.f32.mrf.mxu0
      %v1598 = vadd.f32 %v1566, %v1597
      %1599 = vmatmul.f32.gmra.mxu0 %v1475
      %v1600 = vpop.f32.mrf.mxu0
      %v1601 = vadd.f32 %v1569, %v1600
      %1602 = vmatmul.f32.gmra.mxu0 %v1489
      %v1603 = vpop.f32.mrf.mxu0
      %v1604 = vadd.f32 %v1572, %v1603
      %1605 = vmatmul.f32.gmra.mxu0 %v1503
      %v1606 = vpop.f32.mrf.mxu0
      %v1607 = vadd.f32 %v1575, %v1606
      %1608 = vmatmul.f32.gmra.mxu0 %v1513
      %v1609 = vpop.f32.mrf.mxu0
      %v1610 = vadd.f32 %v1578, %v1609
      %1611 = vdwg.mxu0
      %1612 = vmatpush.msra.mxu0 %v495
      %1613 = vmatpush.msra.mxu0 %v493
      %1614 = vmatpush.msra.mxu0 %v491
      %1615 = vmatpush.msra.mxu0 %v489
      %1616 = vmatpush.msra.mxu0 %v487
      %1617 = vmatpush.msra.mxu0 %v485
      %1618 = vmatpush.msra.mxu0 %v483
      %1619 = vmatpush.msra.mxu0 %v481
      %1620 = vmatpush.msra.mxu0 %v479
      %1621 = vmatpush.msra.mxu0 %v477
      %1622 = vmatpush.msra.mxu0 %v475
      %1623 = vmatpush.msra.mxu0 %v473
      %1624 = vmatpush.msra.mxu0 %v471
      %1625 = vmatpush.msra.mxu0 %v469
      %1626 = vmatpush.msra.mxu0 %v467
      %1627 = vmatpush.msra.mxu0 %v465
      %1628 = vmatmul.f32.gmra.mxu0 %v1462
      %v1629 = vpop.f32.mrf.mxu0
      %v1630 = vadd.f32 %v1598, %v1629
      %1631 = vmatmul.f32.gmra.mxu0 %v1476
      %v1632 = vpop.f32.mrf.mxu0
      %v1633 = vadd.f32 %v1601, %v1632
      %1634 = vmatmul.f32.gmra.mxu0 %v1490
      %v1635 = vpop.f32.mrf.mxu0
      %v1636 = vadd.f32 %v1604, %v1635
      %1637 = vmatmul.f32.gmra.mxu0 %v1504
      %v1638 = vpop.f32.mrf.mxu0
      %v1639 = vadd.f32 %v1607, %v1638
      %1640 = vmatmul.f32.gmra.mxu0 %v1514
      %v1641 = vpop.f32.mrf.mxu0
      %v1642 = vadd.f32 %v1610, %v1641
      %1643 = vdwg.mxu0
      %1644 = vmatpush.msra.mxu0 %v527
      %1645 = vmatpush.msra.mxu0 %v525
      %1646 = vmatpush.msra.mxu0 %v523
      %1647 = vmatpush.msra.mxu0 %v521
      %1648 = vmatpush.msra.mxu0 %v519
      %1649 = vmatpush.msra.mxu0 %v517
      %1650 = vmatpush.msra.mxu0 %v515
      %1651 = vmatpush.msra.mxu0 %v513
      %1652 = vmatpush.msra.mxu0 %v511
      %1653 = vmatpush.msra.mxu0 %v509
      %1654 = vmatpush.msra.mxu0 %v507
      %1655 = vmatpush.msra.mxu0 %v505
      %1656 = vmatpush.msra.mxu0 %v503
      %1657 = vmatpush.msra.mxu0 %v501
      %1658 = vmatpush.msra.mxu0 %v499
      %1659 = vmatpush.msra.mxu0 %v497
      %1660 = vmatmul.f32.gmra.mxu0 %v1463
      %v1661 = vpop.f32.mrf.mxu0
      %v1662 = vadd.f32 %v1630, %v1661
      %1663 = vmatmul.f32.gmra.mxu0 %v1477
      %v1664 = vpop.f32.mrf.mxu0
      %v1665 = vadd.f32 %v1633, %v1664
      %1666 = vmatmul.f32.gmra.mxu0 %v1491
      %v1667 = vpop.f32.mrf.mxu0
      %v1668 = vadd.f32 %v1636, %v1667
      %1669 = vmatmul.f32.gmra.mxu0 %v1505
      %v1670 = vpop.f32.mrf.mxu0
      %v1671 = vadd.f32 %v1639, %v1670
      %1672 = vmatmul.f32.gmra.mxu0 %v1515
      %v1673 = vpop.f32.mrf.mxu0
      %v1674 = vadd.f32 %v1642, %v1673
      %1675 = vdwg.mxu0
      %1676 = vmatpush.msra.mxu0 %v559
      %1677 = vmatpush.msra.mxu0 %v557
      %1678 = vmatpush.msra.mxu0 %v555
      %1679 = vmatpush.msra.mxu0 %v553
      %1680 = vmatpush.msra.mxu0 %v551
      %1681 = vmatpush.msra.mxu0 %v549
      %1682 = vmatpush.msra.mxu0 %v547
      %1683 = vmatpush.msra.mxu0 %v545
      %1684 = vmatpush.msra.mxu0 %v543
      %1685 = vmatpush.msra.mxu0 %v541
      %1686 = vmatpush.msra.mxu0 %v539
      %1687 = vmatpush.msra.mxu0 %v537
      %1688 = vmatpush.msra.mxu0 %v535
      %1689 = vmatpush.msra.mxu0 %v533
      %1690 = vmatpush.msra.mxu0 %v531
      %1691 = vmatpush.msra.mxu0 %v529
      %1692 = vmatmul.f32.gmra.mxu0 %v1464
      %v1693 = vpop.f32.mrf.mxu0
      %v1694 = vadd.f32 %v1662, %v1693
      %1695 = vmatmul.f32.gmra.mxu0 %v1478
      %v1696 = vpop.f32.mrf.mxu0
      %v1697 = vadd.f32 %v1665, %v1696
      %1698 = vmatmul.f32.gmra.mxu0 %v1492
      %v1699 = vpop.f32.mrf.mxu0
      %v1700 = vadd.f32 %v1668, %v1699
      %1701 = vmatmul.f32.gmra.mxu0 %v1506
      %v1702 = vpop.f32.mrf.mxu0
      %v1703 = vadd.f32 %v1671, %v1702
      %1704 = vmatmul.f32.gmra.mxu0 %v1516
      %v1705 = vpop.f32.mrf.mxu0
      %v1706 = vadd.f32 %v1674, %v1705
      %1707 = vdwg.mxu0
      %1708 = vmatpush.msra.mxu0 %v591
      %1709 = vmatpush.msra.mxu0 %v589
      %1710 = vmatpush.msra.mxu0 %v587
      %1711 = vmatpush.msra.mxu0 %v585
      %1712 = vmatpush.msra.mxu0 %v583
      %1713 = vmatpush.msra.mxu0 %v581
      %1714 = vmatpush.msra.mxu0 %v579
      %1715 = vmatpush.msra.mxu0 %v577
      %1716 = vmatpush.msra.mxu0 %v575
      %1717 = vmatpush.msra.mxu0 %v573
      %1718 = vmatpush.msra.mxu0 %v571
      %1719 = vmatpush.msra.mxu0 %v569
      %1720 = vmatpush.msra.mxu0 %v567
      %1721 = vmatpush.msra.mxu0 %v565
      %1722 = vmatpush.msra.mxu0 %v563
      %1723 = vmatpush.msra.mxu0 %v561
      %1724 = vmatmul.f32.gmra.mxu0 %v1465
      %v1725 = vpop.f32.mrf.mxu0
      %v1726 = vadd.f32 %v1694, %v1725
      %1727 = vmatmul.f32.gmra.mxu0 %v1479
      %v1728 = vpop.f32.mrf.mxu0
      %v1729 = vadd.f32 %v1697, %v1728
      %1730 = vmatmul.f32.gmra.mxu0 %v1493
      %v1731 = vpop.f32.mrf.mxu0
      %v1732 = vadd.f32 %v1700, %v1731
      %1733 = vmatmul.f32.gmra.mxu0 %v1507
      %v1734 = vpop.f32.mrf.mxu0
      %v1735 = vadd.f32 %v1703, %v1734
      %1736 = vmatmul.f32.gmra.mxu0 %v1517
      %v1737 = vpop.f32.mrf.mxu0
      %v1738 = vadd.f32 %v1706, %v1737
      %1739 = vdwg.mxu0
      %1740 = vmatpush.msra.mxu0 %v432
      %1741 = vmatpush.msra.mxu0 %v430
      %1742 = vmatpush.msra.mxu0 %v428
      %1743 = vmatpush.msra.mxu0 %v426
      %1744 = vmatpush.msra.mxu0 %v424
      %1745 = vmatpush.msra.mxu0 %v422
      %1746 = vmatpush.msra.mxu0 %v420
      %1747 = vmatpush.msra.mxu0 %v418
      %1748 = vmatpush.msra.mxu0 %v416
      %1749 = vmatpush.msra.mxu0 %v414
      %1750 = vmatpush.msra.mxu0 %v412
      %1751 = vmatpush.msra.mxu0 %v410
      %1752 = vmatpush.msra.mxu0 %v408
      %1753 = vmatpush.msra.mxu0 %v406
      %1754 = vmatpush.msra.mxu0 %v404
      %1755 = vmatpush.msra.mxu0 %v402
      %1756 = vmatmul.f32.gmra.mxu0 %v1460
      %v1757 = vpop.f32.mrf.mxu0
      %v1758 = vadd.f32 %v1431, %v1757
      %1759 = vmatmul.f32.gmra.mxu0 %v1474
      %v1760 = vpop.f32.mrf.mxu0
      %v1761 = vadd.f32 %v1434, %v1760
      %1762 = vmatmul.f32.gmra.mxu0 %v1488
      %v1763 = vpop.f32.mrf.mxu0
      %v1764 = vadd.f32 %v1437, %v1763
      %1765 = vmatmul.f32.gmra.mxu0 %v1502
      %v1766 = vpop.f32.mrf.mxu0
      %v1767 = vadd.f32 %v1440, %v1766
      %1768 = vmatmul.f32.gmra.mxu0 %v1512
      %v1769 = vpop.f32.mrf.mxu0
      %v1770 = vadd.f32 %v1443, %v1769
      %1771 = vdwg.mxu0
      %1772 = vmatpush.msra.mxu0 %v464
      %1773 = vmatpush.msra.mxu0 %v462
      %1774 = vmatpush.msra.mxu0 %v460
      %1775 = vmatpush.msra.mxu0 %v458
      %1776 = vmatpush.msra.mxu0 %v456
      %1777 = vmatpush.msra.mxu0 %v454
      %1778 = vmatpush.msra.mxu0 %v452
      %1779 = vmatpush.msra.mxu0 %v450
      %1780 = vmatpush.msra.mxu0 %v448
      %1781 = vmatpush.msra.mxu0 %v446
      %1782 = vmatpush.msra.mxu0 %v444
      %1783 = vmatpush.msra.mxu0 %v442
      %1784 = vmatpush.msra.mxu0 %v440
      %1785 = vmatpush.msra.mxu0 %v438
      %1786 = vmatpush.msra.mxu0 %v436
      %1787 = vmatpush.msra.mxu0 %v434
      %1788 = vmatmul.f32.gmra.mxu0 %v1461
      %v1789 = vpop.f32.mrf.mxu0
      %v1790 = vadd.f32 %v1758, %v1789
      %1791 = vmatmul.f32.gmra.mxu0 %v1475
      %v1792 = vpop.f32.mrf.mxu0
      %v1793 = vadd.f32 %v1761, %v1792
      %1794 = vmatmul.f32.gmra.mxu0 %v1489
      %v1795 = vpop.f32.mrf.mxu0
      %v1796 = vadd.f32 %v1764, %v1795
      %1797 = vmatmul.f32.gmra.mxu0 %v1503
      %v1798 = vpop.f32.mrf.mxu0
      %v1799 = vadd.f32 %v1767, %v1798
      %1800 = vmatmul.f32.gmra.mxu0 %v1513
      %v1801 = vpop.f32.mrf.mxu0
      %v1802 = vadd.f32 %v1770, %v1801
      %1803 = vdwg.mxu0
      %1804 = vmatpush.msra.mxu0 %v496
      %1805 = vmatpush.msra.mxu0 %v494
      %1806 = vmatpush.msra.mxu0 %v492
      %1807 = vmatpush.msra.mxu0 %v490
      %1808 = vmatpush.msra.mxu0 %v488
      %1809 = vmatpush.msra.mxu0 %v486
      %1810 = vmatpush.msra.mxu0 %v484
      %1811 = vmatpush.msra.mxu0 %v482
      %1812 = vmatpush.msra.mxu0 %v480
      %1813 = vmatpush.msra.mxu0 %v478
      %1814 = vmatpush.msra.mxu0 %v476
      %1815 = vmatpush.msra.mxu0 %v474
      %1816 = vmatpush.msra.mxu0 %v472
      %1817 = vmatpush.msra.mxu0 %v470
      %1818 = vmatpush.msra.mxu0 %v468
      %1819 = vmatpush.msra.mxu0 %v466
      %1820 = vmatmul.f32.gmra.mxu0 %v1462
      %v1821 = vpop.f32.mrf.mxu0
      %v1822 = vadd.f32 %v1790, %v1821
      %1823 = vmatmul.f32.gmra.mxu0 %v1476
      %v1824 = vpop.f32.mrf.mxu0
      %v1825 = vadd.f32 %v1793, %v1824
      %1826 = vmatmul.f32.gmra.mxu0 %v1490
      %v1827 = vpop.f32.mrf.mxu0
      %v1828 = vadd.f32 %v1796, %v1827
      %1829 = vmatmul.f32.gmra.mxu0 %v1504
      %v1830 = vpop.f32.mrf.mxu0
      %v1831 = vadd.f32 %v1799, %v1830
      %1832 = vmatmul.f32.gmra.mxu0 %v1514
      %v1833 = vpop.f32.mrf.mxu0
      %v1834 = vadd.f32 %v1802, %v1833
      %1835 = vdwg.mxu0
      %1836 = vmatpush.msra.mxu0 %v528
      %1837 = vmatpush.msra.mxu0 %v526
      %1838 = vmatpush.msra.mxu0 %v524
      %1839 = vmatpush.msra.mxu0 %v522
      %1840 = vmatpush.msra.mxu0 %v520
      %1841 = vmatpush.msra.mxu0 %v518
      %1842 = vmatpush.msra.mxu0 %v516
      %1843 = vmatpush.msra.mxu0 %v514
      %1844 = vmatpush.msra.mxu0 %v512
      %1845 = vmatpush.msra.mxu0 %v510
      %1846 = vmatpush.msra.mxu0 %v508
      %1847 = vmatpush.msra.mxu0 %v506
      %1848 = vmatpush.msra.mxu0 %v504
      %1849 = vmatpush.msra.mxu0 %v502
      %1850 = vmatpush.msra.mxu0 %v500
      %1851 = vmatpush.msra.mxu0 %v498
      %1852 = vmatmul.f32.gmra.mxu0 %v1463
      %v1853 = vpop.f32.mrf.mxu0
      %v1854 = vadd.f32 %v1822, %v1853
      %1855 = vmatmul.f32.gmra.mxu0 %v1477
      %v1856 = vpop.f32.mrf.mxu0
      %v1857 = vadd.f32 %v1825, %v1856
      %1858 = vmatmul.f32.gmra.mxu0 %v1491
      %v1859 = vpop.f32.mrf.mxu0
      %v1860 = vadd.f32 %v1828, %v1859
      %1861 = vmatmul.f32.gmra.mxu0 %v1505
      %v1862 = vpop.f32.mrf.mxu0
      %v1863 = vadd.f32 %v1831, %v1862
      %1864 = vmatmul.f32.gmra.mxu0 %v1515
      %v1865 = vpop.f32.mrf.mxu0
      %v1866 = vadd.f32 %v1834, %v1865
      %1867 = vdwg.mxu0
      %1868 = vmatpush.msra.mxu0 %v560
      %1869 = vmatpush.msra.mxu0 %v558
      %1870 = vmatpush.msra.mxu0 %v556
      %1871 = vmatpush.msra.mxu0 %v554
      %1872 = vmatpush.msra.mxu0 %v552
      %1873 = vmatpush.msra.mxu0 %v550
      %1874 = vmatpush.msra.mxu0 %v548
      %1875 = vmatpush.msra.mxu0 %v546
      %1876 = vmatpush.msra.mxu0 %v544
      %1877 = vmatpush.msra.mxu0 %v542
      %1878 = vmatpush.msra.mxu0 %v540
      %1879 = vmatpush.msra.mxu0 %v538
      %1880 = vmatpush.msra.mxu0 %v536
      %1881 = vmatpush.msra.mxu0 %v534
      %1882 = vmatpush.msra.mxu0 %v532
      %1883 = vmatpush.msra.mxu0 %v530
      %1884 = vmatmul.f32.gmra.mxu0 %v1464
      %v1885 = vpop.f32.mrf.mxu0
      %v1886 = vadd.f32 %v1854, %v1885
      %1887 = vmatmul.f32.gmra.mxu0 %v1478
      %v1888 = vpop.f32.mrf.mxu0
      %v1889 = vadd.f32 %v1857, %v1888
      %1890 = vmatmul.f32.gmra.mxu0 %v1492
      %v1891 = vpop.f32.mrf.mxu0
      %v1892 = vadd.f32 %v1860, %v1891
      %1893 = vmatmul.f32.gmra.mxu0 %v1506
      %v1894 = vpop.f32.mrf.mxu0
      %v1895 = vadd.f32 %v1863, %v1894
      %1896 = vmatmul.f32.gmra.mxu0 %v1516
      %v1897 = vpop.f32.mrf.mxu0
      %v1898 = vadd.f32 %v1866, %v1897
      %1899 = vdwg.mxu0
      %1900 = vmatpush.msra.mxu0 %v592
      %1901 = vmatpush.msra.mxu0 %v590
      %1902 = vmatpush.msra.mxu0 %v588
      %1903 = vmatpush.msra.mxu0 %v586
      %1904 = vmatpush.msra.mxu0 %v584
      %1905 = vmatpush.msra.mxu0 %v582
      %1906 = vmatpush.msra.mxu0 %v580
      %1907 = vmatpush.msra.mxu0 %v578
      %1908 = vmatpush.msra.mxu0 %v576
      %1909 = vmatpush.msra.mxu0 %v574
      %1910 = vmatpush.msra.mxu0 %v572
      %1911 = vmatpush.msra.mxu0 %v570
      %1912 = vmatpush.msra.mxu0 %v568
      %1913 = vmatpush.msra.mxu0 %v566
      %1914 = vmatpush.msra.mxu0 %v564
      %1915 = vmatpush.msra.mxu0 %v562
      %1916 = vmatmul.f32.gmra.mxu0 %v1465
      %v1917 = vpop.f32.mrf.mxu0
      %v1918 = vadd.f32 %v1886, %v1917
      %1919 = vmatmul.f32.gmra.mxu0 %v1479
      %v1920 = vpop.f32.mrf.mxu0
      %v1921 = vadd.f32 %v1889, %v1920
      %1922 = vmatmul.f32.gmra.mxu0 %v1493
      %v1923 = vpop.f32.mrf.mxu0
      %v1924 = vadd.f32 %v1892, %v1923
      %1925 = vmatmul.f32.gmra.mxu0 %v1507
      %v1926 = vpop.f32.mrf.mxu0
      %v1927 = vadd.f32 %v1895, %v1926
      %1928 = vmatmul.f32.gmra.mxu0 %v1517
      %v1929 = vpop.f32.mrf.mxu0
      %v1930 = vadd.f32 %v1898, %v1929
      %1931 = vdwg.mxu0
      %s1932 = sadd.s32 %s223, 2
      %s1933 = smul.u32 %s1932, 2
      %s1934 = smul.addr %s1933, 8
      %s1935 = scalar_lea.vmem %s211, %s1934
      %v1936 = vld [vmem:[%s1935] sm:$0xff]
      %v1937 = vld [vmem:[%s1935 + $0x8] sm:$0xff]
      %v1938 = vld [vmem:[%s1935 + $0x10] sm:$0xff]
      %v1939 = vld [vmem:[%s1935 + $0x18] sm:$0xff]
      %v1940 = vld [vmem:[%s1935 + $0x20] sm:$0xff]
      %v1941 = vld [vmem:[%s1935 + $0x28] sm:$0xff]
      %v1942 = vld [vmem:[%s1935 + $0x30] sm:$0xff]
      %v1943 = vld [vmem:[%s1935 + $0x38] sm:$0xff]
      %v1944 = vld [vmem:[%s1935 + $0x40] sm:$0xff]
      %v1945 = vld [vmem:[%s1935 + $0x48] sm:$0xff]
      %v1946 = vld [vmem:[%s1935 + $0x50] sm:$0xff]
      %v1947 = vld [vmem:[%s1935 + $0x58] sm:$0xff]
      %v1960 = vrot.slane %v1936, 1
      %v1961 = vrot.slane %v1937, 1
      %v1962 = vrot.slane %v1938, 1
      %v1963 = vrot.slane %v1939, 1
      %v1964 = vrot.slane %v1940, 1
      %v1965 = vrot.slane %v1941, 1
      %v1966 = vrot.slane %v1942, 1
      %v1967 = vrot.slane %v1943, 1
      %v1968 = vrot.slane %v1944, 1
      %v1969 = vrot.slane %v1945, 1
      %v1970 = vrot.slane %v1946, 1
      %v1971 = vrot.slane %v1947, 1
      %v1972 = vrot.slane %v1936, 2
      %v1973 = vrot.slane %v1937, 2
      %v1974 = vrot.slane %v1938, 2
      %v1975 = vrot.slane %v1939, 2
      %v1976 = vrot.slane %v1940, 2
      %v1977 = vrot.slane %v1941, 2
      %v1978 = vrot.slane %v1942, 2
      %v1979 = vrot.slane %v1943, 2
      %v1980 = vrot.slane %v1944, 2
      %v1981 = vrot.slane %v1945, 2
      %v1982 = vrot.slane %v1946, 2
      %v1983 = vrot.slane %v1947, 2
      %v1984 = vrot.slane %v1937, 6
      %v1985 = vrot.slane %v1960, 4
      %v1986 = vrot.slane %v1961, 2
      %v1987 = vrot.slane %v1973, 6
      %v1988 = vrot.slane %v1939, 6
      %v1989 = vrot.slane %v1962, 4
      %v1990 = vrot.slane %v1963, 2
      %v1991 = vrot.slane %v1975, 6
      %v1992 = vrot.slane %v1941, 6
      %v1993 = vrot.slane %v1964, 4
      %v1994 = vrot.slane %v1965, 2
      %v1995 = vrot.slane %v1977, 6
      %v1996 = vrot.slane %v1943, 6
      %v1997 = vrot.slane %v1966, 4
      %v1998 = vrot.slane %v1967, 2
      %v1999 = vrot.slane %v1979, 6
      %v2000 = vrot.slane %v1945, 6
      %v2001 = vrot.slane %v1968, 4
      %v2002 = vrot.slane %v1969, 2
      %v2003 = vrot.slane %v1981, 6
      %v2004 = vrot.slane %v1947, 6
      %v2005 = vrot.slane %v1970, 4
      %v2006 = vrot.slane %v1971, 2
      %v2007 = vrot.slane %v1983, 6
      %v2008 = vsel %vm299, %v1936, %v1984
      %v2009 = vsel %vm301, %v1985, %v1986
      %v2010 = vsel %vm303, %v2008, %v2009
      %v2011 = vsel %vm299, %v1972, %v1987
      %v2012 = vsel %vm306, %v1936, %v1984
      %v2013 = vsel %vm308, %v1986, %v1985
      %v2014 = vsel %vm310, %v2012, %v2013
      %v2015 = vrot.slane %v2014, 2
      %v2016 = vsel %vm306, %v1972, %v1987
      %v2017 = vrot.slane %v2016, 2
      %v2018 = vsel %vm301, %v1936, %v1984
      %v2019 = vsel %vm299, %v1985, %v1986
      %v2020 = vsel %vm303, %v2019, %v2018
      %v2021 = vrot.slane %v2020, 4
      %v2022 = vsel %vm301, %v1972, %v1987
      %v2023 = vrot.slane %v2022, 4
      %v2024 = vsel %vm299, %v1938, %v1988
      %v2025 = vsel %vm301, %v1989, %v1990
      %v2026 = vsel %vm303, %v2024, %v2025
      %v2027 = vsel %vm299, %v1974, %v1991
      %v2028 = vsel %vm306, %v1938, %v1988
      %v2029 = vsel %vm308, %v1990, %v1989
      %v2030 = vsel %vm310, %v2028, %v2029
      %v2031 = vrot.slane %v2030, 2
      %v2032 = vsel %vm306, %v1974, %v1991
      %v2033 = vrot.slane %v2032, 2
      %v2034 = vsel %vm301, %v1938, %v1988
      %v2035 = vsel %vm299, %v1989, %v1990
      %v2036 = vsel %vm303, %v2035, %v2034
      %v2037 = vrot.slane %v2036, 4
      %v2038 = vsel %vm301, %v1974, %v1991
      %v2039 = vrot.slane %v2038, 4
      %v2040 = vsel %vm299, %v1940, %v1992
      %v2041 = vsel %vm301, %v1993, %v1994
      %v2042 = vsel %vm303, %v2040, %v2041
      %v2043 = vsel %vm299, %v1976, %v1995
      %v2044 = vsel %vm306, %v1940, %v1992
      %v2045 = vsel %vm308, %v1994, %v1993
      %v2046 = vsel %vm310, %v2044, %v2045
      %v2047 = vrot.slane %v2046, 2
      %v2048 = vsel %vm306, %v1976, %v1995
      %v2049 = vrot.slane %v2048, 2
      %v2050 = vsel %vm301, %v1940, %v1992
      %v2051 = vsel %vm299, %v1993, %v1994
      %v2052 = vsel %vm303, %v2051, %v2050
      %v2053 = vrot.slane %v2052, 4
      %v2054 = vsel %vm301, %v1976, %v1995
      %v2055 = vrot.slane %v2054, 4
      %v2056 = vsel %vm299, %v1942, %v1996
      %v2057 = vsel %vm301, %v1997, %v1998
      %v2058 = vsel %vm303, %v2056, %v2057
      %v2059 = vsel %vm299, %v1978, %v1999
      %v2060 = vsel %vm306, %v1942, %v1996
      %v2061 = vsel %vm308, %v1998, %v1997
      %v2062 = vsel %vm310, %v2060, %v2061
      %v2063 = vrot.slane %v2062, 2
      %v2064 = vsel %vm306, %v1978, %v1999
      %v2065 = vrot.slane %v2064, 2
      %v2066 = vsel %vm301, %v1942, %v1996
      %v2067 = vsel %vm299, %v1997, %v1998
      %v2068 = vsel %vm303, %v2067, %v2066
      %v2069 = vrot.slane %v2068, 4
      %v2070 = vsel %vm301, %v1978, %v1999
      %v2071 = vrot.slane %v2070, 4
      %v2072 = vsel %vm299, %v1944, %v2000
      %v2073 = vsel %vm301, %v2001, %v2002
      %v2074 = vsel %vm303, %v2072, %v2073
      %v2075 = vsel %vm299, %v1980, %v2003
      %v2076 = vsel %vm306, %v1944, %v2000
      %v2077 = vsel %vm308, %v2002, %v2001
      %v2078 = vsel %vm310, %v2076, %v2077
      %v2079 = vrot.slane %v2078, 2
      %v2080 = vsel %vm306, %v1980, %v2003
      %v2081 = vrot.slane %v2080, 2
      %v2082 = vsel %vm301, %v1944, %v2000
      %v2083 = vsel %vm299, %v2001, %v2002
      %v2084 = vsel %vm303, %v2083, %v2082
      %v2085 = vrot.slane %v2084, 4
      %v2086 = vsel %vm301, %v1980, %v2003
      %v2087 = vrot.slane %v2086, 4
      %v2088 = vsel %vm299, %v1946, %v2004
      %v2089 = vsel %vm301, %v2005, %v2006
      %v2090 = vsel %vm303, %v2088, %v2089
      %v2091 = vsel %vm299, %v1982, %v2007
      %v2092 = vsel %vm306, %v1946, %v2004
      %v2093 = vsel %vm308, %v2006, %v2005
      %v2094 = vsel %vm310, %v2092, %v2093
      %v2095 = vrot.slane %v2094, 2
      %v2096 = vsel %vm306, %v1982, %v2007
      %v2097 = vrot.slane %v2096, 2
      %v2098 = vsel %vm301, %v1946, %v2004
      %v2099 = vsel %vm299, %v2005, %v2006
      %v2100 = vsel %vm303, %v2099, %v2098
      %v2101 = vrot.slane %v2100, 4
      %v2102 = vsel %vm301, %v1982, %v2007
      %v2103 = vrot.slane %v2102, 4
      %s2104 = scalar_lea.vmem %s1, 3072
      %v2105 = vld [vmem:[%s2104] sm:$0xff]
      %v2106 = vld [vmem:[%s2104 + $0x8] sm:$0xff]
      %v2107 = vld [vmem:[%s2104 + $0x10] sm:$0xff]
      %v2108 = vld [vmem:[%s2104 + $0x18] sm:$0xff]
      %v2109 = vld [vmem:[%s2104 + $0x20] sm:$0xff]
      %v2110 = vld [vmem:[%s2104 + $0x28] sm:$0xff]
      %v2111 = vld [vmem:[%s2104 + $0x30] sm:$0xff]
      %v2112 = vld [vmem:[%s2104 + $0x38] sm:$0xff]
      %v2113 = vld [vmem:[%s2104 + $0x40] sm:$0xff]
      %v2114 = vld [vmem:[%s2104 + $0x48] sm:$0xff]
      %v2115 = vld [vmem:[%s2104 + $0x50] sm:$0xff]
      %v2116 = vld [vmem:[%s2104 + $0x58] sm:$0xff]
      %v2117 = vld [vmem:[%s2104 + $0x60] sm:$0xff]
      %v2118 = vld [vmem:[%s2104 + $0x68] sm:$0xff]
      %v2119 = vld [vmem:[%s2104 + $0x70] sm:$0xff]
      %v2120 = vld [vmem:[%s2104 + $0x78] sm:$0xff]
      %v2121 = vld [vmem:[%s2104 + $0x80] sm:$0xff]
      %v2122 = vld [vmem:[%s2104 + $0x88] sm:$0xff]
      %v2123 = vld [vmem:[%s2104 + $0x90] sm:$0xff]
      %v2124 = vld [vmem:[%s2104 + $0x98] sm:$0xff]
      %v2125 = vld [vmem:[%s2104 + $0xa0] sm:$0xff]
      %v2126 = vld [vmem:[%s2104 + $0xa8] sm:$0xff]
      %v2127 = vld [vmem:[%s2104 + $0xb0] sm:$0xff]
      %v2128 = vld [vmem:[%s2104 + $0xb8] sm:$0xff]
      %v2129 = vld [vmem:[%s2104 + $0xc0] sm:$0xff]
      %v2130 = vld [vmem:[%s2104 + $0xc8] sm:$0xff]
      %v2131 = vld [vmem:[%s2104 + $0xd0] sm:$0xff]
      %v2132 = vld [vmem:[%s2104 + $0xd8] sm:$0xff]
      %v2133 = vld [vmem:[%s2104 + $0xe0] sm:$0xff]
      %v2134 = vld [vmem:[%s2104 + $0xe8] sm:$0xff]
      %v2135 = vld [vmem:[%s2104 + $0xf0] sm:$0xff]
      %v2136 = vld [vmem:[%s2104 + $0xf8] sm:$0xff]
      %v2137 = vld [vmem:[%s2104 + $0x100] sm:$0xff]
      %v2138 = vld [vmem:[%s2104 + $0x108] sm:$0xff]
      %v2139 = vld [vmem:[%s2104 + $0x110] sm:$0xff]
      %v2140 = vld [vmem:[%s2104 + $0x118] sm:$0xff]
      %v2141 = vld [vmem:[%s2104 + $0x120] sm:$0xff]
      %v2142 = vld [vmem:[%s2104 + $0x128] sm:$0xff]
      %v2143 = vld [vmem:[%s2104 + $0x130] sm:$0xff]
      %v2144 = vld [vmem:[%s2104 + $0x138] sm:$0xff]
      %v2145 = vld [vmem:[%s2104 + $0x140] sm:$0xff]
      %v2146 = vld [vmem:[%s2104 + $0x148] sm:$0xff]
      %v2147 = vld [vmem:[%s2104 + $0x150] sm:$0xff]
      %v2148 = vld [vmem:[%s2104 + $0x158] sm:$0xff]
      %v2149 = vld [vmem:[%s2104 + $0x160] sm:$0xff]
      %v2150 = vld [vmem:[%s2104 + $0x168] sm:$0xff]
      %v2151 = vld [vmem:[%s2104 + $0x170] sm:$0xff]
      %v2152 = vld [vmem:[%s2104 + $0x178] sm:$0xff]
      %v2153 = vld [vmem:[%s2104 + $0x180] sm:$0xff]
      %v2154 = vld [vmem:[%s2104 + $0x188] sm:$0xff]
      %v2155 = vld [vmem:[%s2104 + $0x190] sm:$0xff]
      %v2156 = vld [vmem:[%s2104 + $0x198] sm:$0xff]
      %v2157 = vld [vmem:[%s2104 + $0x1a0] sm:$0xff]
      %v2158 = vld [vmem:[%s2104 + $0x1a8] sm:$0xff]
      %v2159 = vld [vmem:[%s2104 + $0x1b0] sm:$0xff]
      %v2160 = vld [vmem:[%s2104 + $0x1b8] sm:$0xff]
      %v2161 = vld [vmem:[%s2104 + $0x1c0] sm:$0xff]
      %v2162 = vld [vmem:[%s2104 + $0x1c8] sm:$0xff]
      %v2163 = vld [vmem:[%s2104 + $0x1d0] sm:$0xff]
      %v2164 = vld [vmem:[%s2104 + $0x1d8] sm:$0xff]
      %v2165 = vld [vmem:[%s2104 + $0x1e0] sm:$0xff]
      %v2166 = vld [vmem:[%s2104 + $0x1e8] sm:$0xff]
      %v2167 = vld [vmem:[%s2104 + $0x1f0] sm:$0xff]
      %v2168 = vld [vmem:[%s2104 + $0x1f8] sm:$0xff]
      %v2169 = vld [vmem:[%s2104 + $0x200] sm:$0xff]
      %v2170 = vld [vmem:[%s2104 + $0x208] sm:$0xff]
      %v2171 = vld [vmem:[%s2104 + $0x210] sm:$0xff]
      %v2172 = vld [vmem:[%s2104 + $0x218] sm:$0xff]
      %v2173 = vld [vmem:[%s2104 + $0x220] sm:$0xff]
      %v2174 = vld [vmem:[%s2104 + $0x228] sm:$0xff]
      %v2175 = vld [vmem:[%s2104 + $0x230] sm:$0xff]
      %v2176 = vld [vmem:[%s2104 + $0x238] sm:$0xff]
      %v2177 = vld [vmem:[%s2104 + $0x240] sm:$0xff]
      %v2178 = vld [vmem:[%s2104 + $0x248] sm:$0xff]
      %v2179 = vld [vmem:[%s2104 + $0x250] sm:$0xff]
      %v2180 = vld [vmem:[%s2104 + $0x258] sm:$0xff]
      %v2181 = vld [vmem:[%s2104 + $0x260] sm:$0xff]
      %v2182 = vld [vmem:[%s2104 + $0x268] sm:$0xff]
      %v2183 = vld [vmem:[%s2104 + $0x270] sm:$0xff]
      %v2184 = vld [vmem:[%s2104 + $0x278] sm:$0xff]
      %v2185 = vld [vmem:[%s2104 + $0x280] sm:$0xff]
      %v2186 = vld [vmem:[%s2104 + $0x288] sm:$0xff]
      %v2187 = vld [vmem:[%s2104 + $0x290] sm:$0xff]
      %v2188 = vld [vmem:[%s2104 + $0x298] sm:$0xff]
      %v2189 = vld [vmem:[%s2104 + $0x2a0] sm:$0xff]
      %v2190 = vld [vmem:[%s2104 + $0x2a8] sm:$0xff]
      %v2191 = vld [vmem:[%s2104 + $0x2b0] sm:$0xff]
      %v2192 = vld [vmem:[%s2104 + $0x2b8] sm:$0xff]
      %v2193 = vld [vmem:[%s2104 + $0x2c0] sm:$0xff]
      %v2194 = vld [vmem:[%s2104 + $0x2c8] sm:$0xff]
      %v2195 = vld [vmem:[%s2104 + $0x2d0] sm:$0xff]
      %v2196 = vld [vmem:[%s2104 + $0x2d8] sm:$0xff]
      %v2197 = vld [vmem:[%s2104 + $0x2e0] sm:$0xff]
      %v2198 = vld [vmem:[%s2104 + $0x2e8] sm:$0xff]
      %v2199 = vld [vmem:[%s2104 + $0x2f0] sm:$0xff]
      %v2200 = vld [vmem:[%s2104 + $0x2f8] sm:$0xff]
      %v2201 = vld [vmem:[%s2104 + $0x300] sm:$0xff]
      %v2202 = vld [vmem:[%s2104 + $0x308] sm:$0xff]
      %v2203 = vld [vmem:[%s2104 + $0x310] sm:$0xff]
      %v2204 = vld [vmem:[%s2104 + $0x318] sm:$0xff]
      %v2205 = vld [vmem:[%s2104 + $0x320] sm:$0xff]
      %v2206 = vld [vmem:[%s2104 + $0x328] sm:$0xff]
      %v2207 = vld [vmem:[%s2104 + $0x330] sm:$0xff]
      %v2208 = vld [vmem:[%s2104 + $0x338] sm:$0xff]
      %v2209 = vld [vmem:[%s2104 + $0x340] sm:$0xff]
      %v2210 = vld [vmem:[%s2104 + $0x348] sm:$0xff]
      %v2211 = vld [vmem:[%s2104 + $0x350] sm:$0xff]
      %v2212 = vld [vmem:[%s2104 + $0x358] sm:$0xff]
      %v2213 = vld [vmem:[%s2104 + $0x360] sm:$0xff]
      %v2214 = vld [vmem:[%s2104 + $0x368] sm:$0xff]
      %v2215 = vld [vmem:[%s2104 + $0x370] sm:$0xff]
      %v2216 = vld [vmem:[%s2104 + $0x378] sm:$0xff]
      %v2217 = vld [vmem:[%s2104 + $0x380] sm:$0xff]
      %v2218 = vld [vmem:[%s2104 + $0x388] sm:$0xff]
      %v2219 = vld [vmem:[%s2104 + $0x390] sm:$0xff]
      %v2220 = vld [vmem:[%s2104 + $0x398] sm:$0xff]
      %v2221 = vld [vmem:[%s2104 + $0x3a0] sm:$0xff]
      %v2222 = vld [vmem:[%s2104 + $0x3a8] sm:$0xff]
      %v2223 = vld [vmem:[%s2104 + $0x3b0] sm:$0xff]
      %v2224 = vld [vmem:[%s2104 + $0x3b8] sm:$0xff]
      %v2225 = vld [vmem:[%s2104 + $0x3c0] sm:$0xff]
      %v2226 = vld [vmem:[%s2104 + $0x3c8] sm:$0xff]
      %v2227 = vld [vmem:[%s2104 + $0x3d0] sm:$0xff]
      %v2228 = vld [vmem:[%s2104 + $0x3d8] sm:$0xff]
      %v2229 = vld [vmem:[%s2104 + $0x3e0] sm:$0xff]
      %v2230 = vld [vmem:[%s2104 + $0x3e8] sm:$0xff]
      %v2231 = vld [vmem:[%s2104 + $0x3f0] sm:$0xff]
      %v2232 = vld [vmem:[%s2104 + $0x3f8] sm:$0xff]
      %v2233 = vld [vmem:[%s2104 + $0x400] sm:$0xff]
      %v2234 = vld [vmem:[%s2104 + $0x408] sm:$0xff]
      %v2235 = vld [vmem:[%s2104 + $0x410] sm:$0xff]
      %v2236 = vld [vmem:[%s2104 + $0x418] sm:$0xff]
      %v2237 = vld [vmem:[%s2104 + $0x420] sm:$0xff]
      %v2238 = vld [vmem:[%s2104 + $0x428] sm:$0xff]
      %v2239 = vld [vmem:[%s2104 + $0x430] sm:$0xff]
      %v2240 = vld [vmem:[%s2104 + $0x438] sm:$0xff]
      %v2241 = vld [vmem:[%s2104 + $0x440] sm:$0xff]
      %v2242 = vld [vmem:[%s2104 + $0x448] sm:$0xff]
      %v2243 = vld [vmem:[%s2104 + $0x450] sm:$0xff]
      %v2244 = vld [vmem:[%s2104 + $0x458] sm:$0xff]
      %v2245 = vld [vmem:[%s2104 + $0x460] sm:$0xff]
      %v2246 = vld [vmem:[%s2104 + $0x468] sm:$0xff]
      %v2247 = vld [vmem:[%s2104 + $0x470] sm:$0xff]
      %v2248 = vld [vmem:[%s2104 + $0x478] sm:$0xff]
      %v2249 = vld [vmem:[%s2104 + $0x480] sm:$0xff]
      %v2250 = vld [vmem:[%s2104 + $0x488] sm:$0xff]
      %v2251 = vld [vmem:[%s2104 + $0x490] sm:$0xff]
      %v2252 = vld [vmem:[%s2104 + $0x498] sm:$0xff]
      %v2253 = vld [vmem:[%s2104 + $0x4a0] sm:$0xff]
      %v2254 = vld [vmem:[%s2104 + $0x4a8] sm:$0xff]
      %v2255 = vld [vmem:[%s2104 + $0x4b0] sm:$0xff]
      %v2256 = vld [vmem:[%s2104 + $0x4b8] sm:$0xff]
      %v2257 = vld [vmem:[%s2104 + $0x4c0] sm:$0xff]
      %v2258 = vld [vmem:[%s2104 + $0x4c8] sm:$0xff]
      %v2259 = vld [vmem:[%s2104 + $0x4d0] sm:$0xff]
      %v2260 = vld [vmem:[%s2104 + $0x4d8] sm:$0xff]
      %v2261 = vld [vmem:[%s2104 + $0x4e0] sm:$0xff]
      %v2262 = vld [vmem:[%s2104 + $0x4e8] sm:$0xff]
      %v2263 = vld [vmem:[%s2104 + $0x4f0] sm:$0xff]
      %v2264 = vld [vmem:[%s2104 + $0x4f8] sm:$0xff]
      %v2265 = vld [vmem:[%s2104 + $0x500] sm:$0xff]
      %v2266 = vld [vmem:[%s2104 + $0x508] sm:$0xff]
      %v2267 = vld [vmem:[%s2104 + $0x510] sm:$0xff]
      %v2268 = vld [vmem:[%s2104 + $0x518] sm:$0xff]
      %v2269 = vld [vmem:[%s2104 + $0x520] sm:$0xff]
      %v2270 = vld [vmem:[%s2104 + $0x528] sm:$0xff]
      %v2271 = vld [vmem:[%s2104 + $0x530] sm:$0xff]
      %v2272 = vld [vmem:[%s2104 + $0x538] sm:$0xff]
      %v2273 = vld [vmem:[%s2104 + $0x540] sm:$0xff]
      %v2274 = vld [vmem:[%s2104 + $0x548] sm:$0xff]
      %v2275 = vld [vmem:[%s2104 + $0x550] sm:$0xff]
      %v2276 = vld [vmem:[%s2104 + $0x558] sm:$0xff]
      %v2277 = vld [vmem:[%s2104 + $0x560] sm:$0xff]
      %v2278 = vld [vmem:[%s2104 + $0x568] sm:$0xff]
      %v2279 = vld [vmem:[%s2104 + $0x570] sm:$0xff]
      %v2280 = vld [vmem:[%s2104 + $0x578] sm:$0xff]
      %v2281 = vld [vmem:[%s2104 + $0x580] sm:$0xff]
      %v2282 = vld [vmem:[%s2104 + $0x588] sm:$0xff]
      %v2283 = vld [vmem:[%s2104 + $0x590] sm:$0xff]
      %v2284 = vld [vmem:[%s2104 + $0x598] sm:$0xff]
      %v2285 = vld [vmem:[%s2104 + $0x5a0] sm:$0xff]
      %v2286 = vld [vmem:[%s2104 + $0x5a8] sm:$0xff]
      %v2287 = vld [vmem:[%s2104 + $0x5b0] sm:$0xff]
      %v2288 = vld [vmem:[%s2104 + $0x5b8] sm:$0xff]
      %v2289 = vld [vmem:[%s2104 + $0x5c0] sm:$0xff]
      %v2290 = vld [vmem:[%s2104 + $0x5c8] sm:$0xff]
      %v2291 = vld [vmem:[%s2104 + $0x5d0] sm:$0xff]
      %v2292 = vld [vmem:[%s2104 + $0x5d8] sm:$0xff]
      %v2293 = vld [vmem:[%s2104 + $0x5e0] sm:$0xff]
      %v2294 = vld [vmem:[%s2104 + $0x5e8] sm:$0xff]
      %v2295 = vld [vmem:[%s2104 + $0x5f0] sm:$0xff]
      %v2296 = vld [vmem:[%s2104 + $0x5f8] sm:$0xff]
      %2297 = vst [vmem:[#allocation1] ss:$4 sm:$0xff] %v2010
      %s2298 = scalar_lea.vmem [#allocation1], 1
      %2299 = vst [vmem:[%s2298] ss:$4 sm:$0xff] %v2015
      %s2300 = scalar_lea.vmem [#allocation1], 2
      %2301 = vst [vmem:[%s2300] ss:$4 sm:$0xff] %v2021
      %s2302 = scalar_lea.vmem [#allocation1], 3
      %2303 = vst [vmem:[%s2302] ss:$4 sm:$0xff] %v2026
      %s2304 = scalar_lea.vmem [#allocation1], 32
      %2305 = vst [vmem:[%s2304] ss:$4 sm:$0xff] %v2011
      %s2306 = scalar_lea.vmem [#allocation1], 33
      %2307 = vst [vmem:[%s2306] ss:$4 sm:$0xff] %v2017
      %s2308 = scalar_lea.vmem [#allocation1], 34
      %2309 = vst [vmem:[%s2308] ss:$4 sm:$0xff] %v2023
      %s2310 = scalar_lea.vmem [#allocation1], 35
      %2311 = vst [vmem:[%s2310] ss:$4 sm:$0xff] %v2027
      %v2312 = vld.sshfl [vmem:[#allocation1] sm:$0xff pattern:$0x73625140]
      %v2313 = vld.sshfl [vmem:[#allocation1 + $0x8] sm:$0xff pattern:$0x73625140]
      %v2314 = vld.sshfl [vmem:[#allocation1 + $0x10] sm:$0xff pattern:$0x73625140]
      %v2315 = vld.sshfl [vmem:[#allocation1 + $0x18] sm:$0xff pattern:$0x73625140]
      %v2316 = vld.sshfl [vmem:[#allocation1 + $0x20] sm:$0xff pattern:$0x73625140]
      %v2317 = vld.sshfl [vmem:[#allocation1 + $0x28] sm:$0xff pattern:$0x73625140]
      %2318 = vst [vmem:[#allocation1] ss:$4 sm:$0xff] %v2031
      %2319 = vst [vmem:[%s2298] ss:$4 sm:$0xff] %v2037
      %2320 = vst [vmem:[%s2300] ss:$4 sm:$0xff] %v2042
      %2321 = vst [vmem:[%s2302] ss:$4 sm:$0xff] %v2047
      %2322 = vst [vmem:[%s2304] ss:$4 sm:$0xff] %v2033
      %2323 = vst [vmem:[%s2306] ss:$4 sm:$0xff] %v2039
      %2324 = vst [vmem:[%s2308] ss:$4 sm:$0xff] %v2043
      %2325 = vst [vmem:[%s2310] ss:$4 sm:$0xff] %v2049
      %v2326 = vld.sshfl [vmem:[#allocation1] sm:$0xff pattern:$0x73625140]
      %v2327 = vld.sshfl [vmem:[#allocation1 + $0x8] sm:$0xff pattern:$0x73625140]
      %v2328 = vld.sshfl [vmem:[#allocation1 + $0x10] sm:$0xff pattern:$0x73625140]
      %v2329 = vld.sshfl [vmem:[#allocation1 + $0x18] sm:$0xff pattern:$0x73625140]
      %v2330 = vld.sshfl [vmem:[#allocation1 + $0x20] sm:$0xff pattern:$0x73625140]
      %v2331 = vld.sshfl [vmem:[#allocation1 + $0x28] sm:$0xff pattern:$0x73625140]
      %2332 = vst [vmem:[#allocation1] ss:$4 sm:$0xff] %v2053
      %2333 = vst [vmem:[%s2298] ss:$4 sm:$0xff] %v2058
      %2334 = vst [vmem:[%s2300] ss:$4 sm:$0xff] %v2063
      %2335 = vst [vmem:[%s2302] ss:$4 sm:$0xff] %v2069
      %2336 = vst [vmem:[%s2304] ss:$4 sm:$0xff] %v2055
      %2337 = vst [vmem:[%s2306] ss:$4 sm:$0xff] %v2059
      %2338 = vst [vmem:[%s2308] ss:$4 sm:$0xff] %v2065
      %2339 = vst [vmem:[%s2310] ss:$4 sm:$0xff] %v2071
      %v2340 = vld.sshfl [vmem:[#allocation1] sm:$0xff pattern:$0x73625140]
      %v2341 = vld.sshfl [vmem:[#allocation1 + $0x8] sm:$0xff pattern:$0x73625140]
      %v2342 = vld.sshfl [vmem:[#allocation1 + $0x10] sm:$0xff pattern:$0x73625140]
      %v2343 = vld.sshfl [vmem:[#allocation1 + $0x18] sm:$0xff pattern:$0x73625140]
      %v2344 = vld.sshfl [vmem:[#allocation1 + $0x20] sm:$0xff pattern:$0x73625140]
      %v2345 = vld.sshfl [vmem:[#allocation1 + $0x28] sm:$0xff pattern:$0x73625140]
      %2346 = vst [vmem:[#allocation1] ss:$4 sm:$0xff] %v2074
      %2347 = vst [vmem:[%s2298] ss:$4 sm:$0xff] %v2079
      %2348 = vst [vmem:[%s2300] ss:$4 sm:$0xff] %v2085
      %2349 = vst [vmem:[%s2302] ss:$4 sm:$0xff] %v2090
      %2350 = vst [vmem:[%s2304] ss:$4 sm:$0xff] %v2075
      %2351 = vst [vmem:[%s2306] ss:$4 sm:$0xff] %v2081
      %2352 = vst [vmem:[%s2308] ss:$4 sm:$0xff] %v2087
      %2353 = vst [vmem:[%s2310] ss:$4 sm:$0xff] %v2091
      %v2354 = vld.sshfl [vmem:[#allocation1] sm:$0xff pattern:$0x73625140]
      %v2355 = vld.sshfl [vmem:[#allocation1 + $0x8] sm:$0xff pattern:$0x73625140]
      %v2356 = vld.sshfl [vmem:[#allocation1 + $0x10] sm:$0xff pattern:$0x73625140]
      %v2357 = vld.sshfl [vmem:[#allocation1 + $0x18] sm:$0xff pattern:$0x73625140]
      %v2358 = vld.sshfl [vmem:[#allocation1 + $0x20] sm:$0xff pattern:$0x73625140]
      %v2359 = vld.sshfl [vmem:[#allocation1 + $0x28] sm:$0xff pattern:$0x73625140]
      %2360 = vst [vmem:[#allocation1] ss:$4 sm:$0xff] %v2095
      %2361 = vst [vmem:[%s2298] ss:$4 sm:$0xff] %v2101
      %2362 = vst [vmem:[%s2304] ss:$4 sm:$0xff] %v2097
      %2363 = vst [vmem:[%s2306] ss:$4 sm:$0xff] %v2103
      %v2364 = vld.sshfl [vmem:[#allocation1] sm:$0xff pattern:$0x73625140]
      %v2365 = vld.sshfl [vmem:[#allocation1 + $0x8] sm:$0xff pattern:$0x73625140]
      %v2366 = vld.sshfl [vmem:[#allocation1 + $0x10] sm:$0xff pattern:$0x73625140]
      %v2367 = vld.sshfl [vmem:[#allocation1 + $0x18] sm:$0xff pattern:$0x73625140]
      %v2368 = vld.sshfl [vmem:[#allocation1 + $0x20] sm:$0xff pattern:$0x73625140]
      %v2369 = vld.sshfl [vmem:[#allocation1 + $0x28] sm:$0xff pattern:$0x73625140]
      %2400 = vmatpush.msra.mxu0 %v2135
      %2401 = vmatpush.msra.mxu0 %v2133
      %2402 = vmatpush.msra.mxu0 %v2131
      %2403 = vmatpush.msra.mxu0 %v2129
      %2404 = vmatpush.msra.mxu0 %v2127
      %2405 = vmatpush.msra.mxu0 %v2125
      %2406 = vmatpush.msra.mxu0 %v2123
      %2407 = vmatpush.msra.mxu0 %v2121
      %2408 = vmatpush.msra.mxu0 %v2119
      %2409 = vmatpush.msra.mxu0 %v2117
      %2410 = vmatpush.msra.mxu0 %v2115
      %2411 = vmatpush.msra.mxu0 %v2113
      %2412 = vmatpush.msra.mxu0 %v2111
      %2413 = vmatpush.msra.mxu0 %v2109
      %2414 = vmatpush.msra.mxu0 %v2107
      %2415 = vmatpush.msra.mxu0 %v2105
      %2416 = vmatmul.f32.gmra.mxu0 %v2312
      %v2417 = vpop.f32.mrf.mxu0
      %v2418 = vadd.f32 0.0, %v2417
      %2419 = vmatmul.f32.gmra.mxu0 %v2326
      %v2420 = vpop.f32.mrf.mxu0
      %v2421 = vadd.f32 0.0, %v2420
      %2422 = vmatmul.f32.gmra.mxu0 %v2340
      %v2423 = vpop.f32.mrf.mxu0
      %v2424 = vadd.f32 0.0, %v2423
      %2425 = vmatmul.f32.gmra.mxu0 %v2354
      %v2426 = vpop.f32.mrf.mxu0
      %v2427 = vadd.f32 0.0, %v2426
      %2428 = vmatmul.f32.gmra.mxu0 %v2364
      %v2429 = vpop.f32.mrf.mxu0
      %v2430 = vadd.f32 0.0, %v2429
      %2431 = vdwg.mxu0
      %2432 = vmatpush.msra.mxu0 %v2167
      %2433 = vmatpush.msra.mxu0 %v2165
      %2434 = vmatpush.msra.mxu0 %v2163
      %2435 = vmatpush.msra.mxu0 %v2161
      %2436 = vmatpush.msra.mxu0 %v2159
      %2437 = vmatpush.msra.mxu0 %v2157
      %2438 = vmatpush.msra.mxu0 %v2155
      %2439 = vmatpush.msra.mxu0 %v2153
      %2440 = vmatpush.msra.mxu0 %v2151
      %2441 = vmatpush.msra.mxu0 %v2149
      %2442 = vmatpush.msra.mxu0 %v2147
      %2443 = vmatpush.msra.mxu0 %v2145
      %2444 = vmatpush.msra.mxu0 %v2143
      %2445 = vmatpush.msra.mxu0 %v2141
      %2446 = vmatpush.msra.mxu0 %v2139
      %2447 = vmatpush.msra.mxu0 %v2137
      %2448 = vmatmul.f32.gmra.mxu0 %v2313
      %v2449 = vpop.f32.mrf.mxu0
      %v2450 = vadd.f32 %v2418, %v2449
      %2451 = vmatmul.f32.gmra.mxu0 %v2327
      %v2452 = vpop.f32.mrf.mxu0
      %v2453 = vadd.f32 %v2421, %v2452
      %2454 = vmatmul.f32.gmra.mxu0 %v2341
      %v2455 = vpop.f32.mrf.mxu0
      %v2456 = vadd.f32 %v2424, %v2455
      %2457 = vmatmul.f32.gmra.mxu0 %v2355
      %v2458 = vpop.f32.mrf.mxu0
      %v2459 = vadd.f32 %v2427, %v2458
      %2460 = vmatmul.f32.gmra.mxu0 %v2365
      %v2461 = vpop.f32.mrf.mxu0
      %v2462 = vadd.f32 %v2430, %v2461
      %2463 = vdwg.mxu0
      %2464 = vmatpush.msra.mxu0 %v2199
      %2465 = vmatpush.msra.mxu0 %v2197
      %2466 = vmatpush.msra.mxu0 %v2195
      %2467 = vmatpush.msra.mxu0 %v2193
      %2468 = vmatpush.msra.mxu0 %v2191
      %2469 = vmatpush.msra.mxu0 %v2189
      %2470 = vmatpush.msra.mxu0 %v2187
      %2471 = vmatpush.msra.mxu0 %v2185
      %2472 = vmatpush.msra.mxu0 %v2183
      %2473 = vmatpush.msra.mxu0 %v2181
      %2474 = vmatpush.msra.mxu0 %v2179
      %2475 = vmatpush.msra.mxu0 %v2177
      %2476 = vmatpush.msra.mxu0 %v2175
      %2477 = vmatpush.msra.mxu0 %v2173
      %2478 = vmatpush.msra.mxu0 %v2171
      %2479 = vmatpush.msra.mxu0 %v2169
      %2480 = vmatmul.f32.gmra.mxu0 %v2314
      %v2481 = vpop.f32.mrf.mxu0
      %v2482 = vadd.f32 %v2450, %v2481
      %2483 = vmatmul.f32.gmra.mxu0 %v2328
      %v2484 = vpop.f32.mrf.mxu0
      %v2485 = vadd.f32 %v2453, %v2484
      %2486 = vmatmul.f32.gmra.mxu0 %v2342
      %v2487 = vpop.f32.mrf.mxu0
      %v2488 = vadd.f32 %v2456, %v2487
      %2489 = vmatmul.f32.gmra.mxu0 %v2356
      %v2490 = vpop.f32.mrf.mxu0
      %v2491 = vadd.f32 %v2459, %v2490
      %2492 = vmatmul.f32.gmra.mxu0 %v2366
      %v2493 = vpop.f32.mrf.mxu0
      %v2494 = vadd.f32 %v2462, %v2493
      %2495 = vdwg.mxu0
      %2496 = vmatpush.msra.mxu0 %v2231
      %2497 = vmatpush.msra.mxu0 %v2229
      %2498 = vmatpush.msra.mxu0 %v2227
      %2499 = vmatpush.msra.mxu0 %v2225
      %2500 = vmatpush.msra.mxu0 %v2223
      %2501 = vmatpush.msra.mxu0 %v2221
      %2502 = vmatpush.msra.mxu0 %v2219
      %2503 = vmatpush.msra.mxu0 %v2217
      %2504 = vmatpush.msra.mxu0 %v2215
      %2505 = vmatpush.msra.mxu0 %v2213
      %2506 = vmatpush.msra.mxu0 %v2211
      %2507 = vmatpush.msra.mxu0 %v2209
      %2508 = vmatpush.msra.mxu0 %v2207
      %2509 = vmatpush.msra.mxu0 %v2205
      %2510 = vmatpush.msra.mxu0 %v2203
      %2511 = vmatpush.msra.mxu0 %v2201
      %2512 = vmatmul.f32.gmra.mxu0 %v2315
      %v2513 = vpop.f32.mrf.mxu0
      %v2514 = vadd.f32 %v2482, %v2513
      %2515 = vmatmul.f32.gmra.mxu0 %v2329
      %v2516 = vpop.f32.mrf.mxu0
      %v2517 = vadd.f32 %v2485, %v2516
      %2518 = vmatmul.f32.gmra.mxu0 %v2343
      %v2519 = vpop.f32.mrf.mxu0
      %v2520 = vadd.f32 %v2488, %v2519
      %2521 = vmatmul.f32.gmra.mxu0 %v2357
      %v2522 = vpop.f32.mrf.mxu0
      %v2523 = vadd.f32 %v2491, %v2522
      %2524 = vmatmul.f32.gmra.mxu0 %v2367
      %v2525 = vpop.f32.mrf.mxu0
      %v2526 = vadd.f32 %v2494, %v2525
      %2527 = vdwg.mxu0
      %2528 = vmatpush.msra.mxu0 %v2263
      %2529 = vmatpush.msra.mxu0 %v2261
      %2530 = vmatpush.msra.mxu0 %v2259
      %2531 = vmatpush.msra.mxu0 %v2257
      %2532 = vmatpush.msra.mxu0 %v2255
      %2533 = vmatpush.msra.mxu0 %v2253
      %2534 = vmatpush.msra.mxu0 %v2251
      %2535 = vmatpush.msra.mxu0 %v2249
      %2536 = vmatpush.msra.mxu0 %v2247
      %2537 = vmatpush.msra.mxu0 %v2245
      %2538 = vmatpush.msra.mxu0 %v2243
      %2539 = vmatpush.msra.mxu0 %v2241
      %2540 = vmatpush.msra.mxu0 %v2239
      %2541 = vmatpush.msra.mxu0 %v2237
      %2542 = vmatpush.msra.mxu0 %v2235
      %2543 = vmatpush.msra.mxu0 %v2233
      %2544 = vmatmul.f32.gmra.mxu0 %v2316
      %v2545 = vpop.f32.mrf.mxu0
      %v2546 = vadd.f32 %v2514, %v2545
      %2547 = vmatmul.f32.gmra.mxu0 %v2330
      %v2548 = vpop.f32.mrf.mxu0
      %v2549 = vadd.f32 %v2517, %v2548
      %2550 = vmatmul.f32.gmra.mxu0 %v2344
      %v2551 = vpop.f32.mrf.mxu0
      %v2552 = vadd.f32 %v2520, %v2551
      %2553 = vmatmul.f32.gmra.mxu0 %v2358
      %v2554 = vpop.f32.mrf.mxu0
      %v2555 = vadd.f32 %v2523, %v2554
      %2556 = vmatmul.f32.gmra.mxu0 %v2368
      %v2557 = vpop.f32.mrf.mxu0
      %v2558 = vadd.f32 %v2526, %v2557
      %2559 = vdwg.mxu0
      %2560 = vmatpush.msra.mxu0 %v2295
      %2561 = vmatpush.msra.mxu0 %v2293
      %2562 = vmatpush.msra.mxu0 %v2291
      %2563 = vmatpush.msra.mxu0 %v2289
      %2564 = vmatpush.msra.mxu0 %v2287
      %2565 = vmatpush.msra.mxu0 %v2285
      %2566 = vmatpush.msra.mxu0 %v2283
      %2567 = vmatpush.msra.mxu0 %v2281
      %2568 = vmatpush.msra.mxu0 %v2279
      %2569 = vmatpush.msra.mxu0 %v2277
      %2570 = vmatpush.msra.mxu0 %v2275
      %2571 = vmatpush.msra.mxu0 %v2273
      %2572 = vmatpush.msra.mxu0 %v2271
      %2573 = vmatpush.msra.mxu0 %v2269
      %2574 = vmatpush.msra.mxu0 %v2267
      %2575 = vmatpush.msra.mxu0 %v2265
      %2576 = vmatmul.f32.gmra.mxu0 %v2317
      %v2577 = vpop.f32.mrf.mxu0
      %v2578 = vadd.f32 %v2546, %v2577
      %2579 = vmatmul.f32.gmra.mxu0 %v2331
      %v2580 = vpop.f32.mrf.mxu0
      %v2581 = vadd.f32 %v2549, %v2580
      %2582 = vmatmul.f32.gmra.mxu0 %v2345
      %v2583 = vpop.f32.mrf.mxu0
      %v2584 = vadd.f32 %v2552, %v2583
      %2585 = vmatmul.f32.gmra.mxu0 %v2359
      %v2586 = vpop.f32.mrf.mxu0
      %v2587 = vadd.f32 %v2555, %v2586
      %2588 = vmatmul.f32.gmra.mxu0 %v2369
      %v2589 = vpop.f32.mrf.mxu0
      %v2590 = vadd.f32 %v2558, %v2589
      %2591 = vdwg.mxu0
      %2592 = vmatpush.msra.mxu0 %v2136
      %2593 = vmatpush.msra.mxu0 %v2134
      %2594 = vmatpush.msra.mxu0 %v2132
      %2595 = vmatpush.msra.mxu0 %v2130
      %2596 = vmatpush.msra.mxu0 %v2128
      %2597 = vmatpush.msra.mxu0 %v2126
      %2598 = vmatpush.msra.mxu0 %v2124
      %2599 = vmatpush.msra.mxu0 %v2122
      %2600 = vmatpush.msra.mxu0 %v2120
      %2601 = vmatpush.msra.mxu0 %v2118
      %2602 = vmatpush.msra.mxu0 %v2116
      %2603 = vmatpush.msra.mxu0 %v2114
      %2604 = vmatpush.msra.mxu0 %v2112
      %2605 = vmatpush.msra.mxu0 %v2110
      %2606 = vmatpush.msra.mxu0 %v2108
      %2607 = vmatpush.msra.mxu0 %v2106
      %2608 = vmatmul.f32.gmra.mxu0 %v2312
      %v2609 = vpop.f32.mrf.mxu0
      %v2610 = vadd.f32 0.0, %v2609
      %2611 = vmatmul.f32.gmra.mxu0 %v2326
      %v2612 = vpop.f32.mrf.mxu0
      %v2613 = vadd.f32 0.0, %v2612
      %2614 = vmatmul.f32.gmra.mxu0 %v2340
      %v2615 = vpop.f32.mrf.mxu0
      %v2616 = vadd.f32 0.0, %v2615
      %2617 = vmatmul.f32.gmra.mxu0 %v2354
      %v2618 = vpop.f32.mrf.mxu0
      %v2619 = vadd.f32 0.0, %v2618
      %2620 = vmatmul.f32.gmra.mxu0 %v2364
      %v2621 = vpop.f32.mrf.mxu0
      %v2622 = vadd.f32 0.0, %v2621
      %2623 = vdwg.mxu0
      %2624 = vmatpush.msra.mxu0 %v2168
      %2625 = vmatpush.msra.mxu0 %v2166
      %2626 = vmatpush.msra.mxu0 %v2164
      %2627 = vmatpush.msra.mxu0 %v2162
      %2628 = vmatpush.msra.mxu0 %v2160
      %2629 = vmatpush.msra.mxu0 %v2158
      %2630 = vmatpush.msra.mxu0 %v2156
      %2631 = vmatpush.msra.mxu0 %v2154
      %2632 = vmatpush.msra.mxu0 %v2152
      %2633 = vmatpush.msra.mxu0 %v2150
      %2634 = vmatpush.msra.mxu0 %v2148
      %2635 = vmatpush.msra.mxu0 %v2146
      %2636 = vmatpush.msra.mxu0 %v2144
      %2637 = vmatpush.msra.mxu0 %v2142
      %2638 = vmatpush.msra.mxu0 %v2140
      %2639 = vmatpush.msra.mxu0 %v2138
      %2640 = vmatmul.f32.gmra.mxu0 %v2313
      %v2641 = vpop.f32.mrf.mxu0
      %v2642 = vadd.f32 %v2610, %v2641
      %2643 = vmatmul.f32.gmra.mxu0 %v2327
      %v2644 = vpop.f32.mrf.mxu0
      %v2645 = vadd.f32 %v2613, %v2644
      %2646 = vmatmul.f32.gmra.mxu0 %v2341
      %v2647 = vpop.f32.mrf.mxu0
      %v2648 = vadd.f32 %v2616, %v2647
      %2649 = vmatmul.f32.gmra.mxu0 %v2355
      %v2650 = vpop.f32.mrf.mxu0
      %v2651 = vadd.f32 %v2619, %v2650
      %2652 = vmatmul.f32.gmra.mxu0 %v2365
      %v2653 = vpop.f32.mrf.mxu0
      %v2654 = vadd.f32 %v2622, %v2653
      %2655 = vdwg.mxu0
      %2656 = vmatpush.msra.mxu0 %v2200
      %2657 = vmatpush.msra.mxu0 %v2198
      %2658 = vmatpush.msra.mxu0 %v2196
      %2659 = vmatpush.msra.mxu0 %v2194
      %2660 = vmatpush.msra.mxu0 %v2192
      %2661 = vmatpush.msra.mxu0 %v2190
      %2662 = vmatpush.msra.mxu0 %v2188
      %2663 = vmatpush.msra.mxu0 %v2186
      %2664 = vmatpush.msra.mxu0 %v2184
      %2665 = vmatpush.msra.mxu0 %v2182
      %2666 = vmatpush.msra.mxu0 %v2180
      %2667 = vmatpush.msra.mxu0 %v2178
      %2668 = vmatpush.msra.mxu0 %v2176
      %2669 = vmatpush.msra.mxu0 %v2174
      %2670 = vmatpush.msra.mxu0 %v2172
      %2671 = vmatpush.msra.mxu0 %v2170
      %2672 = vmatmul.f32.gmra.mxu0 %v2314
      %v2673 = vpop.f32.mrf.mxu0
      %v2674 = vadd.f32 %v2642, %v2673
      %2675 = vmatmul.f32.gmra.mxu0 %v2328
      %v2676 = vpop.f32.mrf.mxu0
      %v2677 = vadd.f32 %v2645, %v2676
      %2678 = vmatmul.f32.gmra.mxu0 %v2342
      %v2679 = vpop.f32.mrf.mxu0
      %v2680 = vadd.f32 %v2648, %v2679
      %2681 = vmatmul.f32.gmra.mxu0 %v2356
      %v2682 = vpop.f32.mrf.mxu0
      %v2683 = vadd.f32 %v2651, %v2682
      %2684 = vmatmul.f32.gmra.mxu0 %v2366
      %v2685 = vpop.f32.mrf.mxu0
      %v2686 = vadd.f32 %v2654, %v2685
      %2687 = vdwg.mxu0
      %2688 = vmatpush.msra.mxu0 %v2232
      %2689 = vmatpush.msra.mxu0 %v2230
      %2690 = vmatpush.msra.mxu0 %v2228
      %2691 = vmatpush.msra.mxu0 %v2226
      %2692 = vmatpush.msra.mxu0 %v2224
      %2693 = vmatpush.msra.mxu0 %v2222
      %2694 = vmatpush.msra.mxu0 %v2220
      %2695 = vmatpush.msra.mxu0 %v2218
      %2696 = vmatpush.msra.mxu0 %v2216
      %2697 = vmatpush.msra.mxu0 %v2214
      %2698 = vmatpush.msra.mxu0 %v2212
      %2699 = vmatpush.msra.mxu0 %v2210
      %2700 = vmatpush.msra.mxu0 %v2208
      %2701 = vmatpush.msra.mxu0 %v2206
      %2702 = vmatpush.msra.mxu0 %v2204
      %2703 = vmatpush.msra.mxu0 %v2202
      %2704 = vmatmul.f32.gmra.mxu0 %v2315
      %v2705 = vpop.f32.mrf.mxu0
      %v2706 = vadd.f32 %v2674, %v2705
      %2707 = vmatmul.f32.gmra.mxu0 %v2329
      %v2708 = vpop.f32.mrf.mxu0
      %v2709 = vadd.f32 %v2677, %v2708
      %2710 = vmatmul.f32.gmra.mxu0 %v2343
      %v2711 = vpop.f32.mrf.mxu0
      %v2712 = vadd.f32 %v2680, %v2711
      %2713 = vmatmul.f32.gmra.mxu0 %v2357
      %v2714 = vpop.f32.mrf.mxu0
      %v2715 = vadd.f32 %v2683, %v2714
      %2716 = vmatmul.f32.gmra.mxu0 %v2367
      %v2717 = vpop.f32.mrf.mxu0
      %v2718 = vadd.f32 %v2686, %v2717
      %2719 = vdwg.mxu0
      %2720 = vmatpush.msra.mxu0 %v2264
      %2721 = vmatpush.msra.mxu0 %v2262
      %2722 = vmatpush.msra.mxu0 %v2260
      %2723 = vmatpush.msra.mxu0 %v2258
      %2724 = vmatpush.msra.mxu0 %v2256
      %2725 = vmatpush.msra.mxu0 %v2254
      %2726 = vmatpush.msra.mxu0 %v2252
      %2727 = vmatpush.msra.mxu0 %v2250
      %2728 = vmatpush.msra.mxu0 %v2248
      %2729 = vmatpush.msra.mxu0 %v2246
      %2730 = vmatpush.msra.mxu0 %v2244
      %2731 = vmatpush.msra.mxu0 %v2242
      %2732 = vmatpush.msra.mxu0 %v2240
      %2733 = vmatpush.msra.mxu0 %v2238
      %2734 = vmatpush.msra.mxu0 %v2236
      %2735 = vmatpush.msra.mxu0 %v2234
      %2736 = vmatmul.f32.gmra.mxu0 %v2316
      %v2737 = vpop.f32.mrf.mxu0
      %v2738 = vadd.f32 %v2706, %v2737
      %2739 = vmatmul.f32.gmra.mxu0 %v2330
      %v2740 = vpop.f32.mrf.mxu0
      %v2741 = vadd.f32 %v2709, %v2740
      %2742 = vmatmul.f32.gmra.mxu0 %v2344
      %v2743 = vpop.f32.mrf.mxu0
      %v2744 = vadd.f32 %v2712, %v2743
      %2745 = vmatmul.f32.gmra.mxu0 %v2358
      %v2746 = vpop.f32.mrf.mxu0
      %v2747 = vadd.f32 %v2715, %v2746
      %2748 = vmatmul.f32.gmra.mxu0 %v2368
      %v2749 = vpop.f32.mrf.mxu0
      %v2750 = vadd.f32 %v2718, %v2749
      %2751 = vdwg.mxu0
      %2752 = vmatpush.msra.mxu0 %v2296
      %2753 = vmatpush.msra.mxu0 %v2294
      %2754 = vmatpush.msra.mxu0 %v2292
      %2755 = vmatpush.msra.mxu0 %v2290
      %2756 = vmatpush.msra.mxu0 %v2288
      %2757 = vmatpush.msra.mxu0 %v2286
      %2758 = vmatpush.msra.mxu0 %v2284
      %2759 = vmatpush.msra.mxu0 %v2282
      %2760 = vmatpush.msra.mxu0 %v2280
      %2761 = vmatpush.msra.mxu0 %v2278
      %2762 = vmatpush.msra.mxu0 %v2276
      %2763 = vmatpush.msra.mxu0 %v2274
      %2764 = vmatpush.msra.mxu0 %v2272
      %2765 = vmatpush.msra.mxu0 %v2270
      %2766 = vmatpush.msra.mxu0 %v2268
      %2767 = vmatpush.msra.mxu0 %v2266
      %2768 = vmatmul.f32.gmra.mxu0 %v2317
      %v2769 = vpop.f32.mrf.mxu0
      %v2770 = vadd.f32 %v2738, %v2769
      %2771 = vmatmul.f32.gmra.mxu0 %v2331
      %v2772 = vpop.f32.mrf.mxu0
      %v2773 = vadd.f32 %v2741, %v2772
      %2774 = vmatmul.f32.gmra.mxu0 %v2345
      %v2775 = vpop.f32.mrf.mxu0
      %v2776 = vadd.f32 %v2744, %v2775
      %2777 = vmatmul.f32.gmra.mxu0 %v2359
      %v2778 = vpop.f32.mrf.mxu0
      %v2779 = vadd.f32 %v2747, %v2778
      %2780 = vmatmul.f32.gmra.mxu0 %v2369
      %v2781 = vpop.f32.mrf.mxu0
      %v2782 = vadd.f32 %v2750, %v2781
      %2783 = vdwg.mxu0
      %v2784 = vadd.f32 %v1726, %v2578
      %v2785 = vadd.f32 %v1918, %v2770
      %v2786 = vadd.f32 %v1729, %v2581
      %v2787 = vadd.f32 %v1921, %v2773
      %v2788 = vadd.f32 %v1732, %v2584
      %v2789 = vadd.f32 %v1924, %v2776
      %v2790 = vadd.f32 %v1735, %v2587
      %v2791 = vadd.f32 %v1927, %v2779
      %v2792 = vadd.f32 %v1738, %v2590
      %v2793 = vadd.f32 %v1930, %v2782
      %v2794 = vld [vmem:[%s2] sm:$0x3]
      %v2796 = vperm.slane %v2794, 0
      %v2797 = vperm.slane %v2794, 1
      %v2800 = vmul.f32 %v2784, %v2796
      %v2801 = vmul.f32 %v2785, %v2797
      %v2802 = vmul.f32 %v2786, %v2796
      %v2803 = vmul.f32 %v2787, %v2797
      %v2804 = vmul.f32 %v2788, %v2796
      %v2805 = vmul.f32 %v2789, %v2797
      %v2806 = vmul.f32 %v2790, %v2796
      %v2807 = vmul.f32 %v2791, %v2797
      %v2808 = vmul.f32 %v2792, %v2796
      %v2809 = vmul.f32 %v2793, %v2797
      %v2810 = vld [vmem:[%s3] sm:$0x3]
      %v2812 = vperm.slane %v2810, 0
      %v2813 = vperm.slane %v2810, 1
      %v2816 = vadd.f32 %v2800, %v2812
      %v2817 = vadd.f32 %v2801, %v2813
      %v2818 = vadd.f32 %v2802, %v2812
      %v2819 = vadd.f32 %v2803, %v2813
      %v2820 = vadd.f32 %v2804, %v2812
      %v2821 = vadd.f32 %v2805, %v2813
      %v2822 = vadd.f32 %v2806, %v2812
      %v2823 = vadd.f32 %v2807, %v2813
      %v2824 = vadd.f32 %v2808, %v2812
      %v2825 = vadd.f32 %v2809, %v2813
      %v2826 = vmax.f32 %v2816, 0.0
      %v2827 = vmax.f32 %v2817, 0.0
      %v2828 = vmax.f32 %v2818, 0.0
      %v2829 = vmax.f32 %v2819, 0.0
      %v2830 = vmax.f32 %v2820, 0.0
      %v2831 = vmax.f32 %v2821, 0.0
      %v2832 = vmax.f32 %v2822, 0.0
      %v2833 = vmax.f32 %v2823, 0.0
      %v2834 = vmax.f32 %v2824, 0.0
      %v2835 = vmax.f32 %v2825, 0.0
      %v2846 = vrot.slane %v2827, 6
      %v2847 = vrot.slane %v2829, 6
      %v2848 = vrot.slane %v2831, 6
      %v2849 = vrot.slane %v2833, 6
      %v2850 = vrot.slane %v2835, 6
      %v2851 = vsel %vm299, %v2826, %v2846
      %v2852 = vsel %vm306, %v2826, %v2846
      %v2853 = vrot.slane %v2852, 2
      %v2854 = vsel %vm301, %v2826, %v2846
      %v2855 = vrot.slane %v2854, 4
      %v2856 = vsel %vm308, %v2846, %v2826
      %v2857 = vrot.slane %v2856, 6
      %v2858 = vsel %vm299, %v2828, %v2847
      %v2859 = vsel %vm306, %v2828, %v2847
      %v2860 = vrot.slane %v2859, 2
      %v2861 = vsel %vm301, %v2828, %v2847
      %v2862 = vrot.slane %v2861, 4
      %v2863 = vsel %vm308, %v2847, %v2828
      %v2864 = vrot.slane %v2863, 6
      %v2865 = vsel %vm299, %v2830, %v2848
      %v2866 = vsel %vm306, %v2830, %v2848
      %v2867 = vrot.slane %v2866, 2
      %v2868 = vsel %vm301, %v2830, %v2848
      %v2869 = vrot.slane %v2868, 4
      %v2870 = vsel %vm308, %v2848, %v2830
      %v2871 = vrot.slane %v2870, 6
      %v2872 = vsel %vm299, %v2832, %v2849
      %v2873 = vsel %vm306, %v2832, %v2849
      %v2874 = vrot.slane %v2873, 2
      %v2875 = vsel %vm301, %v2832, %v2849
      %v2876 = vrot.slane %v2875, 4
      %v2877 = vsel %vm308, %v2849, %v2832
      %v2878 = vrot.slane %v2877, 6
      %v2879 = vsel %vm299, %v2834, %v2850
      %v2880 = vsel %vm306, %v2834, %v2850
      %v2881 = vrot.slane %v2880, 2
      %2882 = vst [vmem:[#allocation1] ss:$4 sm:$0xff] %v2851
      %s2883 = scalar_lea.vmem [#allocation1], 1
      %2884 = vst [vmem:[%s2883] ss:$4 sm:$0xff] %v2853
      %s2885 = scalar_lea.vmem [#allocation1], 2
      %2886 = vst [vmem:[%s2885] ss:$4 sm:$0xff] %v2855
      %v2887 = vld.sshfl [vmem:[#allocation1] sm:$0xff pattern:$0x73625140]
      %v2888 = vld.sshfl [vmem:[#allocation1 + $0x8] sm:$0xff pattern:$0x73625140]
      %s2889 = scalar_lea.vmem [#allocation1], 32
      %2890 = vst [vmem:[%s2889] ss:$4 sm:$0xff] %v2857
      %s2891 = scalar_lea.vmem [#allocation1], 33
      %2892 = vst [vmem:[%s2891] ss:$4 sm:$0xff] %v2858
      %s2893 = scalar_lea.vmem [#allocation1], 34
      %2894 = vst [vmem:[%s2893] ss:$4 sm:$0xff] %v2860
      %v2895 = vld.sshfl [vmem:[#allocation1 + $0x20] sm:$0xff pattern:$0x73625140]
      %v2896 = vld.sshfl [vmem:[#allocation1 + $0x28] sm:$0xff pattern:$0x73625140]
      %2897 = vst [vmem:[#allocation1] ss:$4 sm:$0xff] %v2862
      %2898 = vst [vmem:[%s2883] ss:$4 sm:$0xff] %v2864
      %2899 = vst [vmem:[%s2885] ss:$4 sm:$0xff] %v2865
      %v2900 = vld.sshfl [vmem:[#allocation1] sm:$0xff pattern:$0x73625140]
      %v2901 = vld.sshfl [vmem:[#allocation1 + $0x8] sm:$0xff pattern:$0x73625140]
      %2902 = vst [vmem:[%s2889] ss:$4 sm:$0xff] %v2867
      %2903 = vst [vmem:[%s2891] ss:$4 sm:$0xff] %v2869
      %2904 = vst [vmem:[%s2893] ss:$4 sm:$0xff] %v2871
      %v2905 = vld.sshfl [vmem:[#allocation1 + $0x20] sm:$0xff pattern:$0x73625140]
      %v2906 = vld.sshfl [vmem:[#allocation1 + $0x28] sm:$0xff pattern:$0x73625140]
      %2907 = vst [vmem:[#allocation1] ss:$4 sm:$0xff] %v2872
      %2908 = vst [vmem:[%s2883] ss:$4 sm:$0xff] %v2874
      %2909 = vst [vmem:[%s2885] ss:$4 sm:$0xff] %v2876
      %v2910 = vld.sshfl [vmem:[#allocation1] sm:$0xff pattern:$0x73625140]
      %v2911 = vld.sshfl [vmem:[#allocation1 + $0x8] sm:$0xff pattern:$0x73625140]
      %2912 = vst [vmem:[%s2889] ss:$4 sm:$0xff] %v2878
      %2913 = vst [vmem:[%s2891] ss:$4 sm:$0xff] %v2879
      %2914 = vst [vmem:[%s2893] ss:$4 sm:$0xff] %v2881
      %v2915 = vld.sshfl [vmem:[#allocation1 + $0x20] sm:$0xff pattern:$0x73625140]
      %v2916 = vld.sshfl [vmem:[#allocation1 + $0x28] sm:$0xff pattern:$0x73625140]
      %2929 = vst [vmem:[%s221] sm:$0x3f] %v2887
      %2930 = vst [vmem:[%s221 + $0x8] sm:$0x3f] %v2888
      %2931 = vst [vmem:[%s221 + $0x10] sm:$0x3f] %v2895
      %2932 = vst [vmem:[%s221 + $0x18] sm:$0x3f] %v2896
      %2933 = vst [vmem:[%s221 + $0x20] sm:$0x3f] %v2900
      %2934 = vst [vmem:[%s221 + $0x28] sm:$0x3f] %v2901
      %2935 = vst [vmem:[%s221 + $0x30] sm:$0x3f] %v2905
      %2936 = vst [vmem:[%s221 + $0x38] sm:$0x3f] %v2906
      %2937 = vst [vmem:[%s221 + $0x40] sm:$0x3f] %v2910
      %2938 = vst [vmem:[%s221 + $0x48] sm:$0x3f] %v2911
      %2939 = vst [vmem:[%s221 + $0x50] sm:$0x3f] %v2915
      %2940 = vst [vmem:[%s221 + $0x58] sm:$0x3f] %v2916
      %s2941 = smul.u32 6, %s20
      %p2942 = scmp.lt.s32.totalorder %s19, 1
      %s2943 = scalar_select %p2942, %s19, 1
      %p2944 = scmp.lt.s32.totalorder %s2941, 5
      %s2945 = scalar_select %p2944, %s2941, 5
      %s2946 = smul.addr %s2945, 2
      %s2947 = smul.addr %s2943, 12
      %s2948 = sadd.s32 %s2946, %s2947
      %s2949 = smul.addr %s2948, 8
      %s2950 = scalar_lea.vmem %s4, %s2949
      // Predicated region
      $region37: #{branch3_forward.5} parent=35 // pred_check
        %p2951 = pneg %p136
      $region38: #{branch3_forward.5} parent=35 // pred_check_branch
        %2953 = sbr.rel (%p2951) target = $region40
      $region39: #{branch3_forward.5} parent=35 // pred_region
        %s2954 = smul.u32 6, %s20
      $region40: #{branch3_forward.5} parent=35 // pred_fallthru
        _
    $region36: #{branch3_forward.5} parent=5 // pred_fallthru
      _
    %p2955 = scmp.le.s32.totalorder 2, %s10
    // Predicated region
    $region41: #{branch3_forward.5} parent=5 // pred_check
      %p2956 = pneg %p2955
    $region42: #{branch3_forward.5} parent=5 // pred_check_branch
      %2958 = sbr.rel (%p2956) target = $region44
    $region43: #{branch3_forward.5} parent=5 // pred_region
      %s2959 = ssub.s32 %s10, 2
      // Predicated region
      $region45: #{branch3_forward.5} parent=43 // pred_check
        %p2960 = pneg %p142
      $region46: #{branch3_forward.5} parent=43 // pred_check_branch
        %2962 = sbr.rel (%p2960) target = $region48
      $region47: #{branch3_forward.5} parent=43 // pred_region
        %s2963 = smul.u32 6, %s22
        %p2964 = scmp.lt.s32.totalorder %s21, 1
        %s2965 = scalar_select %p2964, %s21, 1
        %p2966 = scmp.lt.s32.totalorder %s2963, 5
        %s2967 = scalar_select %p2966, %s2963, 5
        %s2968 = smul.addr %s2967, 2
        %s2969 = smul.addr %s2965, 12
        %s2970 = sadd.s32 %s2968, %s2969
        %s2971 = smul.addr %s2970, 8
        %s2972 = scalar_lea.vmem %s4, %s2971
      $region48: #{branch3_forward.5} parent=43 // pred_fallthru
        _
    $region44: #{branch3_forward.5} parent=5 // pred_fallthru
      _
  $region6: #{branch3_forward.5} parent=0 // loop_footer
    %s14 = sadd.s32 1, %s10
  $region7: #{branch3_forward.5} parent=0 // loop_footer_branch
    %9 = sbr.rel target = $region3
  $region8: #{branch3_forward.5} parent=0 // loop_exit
    _

</llo_original>
